<compile_context>
chip_gen: v6e
topology: v6e:2x2x1
jax: 0.10.0
libtpu: 0.0.40
codegen_flags: <defaults>
</compile_context>

<pallas_src>
import functools

import numpy as np
import jax
import jax.numpy as jnp
from jax.experimental import pallas as pl
from jax.experimental.pallas import tpu as pltpu


# -----------------------------------------------------------------------------
# Fused Conv3d(3x3x3, pad=1) + GroupNorm + ReLU, one sample per grid step.
# Input/output layout: channels-first, spatially zero-padded, flattened volume
# (C, Lv) with Lv = (D+2)(H+2)(W+2).  Output is directly consumable as the next
# conv's padded input (junk/pad columns zeroed).
# -----------------------------------------------------------------------------
def _geom(D, H, W):
    Wp, Hp, Dp = W + 2, H + 2, D + 2
    plane = Hp * Wp
    first = plane + Wp + 1          # padded flat index of the first interior voxel
    Lv = Dp * plane
    Lc = Lv - 2 * first             # contiguous flat range covering all interior voxels
    return Wp, plane, first, Lv, Lc


def _interior_mask(D, H, W):
    """(1, Lc) f32 mask: 1.0 on interior voxels, 0.0 on halo 'junk' columns."""
    Wp, plane, first, Lv, Lc = _geom(D, H, W)
    p = np.arange(Lc) + first
    z = p // plane
    rem = p % plane
    y = rem // Wp
    x = rem % Wp
    inner = (z >= 1) & (z <= D) & (y >= 1) & (y <= H) & (x >= 1) & (x <= W)
    return jnp.asarray(inner.astype(np.float32).reshape(1, Lc))


def _make_fused_kernel(c_ins, C_out, G, D, H, W, out_dtype):
    Wp, plane, first, Lv, Lc = _geom(D, H, W)
    C_in = sum(c_ins)
    K = 27 * C_in
    Cg = C_out // G
    inv_cnt = 1.0 / float(Cg * D * H * W)
    n_in = len(c_ins)

    def kernel(*refs):
        # refs: x_refs (n_in x (1, c, Lv) bf16), w (C_out, K) bf16, b/gamma/beta
        #       (C_out, 1) f32, mask (1, Lc) f32, out (1, C_out, Lv), stage (K, Lc) bf16.
        x_refs = refs[:n_in]
        w_ref, b_ref, g_ref, be_ref, m_ref = refs[n_in:n_in + 5]
        o_ref = refs[n_in + 5]
        stage_ref = refs[n_in + 6]

        # --- Stage all 27 tap windows once into the (K, Lc) bf16 scratch. ---
        # (input already bf16 -> no per-tap cast; concat order = input order)
        for dz in range(3):
            for dy in range(3):
                for dx in range(3):
                    t = dz * 9 + dy * 3 + dx
                    off = dz * plane + dy * Wp + dx
                    row = t * C_in
                    for xi in range(n_in):
                        c = c_ins[xi]
                        stage_ref[row:row + c, :] = x_refs[xi][0, :, off:off + Lc]
                        row += c

        # --- One big MXU matmul: (C_out, 27*C_in) @ (27*C_in, Lc), f32 accum. ---
        y = jnp.dot(w_ref[...], stage_ref[...],
                    preferred_element_type=jnp.float32) + b_ref[...]

        # --- GroupNorm statistics over interior columns only. ---
        m = m_ref[...]                                    # (1, Lc)
        ym = y * m
        if Cg == 1:
            mean = jnp.sum(ym, axis=1, keepdims=True) * inv_cnt
        else:
            rg = jax.lax.broadcasted_iota(jnp.int32, (C_out, C_out), 0) // Cg
            cg = jax.lax.broadcasted_iota(jnp.int32, (C_out, C_out), 1) // Cg
            agg = (rg == cg).astype(jnp.float32)          # same-group aggregation
            mean = jnp.sum(jnp.dot(agg, ym, preferred_element_type=jnp.float32),
                           axis=1, keepdims=True) * inv_cnt
        xc = y - mean
        sq = xc * xc * m
        if Cg == 1:
            var = jnp.sum(sq, axis=1, keepdims=True) * inv_cnt
        else:
            var = jnp.sum(jnp.dot(agg, sq, preferred_element_type=jnp.float32),
                          axis=1, keepdims=True) * inv_cnt

        out = xc * jax.lax.rsqrt(var + 1e-5) * g_ref[...] + be_ref[...]
        out = jnp.maximum(out, 0.0) * m                   # ReLU + zero halo columns

        # --- Store as a padded flat volume (next conv consumes it directly). ---
        zpad = jnp.zeros((C_out, first), out_dtype)
        o_ref[0, :, 0:first] = zpad
        o_ref[0, :, first:first + Lc] = out.astype(out_dtype)
        o_ref[0, :, first + Lc:Lv] = zpad

    return kernel, Lv, Lc


def fused_conv_gn_relu(x_flats, weight, bias, gamma, beta, num_groups, spatial,
                       out_dtype):
    """x_flats: list of (N, c_i, Lv) bf16 padded-flat activations (channel-concat order)."""
    D, H, W = spatial
    c_ins = tuple(int(x.shape[1]) for x in x_flats)
    N = x_flats[0].shape[0]
    C_out = weight.shape[0]
    assert weight.shape[1] == sum(c_ins)
    K = 27 * sum(c_ins)

    kernel, Lv, Lc = _make_fused_kernel(c_ins, C_out, num_groups, D, H, W, out_dtype)

    # (C_out, C_in, 3,3,3) -> (C_out, 27*C_in); K index = tap*C_in + in_channel,
    # in_channel ordering matches the (never materialized) channel concat.
    w2 = (jnp.transpose(weight, (0, 2, 3, 4, 1))
          .reshape(C_out, K).astype(jnp.bfloat16))
    b2 = bias.reshape(C_out, 1).astype(jnp.float32)
    g2 = gamma.reshape(C_out, 1).astype(jnp.float32)
    be2 = beta.reshape(C_out, 1).astype(jnp.float32)
    mask = _interior_mask(D, H, W)

    in_specs = [pl.BlockSpec((1, c, Lv), lambda n: (n, 0, 0)) for c in c_ins]
    in_specs += [
        pl.BlockSpec((C_out, K), lambda n: (0, 0)),
        pl.BlockSpec((C_out, 1), lambda n: (0, 0)),
        pl.BlockSpec((C_out, 1), lambda n: (0, 0)),
        pl.BlockSpec((C_out, 1), lambda n: (0, 0)),
        pl.BlockSpec((1, Lc), lambda n: (0, 0)),
    ]

    return pl.pallas_call(
        kernel,
        out_shape=jax.ShapeDtypeStruct((N, C_out, Lv), out_dtype),
        grid=(N,),
        in_specs=in_specs,
        out_specs=pl.BlockSpec((1, C_out, Lv), lambda n: (n, 0, 0)),
        scratch_shapes=[pltpu.VMEM((K, Lc), jnp.bfloat16)],
        compiler_params=pltpu.CompilerParams(
            dimension_semantics=("parallel",),
            vmem_limit_bytes=48 * 1024 * 1024,
        ),
    )(*x_flats, w2, b2, g2, be2, mask)


# -----------------------------------------------------------------------------
# Glue (plain JAX): trilinear upsample (align_corners=True), pad-to-match,
# bf16 pad+flatten (single cast).
# -----------------------------------------------------------------------------
def upsample_trilinear_align_corners(x, scale=2):
    """x: (N, C, D, H, W) -> (N, C, sD, sH, sW)."""
    def interp_axis(x, axis, out_size):
        in_size = x.shape[axis]
        if in_size == 1:
            return jnp.repeat(x, out_size, axis=axis)
        pos = jnp.arange(out_size, dtype=jnp.float32) * (in_size - 1) / (out_size - 1)
        lo = jnp.floor(pos).astype(jnp.int32)
        hi = jnp.minimum(lo + 1, in_size - 1)
        w = (pos - lo.astype(jnp.float32)).astype(x.dtype)
        x_lo = jnp.take(x, lo, axis=axis)
        x_hi = jnp.take(x, hi, axis=axis)
        shape = [1] * x.ndim
        shape[axis] = out_size
        w = w.reshape(shape)
        return x_lo * (1 - w) + x_hi * w

    x = interp_axis(x, 2, x.shape[2] * scale)
    x = interp_axis(x, 3, x.shape[3] * scale)
    x = interp_axis(x, 4, x.shape[4] * scale)
    return x


def pad_to_match(x1, x2):
    """Mirror F.pad(x1, [dX//2, dX-dX//2, dY//2, dY-dY//2, dZ//2, dZ-dZ//2])."""
    dZ = x2.shape[2] - x1.shape[2]
    dY = x2.shape[3] - x1.shape[3]
    dX = x2.shape[4] - x1.shape[4]
    return jnp.pad(
        x1,
        ((0, 0), (0, 0),
         (dZ // 2, dZ - dZ // 2),
         (dY // 2, dY - dY // 2),
         (dX // 2, dX - dX // 2)),
    )


def _pad_flatten_bf16(x):
    """(N, C, D, H, W) f32 -> (N, C, (D+2)(H+2)(W+2)) bf16 (cast exactly once)."""
    N, C, D, H, W = x.shape
    xp = jnp.pad(x.astype(jnp.bfloat16), ((0, 0), (0, 0), (1, 1), (1, 1), (1, 1)))
    return xp.reshape(N, C, (D + 2) * (H + 2) * (W + 2))


# -----------------------------------------------------------------------------
# Up module (trilinear=True path)
# -----------------------------------------------------------------------------
def init_up_params(key, in_channels, out_channels, num_groups=8):
    k1, k2, k3, k4 = jax.random.split(key, 4)
    fan1 = in_channels * 27
    fan2 = out_channels * 27
    return {
        "conv1_w": jax.random.normal(k1, (out_channels, in_channels, 3, 3, 3),
                                     jnp.float32) / jnp.sqrt(fan1),
        "conv1_b": 0.01 * jax.random.normal(k2, (out_channels,), jnp.float32),
        "gn1_gamma": jnp.ones((out_channels,), jnp.float32),
        "gn1_beta": jnp.zeros((out_channels,), jnp.float32),
        "conv2_w": jax.random.normal(k3, (out_channels, out_channels, 3, 3, 3),
                                     jnp.float32) / jnp.sqrt(fan2),
        "conv2_b": 0.01 * jax.random.normal(k4, (out_channels,), jnp.float32),
        "gn2_gamma": jnp.ones((out_channels,), jnp.float32),
        "gn2_beta": jnp.zeros((out_channels,), jnp.float32),
        "num_groups": num_groups,
    }


def up_forward(params, x1, x2):
    """x1: low-res (N, Cin/2, D, H, W); x2: skip (N, Cin/2, 2D, 2H, 2W)."""
    x1 = upsample_trilinear_align_corners(x1, scale=2)
    x1 = pad_to_match(x1, x2)

    N, _, D, H, W = x2.shape
    g = params["num_groups"]
    C_out = params["conv1_w"].shape[0]

    # Padded-flat bf16 activations; the channel concat is never materialized:
    # both inputs feed conv1 separately and are stacked into the staged K dim.
    x2f = _pad_flatten_bf16(x2)
    x1f = _pad_flatten_bf16(x1)

    h = fused_conv_gn_relu([x2f, x1f],
                           params["conv1_w"], params["conv1_b"],
                           params["gn1_gamma"], params["gn1_beta"],
                           g, (D, H, W), out_dtype=jnp.bfloat16)
    o = fused_conv_gn_relu([h],
                           params["conv2_w"], params["conv2_b"],
                           params["gn2_gamma"], params["gn2_beta"],
                           g, (D, H, W), out_dtype=jnp.float32)

    # Single un-flatten + interior crop at the very end (padded flat -> NCDHW).
    o = o.reshape(N, C_out, D + 2, H + 2, W + 2)
    return o[:, :, 1:D + 1, 1:H + 1, 1:W + 1]


if __name__ == "__main__":
    key = jax.random.PRNGKey(0)
    kx1, kx2, kp = jax.random.split(key, 3)

    in_channels, out_channels = 16, 8
    N = 2
    # x1 comes from the deeper level (half spatial), x2 is the skip connection.
    x1 = jax.random.normal(kx1, (N, in_channels // 2, 4, 4, 4), jnp.float32)
    x2 = jax.random.normal(kx2, (N, in_channels // 2, 8, 8, 8), jnp.float32)

    params = init_up_params(kp, in_channels, out_channels)

    fwd = jax.jit(functools.partial(up_forward, params))
    out = fwd(x1, x2)
    jax.block_until_ready(out)

    assert out.shape == (N, out_channels, 8, 8, 8), out.shape
    assert out.dtype == jnp.float32
    print("KERNEL_OK")
</pallas_src>

<mosaic_0001>
module attributes {stable_mosaic.version = 11 : i64} {
  func.func @kernel(%arg0: i32, %arg1: memref<1x8x1000xbf16, #tpu.memory_space<vmem>>, %arg2: memref<1x8x1000xbf16, #tpu.memory_space<vmem>>, %arg3: memref<8x432xbf16, #tpu.memory_space<vmem>>, %arg4: memref<8x1xf32, #tpu.memory_space<vmem>>, %arg5: memref<8x1xf32, #tpu.memory_space<vmem>>, %arg6: memref<8x1xf32, #tpu.memory_space<vmem>>, %arg7: memref<1x778xf32, #tpu.memory_space<vmem>>, %arg8: memref<1x8x1000xbf16, #tpu.memory_space<vmem>>, %arg9: memref<432x778xbf16, #tpu.memory_space<vmem>>) attributes {dimension_semantics = [#tpu.dimension_semantics<parallel>], iteration_bounds = array<i64: 2>, scalar_prefetch = 0 : i64, scratch_operands = 1 : i64, tpu.core_type = #tpu.core_type<tc>, window_params = [{transform_indices = @transform_0, window_bounds = array<i64: 1, 8, 1000>}, {transform_indices = @transform_1, window_bounds = array<i64: 1, 8, 1000>}, {pipeline_mode = #tpu.pipeline_mode<synchronous>, transform_indices = @transform_2, window_bounds = array<i64: 8, 432>}, {pipeline_mode = #tpu.pipeline_mode<synchronous>, transform_indices = @transform_3, window_bounds = array<i64: 8, 1>}, {pipeline_mode = #tpu.pipeline_mode<synchronous>, transform_indices = @transform_4, window_bounds = array<i64: 8, 1>}, {pipeline_mode = #tpu.pipeline_mode<synchronous>, transform_indices = @transform_5, window_bounds = array<i64: 8, 1>}, {pipeline_mode = #tpu.pipeline_mode<synchronous>, transform_indices = @transform_6, window_bounds = array<i64: 1, 778>}, {transform_indices = @transform_7, window_bounds = array<i64: 1, 8, 1000>}]} {
    %c0 = arith.constant 0 : index
    %c0_0 = arith.constant 0 : index
    %c0_1 = arith.constant 0 : index
    %0 = vector.load %arg1[%c0, %c0_0, %c0_1] : memref<1x8x1000xbf16, #tpu.memory_space<vmem>>, vector<1x8x778xbf16>
    %1 = vector.shape_cast %0 : vector<1x8x778xbf16> to vector<8x778xbf16>
    %c0_2 = arith.constant 0 : index
    %c0_3 = arith.constant 0 : index
    %2 = vector.load %arg9[%c0_2, %c0_3] : memref<432x778xbf16, #tpu.memory_space<vmem>>, vector<8x778xbf16>
    tpu.vector_store %arg9[%c0_2, %c0_3], %1 {strides = array<i32>} : memref<432x778xbf16, #tpu.memory_space<vmem>>, vector<8x778xbf16>,
    %c0_4 = arith.constant 0 : index
    %c0_5 = arith.constant 0 : index
    %c0_6 = arith.constant 0 : index
    %3 = vector.load %arg2[%c0_4, %c0_5, %c0_6] : memref<1x8x1000xbf16, #tpu.memory_space<vmem>>, vector<1x8x778xbf16>
    %4 = vector.shape_cast %3 : vector<1x8x778xbf16> to vector<8x778xbf16>
    %c8 = arith.constant 8 : index
    %c0_7 = arith.constant 0 : index
    %5 = vector.load %arg9[%c8, %c0_7] : memref<432x778xbf16, #tpu.memory_space<vmem>>, vector<8x778xbf16>
    tpu.vector_store %arg9[%c8, %c0_7], %4 {strides = array<i32>} : memref<432x778xbf16, #tpu.memory_space<vmem>>, vector<8x778xbf16>,
    %c0_8 = arith.constant 0 : index
    %c0_9 = arith.constant 0 : index
    %c1 = arith.constant 1 : index
    %6 = vector.load %arg1[%c0_8, %c0_9, %c1] : memref<1x8x1000xbf16, #tpu.memory_space<vmem>>, vector<1x8x778xbf16>
    %7 = vector.shape_cast %6 : vector<1x8x778xbf16> to vector<8x778xbf16>
    %c16 = arith.constant 16 : index
    %c0_10 = arith.constant 0 : index
    %8 = vector.load %arg9[%c16, %c0_10] : memref<432x778xbf16, #tpu.memory_space<vmem>>, vector<8x778xbf16>
    tpu.vector_store %arg9[%c16, %c0_10], %7 {strides = array<i32>} : memref<432x778xbf16, #tpu.memory_space<vmem>>, vector<8x778xbf16>,
    %c0_11 = arith.constant 0 : index
    %c0_12 = arith.constant 0 : index
    %c1_13 = arith.constant 1 : index
    %9 = vector.load %arg2[%c0_11, %c0_12, %c1_13] : memref<1x8x1000xbf16, #tpu.memory_space<vmem>>, vector<1x8x778xbf16>
    %10 = vector.shape_cast %9 : vector<1x8x778xbf16> to vector<8x778xbf16>
    %c24 = arith.constant 24 : index
    %c0_14 = arith.constant 0 : index
    %11 = vector.load %arg9[%c24, %c0_14] : memref<432x778xbf16, #tpu.memory_space<vmem>>, vector<8x778xbf16>
    tpu.vector_store %arg9[%c24, %c0_14], %10 {strides = array<i32>} : memref<432x778xbf16, #tpu.memory_space<vmem>>, vector<8x778xbf16>,
    %c0_15 = arith.constant 0 : index
    %c0_16 = arith.constant 0 : index
    %c2 = arith.constant 2 : index
    %12 = vector.load %arg1[%c0_15, %c0_16, %c2] : memref<1x8x1000xbf16, #tpu.memory_space<vmem>>, vector<1x8x778xbf16>
    %13 = vector.shape_cast %12 : vector<1x8x778xbf16> to vector<8x778xbf16>
    %c32 = arith.constant 32 : index
    %c0_17 = arith.constant 0 : index
    %14 = vector.load %arg9[%c32, %c0_17] : memref<432x778xbf16, #tpu.memory_space<vmem>>, vector<8x778xbf16>
    tpu.vector_store %arg9[%c32, %c0_17], %13 {strides = array<i32>} : memref<432x778xbf16, #tpu.memory_space<vmem>>, vector<8x778xbf16>,
    %c0_18 = arith.constant 0 : index
    %c0_19 = arith.constant 0 : index
    %c2_20 = arith.constant 2 : index
    %15 = vector.load %arg2[%c0_18, %c0_19, %c2_20] : memref<1x8x1000xbf16, #tpu.memory_space<vmem>>, vector<1x8x778xbf16>
    %16 = vector.shape_cast %15 : vector<1x8x778xbf16> to vector<8x778xbf16>
    %c40 = arith.constant 40 : index
    %c0_21 = arith.constant 0 : index
    %17 = vector.load %arg9[%c40, %c0_21] : memref<432x778xbf16, #tpu.memory_space<vmem>>, vector<8x778xbf16>
    tpu.vector_store %arg9[%c40, %c0_21], %16 {strides = array<i32>} : memref<432x778xbf16, #tpu.memory_space<vmem>>, vector<8x778xbf16>,
    %c0_22 = arith.constant 0 : index
    %c0_23 = arith.constant 0 : index
    %c10 = arith.constant 10 : index
    %18 = vector.load %arg1[%c0_22, %c0_23, %c10] : memref<1x8x1000xbf16, #tpu.memory_space<vmem>>, vector<1x8x778xbf16>
    %19 = vector.shape_cast %18 : vector<1x8x778xbf16> to vector<8x778xbf16>
    %c48 = arith.constant 48 : index
    %c0_24 = arith.constant 0 : index
    %20 = vector.load %arg9[%c48, %c0_24] : memref<432x778xbf16, #tpu.memory_space<vmem>>, vector<8x778xbf16>
    tpu.vector_store %arg9[%c48, %c0_24], %19 {strides = array<i32>} : memref<432x778xbf16, #tpu.memory_space<vmem>>, vector<8x778xbf16>,
    %c0_25 = arith.constant 0 : index
    %c0_26 = arith.constant 0 : index
    %c10_27 = arith.constant 10 : index
    %21 = vector.load %arg2[%c0_25, %c0_26, %c10_27] : memref<1x8x1000xbf16, #tpu.memory_space<vmem>>, vector<1x8x778xbf16>
    %22 = vector.shape_cast %21 : vector<1x8x778xbf16> to vector<8x778xbf16>
    %c56 = arith.constant 56 : index
    %c0_28 = arith.constant 0 : index
    %23 = vector.load %arg9[%c56, %c0_28] : memref<432x778xbf16, #tpu.memory_space<vmem>>, vector<8x778xbf16>
    tpu.vector_store %arg9[%c56, %c0_28], %22 {strides = array<i32>} : memref<432x778xbf16, #tpu.memory_space<vmem>>, vector<8x778xbf16>,
    %c0_29 = arith.constant 0 : index
    %c0_30 = arith.constant 0 : index
    %c11 = arith.constant 11 : index
    %24 = vector.load %arg1[%c0_29, %c0_30, %c11] : memref<1x8x1000xbf16, #tpu.memory_space<vmem>>, vector<1x8x778xbf16>
    %25 = vector.shape_cast %24 : vector<1x8x778xbf16> to vector<8x778xbf16>
    %c64 = arith.constant 64 : index
    %c0_31 = arith.constant 0 : index
    %26 = vector.load %arg9[%c64, %c0_31] : memref<432x778xbf16, #tpu.memory_space<vmem>>, vector<8x778xbf16>
    tpu.vector_store %arg9[%c64, %c0_31], %25 {strides = array<i32>} : memref<432x778xbf16, #tpu.memory_space<vmem>>, vector<8x778xbf16>,
    %c0_32 = arith.constant 0 : index
    %c0_33 = arith.constant 0 : index
    %c11_34 = arith.constant 11 : index
    %27 = vector.load %arg2[%c0_32, %c0_33, %c11_34] : memref<1x8x1000xbf16, #tpu.memory_space<vmem>>, vector<1x8x778xbf16>
    %28 = vector.shape_cast %27 : vector<1x8x778xbf16> to vector<8x778xbf16>
    %c72 = arith.constant 72 : index
    %c0_35 = arith.constant 0 : index
    %29 = vector.load %arg9[%c72, %c0_35] : memref<432x778xbf16, #tpu.memory_space<vmem>>, vector<8x778xbf16>
    tpu.vector_store %arg9[%c72, %c0_35], %28 {strides = array<i32>} : memref<432x778xbf16, #tpu.memory_space<vmem>>, vector<8x778xbf16>,
    %c0_36 = arith.constant 0 : index
    %c0_37 = arith.constant 0 : index
    %c12 = arith.constant 12 : index
    %30 = vector.load %arg1[%c0_36, %c0_37, %c12] : memref<1x8x1000xbf16, #tpu.memory_space<vmem>>, vector<1x8x778xbf16>
    %31 = vector.shape_cast %30 : vector<1x8x778xbf16> to vector<8x778xbf16>
    %c80 = arith.constant 80 : index
    %c0_38 = arith.constant 0 : index
    %32 = vector.load %arg9[%c80, %c0_38] : memref<432x778xbf16, #tpu.memory_space<vmem>>, vector<8x778xbf16>
    tpu.vector_store %arg9[%c80, %c0_38], %31 {strides = array<i32>} : memref<432x778xbf16, #tpu.memory_space<vmem>>, vector<8x778xbf16>,
    %c0_39 = arith.constant 0 : index
    %c0_40 = arith.constant 0 : index
    %c12_41 = arith.constant 12 : index
    %33 = vector.load %arg2[%c0_39, %c0_40, %c12_41] : memref<1x8x1000xbf16, #tpu.memory_space<vmem>>, vector<1x8x778xbf16>
    %34 = vector.shape_cast %33 : vector<1x8x778xbf16> to vector<8x778xbf16>
    %c88 = arith.constant 88 : index
    %c0_42 = arith.constant 0 : index
    %35 = vector.load %arg9[%c88, %c0_42] : memref<432x778xbf16, #tpu.memory_space<vmem>>, vector<8x778xbf16>
    tpu.vector_store %arg9[%c88, %c0_42], %34 {strides = array<i32>} : memref<432x778xbf16, #tpu.memory_space<vmem>>, vector<8x778xbf16>,
    %c0_43 = arith.constant 0 : index
    %c0_44 = arith.constant 0 : index
    %c20 = arith.constant 20 : index
    %36 = vector.load %arg1[%c0_43, %c0_44, %c20] : memref<1x8x1000xbf16, #tpu.memory_space<vmem>>, vector<1x8x778xbf16>
    %37 = vector.shape_cast %36 : vector<1x8x778xbf16> to vector<8x778xbf16>
    %c96 = arith.constant 96 : index
    %c0_45 = arith.constant 0 : index
    %38 = vector.load %arg9[%c96, %c0_45] : memref<432x778xbf16, #tpu.memory_space<vmem>>, vector<8x778xbf16>
    tpu.vector_store %arg9[%c96, %c0_45], %37 {strides = array<i32>} : memref<432x778xbf16, #tpu.memory_space<vmem>>, vector<8x778xbf16>,
    %c0_46 = arith.constant 0 : index
    %c0_47 = arith.constant 0 : index
    %c20_48 = arith.constant 20 : index
    %39 = vector.load %arg2[%c0_46, %c0_47, %c20_48] : memref<1x8x1000xbf16, #tpu.memory_space<vmem>>, vector<1x8x778xbf16>
    %40 = vector.shape_cast %39 : vector<1x8x778xbf16> to vector<8x778xbf16>
    %c104 = arith.constant 104 : index
    %c0_49 = arith.constant 0 : index
    %41 = vector.load %arg9[%c104, %c0_49] : memref<432x778xbf16, #tpu.memory_space<vmem>>, vector<8x778xbf16>
    tpu.vector_store %arg9[%c104, %c0_49], %40 {strides = array<i32>} : memref<432x778xbf16, #tpu.memory_space<vmem>>, vector<8x778xbf16>,
    %c0_50 = arith.constant 0 : index
    %c0_51 = arith.constant 0 : index
    %c21 = arith.constant 21 : index
    %42 = vector.load %arg1[%c0_50, %c0_51, %c21] : memref<1x8x1000xbf16, #tpu.memory_space<vmem>>, vector<1x8x778xbf16>
    %43 = vector.shape_cast %42 : vector<1x8x778xbf16> to vector<8x778xbf16>
    %c112 = arith.constant 112 : index
    %c0_52 = arith.constant 0 : index
    %44 = vector.load %arg9[%c112, %c0_52] : memref<432x778xbf16, #tpu.memory_space<vmem>>, vector<8x778xbf16>
    tpu.vector_store %arg9[%c112, %c0_52], %43 {strides = array<i32>} : memref<432x778xbf16, #tpu.memory_space<vmem>>, vector<8x778xbf16>,
    %c0_53 = arith.constant 0 : index
    %c0_54 = arith.constant 0 : index
    %c21_55 = arith.constant 21 : index
    %45 = vector.load %arg2[%c0_53, %c0_54, %c21_55] : memref<1x8x1000xbf16, #tpu.memory_space<vmem>>, vector<1x8x778xbf16>
    %46 = vector.shape_cast %45 : vector<1x8x778xbf16> to vector<8x778xbf16>
    %c120 = arith.constant 120 : index
    %c0_56 = arith.constant 0 : index
    %47 = vector.load %arg9[%c120, %c0_56] : memref<432x778xbf16, #tpu.memory_space<vmem>>, vector<8x778xbf16>
    tpu.vector_store %arg9[%c120, %c0_56], %46 {strides = array<i32>} : memref<432x778xbf16, #tpu.memory_space<vmem>>, vector<8x778xbf16>,
    %c0_57 = arith.constant 0 : index
    %c0_58 = arith.constant 0 : index
    %c22 = arith.constant 22 : index
    %48 = vector.load %arg1[%c0_57, %c0_58, %c22] : memref<1x8x1000xbf16, #tpu.memory_space<vmem>>, vector<1x8x778xbf16>
    %49 = vector.shape_cast %48 : vector<1x8x778xbf16> to vector<8x778xbf16>
    %c128 = arith.constant 128 : index
    %c0_59 = arith.constant 0 : index
    %50 = vector.load %arg9[%c128, %c0_59] : memref<432x778xbf16, #tpu.memory_space<vmem>>, vector<8x778xbf16>
    tpu.vector_store %arg9[%c128, %c0_59], %49 {strides = array<i32>} : memref<432x778xbf16, #tpu.memory_space<vmem>>, vector<8x778xbf16>,
    %c0_60 = arith.constant 0 : index
    %c0_61 = arith.constant 0 : index
    %c22_62 = arith.constant 22 : index
    %51 = vector.load %arg2[%c0_60, %c0_61, %c22_62] : memref<1x8x1000xbf16, #tpu.memory_space<vmem>>, vector<1x8x778xbf16>
    %52 = vector.shape_cast %51 : vector<1x8x778xbf16> to vector<8x778xbf16>
    %c136 = arith.constant 136 : index
    %c0_63 = arith.constant 0 : index
    %53 = vector.load %arg9[%c136, %c0_63] : memref<432x778xbf16, #tpu.memory_space<vmem>>, vector<8x778xbf16>
    tpu.vector_store %arg9[%c136, %c0_63], %52 {strides = array<i32>} : memref<432x778xbf16, #tpu.memory_space<vmem>>, vector<8x778xbf16>,
    %c0_64 = arith.constant 0 : index
    %c0_65 = arith.constant 0 : index
    %c100 = arith.constant 100 : index
    %54 = vector.load %arg1[%c0_64, %c0_65, %c100] : memref<1x8x1000xbf16, #tpu.memory_space<vmem>>, vector<1x8x778xbf16>
    %55 = vector.shape_cast %54 : vector<1x8x778xbf16> to vector<8x778xbf16>
    %c144 = arith.constant 144 : index
    %c0_66 = arith.constant 0 : index
    %56 = vector.load %arg9[%c144, %c0_66] : memref<432x778xbf16, #tpu.memory_space<vmem>>, vector<8x778xbf16>
    tpu.vector_store %arg9[%c144, %c0_66], %55 {strides = array<i32>} : memref<432x778xbf16, #tpu.memory_space<vmem>>, vector<8x778xbf16>,
    %c0_67 = arith.constant 0 : index
    %c0_68 = arith.constant 0 : index
    %c100_69 = arith.constant 100 : index
    %57 = vector.load %arg2[%c0_67, %c0_68, %c100_69] : memref<1x8x1000xbf16, #tpu.memory_space<vmem>>, vector<1x8x778xbf16>
    %58 = vector.shape_cast %57 : vector<1x8x778xbf16> to vector<8x778xbf16>
    %c152 = arith.constant 152 : index
    %c0_70 = arith.constant 0 : index
    %59 = vector.load %arg9[%c152, %c0_70] : memref<432x778xbf16, #tpu.memory_space<vmem>>, vector<8x778xbf16>
    tpu.vector_store %arg9[%c152, %c0_70], %58 {strides = array<i32>} : memref<432x778xbf16, #tpu.memory_space<vmem>>, vector<8x778xbf16>,
    %c0_71 = arith.constant 0 : index
    %c0_72 = arith.constant 0 : index
    %c101 = arith.constant 101 : index
    %60 = vector.load %arg1[%c0_71, %c0_72, %c101] : memref<1x8x1000xbf16, #tpu.memory_space<vmem>>, vector<1x8x778xbf16>
    %61 = vector.shape_cast %60 : vector<1x8x778xbf16> to vector<8x778xbf16>
    %c160 = arith.constant 160 : index
    %c0_73 = arith.constant 0 : index
    %62 = vector.load %arg9[%c160, %c0_73] : memref<432x778xbf16, #tpu.memory_space<vmem>>, vector<8x778xbf16>
    tpu.vector_store %arg9[%c160, %c0_73], %61 {strides = array<i32>} : memref<432x778xbf16, #tpu.memory_space<vmem>>, vector<8x778xbf16>,
    %c0_74 = arith.constant 0 : index
    %c0_75 = arith.constant 0 : index
    %c101_76 = arith.constant 101 : index
    %63 = vector.load %arg2[%c0_74, %c0_75, %c101_76] : memref<1x8x1000xbf16, #tpu.memory_space<vmem>>, vector<1x8x778xbf16>
    %64 = vector.shape_cast %63 : vector<1x8x778xbf16> to vector<8x778xbf16>
    %c168 = arith.constant 168 : index
    %c0_77 = arith.constant 0 : index
    %65 = vector.load %arg9[%c168, %c0_77] : memref<432x778xbf16, #tpu.memory_space<vmem>>, vector<8x778xbf16>
    tpu.vector_store %arg9[%c168, %c0_77], %64 {strides = array<i32>} : memref<432x778xbf16, #tpu.memory_space<vmem>>, vector<8x778xbf16>,
    %c0_78 = arith.constant 0 : index
    %c0_79 = arith.constant 0 : index
    %c102 = arith.constant 102 : index
    %66 = vector.load %arg1[%c0_78, %c0_79, %c102] : memref<1x8x1000xbf16, #tpu.memory_space<vmem>>, vector<1x8x778xbf16>
    %67 = vector.shape_cast %66 : vector<1x8x778xbf16> to vector<8x778xbf16>
    %c176 = arith.constant 176 : index
    %c0_80 = arith.constant 0 : index
    %68 = vector.load %arg9[%c176, %c0_80] : memref<432x778xbf16, #tpu.memory_space<vmem>>, vector<8x778xbf16>
    tpu.vector_store %arg9[%c176, %c0_80], %67 {strides = array<i32>} : memref<432x778xbf16, #tpu.memory_space<vmem>>, vector<8x778xbf16>,
    %c0_81 = arith.constant 0 : index
    %c0_82 = arith.constant 0 : index
    %c102_83 = arith.constant 102 : index
    %69 = vector.load %arg2[%c0_81, %c0_82, %c102_83] : memref<1x8x1000xbf16, #tpu.memory_space<vmem>>, vector<1x8x778xbf16>
    %70 = vector.shape_cast %69 : vector<1x8x778xbf16> to vector<8x778xbf16>
    %c184 = arith.constant 184 : index
    %c0_84 = arith.constant 0 : index
    %71 = vector.load %arg9[%c184, %c0_84] : memref<432x778xbf16, #tpu.memory_space<vmem>>, vector<8x778xbf16>
    tpu.vector_store %arg9[%c184, %c0_84], %70 {strides = array<i32>} : memref<432x778xbf16, #tpu.memory_space<vmem>>, vector<8x778xbf16>,
    %c0_85 = arith.constant 0 : index
    %c0_86 = arith.constant 0 : index
    %c110 = arith.constant 110 : index
    %72 = vector.load %arg1[%c0_85, %c0_86, %c110] : memref<1x8x1000xbf16, #tpu.memory_space<vmem>>, vector<1x8x778xbf16>
    %73 = vector.shape_cast %72 : vector<1x8x778xbf16> to vector<8x778xbf16>
    %c192 = arith.constant 192 : index
    %c0_87 = arith.constant 0 : index
    %74 = vector.load %arg9[%c192, %c0_87] : memref<432x778xbf16, #tpu.memory_space<vmem>>, vector<8x778xbf16>
    tpu.vector_store %arg9[%c192, %c0_87], %73 {strides = array<i32>} : memref<432x778xbf16, #tpu.memory_space<vmem>>, vector<8x778xbf16>,
    %c0_88 = arith.constant 0 : index
    %c0_89 = arith.constant 0 : index
    %c110_90 = arith.constant 110 : index
    %75 = vector.load %arg2[%c0_88, %c0_89, %c110_90] : memref<1x8x1000xbf16, #tpu.memory_space<vmem>>, vector<1x8x778xbf16>
    %76 = vector.shape_cast %75 : vector<1x8x778xbf16> to vector<8x778xbf16>
    %c200 = arith.constant 200 : index
    %c0_91 = arith.constant 0 : index
    %77 = vector.load %arg9[%c200, %c0_91] : memref<432x778xbf16, #tpu.memory_space<vmem>>, vector<8x778xbf16>
    tpu.vector_store %arg9[%c200, %c0_91], %76 {strides = array<i32>} : memref<432x778xbf16, #tpu.memory_space<vmem>>, vector<8x778xbf16>,
    %c0_92 = arith.constant 0 : index
    %c0_93 = arith.constant 0 : index
    %c111 = arith.constant 111 : index
    %78 = vector.load %arg1[%c0_92, %c0_93, %c111] : memref<1x8x1000xbf16, #tpu.memory_space<vmem>>, vector<1x8x778xbf16>
    %79 = vector.shape_cast %78 : vector<1x8x778xbf16> to vector<8x778xbf16>
    %c208 = arith.constant 208 : index
    %c0_94 = arith.constant 0 : index
    %80 = vector.load %arg9[%c208, %c0_94] : memref<432x778xbf16, #tpu.memory_space<vmem>>, vector<8x778xbf16>
    tpu.vector_store %arg9[%c208, %c0_94], %79 {strides = array<i32>} : memref<432x778xbf16, #tpu.memory_space<vmem>>, vector<8x778xbf16>,
    %c0_95 = arith.constant 0 : index
    %c0_96 = arith.constant 0 : index
    %c111_97 = arith.constant 111 : index
    %81 = vector.load %arg2[%c0_95, %c0_96, %c111_97] : memref<1x8x1000xbf16, #tpu.memory_space<vmem>>, vector<1x8x778xbf16>
    %82 = vector.shape_cast %81 : vector<1x8x778xbf16> to vector<8x778xbf16>
    %c216 = arith.constant 216 : index
    %c0_98 = arith.constant 0 : index
    %83 = vector.load %arg9[%c216, %c0_98] : memref<432x778xbf16, #tpu.memory_space<vmem>>, vector<8x778xbf16>
    tpu.vector_store %arg9[%c216, %c0_98], %82 {strides = array<i32>} : memref<432x778xbf16, #tpu.memory_space<vmem>>, vector<8x778xbf16>,
    %c0_99 = arith.constant 0 : index
    %c0_100 = arith.constant 0 : index
    %c112_101 = arith.constant 112 : index
    %84 = vector.load %arg1[%c0_99, %c0_100, %c112_101] : memref<1x8x1000xbf16, #tpu.memory_space<vmem>>, vector<1x8x778xbf16>
    %85 = vector.shape_cast %84 : vector<1x8x778xbf16> to vector<8x778xbf16>
    %c224 = arith.constant 224 : index
    %c0_102 = arith.constant 0 : index
    %86 = vector.load %arg9[%c224, %c0_102] : memref<432x778xbf16, #tpu.memory_space<vmem>>, vector<8x778xbf16>
    tpu.vector_store %arg9[%c224, %c0_102], %85 {strides = array<i32>} : memref<432x778xbf16, #tpu.memory_space<vmem>>, vector<8x778xbf16>,
    %c0_103 = arith.constant 0 : index
    %c0_104 = arith.constant 0 : index
    %c112_105 = arith.constant 112 : index
    %87 = vector.load %arg2[%c0_103, %c0_104, %c112_105] : memref<1x8x1000xbf16, #tpu.memory_space<vmem>>, vector<1x8x778xbf16>
    %88 = vector.shape_cast %87 : vector<1x8x778xbf16> to vector<8x778xbf16>
    %c232 = arith.constant 232 : index
    %c0_106 = arith.constant 0 : index
    %89 = vector.load %arg9[%c232, %c0_106] : memref<432x778xbf16, #tpu.memory_space<vmem>>, vector<8x778xbf16>
    tpu.vector_store %arg9[%c232, %c0_106], %88 {strides = array<i32>} : memref<432x778xbf16, #tpu.memory_space<vmem>>, vector<8x778xbf16>,
    %c0_107 = arith.constant 0 : index
    %c0_108 = arith.constant 0 : index
    %c120_109 = arith.constant 120 : index
    %90 = vector.load %arg1[%c0_107, %c0_108, %c120_109] : memref<1x8x1000xbf16, #tpu.memory_space<vmem>>, vector<1x8x778xbf16>
    %91 = vector.shape_cast %90 : vector<1x8x778xbf16> to vector<8x778xbf16>
    %c240 = arith.constant 240 : index
    %c0_110 = arith.constant 0 : index
    %92 = vector.load %arg9[%c240, %c0_110] : memref<432x778xbf16, #tpu.memory_space<vmem>>, vector<8x778xbf16>
    tpu.vector_store %arg9[%c240, %c0_110], %91 {strides = array<i32>} : memref<432x778xbf16, #tpu.memory_space<vmem>>, vector<8x778xbf16>,
    %c0_111 = arith.constant 0 : index
    %c0_112 = arith.constant 0 : index
    %c120_113 = arith.constant 120 : index
    %93 = vector.load %arg2[%c0_111, %c0_112, %c120_113] : memref<1x8x1000xbf16, #tpu.memory_space<vmem>>, vector<1x8x778xbf16>
    %94 = vector.shape_cast %93 : vector<1x8x778xbf16> to vector<8x778xbf16>
    %c248 = arith.constant 248 : index
    %c0_114 = arith.constant 0 : index
    %95 = vector.load %arg9[%c248, %c0_114] : memref<432x778xbf16, #tpu.memory_space<vmem>>, vector<8x778xbf16>
    tpu.vector_store %arg9[%c248, %c0_114], %94 {strides = array<i32>} : memref<432x778xbf16, #tpu.memory_space<vmem>>, vector<8x778xbf16>,
    %c0_115 = arith.constant 0 : index
    %c0_116 = arith.constant 0 : index
    %c121 = arith.constant 121 : index
    %96 = vector.load %arg1[%c0_115, %c0_116, %c121] : memref<1x8x1000xbf16, #tpu.memory_space<vmem>>, vector<1x8x778xbf16>
    %97 = vector.shape_cast %96 : vector<1x8x778xbf16> to vector<8x778xbf16>
    %c256 = arith.constant 256 : index
    %c0_117 = arith.constant 0 : index
    %98 = vector.load %arg9[%c256, %c0_117] : memref<432x778xbf16, #tpu.memory_space<vmem>>, vector<8x778xbf16>
    tpu.vector_store %arg9[%c256, %c0_117], %97 {strides = array<i32>} : memref<432x778xbf16, #tpu.memory_space<vmem>>, vector<8x778xbf16>,
    %c0_118 = arith.constant 0 : index
    %c0_119 = arith.constant 0 : index
    %c121_120 = arith.constant 121 : index
    %99 = vector.load %arg2[%c0_118, %c0_119, %c121_120] : memref<1x8x1000xbf16, #tpu.memory_space<vmem>>, vector<1x8x778xbf16>
    %100 = vector.shape_cast %99 : vector<1x8x778xbf16> to vector<8x778xbf16>
    %c264 = arith.constant 264 : index
    %c0_121 = arith.constant 0 : index
    %101 = vector.load %arg9[%c264, %c0_121] : memref<432x778xbf16, #tpu.memory_space<vmem>>, vector<8x778xbf16>
    tpu.vector_store %arg9[%c264, %c0_121], %100 {strides = array<i32>} : memref<432x778xbf16, #tpu.memory_space<vmem>>, vector<8x778xbf16>,
    %c0_122 = arith.constant 0 : index
    %c0_123 = arith.constant 0 : index
    %c122 = arith.constant 122 : index
    %102 = vector.load %arg1[%c0_122, %c0_123, %c122] : memref<1x8x1000xbf16, #tpu.memory_space<vmem>>, vector<1x8x778xbf16>
    %103 = vector.shape_cast %102 : vector<1x8x778xbf16> to vector<8x778xbf16>
    %c272 = arith.constant 272 : index
    %c0_124 = arith.constant 0 : index
    %104 = vector.load %arg9[%c272, %c0_124] : memref<432x778xbf16, #tpu.memory_space<vmem>>, vector<8x778xbf16>
    tpu.vector_store %arg9[%c272, %c0_124], %103 {strides = array<i32>} : memref<432x778xbf16, #tpu.memory_space<vmem>>, vector<8x778xbf16>,
    %c0_125 = arith.constant 0 : index
    %c0_126 = arith.constant 0 : index
    %c122_127 = arith.constant 122 : index
    %105 = vector.load %arg2[%c0_125, %c0_126, %c122_127] : memref<1x8x1000xbf16, #tpu.memory_space<vmem>>, vector<1x8x778xbf16>
    %106 = vector.shape_cast %105 : vector<1x8x778xbf16> to vector<8x778xbf16>
    %c280 = arith.constant 280 : index
    %c0_128 = arith.constant 0 : index
    %107 = vector.load %arg9[%c280, %c0_128] : memref<432x778xbf16, #tpu.memory_space<vmem>>, vector<8x778xbf16>
    tpu.vector_store %arg9[%c280, %c0_128], %106 {strides = array<i32>} : memref<432x778xbf16, #tpu.memory_space<vmem>>, vector<8x778xbf16>,
    %c0_129 = arith.constant 0 : index
    %c0_130 = arith.constant 0 : index
    %c200_131 = arith.constant 200 : index
    %108 = vector.load %arg1[%c0_129, %c0_130, %c200_131] : memref<1x8x1000xbf16, #tpu.memory_space<vmem>>, vector<1x8x778xbf16>
    %109 = vector.shape_cast %108 : vector<1x8x778xbf16> to vector<8x778xbf16>
    %c288 = arith.constant 288 : index
    %c0_132 = arith.constant 0 : index
    %110 = vector.load %arg9[%c288, %c0_132] : memref<432x778xbf16, #tpu.memory_space<vmem>>, vector<8x778xbf16>
    tpu.vector_store %arg9[%c288, %c0_132], %109 {strides = array<i32>} : memref<432x778xbf16, #tpu.memory_space<vmem>>, vector<8x778xbf16>,
    %c0_133 = arith.constant 0 : index
    %c0_134 = arith.constant 0 : index
    %c200_135 = arith.constant 200 : index
    %111 = vector.load %arg2[%c0_133, %c0_134, %c200_135] : memref<1x8x1000xbf16, #tpu.memory_space<vmem>>, vector<1x8x778xbf16>
    %112 = vector.shape_cast %111 : vector<1x8x778xbf16> to vector<8x778xbf16>
    %c296 = arith.constant 296 : index
    %c0_136 = arith.constant 0 : index
    %113 = vector.load %arg9[%c296, %c0_136] : memref<432x778xbf16, #tpu.memory_space<vmem>>, vector<8x778xbf16>
    tpu.vector_store %arg9[%c296, %c0_136], %112 {strides = array<i32>} : memref<432x778xbf16, #tpu.memory_space<vmem>>, vector<8x778xbf16>,
    %c0_137 = arith.constant 0 : index
    %c0_138 = arith.constant 0 : index
    %c201 = arith.constant 201 : index
    %114 = vector.load %arg1[%c0_137, %c0_138, %c201] : memref<1x8x1000xbf16, #tpu.memory_space<vmem>>, vector<1x8x778xbf16>
    %115 = vector.shape_cast %114 : vector<1x8x778xbf16> to vector<8x778xbf16>
    %c304 = arith.constant 304 : index
    %c0_139 = arith.constant 0 : index
    %116 = vector.load %arg9[%c304, %c0_139] : memref<432x778xbf16, #tpu.memory_space<vmem>>, vector<8x778xbf16>
    tpu.vector_store %arg9[%c304, %c0_139], %115 {strides = array<i32>} : memref<432x778xbf16, #tpu.memory_space<vmem>>, vector<8x778xbf16>,
    %c0_140 = arith.constant 0 : index
    %c0_141 = arith.constant 0 : index
    %c201_142 = arith.constant 201 : index
    %117 = vector.load %arg2[%c0_140, %c0_141, %c201_142] : memref<1x8x1000xbf16, #tpu.memory_space<vmem>>, vector<1x8x778xbf16>
    %118 = vector.shape_cast %117 : vector<1x8x778xbf16> to vector<8x778xbf16>
    %c312 = arith.constant 312 : index
    %c0_143 = arith.constant 0 : index
    %119 = vector.load %arg9[%c312, %c0_143] : memref<432x778xbf16, #tpu.memory_space<vmem>>, vector<8x778xbf16>
    tpu.vector_store %arg9[%c312, %c0_143], %118 {strides = array<i32>} : memref<432x778xbf16, #tpu.memory_space<vmem>>, vector<8x778xbf16>,
    %c0_144 = arith.constant 0 : index
    %c0_145 = arith.constant 0 : index
    %c202 = arith.constant 202 : index
    %120 = vector.load %arg1[%c0_144, %c0_145, %c202] : memref<1x8x1000xbf16, #tpu.memory_space<vmem>>, vector<1x8x778xbf16>
    %121 = vector.shape_cast %120 : vector<1x8x778xbf16> to vector<8x778xbf16>
    %c320 = arith.constant 320 : index
    %c0_146 = arith.constant 0 : index
    %122 = vector.load %arg9[%c320, %c0_146] : memref<432x778xbf16, #tpu.memory_space<vmem>>, vector<8x778xbf16>
    tpu.vector_store %arg9[%c320, %c0_146], %121 {strides = array<i32>} : memref<432x778xbf16, #tpu.memory_space<vmem>>, vector<8x778xbf16>,
    %c0_147 = arith.constant 0 : index
    %c0_148 = arith.constant 0 : index
    %c202_149 = arith.constant 202 : index
    %123 = vector.load %arg2[%c0_147, %c0_148, %c202_149] : memref<1x8x1000xbf16, #tpu.memory_space<vmem>>, vector<1x8x778xbf16>
    %124 = vector.shape_cast %123 : vector<1x8x778xbf16> to vector<8x778xbf16>
    %c328 = arith.constant 328 : index
    %c0_150 = arith.constant 0 : index
    %125 = vector.load %arg9[%c328, %c0_150] : memref<432x778xbf16, #tpu.memory_space<vmem>>, vector<8x778xbf16>
    tpu.vector_store %arg9[%c328, %c0_150], %124 {strides = array<i32>} : memref<432x778xbf16, #tpu.memory_space<vmem>>, vector<8x778xbf16>,
    %c0_151 = arith.constant 0 : index
    %c0_152 = arith.constant 0 : index
    %c210 = arith.constant 210 : index
    %126 = vector.load %arg1[%c0_151, %c0_152, %c210] : memref<1x8x1000xbf16, #tpu.memory_space<vmem>>, vector<1x8x778xbf16>
    %127 = vector.shape_cast %126 : vector<1x8x778xbf16> to vector<8x778xbf16>
    %c336 = arith.constant 336 : index
    %c0_153 = arith.constant 0 : index
    %128 = vector.load %arg9[%c336, %c0_153] : memref<432x778xbf16, #tpu.memory_space<vmem>>, vector<8x778xbf16>
    tpu.vector_store %arg9[%c336, %c0_153], %127 {strides = array<i32>} : memref<432x778xbf16, #tpu.memory_space<vmem>>, vector<8x778xbf16>,
    %c0_154 = arith.constant 0 : index
    %c0_155 = arith.constant 0 : index
    %c210_156 = arith.constant 210 : index
    %129 = vector.load %arg2[%c0_154, %c0_155, %c210_156] : memref<1x8x1000xbf16, #tpu.memory_space<vmem>>, vector<1x8x778xbf16>
    %130 = vector.shape_cast %129 : vector<1x8x778xbf16> to vector<8x778xbf16>
    %c344 = arith.constant 344 : index
    %c0_157 = arith.constant 0 : index
    %131 = vector.load %arg9[%c344, %c0_157] : memref<432x778xbf16, #tpu.memory_space<vmem>>, vector<8x778xbf16>
    tpu.vector_store %arg9[%c344, %c0_157], %130 {strides = array<i32>} : memref<432x778xbf16, #tpu.memory_space<vmem>>, vector<8x778xbf16>,
    %c0_158 = arith.constant 0 : index
    %c0_159 = arith.constant 0 : index
    %c211 = arith.constant 211 : index
    %132 = vector.load %arg1[%c0_158, %c0_159, %c211] : memref<1x8x1000xbf16, #tpu.memory_space<vmem>>, vector<1x8x778xbf16>
    %133 = vector.shape_cast %132 : vector<1x8x778xbf16> to vector<8x778xbf16>
    %c352 = arith.constant 352 : index
    %c0_160 = arith.constant 0 : index
    %134 = vector.load %arg9[%c352, %c0_160] : memref<432x778xbf16, #tpu.memory_space<vmem>>, vector<8x778xbf16>
    tpu.vector_store %arg9[%c352, %c0_160], %133 {strides = array<i32>} : memref<432x778xbf16, #tpu.memory_space<vmem>>, vector<8x778xbf16>,
    %c0_161 = arith.constant 0 : index
    %c0_162 = arith.constant 0 : index
    %c211_163 = arith.constant 211 : index
    %135 = vector.load %arg2[%c0_161, %c0_162, %c211_163] : memref<1x8x1000xbf16, #tpu.memory_space<vmem>>, vector<1x8x778xbf16>
    %136 = vector.shape_cast %135 : vector<1x8x778xbf16> to vector<8x778xbf16>
    %c360 = arith.constant 360 : index
    %c0_164 = arith.constant 0 : index
    %137 = vector.load %arg9[%c360, %c0_164] : memref<432x778xbf16, #tpu.memory_space<vmem>>, vector<8x778xbf16>
    tpu.vector_store %arg9[%c360, %c0_164], %136 {strides = array<i32>} : memref<432x778xbf16, #tpu.memory_space<vmem>>, vector<8x778xbf16>,
    %c0_165 = arith.constant 0 : index
    %c0_166 = arith.constant 0 : index
    %c212 = arith.constant 212 : index
    %138 = vector.load %arg1[%c0_165, %c0_166, %c212] : memref<1x8x1000xbf16, #tpu.memory_space<vmem>>, vector<1x8x778xbf16>
    %139 = vector.shape_cast %138 : vector<1x8x778xbf16> to vector<8x778xbf16>
    %c368 = arith.constant 368 : index
    %c0_167 = arith.constant 0 : index
    %140 = vector.load %arg9[%c368, %c0_167] : memref<432x778xbf16, #tpu.memory_space<vmem>>, vector<8x778xbf16>
    tpu.vector_store %arg9[%c368, %c0_167], %139 {strides = array<i32>} : memref<432x778xbf16, #tpu.memory_space<vmem>>, vector<8x778xbf16>,
    %c0_168 = arith.constant 0 : index
    %c0_169 = arith.constant 0 : index
    %c212_170 = arith.constant 212 : index
    %141 = vector.load %arg2[%c0_168, %c0_169, %c212_170] : memref<1x8x1000xbf16, #tpu.memory_space<vmem>>, vector<1x8x778xbf16>
    %142 = vector.shape_cast %141 : vector<1x8x778xbf16> to vector<8x778xbf16>
    %c376 = arith.constant 376 : index
    %c0_171 = arith.constant 0 : index
    %143 = vector.load %arg9[%c376, %c0_171] : memref<432x778xbf16, #tpu.memory_space<vmem>>, vector<8x778xbf16>
    tpu.vector_store %arg9[%c376, %c0_171], %142 {strides = array<i32>} : memref<432x778xbf16, #tpu.memory_space<vmem>>, vector<8x778xbf16>,
    %c0_172 = arith.constant 0 : index
    %c0_173 = arith.constant 0 : index
    %c220 = arith.constant 220 : index
    %144 = vector.load %arg1[%c0_172, %c0_173, %c220] : memref<1x8x1000xbf16, #tpu.memory_space<vmem>>, vector<1x8x778xbf16>
    %145 = vector.shape_cast %144 : vector<1x8x778xbf16> to vector<8x778xbf16>
    %c384 = arith.constant 384 : index
    %c0_174 = arith.constant 0 : index
    %146 = vector.load %arg9[%c384, %c0_174] : memref<432x778xbf16, #tpu.memory_space<vmem>>, vector<8x778xbf16>
    tpu.vector_store %arg9[%c384, %c0_174], %145 {strides = array<i32>} : memref<432x778xbf16, #tpu.memory_space<vmem>>, vector<8x778xbf16>,
    %c0_175 = arith.constant 0 : index
    %c0_176 = arith.constant 0 : index
    %c220_177 = arith.constant 220 : index
    %147 = vector.load %arg2[%c0_175, %c0_176, %c220_177] : memref<1x8x1000xbf16, #tpu.memory_space<vmem>>, vector<1x8x778xbf16>
    %148 = vector.shape_cast %147 : vector<1x8x778xbf16> to vector<8x778xbf16>
    %c392 = arith.constant 392 : index
    %c0_178 = arith.constant 0 : index
    %149 = vector.load %arg9[%c392, %c0_178] : memref<432x778xbf16, #tpu.memory_space<vmem>>, vector<8x778xbf16>
    tpu.vector_store %arg9[%c392, %c0_178], %148 {strides = array<i32>} : memref<432x778xbf16, #tpu.memory_space<vmem>>, vector<8x778xbf16>,
    %c0_179 = arith.constant 0 : index
    %c0_180 = arith.constant 0 : index
    %c221 = arith.constant 221 : index
    %150 = vector.load %arg1[%c0_179, %c0_180, %c221] : memref<1x8x1000xbf16, #tpu.memory_space<vmem>>, vector<1x8x778xbf16>
    %151 = vector.shape_cast %150 : vector<1x8x778xbf16> to vector<8x778xbf16>
    %c400 = arith.constant 400 : index
    %c0_181 = arith.constant 0 : index
    %152 = vector.load %arg9[%c400, %c0_181] : memref<432x778xbf16, #tpu.memory_space<vmem>>, vector<8x778xbf16>
    tpu.vector_store %arg9[%c400, %c0_181], %151 {strides = array<i32>} : memref<432x778xbf16, #tpu.memory_space<vmem>>, vector<8x778xbf16>,
    %c0_182 = arith.constant 0 : index
    %c0_183 = arith.constant 0 : index
    %c221_184 = arith.constant 221 : index
    %153 = vector.load %arg2[%c0_182, %c0_183, %c221_184] : memref<1x8x1000xbf16, #tpu.memory_space<vmem>>, vector<1x8x778xbf16>
    %154 = vector.shape_cast %153 : vector<1x8x778xbf16> to vector<8x778xbf16>
    %c408 = arith.constant 408 : index
    %c0_185 = arith.constant 0 : index
    %155 = vector.load %arg9[%c408, %c0_185] : memref<432x778xbf16, #tpu.memory_space<vmem>>, vector<8x778xbf16>
    tpu.vector_store %arg9[%c408, %c0_185], %154 {strides = array<i32>} : memref<432x778xbf16, #tpu.memory_space<vmem>>, vector<8x778xbf16>,
    %c0_186 = arith.constant 0 : index
    %c0_187 = arith.constant 0 : index
    %c222 = arith.constant 222 : index
    %156 = vector.load %arg1[%c0_186, %c0_187, %c222] : memref<1x8x1000xbf16, #tpu.memory_space<vmem>>, vector<1x8x778xbf16>
    %157 = vector.shape_cast %156 : vector<1x8x778xbf16> to vector<8x778xbf16>
    %c416 = arith.constant 416 : index
    %c0_188 = arith.constant 0 : index
    %158 = vector.load %arg9[%c416, %c0_188] : memref<432x778xbf16, #tpu.memory_space<vmem>>, vector<8x778xbf16>
    tpu.vector_store %arg9[%c416, %c0_188], %157 {strides = array<i32>} : memref<432x778xbf16, #tpu.memory_space<vmem>>, vector<8x778xbf16>,
    %c0_189 = arith.constant 0 : index
    %c0_190 = arith.constant 0 : index
    %c222_191 = arith.constant 222 : index
    %159 = vector.load %arg2[%c0_189, %c0_190, %c222_191] : memref<1x8x1000xbf16, #tpu.memory_space<vmem>>, vector<1x8x778xbf16>
    %160 = vector.shape_cast %159 : vector<1x8x778xbf16> to vector<8x778xbf16>
    %c424 = arith.constant 424 : index
    %c0_192 = arith.constant 0 : index
    %161 = vector.load %arg9[%c424, %c0_192] : memref<432x778xbf16, #tpu.memory_space<vmem>>, vector<8x778xbf16>
    tpu.vector_store %arg9[%c424, %c0_192], %160 {strides = array<i32>} : memref<432x778xbf16, #tpu.memory_space<vmem>>, vector<8x778xbf16>,
    %c0_193 = arith.constant 0 : index
    %c0_194 = arith.constant 0 : index
    %162 = vector.load %arg3[%c0_193, %c0_194] : memref<8x432xbf16, #tpu.memory_space<vmem>>, vector<8x432xbf16>
    %c0_195 = arith.constant 0 : index
    %c0_196 = arith.constant 0 : index
    %163 = vector.load %arg9[%c0_195, %c0_196] : memref<432x778xbf16, #tpu.memory_space<vmem>>, vector<432x778xbf16>
    %cst = arith.constant dense<0.000000e+00> : vector<8x778xf32>
    %164 = tpu.matmul %162, %163, %cst {dimension_numbers = #tpu.dot_dimension_numbers<[1], [0], [0], [1], [0, 0, 1, 1], [], []>} : vector<8x432xbf16>, vector<432x778xbf16>, vector<8x778xf32> -> vector<8x778xf32>
    %c0_197 = arith.constant 0 : index
    %c0_198 = arith.constant 0 : index
    %165 = vector.load %arg4[%c0_197, %c0_198] : memref<8x1xf32, #tpu.memory_space<vmem>>, vector<8x1xf32>
    %166 = vector.broadcast %165 : vector<8x1xf32> to vector<8x778xf32>
    %167 = arith.addf %164, %166 : vector<8x778xf32>
    %c0_199 = arith.constant 0 : index
    %c0_200 = arith.constant 0 : index
    %168 = vector.load %arg7[%c0_199, %c0_200] : memref<1x778xf32, #tpu.memory_space<vmem>>, vector<1x778xf32>
    %169 = vector.broadcast %168 : vector<1x778xf32> to vector<8x778xf32>
    %170 = arith.mulf %167, %169 : vector<8x778xf32>
    %cst_201 = arith.constant dense<0.000000e+00> : vector<8xf32>
    %171 = vector.multi_reduction <add>, %170, %cst_201 [1] : vector<8x778xf32> to vector<8xf32>
    %172 = vector.shape_cast %171 : vector<8xf32> to vector<8x1xf32>
    %cst_202 = arith.constant 0.001953125 : f32
    %173 = vector.broadcast %cst_202 : f32 to vector<8x1xf32>
    %174 = arith.mulf %172, %173 : vector<8x1xf32>
    %175 = vector.broadcast %174 : vector<8x1xf32> to vector<8x778xf32>
    %176 = arith.subf %167, %175 : vector<8x778xf32>
    %177 = arith.mulf %176, %176 : vector<8x778xf32>
    %178 = vector.broadcast %168 : vector<1x778xf32> to vector<8x778xf32>
    %179 = arith.mulf %177, %178 : vector<8x778xf32>
    %cst_203 = arith.constant dense<0.000000e+00> : vector<8xf32>
    %180 = vector.multi_reduction <add>, %179, %cst_203 [1] : vector<8x778xf32> to vector<8xf32>
    %181 = vector.shape_cast %180 : vector<8xf32> to vector<8x1xf32>
    %cst_204 = arith.constant 0.001953125 : f32
    %182 = vector.broadcast %cst_204 : f32 to vector<8x1xf32>
    %183 = arith.mulf %181, %182 : vector<8x1xf32>
    %cst_205 = arith.constant 9.99999974E-6 : f32
    %184 = vector.broadcast %cst_205 : f32 to vector<8x1xf32>
    %185 = arith.addf %183, %184 : vector<8x1xf32>
    %186 = math.rsqrt %185 : vector<8x1xf32>
    %187 = vector.broadcast %186 : vector<8x1xf32> to vector<8x778xf32>
    %188 = arith.mulf %176, %187 : vector<8x778xf32>
    %c0_206 = arith.constant 0 : index
    %c0_207 = arith.constant 0 : index
    %189 = vector.load %arg5[%c0_206, %c0_207] : memref<8x1xf32, #tpu.memory_space<vmem>>, vector<8x1xf32>
    %190 = vector.broadcast %189 : vector<8x1xf32> to vector<8x778xf32>
    %191 = arith.mulf %188, %190 : vector<8x778xf32>
    %c0_208 = arith.constant 0 : index
    %c0_209 = arith.constant 0 : index
    %192 = vector.load %arg6[%c0_208, %c0_209] : memref<8x1xf32, #tpu.memory_space<vmem>>, vector<8x1xf32>
    %193 = vector.broadcast %192 : vector<8x1xf32> to vector<8x778xf32>
    %194 = arith.addf %191, %193 : vector<8x778xf32>
    %cst_210 = arith.constant 0.000000e+00 : f32
    %195 = vector.broadcast %cst_210 : f32 to vector<8x778xf32>
    %196 = arith.maximumf %194, %195 : vector<8x778xf32>
    %197 = vector.broadcast %168 : vector<1x778xf32> to vector<8x778xf32>
    %198 = arith.mulf %196, %197 : vector<8x778xf32>
    %cst_211 = arith.constant 0.000000e+00 : bf16
    %199 = vector.broadcast %cst_211 : bf16 to vector<8x111xbf16>
    %c0_212 = arith.constant 0 : index
    %c0_213 = arith.constant 0 : index
    %c0_214 = arith.constant 0 : index
    %200 = vector.load %arg8[%c0_212, %c0_213, %c0_214] : memref<1x8x1000xbf16, #tpu.memory_space<vmem>>, vector<1x8x111xbf16>
    %201 = vector.shape_cast %200 : vector<1x8x111xbf16> to vector<8x111xbf16>
    %202 = vector.shape_cast %199 : vector<8x111xbf16> to vector<1x8x111xbf16>
    tpu.vector_store %arg8[%c0_212, %c0_213, %c0_214], %202 {strides = array<i32>} : memref<1x8x1000xbf16, #tpu.memory_space<vmem>>, vector<1x8x111xbf16>,
    %203 = arith.truncf %198 : vector<8x778xf32> to vector<8x778xbf16>
    %c0_215 = arith.constant 0 : index
    %c0_216 = arith.constant 0 : index
    %c111_217 = arith.constant 111 : index
    %204 = vector.load %arg8[%c0_215, %c0_216, %c111_217] : memref<1x8x1000xbf16, #tpu.memory_space<vmem>>, vector<1x8x778xbf16>
    %205 = vector.shape_cast %204 : vector<1x8x778xbf16> to vector<8x778xbf16>
    %206 = vector.shape_cast %203 : vector<8x778xbf16> to vector<1x8x778xbf16>
    tpu.vector_store %arg8[%c0_215, %c0_216, %c111_217], %206 {strides = array<i32>} : memref<1x8x1000xbf16, #tpu.memory_space<vmem>>, vector<1x8x778xbf16>,
    %c0_218 = arith.constant 0 : index
    %c0_219 = arith.constant 0 : index
    %c889 = arith.constant 889 : index
    %207 = vector.load %arg8[%c0_218, %c0_219, %c889] : memref<1x8x1000xbf16, #tpu.memory_space<vmem>>, vector<1x8x111xbf16>
    %208 = vector.shape_cast %207 : vector<1x8x111xbf16> to vector<8x111xbf16>
    %209 = vector.shape_cast %199 : vector<8x111xbf16> to vector<1x8x111xbf16>
    tpu.vector_store %arg8[%c0_218, %c0_219, %c889], %209 {strides = array<i32>} : memref<1x8x1000xbf16, #tpu.memory_space<vmem>>, vector<1x8x111xbf16>,
    return
  }
  func.func @transform_0(%arg0: i32) -> (i32, i32, i32) {
    %c0_i32 = arith.constant 0 : i32
    %c0_i32_0 = arith.constant 0 : i32
    %c0_i32_1 = arith.constant 0 : i32
    return %arg0, %c0_i32, %c0_i32_0 : i32, i32, i32
  }
  func.func @transform_1(%arg0: i32) -> (i32, i32, i32) {
    %c0_i32 = arith.constant 0 : i32
    %c0_i32_0 = arith.constant 0 : i32
    %c0_i32_1 = arith.constant 0 : i32
    return %arg0, %c0_i32, %c0_i32_0 : i32, i32, i32
  }
  func.func @transform_2(%arg0: i32) -> (i32, i32) {
    %c0_i32 = arith.constant 0 : i32
    %c0_i32_0 = arith.constant 0 : i32
    %c0_i32_1 = arith.constant 0 : i32
    return %c0_i32, %c0_i32_0 : i32, i32
  }
  func.func @transform_3(%arg0: i32) -> (i32, i32) {
    %c0_i32 = arith.constant 0 : i32
    %c0_i32_0 = arith.constant 0 : i32
    %c0_i32_1 = arith.constant 0 : i32
    return %c0_i32, %c0_i32_0 : i32, i32
  }
  func.func @transform_4(%arg0: i32) -> (i32, i32) {
    %c0_i32 = arith.constant 0 : i32
    %c0_i32_0 = arith.constant 0 : i32
    %c0_i32_1 = arith.constant 0 : i32
    return %c0_i32, %c0_i32_0 : i32, i32
  }
  func.func @transform_5(%arg0: i32) -> (i32, i32) {
    %c0_i32 = arith.constant 0 : i32
    %c0_i32_0 = arith.constant 0 : i32
    %c0_i32_1 = arith.constant 0 : i32
    return %c0_i32, %c0_i32_0 : i32, i32
  }
  func.func @transform_6(%arg0: i32) -> (i32, i32) {
    %c0_i32 = arith.constant 0 : i32
    %c0_i32_0 = arith.constant 0 : i32
    %c0_i32_1 = arith.constant 0 : i32
    return %c0_i32, %c0_i32_0 : i32, i32
  }
  func.func @transform_7(%arg0: i32) -> (i32, i32, i32) {
    %c0_i32 = arith.constant 0 : i32
    %c0_i32_0 = arith.constant 0 : i32
    %c0_i32_1 = arith.constant 0 : i32
    return %arg0, %c0_i32, %c0_i32_0 : i32, i32, i32
  }
}

module attributes {stable_mosaic.version = 11 : i64} {
  func.func @kernel(%arg0: i32, %arg1: memref<1x8x1000xbf16, #tpu.memory_space<vmem>>, %arg2: memref<8x216xbf16, #tpu.memory_space<vmem>>, %arg3: memref<8x1xf32, #tpu.memory_space<vmem>>, %arg4: memref<8x1xf32, #tpu.memory_space<vmem>>, %arg5: memref<8x1xf32, #tpu.memory_space<vmem>>, %arg6: memref<1x778xf32, #tpu.memory_space<vmem>>, %arg7: memref<1x8x1000xf32, #tpu.memory_space<vmem>>, %arg8: memref<216x778xbf16, #tpu.memory_space<vmem>>) attributes {dimension_semantics = [#tpu.dimension_semantics<parallel>], iteration_bounds = array<i64: 2>, scalar_prefetch = 0 : i64, scratch_operands = 1 : i64, tpu.core_type = #tpu.core_type<tc>, window_params = [{transform_indices = @transform_0, window_bounds = array<i64: 1, 8, 1000>}, {pipeline_mode = #tpu.pipeline_mode<synchronous>, transform_indices = @transform_1, window_bounds = array<i64: 8, 216>}, {pipeline_mode = #tpu.pipeline_mode<synchronous>, transform_indices = @transform_2, window_bounds = array<i64: 8, 1>}, {pipeline_mode = #tpu.pipeline_mode<synchronous>, transform_indices = @transform_3, window_bounds = array<i64: 8, 1>}, {pipeline_mode = #tpu.pipeline_mode<synchronous>, transform_indices = @transform_4, window_bounds = array<i64: 8, 1>}, {pipeline_mode = #tpu.pipeline_mode<synchronous>, transform_indices = @transform_5, window_bounds = array<i64: 1, 778>}, {transform_indices = @transform_6, window_bounds = array<i64: 1, 8, 1000>}]} {
    %c0 = arith.constant 0 : index
    %c0_0 = arith.constant 0 : index
    %c0_1 = arith.constant 0 : index
    %0 = vector.load %arg1[%c0, %c0_0, %c0_1] : memref<1x8x1000xbf16, #tpu.memory_space<vmem>>, vector<1x8x778xbf16>
    %1 = vector.shape_cast %0 : vector<1x8x778xbf16> to vector<8x778xbf16>
    %c0_2 = arith.constant 0 : index
    %c0_3 = arith.constant 0 : index
    %2 = vector.load %arg8[%c0_2, %c0_3] : memref<216x778xbf16, #tpu.memory_space<vmem>>, vector<8x778xbf16>
    tpu.vector_store %arg8[%c0_2, %c0_3], %1 {strides = array<i32>} : memref<216x778xbf16, #tpu.memory_space<vmem>>, vector<8x778xbf16>,
    %c0_4 = arith.constant 0 : index
    %c0_5 = arith.constant 0 : index
    %c1 = arith.constant 1 : index
    %3 = vector.load %arg1[%c0_4, %c0_5, %c1] : memref<1x8x1000xbf16, #tpu.memory_space<vmem>>, vector<1x8x778xbf16>
    %4 = vector.shape_cast %3 : vector<1x8x778xbf16> to vector<8x778xbf16>
    %c8 = arith.constant 8 : index
    %c0_6 = arith.constant 0 : index
    %5 = vector.load %arg8[%c8, %c0_6] : memref<216x778xbf16, #tpu.memory_space<vmem>>, vector<8x778xbf16>
    tpu.vector_store %arg8[%c8, %c0_6], %4 {strides = array<i32>} : memref<216x778xbf16, #tpu.memory_space<vmem>>, vector<8x778xbf16>,
    %c0_7 = arith.constant 0 : index
    %c0_8 = arith.constant 0 : index
    %c2 = arith.constant 2 : index
    %6 = vector.load %arg1[%c0_7, %c0_8, %c2] : memref<1x8x1000xbf16, #tpu.memory_space<vmem>>, vector<1x8x778xbf16>
    %7 = vector.shape_cast %6 : vector<1x8x778xbf16> to vector<8x778xbf16>
    %c16 = arith.constant 16 : index
    %c0_9 = arith.constant 0 : index
    %8 = vector.load %arg8[%c16, %c0_9] : memref<216x778xbf16, #tpu.memory_space<vmem>>, vector<8x778xbf16>
    tpu.vector_store %arg8[%c16, %c0_9], %7 {strides = array<i32>} : memref<216x778xbf16, #tpu.memory_space<vmem>>, vector<8x778xbf16>,
    %c0_10 = arith.constant 0 : index
    %c0_11 = arith.constant 0 : index
    %c10 = arith.constant 10 : index
    %9 = vector.load %arg1[%c0_10, %c0_11, %c10] : memref<1x8x1000xbf16, #tpu.memory_space<vmem>>, vector<1x8x778xbf16>
    %10 = vector.shape_cast %9 : vector<1x8x778xbf16> to vector<8x778xbf16>
    %c24 = arith.constant 24 : index
    %c0_12 = arith.constant 0 : index
    %11 = vector.load %arg8[%c24, %c0_12] : memref<216x778xbf16, #tpu.memory_space<vmem>>, vector<8x778xbf16>
    tpu.vector_store %arg8[%c24, %c0_12], %10 {strides = array<i32>} : memref<216x778xbf16, #tpu.memory_space<vmem>>, vector<8x778xbf16>,
    %c0_13 = arith.constant 0 : index
    %c0_14 = arith.constant 0 : index
    %c11 = arith.constant 11 : index
    %12 = vector.load %arg1[%c0_13, %c0_14, %c11] : memref<1x8x1000xbf16, #tpu.memory_space<vmem>>, vector<1x8x778xbf16>
    %13 = vector.shape_cast %12 : vector<1x8x778xbf16> to vector<8x778xbf16>
    %c32 = arith.constant 32 : index
    %c0_15 = arith.constant 0 : index
    %14 = vector.load %arg8[%c32, %c0_15] : memref<216x778xbf16, #tpu.memory_space<vmem>>, vector<8x778xbf16>
    tpu.vector_store %arg8[%c32, %c0_15], %13 {strides = array<i32>} : memref<216x778xbf16, #tpu.memory_space<vmem>>, vector<8x778xbf16>,
    %c0_16 = arith.constant 0 : index
    %c0_17 = arith.constant 0 : index
    %c12 = arith.constant 12 : index
    %15 = vector.load %arg1[%c0_16, %c0_17, %c12] : memref<1x8x1000xbf16, #tpu.memory_space<vmem>>, vector<1x8x778xbf16>
    %16 = vector.shape_cast %15 : vector<1x8x778xbf16> to vector<8x778xbf16>
    %c40 = arith.constant 40 : index
    %c0_18 = arith.constant 0 : index
    %17 = vector.load %arg8[%c40, %c0_18] : memref<216x778xbf16, #tpu.memory_space<vmem>>, vector<8x778xbf16>
    tpu.vector_store %arg8[%c40, %c0_18], %16 {strides = array<i32>} : memref<216x778xbf16, #tpu.memory_space<vmem>>, vector<8x778xbf16>,
    %c0_19 = arith.constant 0 : index
    %c0_20 = arith.constant 0 : index
    %c20 = arith.constant 20 : index
    %18 = vector.load %arg1[%c0_19, %c0_20, %c20] : memref<1x8x1000xbf16, #tpu.memory_space<vmem>>, vector<1x8x778xbf16>
    %19 = vector.shape_cast %18 : vector<1x8x778xbf16> to vector<8x778xbf16>
    %c48 = arith.constant 48 : index
    %c0_21 = arith.constant 0 : index
    %20 = vector.load %arg8[%c48, %c0_21] : memref<216x778xbf16, #tpu.memory_space<vmem>>, vector<8x778xbf16>
    tpu.vector_store %arg8[%c48, %c0_21], %19 {strides = array<i32>} : memref<216x778xbf16, #tpu.memory_space<vmem>>, vector<8x778xbf16>,
    %c0_22 = arith.constant 0 : index
    %c0_23 = arith.constant 0 : index
    %c21 = arith.constant 21 : index
    %21 = vector.load %arg1[%c0_22, %c0_23, %c21] : memref<1x8x1000xbf16, #tpu.memory_space<vmem>>, vector<1x8x778xbf16>
    %22 = vector.shape_cast %21 : vector<1x8x778xbf16> to vector<8x778xbf16>
    %c56 = arith.constant 56 : index
    %c0_24 = arith.constant 0 : index
    %23 = vector.load %arg8[%c56, %c0_24] : memref<216x778xbf16, #tpu.memory_space<vmem>>, vector<8x778xbf16>
    tpu.vector_store %arg8[%c56, %c0_24], %22 {strides = array<i32>} : memref<216x778xbf16, #tpu.memory_space<vmem>>, vector<8x778xbf16>,
    %c0_25 = arith.constant 0 : index
    %c0_26 = arith.constant 0 : index
    %c22 = arith.constant 22 : index
    %24 = vector.load %arg1[%c0_25, %c0_26, %c22] : memref<1x8x1000xbf16, #tpu.memory_space<vmem>>, vector<1x8x778xbf16>
    %25 = vector.shape_cast %24 : vector<1x8x778xbf16> to vector<8x778xbf16>
    %c64 = arith.constant 64 : index
    %c0_27 = arith.constant 0 : index
    %26 = vector.load %arg8[%c64, %c0_27] : memref<216x778xbf16, #tpu.memory_space<vmem>>, vector<8x778xbf16>
    tpu.vector_store %arg8[%c64, %c0_27], %25 {strides = array<i32>} : memref<216x778xbf16, #tpu.memory_space<vmem>>, vector<8x778xbf16>,
    %c0_28 = arith.constant 0 : index
    %c0_29 = arith.constant 0 : index
    %c100 = arith.constant 100 : index
    %27 = vector.load %arg1[%c0_28, %c0_29, %c100] : memref<1x8x1000xbf16, #tpu.memory_space<vmem>>, vector<1x8x778xbf16>
    %28 = vector.shape_cast %27 : vector<1x8x778xbf16> to vector<8x778xbf16>
    %c72 = arith.constant 72 : index
    %c0_30 = arith.constant 0 : index
    %29 = vector.load %arg8[%c72, %c0_30] : memref<216x778xbf16, #tpu.memory_space<vmem>>, vector<8x778xbf16>
    tpu.vector_store %arg8[%c72, %c0_30], %28 {strides = array<i32>} : memref<216x778xbf16, #tpu.memory_space<vmem>>, vector<8x778xbf16>,
    %c0_31 = arith.constant 0 : index
    %c0_32 = arith.constant 0 : index
    %c101 = arith.constant 101 : index
    %30 = vector.load %arg1[%c0_31, %c0_32, %c101] : memref<1x8x1000xbf16, #tpu.memory_space<vmem>>, vector<1x8x778xbf16>
    %31 = vector.shape_cast %30 : vector<1x8x778xbf16> to vector<8x778xbf16>
    %c80 = arith.constant 80 : index
    %c0_33 = arith.constant 0 : index
    %32 = vector.load %arg8[%c80, %c0_33] : memref<216x778xbf16, #tpu.memory_space<vmem>>, vector<8x778xbf16>
    tpu.vector_store %arg8[%c80, %c0_33], %31 {strides = array<i32>} : memref<216x778xbf16, #tpu.memory_space<vmem>>, vector<8x778xbf16>,
    %c0_34 = arith.constant 0 : index
    %c0_35 = arith.constant 0 : index
    %c102 = arith.constant 102 : index
    %33 = vector.load %arg1[%c0_34, %c0_35, %c102] : memref<1x8x1000xbf16, #tpu.memory_space<vmem>>, vector<1x8x778xbf16>
    %34 = vector.shape_cast %33 : vector<1x8x778xbf16> to vector<8x778xbf16>
    %c88 = arith.constant 88 : index
    %c0_36 = arith.constant 0 : index
    %35 = vector.load %arg8[%c88, %c0_36] : memref<216x778xbf16, #tpu.memory_space<vmem>>, vector<8x778xbf16>
    tpu.vector_store %arg8[%c88, %c0_36], %34 {strides = array<i32>} : memref<216x778xbf16, #tpu.memory_space<vmem>>, vector<8x778xbf16>,
    %c0_37 = arith.constant 0 : index
    %c0_38 = arith.constant 0 : index
    %c110 = arith.constant 110 : index
    %36 = vector.load %arg1[%c0_37, %c0_38, %c110] : memref<1x8x1000xbf16, #tpu.memory_space<vmem>>, vector<1x8x778xbf16>
    %37 = vector.shape_cast %36 : vector<1x8x778xbf16> to vector<8x778xbf16>
    %c96 = arith.constant 96 : index
    %c0_39 = arith.constant 0 : index
    %38 = vector.load %arg8[%c96, %c0_39] : memref<216x778xbf16, #tpu.memory_space<vmem>>, vector<8x778xbf16>
    tpu.vector_store %arg8[%c96, %c0_39], %37 {strides = array<i32>} : memref<216x778xbf16, #tpu.memory_space<vmem>>, vector<8x778xbf16>,
    %c0_40 = arith.constant 0 : index
    %c0_41 = arith.constant 0 : index
    %c111 = arith.constant 111 : index
    %39 = vector.load %arg1[%c0_40, %c0_41, %c111] : memref<1x8x1000xbf16, #tpu.memory_space<vmem>>, vector<1x8x778xbf16>
    %40 = vector.shape_cast %39 : vector<1x8x778xbf16> to vector<8x778xbf16>
    %c104 = arith.constant 104 : index
    %c0_42 = arith.constant 0 : index
    %41 = vector.load %arg8[%c104, %c0_42] : memref<216x778xbf16, #tpu.memory_space<vmem>>, vector<8x778xbf16>
    tpu.vector_store %arg8[%c104, %c0_42], %40 {strides = array<i32>} : memref<216x778xbf16, #tpu.memory_space<vmem>>, vector<8x778xbf16>,
    %c0_43 = arith.constant 0 : index
    %c0_44 = arith.constant 0 : index
    %c112 = arith.constant 112 : index
    %42 = vector.load %arg1[%c0_43, %c0_44, %c112] : memref<1x8x1000xbf16, #tpu.memory_space<vmem>>, vector<1x8x778xbf16>
    %43 = vector.shape_cast %42 : vector<1x8x778xbf16> to vector<8x778xbf16>
    %c112_45 = arith.constant 112 : index
    %c0_46 = arith.constant 0 : index
    %44 = vector.load %arg8[%c112_45, %c0_46] : memref<216x778xbf16, #tpu.memory_space<vmem>>, vector<8x778xbf16>
    tpu.vector_store %arg8[%c112_45, %c0_46], %43 {strides = array<i32>} : memref<216x778xbf16, #tpu.memory_space<vmem>>, vector<8x778xbf16>,
    %c0_47 = arith.constant 0 : index
    %c0_48 = arith.constant 0 : index
    %c120 = arith.constant 120 : index
    %45 = vector.load %arg1[%c0_47, %c0_48, %c120] : memref<1x8x1000xbf16, #tpu.memory_space<vmem>>, vector<1x8x778xbf16>
    %46 = vector.shape_cast %45 : vector<1x8x778xbf16> to vector<8x778xbf16>
    %c120_49 = arith.constant 120 : index
    %c0_50 = arith.constant 0 : index
    %47 = vector.load %arg8[%c120_49, %c0_50] : memref<216x778xbf16, #tpu.memory_space<vmem>>, vector<8x778xbf16>
    tpu.vector_store %arg8[%c120_49, %c0_50], %46 {strides = array<i32>} : memref<216x778xbf16, #tpu.memory_space<vmem>>, vector<8x778xbf16>,
    %c0_51 = arith.constant 0 : index
    %c0_52 = arith.constant 0 : index
    %c121 = arith.constant 121 : index
    %48 = vector.load %arg1[%c0_51, %c0_52, %c121] : memref<1x8x1000xbf16, #tpu.memory_space<vmem>>, vector<1x8x778xbf16>
    %49 = vector.shape_cast %48 : vector<1x8x778xbf16> to vector<8x778xbf16>
    %c128 = arith.constant 128 : index
    %c0_53 = arith.constant 0 : index
    %50 = vector.load %arg8[%c128, %c0_53] : memref<216x778xbf16, #tpu.memory_space<vmem>>, vector<8x778xbf16>
    tpu.vector_store %arg8[%c128, %c0_53], %49 {strides = array<i32>} : memref<216x778xbf16, #tpu.memory_space<vmem>>, vector<8x778xbf16>,
    %c0_54 = arith.constant 0 : index
    %c0_55 = arith.constant 0 : index
    %c122 = arith.constant 122 : index
    %51 = vector.load %arg1[%c0_54, %c0_55, %c122] : memref<1x8x1000xbf16, #tpu.memory_space<vmem>>, vector<1x8x778xbf16>
    %52 = vector.shape_cast %51 : vector<1x8x778xbf16> to vector<8x778xbf16>
    %c136 = arith.constant 136 : index
    %c0_56 = arith.constant 0 : index
    %53 = vector.load %arg8[%c136, %c0_56] : memref<216x778xbf16, #tpu.memory_space<vmem>>, vector<8x778xbf16>
    tpu.vector_store %arg8[%c136, %c0_56], %52 {strides = array<i32>} : memref<216x778xbf16, #tpu.memory_space<vmem>>, vector<8x778xbf16>,
    %c0_57 = arith.constant 0 : index
    %c0_58 = arith.constant 0 : index
    %c200 = arith.constant 200 : index
    %54 = vector.load %arg1[%c0_57, %c0_58, %c200] : memref<1x8x1000xbf16, #tpu.memory_space<vmem>>, vector<1x8x778xbf16>
    %55 = vector.shape_cast %54 : vector<1x8x778xbf16> to vector<8x778xbf16>
    %c144 = arith.constant 144 : index
    %c0_59 = arith.constant 0 : index
    %56 = vector.load %arg8[%c144, %c0_59] : memref<216x778xbf16, #tpu.memory_space<vmem>>, vector<8x778xbf16>
    tpu.vector_store %arg8[%c144, %c0_59], %55 {strides = array<i32>} : memref<216x778xbf16, #tpu.memory_space<vmem>>, vector<8x778xbf16>,
    %c0_60 = arith.constant 0 : index
    %c0_61 = arith.constant 0 : index
    %c201 = arith.constant 201 : index
    %57 = vector.load %arg1[%c0_60, %c0_61, %c201] : memref<1x8x1000xbf16, #tpu.memory_space<vmem>>, vector<1x8x778xbf16>
    %58 = vector.shape_cast %57 : vector<1x8x778xbf16> to vector<8x778xbf16>
    %c152 = arith.constant 152 : index
    %c0_62 = arith.constant 0 : index
    %59 = vector.load %arg8[%c152, %c0_62] : memref<216x778xbf16, #tpu.memory_space<vmem>>, vector<8x778xbf16>
    tpu.vector_store %arg8[%c152, %c0_62], %58 {strides = array<i32>} : memref<216x778xbf16, #tpu.memory_space<vmem>>, vector<8x778xbf16>,
    %c0_63 = arith.constant 0 : index
    %c0_64 = arith.constant 0 : index
    %c202 = arith.constant 202 : index
    %60 = vector.load %arg1[%c0_63, %c0_64, %c202] : memref<1x8x1000xbf16, #tpu.memory_space<vmem>>, vector<1x8x778xbf16>
    %61 = vector.shape_cast %60 : vector<1x8x778xbf16> to vector<8x778xbf16>
    %c160 = arith.constant 160 : index
    %c0_65 = arith.constant 0 : index
    %62 = vector.load %arg8[%c160, %c0_65] : memref<216x778xbf16, #tpu.memory_space<vmem>>, vector<8x778xbf16>
    tpu.vector_store %arg8[%c160, %c0_65], %61 {strides = array<i32>} : memref<216x778xbf16, #tpu.memory_space<vmem>>, vector<8x778xbf16>,
    %c0_66 = arith.constant 0 : index
    %c0_67 = arith.constant 0 : index
    %c210 = arith.constant 210 : index
    %63 = vector.load %arg1[%c0_66, %c0_67, %c210] : memref<1x8x1000xbf16, #tpu.memory_space<vmem>>, vector<1x8x778xbf16>
    %64 = vector.shape_cast %63 : vector<1x8x778xbf16> to vector<8x778xbf16>
    %c168 = arith.constant 168 : index
    %c0_68 = arith.constant 0 : index
    %65 = vector.load %arg8[%c168, %c0_68] : memref<216x778xbf16, #tpu.memory_space<vmem>>, vector<8x778xbf16>
    tpu.vector_store %arg8[%c168, %c0_68], %64 {strides = array<i32>} : memref<216x778xbf16, #tpu.memory_space<vmem>>, vector<8x778xbf16>,
    %c0_69 = arith.constant 0 : index
    %c0_70 = arith.constant 0 : index
    %c211 = arith.constant 211 : index
    %66 = vector.load %arg1[%c0_69, %c0_70, %c211] : memref<1x8x1000xbf16, #tpu.memory_space<vmem>>, vector<1x8x778xbf16>
    %67 = vector.shape_cast %66 : vector<1x8x778xbf16> to vector<8x778xbf16>
    %c176 = arith.constant 176 : index
    %c0_71 = arith.constant 0 : index
    %68 = vector.load %arg8[%c176, %c0_71] : memref<216x778xbf16, #tpu.memory_space<vmem>>, vector<8x778xbf16>
    tpu.vector_store %arg8[%c176, %c0_71], %67 {strides = array<i32>} : memref<216x778xbf16, #tpu.memory_space<vmem>>, vector<8x778xbf16>,
    %c0_72 = arith.constant 0 : index
    %c0_73 = arith.constant 0 : index
    %c212 = arith.constant 212 : index
    %69 = vector.load %arg1[%c0_72, %c0_73, %c212] : memref<1x8x1000xbf16, #tpu.memory_space<vmem>>, vector<1x8x778xbf16>
    %70 = vector.shape_cast %69 : vector<1x8x778xbf16> to vector<8x778xbf16>
    %c184 = arith.constant 184 : index
    %c0_74 = arith.constant 0 : index
    %71 = vector.load %arg8[%c184, %c0_74] : memref<216x778xbf16, #tpu.memory_space<vmem>>, vector<8x778xbf16>
    tpu.vector_store %arg8[%c184, %c0_74], %70 {strides = array<i32>} : memref<216x778xbf16, #tpu.memory_space<vmem>>, vector<8x778xbf16>,
    %c0_75 = arith.constant 0 : index
    %c0_76 = arith.constant 0 : index
    %c220 = arith.constant 220 : index
    %72 = vector.load %arg1[%c0_75, %c0_76, %c220] : memref<1x8x1000xbf16, #tpu.memory_space<vmem>>, vector<1x8x778xbf16>
    %73 = vector.shape_cast %72 : vector<1x8x778xbf16> to vector<8x778xbf16>
    %c192 = arith.constant 192 : index
    %c0_77 = arith.constant 0 : index
    %74 = vector.load %arg8[%c192, %c0_77] : memref<216x778xbf16, #tpu.memory_space<vmem>>, vector<8x778xbf16>
    tpu.vector_store %arg8[%c192, %c0_77], %73 {strides = array<i32>} : memref<216x778xbf16, #tpu.memory_space<vmem>>, vector<8x778xbf16>,
    %c0_78 = arith.constant 0 : index
    %c0_79 = arith.constant 0 : index
    %c221 = arith.constant 221 : index
    %75 = vector.load %arg1[%c0_78, %c0_79, %c221] : memref<1x8x1000xbf16, #tpu.memory_space<vmem>>, vector<1x8x778xbf16>
    %76 = vector.shape_cast %75 : vector<1x8x778xbf16> to vector<8x778xbf16>
    %c200_80 = arith.constant 200 : index
    %c0_81 = arith.constant 0 : index
    %77 = vector.load %arg8[%c200_80, %c0_81] : memref<216x778xbf16, #tpu.memory_space<vmem>>, vector<8x778xbf16>
    tpu.vector_store %arg8[%c200_80, %c0_81], %76 {strides = array<i32>} : memref<216x778xbf16, #tpu.memory_space<vmem>>, vector<8x778xbf16>,
    %c0_82 = arith.constant 0 : index
    %c0_83 = arith.constant 0 : index
    %c222 = arith.constant 222 : index
    %78 = vector.load %arg1[%c0_82, %c0_83, %c222] : memref<1x8x1000xbf16, #tpu.memory_space<vmem>>, vector<1x8x778xbf16>
    %79 = vector.shape_cast %78 : vector<1x8x778xbf16> to vector<8x778xbf16>
    %c208 = arith.constant 208 : index
    %c0_84 = arith.constant 0 : index
    %80 = vector.load %arg8[%c208, %c0_84] : memref<216x778xbf16, #tpu.memory_space<vmem>>, vector<8x778xbf16>
    tpu.vector_store %arg8[%c208, %c0_84], %79 {strides = array<i32>} : memref<216x778xbf16, #tpu.memory_space<vmem>>, vector<8x778xbf16>,
    %c0_85 = arith.constant 0 : index
    %c0_86 = arith.constant 0 : index
    %81 = vector.load %arg2[%c0_85, %c0_86] : memref<8x216xbf16, #tpu.memory_space<vmem>>, vector<8x216xbf16>
    %c0_87 = arith.constant 0 : index
    %c0_88 = arith.constant 0 : index
    %82 = vector.load %arg8[%c0_87, %c0_88] : memref<216x778xbf16, #tpu.memory_space<vmem>>, vector<216x778xbf16>
    %cst = arith.constant dense<0.000000e+00> : vector<8x778xf32>
    %83 = tpu.matmul %81, %82, %cst {dimension_numbers = #tpu.dot_dimension_numbers<[1], [0], [0], [1], [0, 0, 1, 1], [], []>} : vector<8x216xbf16>, vector<216x778xbf16>, vector<8x778xf32> -> vector<8x778xf32>
    %c0_89 = arith.constant 0 : index
    %c0_90 = arith.constant 0 : index
    %84 = vector.load %arg3[%c0_89, %c0_90] : memref<8x1xf32, #tpu.memory_space<vmem>>, vector<8x1xf32>
    %85 = vector.broadcast %84 : vector<8x1xf32> to vector<8x778xf32>
    %86 = arith.addf %83, %85 : vector<8x778xf32>
    %c0_91 = arith.constant 0 : index
    %c0_92 = arith.constant 0 : index
    %87 = vector.load %arg6[%c0_91, %c0_92] : memref<1x778xf32, #tpu.memory_space<vmem>>, vector<1x778xf32>
    %88 = vector.broadcast %87 : vector<1x778xf32> to vector<8x778xf32>
    %89 = arith.mulf %86, %88 : vector<8x778xf32>
    %cst_93 = arith.constant dense<0.000000e+00> : vector<8xf32>
    %90 = vector.multi_reduction <add>, %89, %cst_93 [1] : vector<8x778xf32> to vector<8xf32>
    %91 = vector.shape_cast %90 : vector<8xf32> to vector<8x1xf32>
    %cst_94 = arith.constant 0.001953125 : f32
    %92 = vector.broadcast %cst_94 : f32 to vector<8x1xf32>
    %93 = arith.mulf %91, %92 : vector<8x1xf32>
    %94 = vector.broadcast %93 : vector<8x1xf32> to vector<8x778xf32>
    %95 = arith.subf %86, %94 : vector<8x778xf32>
    %96 = arith.mulf %95, %95 : vector<8x778xf32>
    %97 = vector.broadcast %87 : vector<1x778xf32> to vector<8x778xf32>
    %98 = arith.mulf %96, %97 : vector<8x778xf32>
    %cst_95 = arith.constant dense<0.000000e+00> : vector<8xf32>
    %99 = vector.multi_reduction <add>, %98, %cst_95 [1] : vector<8x778xf32> to vector<8xf32>
    %100 = vector.shape_cast %99 : vector<8xf32> to vector<8x1xf32>
    %cst_96 = arith.constant 0.001953125 : f32
    %101 = vector.broadcast %cst_96 : f32 to vector<8x1xf32>
    %102 = arith.mulf %100, %101 : vector<8x1xf32>
    %cst_97 = arith.constant 9.99999974E-6 : f32
    %103 = vector.broadcast %cst_97 : f32 to vector<8x1xf32>
    %104 = arith.addf %102, %103 : vector<8x1xf32>
    %105 = math.rsqrt %104 : vector<8x1xf32>
    %106 = vector.broadcast %105 : vector<8x1xf32> to vector<8x778xf32>
    %107 = arith.mulf %95, %106 : vector<8x778xf32>
    %c0_98 = arith.constant 0 : index
    %c0_99 = arith.constant 0 : index
    %108 = vector.load %arg4[%c0_98, %c0_99] : memref<8x1xf32, #tpu.memory_space<vmem>>, vector<8x1xf32>
    %109 = vector.broadcast %108 : vector<8x1xf32> to vector<8x778xf32>
    %110 = arith.mulf %107, %109 : vector<8x778xf32>
    %c0_100 = arith.constant 0 : index
    %c0_101 = arith.constant 0 : index
    %111 = vector.load %arg5[%c0_100, %c0_101] : memref<8x1xf32, #tpu.memory_space<vmem>>, vector<8x1xf32>
    %112 = vector.broadcast %111 : vector<8x1xf32> to vector<8x778xf32>
    %113 = arith.addf %110, %112 : vector<8x778xf32>
    %cst_102 = arith.constant 0.000000e+00 : f32
    %114 = vector.broadcast %cst_102 : f32 to vector<8x778xf32>
    %115 = arith.maximumf %113, %114 : vector<8x778xf32>
    %116 = vector.broadcast %87 : vector<1x778xf32> to vector<8x778xf32>
    %117 = arith.mulf %115, %116 : vector<8x778xf32>
    %cst_103 = arith.constant 0.000000e+00 : f32
    %118 = vector.broadcast %cst_103 : f32 to vector<8x111xf32>
    %c0_104 = arith.constant 0 : index
    %c0_105 = arith.constant 0 : index
    %c0_106 = arith.constant 0 : index
    %119 = vector.load %arg7[%c0_104, %c0_105, %c0_106] : memref<1x8x1000xf32, #tpu.memory_space<vmem>>, vector<1x8x111xf32>
    %120 = vector.shape_cast %119 : vector<1x8x111xf32> to vector<8x111xf32>
    %121 = vector.shape_cast %118 : vector<8x111xf32> to vector<1x8x111xf32>
    tpu.vector_store %arg7[%c0_104, %c0_105, %c0_106], %121 {strides = array<i32>} : memref<1x8x1000xf32, #tpu.memory_space<vmem>>, vector<1x8x111xf32>,
    %c0_107 = arith.constant 0 : index
    %c0_108 = arith.constant 0 : index
    %c111_109 = arith.constant 111 : index
    %122 = vector.load %arg7[%c0_107, %c0_108, %c111_109] : memref<1x8x1000xf32, #tpu.memory_space<vmem>>, vector<1x8x778xf32>
    %123 = vector.shape_cast %122 : vector<1x8x778xf32> to vector<8x778xf32>
    %124 = vector.shape_cast %117 : vector<8x778xf32> to vector<1x8x778xf32>
    tpu.vector_store %arg7[%c0_107, %c0_108, %c111_109], %124 {strides = array<i32>} : memref<1x8x1000xf32, #tpu.memory_space<vmem>>, vector<1x8x778xf32>,
    %c0_110 = arith.constant 0 : index
    %c0_111 = arith.constant 0 : index
    %c889 = arith.constant 889 : index
    %125 = vector.load %arg7[%c0_110, %c0_111, %c889] : memref<1x8x1000xf32, #tpu.memory_space<vmem>>, vector<1x8x111xf32>
    %126 = vector.shape_cast %125 : vector<1x8x111xf32> to vector<8x111xf32>
    %127 = vector.shape_cast %118 : vector<8x111xf32> to vector<1x8x111xf32>
    tpu.vector_store %arg7[%c0_110, %c0_111, %c889], %127 {strides = array<i32>} : memref<1x8x1000xf32, #tpu.memory_space<vmem>>, vector<1x8x111xf32>,
    return
  }
  func.func @transform_0(%arg0: i32) -> (i32, i32, i32) {
    %c0_i32 = arith.constant 0 : i32
    %c0_i32_0 = arith.constant 0 : i32
    %c0_i32_1 = arith.constant 0 : i32
    return %arg0, %c0_i32, %c0_i32_0 : i32, i32, i32
  }
  func.func @transform_1(%arg0: i32) -> (i32, i32) {
    %c0_i32 = arith.constant 0 : i32
    %c0_i32_0 = arith.constant 0 : i32
    %c0_i32_1 = arith.constant 0 : i32
    return %c0_i32, %c0_i32_0 : i32, i32
  }
  func.func @transform_2(%arg0: i32) -> (i32, i32) {
    %c0_i32 = arith.constant 0 : i32
    %c0_i32_0 = arith.constant 0 : i32
    %c0_i32_1 = arith.constant 0 : i32
    return %c0_i32, %c0_i32_0 : i32, i32
  }
  func.func @transform_3(%arg0: i32) -> (i32, i32) {
    %c0_i32 = arith.constant 0 : i32
    %c0_i32_0 = arith.constant 0 : i32
    %c0_i32_1 = arith.constant 0 : i32
    return %c0_i32, %c0_i32_0 : i32, i32
  }
  func.func @transform_4(%arg0: i32) -> (i32, i32) {
    %c0_i32 = arith.constant 0 : i32
    %c0_i32_0 = arith.constant 0 : i32
    %c0_i32_1 = arith.constant 0 : i32
    return %c0_i32, %c0_i32_0 : i32, i32
  }
  func.func @transform_5(%arg0: i32) -> (i32, i32) {
    %c0_i32 = arith.constant 0 : i32
    %c0_i32_0 = arith.constant 0 : i32
    %c0_i32_1 = arith.constant 0 : i32
    return %c0_i32, %c0_i32_0 : i32, i32
  }
  func.func @transform_6(%arg0: i32) -> (i32, i32, i32) {
    %c0_i32 = arith.constant 0 : i32
    %c0_i32_0 = arith.constant 0 : i32
    %c0_i32_1 = arith.constant 0 : i32
    return %arg0, %c0_i32, %c0_i32_0 : i32, i32, i32
  }
}

</mosaic_0001>

<llo_original>
// kernel: up_forward.3
$region0: #{up_forward.3}
  #allocation0 [shape = 'u32[]', space=smem, size = 0x4, offset = 0x4, fixed_abs, tag = 'smem constant byte address 0x4 - core index']
  #allocation1 [shape = 'u32[144,128]{1,0:T(1,128)}', space=vmem, size = 0x12000, scoped, tag = 'internal scratch']
  #allocation2 [shape = 'bf16[216,778]{1,0:T(8,128)(2,1)}', space=vmem, size = 0x5e800, scoped, tag = 'scratch operand']
  %s0 = inlined_call_operand.vmem [shape: bf16[2,8,1000], index: 0, kind: input, shape index: {}]
  %s1 = inlined_call_operand.vmem [shape: bf16[8,216], index: 1, kind: input, shape index: {}]
  %s2 = inlined_call_operand.vmem [shape: f32[8,1], index: 2, kind: input, shape index: {}]
  %s3 = inlined_call_operand.vmem [shape: f32[8,1], index: 3, kind: input, shape index: {}]
  %s4 = inlined_call_operand.vmem [shape: f32[8,1], index: 4, kind: input, shape index: {}]
  %s5 = inlined_call_operand.vmem [shape: f32[1,778], index: 5, kind: input, shape index: {}]
  %s6 = inlined_call_operand.vmem [shape: f32[2,8,1000], index: 6, kind: output, shape index: {}]
  %s7 = sld [smem:[#allocation0]]
  $region57: #{up_forward.3} parent=0
    _
  %s9 = ssub.s32 1, %s7
  %s10 = scalar_select 0, %s9, %s7
  loop: start=0, step=1, limit=4
  $region2: #{up_forward.3} parent=0 // loop_pre_header
    _
  $region3: #{up_forward.3} parent=0 // loop_header
    %s12 = sphi 0, %s16
    %p13 = scmp.ge.s32.totalorder %s12, 4
    %s22 = sphi 0, %s24
    %s25 = sphi 0, %s22
    %s26 = sphi 0, %s25
    %s42 = sphi 0, %s26
    %s46 = sphi 0, %s46
    %s48 = sphi 0, %s46
    %s49 = sphi 0, %s48
    %s63 = sphi 0, %s49
    %s67 = sphi 0, %s67
    %s69 = sphi 0, %s67
    %s70 = sphi 0, %s69
    %s84 = sphi 0, %s70
    %s88 = sphi 0, %s88
    %s90 = sphi 0, %s88
    %s91 = sphi 0, %s90
    %s105 = sphi 0, %s91
    %s109 = sphi 0, %s109
    %s111 = sphi 0, %s109
    %s112 = sphi 0, %s111
    %s126 = sphi 0, %s112
    %s130 = sphi 0, %s130
    %s132 = sphi 0, %s130
    %s133 = sphi 0, %s132
    %s147 = sphi 0, %s133
    %s153 = sphi 0, %s155
    %s156 = sphi 0, %s153
    %s157 = sphi 0, %s156
    %s173 = sphi 0, %s157
  $region4: #{up_forward.3} parent=0 // loop_header_branch
    %15 = sbr.rel (%p13) target = $region8
  $region5: #{up_forward.3} parent=0 // loop_body
    %s17 = ssub.s32 %s12, 1
    %s18 = ssub.s32 %s12, 2
    %s19 = sadd.s32 %s12, 1
    %s20 = ssub.s32 %s12, %s19
    %p21 = scmp.eq.s32.totalorder %s20, 0
    %s23 = sadd.s32 %s22, 1
    %s24 = scalar_select %p21, %s22, %s23
    %p27 = pneg %p21
    %p28 = scmp.eq.s32.totalorder %s12, 1
    %p29 = por %p27, %p28
    %p30 = scmp.ne.s32.totalorder %s22, %s25
    %p31 = scmp.eq.s32.totalorder %s12, 0
    %p32 = por %p30, %p31
    %p33 = scmp.ne.s32.totalorder %s22, %s25
    %p34 = scmp.eq.s32.totalorder %s17, 1
    %p35 = por %p33, %p34
    %p36 = scmp.ne.s32.totalorder %s25, %s26
    %p37 = scmp.eq.s32.totalorder %s17, 0
    %p38 = por %p36, %p37
    %p39 = scmp.ne.s32.totalorder %s25, %s26
    %p40 = scmp.eq.s32.totalorder %s18, 1
    %p41 = por %p39, %p40
    %p43 = scmp.ne.s32.totalorder %s26, %s42
    %p44 = scmp.eq.s32.totalorder %s18, 0
    %p45 = por %p43, %p44
    %s47 = sadd.s32 %s46, 1
    %p50 = scmp.eq.s32.totalorder %s12, 1
    %p51 = scmp.ne.s32.totalorder %s46, %s48
    %p52 = scmp.eq.s32.totalorder %s12, 0
    %p53 = por %p51, %p52
    %p54 = scmp.ne.s32.totalorder %s46, %s48
    %p55 = scmp.eq.s32.totalorder %s17, 1
    %p56 = por %p54, %p55
    %p57 = scmp.ne.s32.totalorder %s48, %s49
    %p58 = scmp.eq.s32.totalorder %s17, 0
    %p59 = por %p57, %p58
    %p60 = scmp.ne.s32.totalorder %s48, %s49
    %p61 = scmp.eq.s32.totalorder %s18, 1
    %p62 = por %p60, %p61
    %p64 = scmp.ne.s32.totalorder %s49, %s63
    %p65 = scmp.eq.s32.totalorder %s18, 0
    %p66 = por %p64, %p65
    %s68 = sadd.s32 %s67, 1
    %p71 = scmp.eq.s32.totalorder %s12, 1
    %p72 = scmp.ne.s32.totalorder %s67, %s69
    %p73 = scmp.eq.s32.totalorder %s12, 0
    %p74 = por %p72, %p73
    %p75 = scmp.ne.s32.totalorder %s67, %s69
    %p76 = scmp.eq.s32.totalorder %s17, 1
    %p77 = por %p75, %p76
    %p78 = scmp.ne.s32.totalorder %s69, %s70
    %p79 = scmp.eq.s32.totalorder %s17, 0
    %p80 = por %p78, %p79
    %p81 = scmp.ne.s32.totalorder %s69, %s70
    %p82 = scmp.eq.s32.totalorder %s18, 1
    %p83 = por %p81, %p82
    %p85 = scmp.ne.s32.totalorder %s70, %s84
    %p86 = scmp.eq.s32.totalorder %s18, 0
    %p87 = por %p85, %p86
    %s89 = sadd.s32 %s88, 1
    %p92 = scmp.eq.s32.totalorder %s12, 1
    %p93 = scmp.ne.s32.totalorder %s88, %s90
    %p94 = scmp.eq.s32.totalorder %s12, 0
    %p95 = por %p93, %p94
    %p96 = scmp.ne.s32.totalorder %s88, %s90
    %p97 = scmp.eq.s32.totalorder %s17, 1
    %p98 = por %p96, %p97
    %p99 = scmp.ne.s32.totalorder %s90, %s91
    %p100 = scmp.eq.s32.totalorder %s17, 0
    %p101 = por %p99, %p100
    %p102 = scmp.ne.s32.totalorder %s90, %s91
    %p103 = scmp.eq.s32.totalorder %s18, 1
    %p104 = por %p102, %p103
    %p106 = scmp.ne.s32.totalorder %s91, %s105
    %p107 = scmp.eq.s32.totalorder %s18, 0
    %p108 = por %p106, %p107
    %s110 = sadd.s32 %s109, 1
    %p113 = scmp.eq.s32.totalorder %s12, 1
    %p114 = scmp.ne.s32.totalorder %s109, %s111
    %p115 = scmp.eq.s32.totalorder %s12, 0
    %p116 = por %p114, %p115
    %p117 = scmp.ne.s32.totalorder %s109, %s111
    %p118 = scmp.eq.s32.totalorder %s17, 1
    %p119 = por %p117, %p118
    %p120 = scmp.ne.s32.totalorder %s111, %s112
    %p121 = scmp.eq.s32.totalorder %s17, 0
    %p122 = por %p120, %p121
    %p123 = scmp.ne.s32.totalorder %s111, %s112
    %p124 = scmp.eq.s32.totalorder %s18, 1
    %p125 = por %p123, %p124
    %p127 = scmp.ne.s32.totalorder %s112, %s126
    %p128 = scmp.eq.s32.totalorder %s18, 0
    %p129 = por %p127, %p128
    %s131 = sadd.s32 %s130, 1
    %p134 = scmp.eq.s32.totalorder %s12, 1
    %p135 = scmp.ne.s32.totalorder %s130, %s132
    %p136 = scmp.eq.s32.totalorder %s12, 0
    %p137 = por %p135, %p136
    %p138 = scmp.ne.s32.totalorder %s130, %s132
    %p139 = scmp.eq.s32.totalorder %s17, 1
    %p140 = por %p138, %p139
    %p141 = scmp.ne.s32.totalorder %s132, %s133
    %p142 = scmp.eq.s32.totalorder %s17, 0
    %p143 = por %p141, %p142
    %p144 = scmp.ne.s32.totalorder %s132, %s133
    %p145 = scmp.eq.s32.totalorder %s18, 1
    %p146 = por %p144, %p145
    %p148 = scmp.ne.s32.totalorder %s133, %s147
    %p149 = scmp.eq.s32.totalorder %s18, 0
    %p150 = por %p148, %p149
    %s151 = ssub.s32 %s12, %s19
    %p152 = scmp.eq.s32.totalorder %s151, 0
    %s154 = sadd.s32 %s153, 1
    %s155 = scalar_select %p152, %s153, %s154
    %p158 = pneg %p152
    %p159 = scmp.eq.s32.totalorder %s12, 1
    %p160 = por %p158, %p159
    %p161 = scmp.ne.s32.totalorder %s153, %s156
    %p162 = scmp.eq.s32.totalorder %s12, 0
    %p163 = por %p161, %p162
    %p164 = scmp.ne.s32.totalorder %s153, %s156
    %p165 = scmp.eq.s32.totalorder %s17, 1
    %p166 = por %p164, %p165
    %p167 = scmp.ne.s32.totalorder %s156, %s157
    %p168 = scmp.eq.s32.totalorder %s17, 0
    %p169 = por %p167, %p168
    %p170 = scmp.ne.s32.totalorder %s156, %s157
    %p171 = scmp.eq.s32.totalorder %s18, 1
    %p172 = por %p170, %p171
    %p174 = scmp.ne.s32.totalorder %s157, %s173
    %p175 = scmp.eq.s32.totalorder %s18, 0
    %p176 = por %p174, %p175
    %p177 = scmp.le.s32.totalorder 1, %s12
    %p178 = scmp.lt.s32.totalorder %s12, 3
    %p179 = pnand %p177, %p178
    %p180 = pneg %p179
    // Predicated region
    $region9: #{up_forward.3} parent=5 // pred_check
      _
    $region10: #{up_forward.3} parent=5 // pred_check_branch
      %182 = sbr.rel (%p179) target = $region12
    $region11: #{up_forward.3} parent=5 // pred_region
      %s183 = ssub.s32 %s12, 1
      // Predicated region
      $region13: #{up_forward.3} parent=11 // pred_check
        %p184 = pneg %p59
      $region14: #{up_forward.3} parent=11 // pred_check_branch
        %186 = sbr.rel (%p184) target = $region16
      $region15: #{up_forward.3} parent=11 // pred_region
        _
      $region16: #{up_forward.3} parent=11 // pred_fallthru
        _
      // Predicated region
      $region17: #{up_forward.3} parent=11 // pred_check
        %p187 = pneg %p80
      $region18: #{up_forward.3} parent=11 // pred_check_branch
        %189 = sbr.rel (%p187) target = $region20
      $region19: #{up_forward.3} parent=11 // pred_region
        _
      $region20: #{up_forward.3} parent=11 // pred_fallthru
        _
      // Predicated region
      $region21: #{up_forward.3} parent=11 // pred_check
        %p190 = pneg %p101
      $region22: #{up_forward.3} parent=11 // pred_check_branch
        %192 = sbr.rel (%p190) target = $region24
      $region23: #{up_forward.3} parent=11 // pred_region
        _
      $region24: #{up_forward.3} parent=11 // pred_fallthru
        _
      // Predicated region
      $region25: #{up_forward.3} parent=11 // pred_check
        %p193 = pneg %p122
      $region26: #{up_forward.3} parent=11 // pred_check_branch
        %195 = sbr.rel (%p193) target = $region28
      $region27: #{up_forward.3} parent=11 // pred_region
        _
      $region28: #{up_forward.3} parent=11 // pred_fallthru
        _
      // Predicated region
      $region29: #{up_forward.3} parent=11 // pred_check
        %p196 = pneg %p143
      $region30: #{up_forward.3} parent=11 // pred_check_branch
        %198 = sbr.rel (%p196) target = $region32
      $region31: #{up_forward.3} parent=11 // pred_region
        _
      $region32: #{up_forward.3} parent=11 // pred_fallthru
        _
    $region12: #{up_forward.3} parent=5 // pred_fallthru
      _
    %p199 = scmp.lt.s32.totalorder %s12, 2
    // Predicated region
    $region33: #{up_forward.3} parent=5 // pred_check
      %p200 = pneg %p199
    $region34: #{up_forward.3} parent=5 // pred_check_branch
      %202 = sbr.rel (%p200) target = $region36
    $region35: #{up_forward.3} parent=5 // pred_region
      // Predicated region
      $region37: #{up_forward.3} parent=35 // pred_check
        %p203 = pneg %p32
      $region38: #{up_forward.3} parent=35 // pred_check_branch
        %205 = sbr.rel (%p203) target = $region40
      $region39: #{up_forward.3} parent=35 // pred_region
        %p206 = scmp.lt.s32.totalorder %s12, 1
        %s207 = scalar_select %p206, %s12, 1
        %s208 = smul.addr %s207, 8
        %s209 = smul.addr %s208, 4
        %s210 = scalar_lea.vmem %s0, %s209
      $region40: #{up_forward.3} parent=35 // pred_fallthru
        _
    $region36: #{up_forward.3} parent=5 // pred_fallthru
      _
    %p211 = scmp.le.s32.totalorder 1, %s12
    %p212 = scmp.lt.s32.totalorder %s12, 3
    %p213 = pnand %p211, %p212
    %p214 = pneg %p213
    // Predicated region
    $region41: #{up_forward.3} parent=5 // pred_check
      _
    $region42: #{up_forward.3} parent=5 // pred_check_branch
      %216 = sbr.rel (%p213) target = $region44
    $region43: #{up_forward.3} parent=5 // pred_region
      %s217 = ssub.s32 %s12, 1
      %p218 = scmp.lt.s32.totalorder %s17, 1
      %s219 = scalar_select %p218, %s17, 1
      %s220 = smul.addr %s219, 8
      %s221 = smul.addr %s220, 4
      %s222 = scalar_lea.vmem %s0, %s221
      %p223 = pneg %p38
      %p224 = pneg %p35
      %p225 = pneg %p59
      %p226 = pneg %p56
      %p227 = pneg %p80
      %p228 = pneg %p77
      %p229 = pneg %p101
      %p230 = pneg %p98
      %p231 = pneg %p122
      %p232 = pneg %p119
      %p233 = pneg %p143
      %p234 = pneg %p140
      %p235 = pneg %p169
      %p236 = pneg %p166
      %p237 = scmp.lt.s32.totalorder %s17, 1
      %s238 = scalar_select %p237, %s17, 1
      %s239 = smul.addr %s238, 8
      %s240 = smul.addr %s239, 8
      %s241 = scalar_lea.vmem %s6, %s240
      %p242 = scmp.lt.s32.totalorder %s17, 1
      %s243 = scalar_select %p242, %s17, 1
      %s244 = smul.addr %s243, 8
      %s245 = smul.addr %s244, 4
      %s246 = scalar_lea.vmem %s0, %s245
      %p247 = scmp.lt.s32.totalorder %s17, 1
      %s248 = scalar_select %p247, %s17, 1
      %s249 = smul.addr %s248, 8
      %s250 = smul.addr %s249, 8
      %s251 = scalar_lea.vmem %s6, %s250
      %v253 = vld [vmem:[%s246] sm:$0xff]
      %v254 = vld [vmem:[%s246 + $0x8] sm:$0xff]
      %v255 = vld [vmem:[%s246 + $0x10] sm:$0xff]
      %v256 = vld [vmem:[%s246 + $0x18] sm:$0xf]
      %257 = vst [vmem:[#allocation2] sm:$0xff] %v253
      %258 = vst [vmem:[#allocation2 + $0x8] sm:$0xff] %v254
      %259 = vst [vmem:[#allocation2 + $0x10] sm:$0xff] %v255
      %vm260 = vcmask 76800
      %261 = vst.msk [vmem:[#allocation2 + $0x18] sm:$0xf] %vm260, %v256
      %v262 = vld [vmem:[%s246] sm:$0xff]
      %v263 = vld [vmem:[%s246 + $0x8] sm:$0xff]
      %v264 = vld [vmem:[%s246 + $0x10] sm:$0xff]
      %v265 = vld [vmem:[%s246 + $0x18] sm:$0xf]
      %270 = vrot.lane.b32.xlu0 %v262, 127
      %v271 = vpop.permute.xlu0 %270
      %272 = vrot.lane.b32.xlu0 %v263, 127
      %v273 = vpop.permute.xlu0 %272
      %274 = vrot.lane.b32.xlu0 %v264, 127
      %v275 = vpop.permute.xlu0 %274
      %276 = vrot.lane.b32.xlu0 %v265, 127
      %v277 = vpop.permute.xlu0 %276
      %v278 = vrot.slane %v271, 4
      %v279 = vrot.slane %v273, 4
      %v280 = vrot.slane %v275, 4
      %v281 = vrot.slane %v277, 4
      %vm282 = vcmask 1043456
      %v283 = vsel %vm282, %v278, %v279
      %vm284 = vcmask 1039360
      %v285 = vsel %vm284, %v271, %v283
      %v286 = vsel %vm282, %v279, %v280
      %v287 = vsel %vm284, %v273, %v286
      %v288 = vsel %vm282, %v280, %v281
      %v289 = vsel %vm284, %v275, %v288
      %294 = vst [vmem:[#allocation2 + $0x1c] sm:$0xff] %v285
      %295 = vst [vmem:[#allocation2 + $0x24] sm:$0xff] %v287
      %296 = vst [vmem:[#allocation2 + $0x2c] sm:$0xff] %v289
      %297 = vst.msk [vmem:[#allocation2 + $0x34] sm:$0xf] %vm260, %v277
      %v298 = vld [vmem:[%s246] sm:$0xff]
      %v299 = vld [vmem:[%s246 + $0x8] sm:$0xff]
      %v300 = vld [vmem:[%s246 + $0x10] sm:$0xff]
      %v301 = vld [vmem:[%s246 + $0x18] sm:$0xf]
      %306 = vrot.lane.b32.xlu0 %v298, 126
      %v307 = vpop.permute.xlu0 %306
      %308 = vrot.lane.b32.xlu0 %v299, 126
      %v309 = vpop.permute.xlu0 %308
      %310 = vrot.lane.b32.xlu0 %v300, 126
      %v311 = vpop.permute.xlu0 %310
      %312 = vrot.lane.b32.xlu0 %v301, 126
      %v313 = vpop.permute.xlu0 %312
      %v314 = vrot.slane %v307, 4
      %v315 = vrot.slane %v309, 4
      %v316 = vrot.slane %v311, 4
      %v317 = vrot.slane %v313, 4
      %v318 = vsel %vm282, %v314, %v315
      %vm319 = vcmask 1031168
      %v320 = vsel %vm319, %v307, %v318
      %v321 = vsel %vm282, %v315, %v316
      %v322 = vsel %vm319, %v309, %v321
      %v323 = vsel %vm282, %v316, %v317
      %v324 = vsel %vm319, %v311, %v323
      %329 = vst [vmem:[#allocation2 + $0x38] sm:$0xff] %v320
      %330 = vst [vmem:[#allocation2 + $0x40] sm:$0xff] %v322
      %331 = vst [vmem:[#allocation2 + $0x48] sm:$0xff] %v324
      %332 = vst.msk [vmem:[#allocation2 + $0x50] sm:$0xf] %vm260, %v313
      %v333 = vld [vmem:[%s246] sm:$0xff]
      %v334 = vld [vmem:[%s246 + $0x8] sm:$0xff]
      %v335 = vld [vmem:[%s246 + $0x10] sm:$0xff]
      %v336 = vld [vmem:[%s246 + $0x18] sm:$0xf]
      %341 = vrot.lane.b32.xlu0 %v333, 118
      %v342 = vpop.permute.xlu0 %341
      %343 = vrot.lane.b32.xlu0 %v334, 118
      %v344 = vpop.permute.xlu0 %343
      %345 = vrot.lane.b32.xlu0 %v335, 118
      %v346 = vpop.permute.xlu0 %345
      %347 = vrot.lane.b32.xlu0 %v336, 118
      %v348 = vpop.permute.xlu0 %347
      %v349 = vrot.slane %v342, 4
      %v350 = vrot.slane %v344, 4
      %v351 = vrot.slane %v346, 4
      %v352 = vrot.slane %v348, 4
      %v353 = vsel %vm282, %v349, %v350
      %vm354 = vcmask 965632
      %v355 = vsel %vm354, %v342, %v353
      %v356 = vsel %vm282, %v350, %v351
      %v357 = vsel %vm354, %v344, %v356
      %v358 = vsel %vm282, %v351, %v352
      %v359 = vsel %vm354, %v346, %v358
      %364 = vst [vmem:[#allocation2 + $0x54] sm:$0xff] %v355
      %365 = vst [vmem:[#allocation2 + $0x5c] sm:$0xff] %v357
      %366 = vst [vmem:[#allocation2 + $0x64] sm:$0xff] %v359
      %367 = vst.msk [vmem:[#allocation2 + $0x6c] sm:$0xf] %vm260, %v348
      %v368 = vld [vmem:[%s246] sm:$0xff]
      %v369 = vld [vmem:[%s246 + $0x8] sm:$0xff]
      %v370 = vld [vmem:[%s246 + $0x10] sm:$0xff]
      %v371 = vld [vmem:[%s246 + $0x18] sm:$0xf]
      %376 = vrot.lane.b32.xlu0 %v368, 117
      %v377 = vpop.permute.xlu0 %376
      %378 = vrot.lane.b32.xlu0 %v369, 117
      %v379 = vpop.permute.xlu0 %378
      %380 = vrot.lane.b32.xlu0 %v370, 117
      %v381 = vpop.permute.xlu0 %380
      %382 = vrot.lane.b32.xlu0 %v371, 117
      %v383 = vpop.permute.xlu0 %382
      %v384 = vrot.slane %v377, 4
      %v385 = vrot.slane %v379, 4
      %v386 = vrot.slane %v381, 4
      %v387 = vrot.slane %v383, 4
      %v388 = vsel %vm282, %v384, %v385
      %vm389 = vcmask 957440
      %v390 = vsel %vm389, %v377, %v388
      %v391 = vsel %vm282, %v385, %v386
      %v392 = vsel %vm389, %v379, %v391
      %v393 = vsel %vm282, %v386, %v387
      %v394 = vsel %vm389, %v381, %v393
      %399 = vst [vmem:[#allocation2 + $0x70] sm:$0xff] %v390
      %400 = vst [vmem:[#allocation2 + $0x78] sm:$0xff] %v392
      %401 = vst [vmem:[#allocation2 + $0x80] sm:$0xff] %v394
      %402 = vst.msk [vmem:[#allocation2 + $0x88] sm:$0xf] %vm260, %v383
      %v403 = vld [vmem:[%s246] sm:$0xff]
      %v404 = vld [vmem:[%s246 + $0x8] sm:$0xff]
      %v405 = vld [vmem:[%s246 + $0x10] sm:$0xff]
      %v406 = vld [vmem:[%s246 + $0x18] sm:$0xf]
      %411 = vrot.lane.b32.xlu0 %v403, 116
      %v412 = vpop.permute.xlu0 %411
      %413 = vrot.lane.b32.xlu0 %v404, 116
      %v414 = vpop.permute.xlu0 %413
      %415 = vrot.lane.b32.xlu0 %v405, 116
      %v416 = vpop.permute.xlu0 %415
      %417 = vrot.lane.b32.xlu0 %v406, 116
      %v418 = vpop.permute.xlu0 %417
      %v419 = vrot.slane %v412, 4
      %v420 = vrot.slane %v414, 4
      %v421 = vrot.slane %v416, 4
      %v422 = vrot.slane %v418, 4
      %v423 = vsel %vm282, %v419, %v420
      %vm424 = vcmask 949248
      %v425 = vsel %vm424, %v412, %v423
      %v426 = vsel %vm282, %v420, %v421
      %v427 = vsel %vm424, %v414, %v426
      %v428 = vsel %vm282, %v421, %v422
      %v429 = vsel %vm424, %v416, %v428
      %434 = vst [vmem:[#allocation2 + $0x8c] sm:$0xff] %v425
      %435 = vst [vmem:[#allocation2 + $0x94] sm:$0xff] %v427
      %436 = vst [vmem:[#allocation2 + $0x9c] sm:$0xff] %v429
      %437 = vst.msk [vmem:[#allocation2 + $0xa4] sm:$0xf] %vm260, %v418
      %v438 = vld [vmem:[%s246] sm:$0xff]
      %v439 = vld [vmem:[%s246 + $0x8] sm:$0xff]
      %v440 = vld [vmem:[%s246 + $0x10] sm:$0xff]
      %v441 = vld [vmem:[%s246 + $0x18] sm:$0xf]
      %446 = vrot.lane.b32.xlu0 %v438, 108
      %v447 = vpop.permute.xlu0 %446
      %448 = vrot.lane.b32.xlu0 %v439, 108
      %v449 = vpop.permute.xlu0 %448
      %450 = vrot.lane.b32.xlu0 %v440, 108
      %v451 = vpop.permute.xlu0 %450
      %452 = vrot.lane.b32.xlu0 %v441, 108
      %v453 = vpop.permute.xlu0 %452
      %v454 = vrot.slane %v447, 4
      %v455 = vrot.slane %v449, 4
      %v456 = vrot.slane %v451, 4
      %v457 = vrot.slane %v453, 4
      %v458 = vsel %vm282, %v454, %v455
      %vm459 = vcmask 883712
      %v460 = vsel %vm459, %v447, %v458
      %v461 = vsel %vm282, %v455, %v456
      %v462 = vsel %vm459, %v449, %v461
      %v463 = vsel %vm282, %v456, %v457
      %v464 = vsel %vm459, %v451, %v463
      %469 = vst [vmem:[#allocation2 + $0xa8] sm:$0xff] %v460
      %470 = vst [vmem:[#allocation2 + $0xb0] sm:$0xff] %v462
      %471 = vst [vmem:[#allocation2 + $0xb8] sm:$0xff] %v464
      %472 = vst.msk [vmem:[#allocation2 + $0xc0] sm:$0xf] %vm260, %v453
      %v473 = vld [vmem:[%s246] sm:$0xff]
      %v474 = vld [vmem:[%s246 + $0x8] sm:$0xff]
      %v475 = vld [vmem:[%s246 + $0x10] sm:$0xff]
      %v476 = vld [vmem:[%s246 + $0x18] sm:$0xf]
      %481 = vrot.lane.b32.xlu0 %v473, 107
      %v482 = vpop.permute.xlu0 %481
      %483 = vrot.lane.b32.xlu0 %v474, 107
      %v484 = vpop.permute.xlu0 %483
      %485 = vrot.lane.b32.xlu0 %v475, 107
      %v486 = vpop.permute.xlu0 %485
      %487 = vrot.lane.b32.xlu0 %v476, 107
      %v488 = vpop.permute.xlu0 %487
      %v489 = vrot.slane %v482, 4
      %v490 = vrot.slane %v484, 4
      %v491 = vrot.slane %v486, 4
      %v492 = vrot.slane %v488, 4
      %v493 = vsel %vm282, %v489, %v490
      %vm494 = vcmask 875520
      %v495 = vsel %vm494, %v482, %v493
      %v496 = vsel %vm282, %v490, %v491
      %v497 = vsel %vm494, %v484, %v496
      %v498 = vsel %vm282, %v491, %v492
      %v499 = vsel %vm494, %v486, %v498
      %504 = vst [vmem:[#allocation2 + $0xc4] sm:$0xff] %v495
      %505 = vst [vmem:[#allocation2 + $0xcc] sm:$0xff] %v497
      %506 = vst [vmem:[#allocation2 + $0xd4] sm:$0xff] %v499
      %507 = vst.msk [vmem:[#allocation2 + $0xdc] sm:$0xf] %vm260, %v488
      %v508 = vld [vmem:[%s246] sm:$0xff]
      %v509 = vld [vmem:[%s246 + $0x8] sm:$0xff]
      %v510 = vld [vmem:[%s246 + $0x10] sm:$0xff]
      %v511 = vld [vmem:[%s246 + $0x18] sm:$0xf]
      %516 = vrot.lane.b32.xlu0 %v508, 106
      %v517 = vpop.permute.xlu0 %516
      %518 = vrot.lane.b32.xlu0 %v509, 106
      %v519 = vpop.permute.xlu0 %518
      %520 = vrot.lane.b32.xlu0 %v510, 106
      %v521 = vpop.permute.xlu0 %520
      %522 = vrot.lane.b32.xlu0 %v511, 106
      %v523 = vpop.permute.xlu0 %522
      %v524 = vrot.slane %v517, 4
      %v525 = vrot.slane %v519, 4
      %v526 = vrot.slane %v521, 4
      %v527 = vrot.slane %v523, 4
      %v528 = vsel %vm282, %v524, %v525
      %vm529 = vcmask 867328
      %v530 = vsel %vm529, %v517, %v528
      %v531 = vsel %vm282, %v525, %v526
      %v532 = vsel %vm529, %v519, %v531
      %v533 = vsel %vm282, %v526, %v527
      %v534 = vsel %vm529, %v521, %v533
      %539 = vst [vmem:[#allocation2 + $0xe0] sm:$0xff] %v530
      %540 = vst [vmem:[#allocation2 + $0xe8] sm:$0xff] %v532
      %541 = vst [vmem:[#allocation2 + $0xf0] sm:$0xff] %v534
      %542 = vst.msk [vmem:[#allocation2 + $0xf8] sm:$0xf] %vm260, %v523
      %v543 = vld [vmem:[%s246] sm:$0xff]
      %v544 = vld [vmem:[%s246 + $0x8] sm:$0xff]
      %v545 = vld [vmem:[%s246 + $0x10] sm:$0xff]
      %v546 = vld [vmem:[%s246 + $0x18] sm:$0xf]
      %551 = vrot.lane.b32.xlu0 %v543, 28
      %v552 = vpop.permute.xlu0 %551
      %553 = vrot.lane.b32.xlu0 %v544, 28
      %v554 = vpop.permute.xlu0 %553
      %555 = vrot.lane.b32.xlu0 %v545, 28
      %v556 = vpop.permute.xlu0 %555
      %557 = vrot.lane.b32.xlu0 %v546, 28
      %v558 = vpop.permute.xlu0 %557
      %v559 = vrot.slane %v552, 4
      %v560 = vrot.slane %v554, 4
      %v561 = vrot.slane %v556, 4
      %v562 = vrot.slane %v558, 4
      %v563 = vsel %vm282, %v559, %v560
      %vm564 = vcmask 228352
      %v565 = vsel %vm564, %v552, %v563
      %v566 = vsel %vm282, %v560, %v561
      %v567 = vsel %vm564, %v554, %v566
      %v568 = vsel %vm282, %v561, %v562
      %v569 = vsel %vm564, %v556, %v568
      %574 = vst [vmem:[#allocation2 + $0xfc] sm:$0xff] %v565
      %575 = vst [vmem:[#allocation2 + $0x104] sm:$0xff] %v567
      %576 = vst [vmem:[#allocation2 + $0x10c] sm:$0xff] %v569
      %577 = vst.msk [vmem:[#allocation2 + $0x114] sm:$0xf] %vm260, %v558
      %v578 = vld [vmem:[%s246] sm:$0xff]
      %v579 = vld [vmem:[%s246 + $0x8] sm:$0xff]
      %v580 = vld [vmem:[%s246 + $0x10] sm:$0xff]
      %v581 = vld [vmem:[%s246 + $0x18] sm:$0xf]
      %586 = vrot.lane.b32.xlu0 %v578, 27
      %v587 = vpop.permute.xlu0 %586
      %588 = vrot.lane.b32.xlu0 %v579, 27
      %v589 = vpop.permute.xlu0 %588
      %590 = vrot.lane.b32.xlu0 %v580, 27
      %v591 = vpop.permute.xlu0 %590
      %592 = vrot.lane.b32.xlu0 %v581, 27
      %v593 = vpop.permute.xlu0 %592
      %v594 = vrot.slane %v587, 4
      %v595 = vrot.slane %v589, 4
      %v596 = vrot.slane %v591, 4
      %v597 = vrot.slane %v593, 4
      %v598 = vsel %vm282, %v594, %v595
      %vm599 = vcmask 220160
      %v600 = vsel %vm599, %v587, %v598
      %v601 = vsel %vm282, %v595, %v596
      %v602 = vsel %vm599, %v589, %v601
      %v603 = vsel %vm282, %v596, %v597
      %v604 = vsel %vm599, %v591, %v603
      %609 = vst [vmem:[#allocation2 + $0x118] sm:$0xff] %v600
      %610 = vst [vmem:[#allocation2 + $0x120] sm:$0xff] %v602
      %611 = vst [vmem:[#allocation2 + $0x128] sm:$0xff] %v604
      %612 = vst.msk [vmem:[#allocation2 + $0x130] sm:$0xf] %vm260, %v593
      %v613 = vld [vmem:[%s246] sm:$0xff]
      %v614 = vld [vmem:[%s246 + $0x8] sm:$0xff]
      %v615 = vld [vmem:[%s246 + $0x10] sm:$0xff]
      %v616 = vld [vmem:[%s246 + $0x18] sm:$0xf]
      %621 = vrot.lane.b32.xlu0 %v613, 26
      %v622 = vpop.permute.xlu0 %621
      %623 = vrot.lane.b32.xlu0 %v614, 26
      %v624 = vpop.permute.xlu0 %623
      %625 = vrot.lane.b32.xlu0 %v615, 26
      %v626 = vpop.permute.xlu0 %625
      %627 = vrot.lane.b32.xlu0 %v616, 26
      %v628 = vpop.permute.xlu0 %627
      %v629 = vrot.slane %v622, 4
      %v630 = vrot.slane %v624, 4
      %v631 = vrot.slane %v626, 4
      %v632 = vrot.slane %v628, 4
      %v633 = vsel %vm282, %v629, %v630
      %vm634 = vcmask 211968
      %v635 = vsel %vm634, %v622, %v633
      %v636 = vsel %vm282, %v630, %v631
      %v637 = vsel %vm634, %v624, %v636
      %v638 = vsel %vm282, %v631, %v632
      %v639 = vsel %vm634, %v626, %v638
      %644 = vst [vmem:[#allocation2 + $0x134] sm:$0xff] %v635
      %645 = vst [vmem:[#allocation2 + $0x13c] sm:$0xff] %v637
      %646 = vst [vmem:[#allocation2 + $0x144] sm:$0xff] %v639
      %647 = vst.msk [vmem:[#allocation2 + $0x14c] sm:$0xf] %vm260, %v628
      %v648 = vld [vmem:[%s246] sm:$0xff]
      %v649 = vld [vmem:[%s246 + $0x8] sm:$0xff]
      %v650 = vld [vmem:[%s246 + $0x10] sm:$0xff]
      %v651 = vld [vmem:[%s246 + $0x18] sm:$0xf]
      %656 = vrot.lane.b32.xlu0 %v648, 18
      %v657 = vpop.permute.xlu0 %656
      %658 = vrot.lane.b32.xlu0 %v649, 18
      %v659 = vpop.permute.xlu0 %658
      %660 = vrot.lane.b32.xlu0 %v650, 18
      %v661 = vpop.permute.xlu0 %660
      %662 = vrot.lane.b32.xlu0 %v651, 18
      %v663 = vpop.permute.xlu0 %662
      %v664 = vrot.slane %v657, 4
      %v665 = vrot.slane %v659, 4
      %v666 = vrot.slane %v661, 4
      %v667 = vrot.slane %v663, 4
      %v668 = vsel %vm282, %v664, %v665
      %vm669 = vcmask 146432
      %v670 = vsel %vm669, %v657, %v668
      %v671 = vsel %vm282, %v665, %v666
      %v672 = vsel %vm669, %v659, %v671
      %v673 = vsel %vm282, %v666, %v667
      %v674 = vsel %vm669, %v661, %v673
      %679 = vst [vmem:[#allocation2 + $0x150] sm:$0xff] %v670
      %680 = vst [vmem:[#allocation2 + $0x158] sm:$0xff] %v672
      %681 = vst [vmem:[#allocation2 + $0x160] sm:$0xff] %v674
      %682 = vst.msk [vmem:[#allocation2 + $0x168] sm:$0xf] %vm260, %v663
      %v683 = vld [vmem:[%s246] sm:$0xff]
      %v684 = vld [vmem:[%s246 + $0x8] sm:$0xff]
      %v685 = vld [vmem:[%s246 + $0x10] sm:$0xff]
      %v686 = vld [vmem:[%s246 + $0x18] sm:$0xf]
      %691 = vrot.lane.b32.xlu0 %v683, 17
      %v692 = vpop.permute.xlu0 %691
      %693 = vrot.lane.b32.xlu0 %v684, 17
      %v694 = vpop.permute.xlu0 %693
      %695 = vrot.lane.b32.xlu0 %v685, 17
      %v696 = vpop.permute.xlu0 %695
      %697 = vrot.lane.b32.xlu0 %v686, 17
      %v698 = vpop.permute.xlu0 %697
      %v699 = vrot.slane %v692, 4
      %v700 = vrot.slane %v694, 4
      %v701 = vrot.slane %v696, 4
      %v702 = vrot.slane %v698, 4
      %v703 = vsel %vm282, %v699, %v700
      %vm704 = vcmask 138240
      %v705 = vsel %vm704, %v692, %v703
      %v706 = vsel %vm282, %v700, %v701
      %v707 = vsel %vm704, %v694, %v706
      %v708 = vsel %vm282, %v701, %v702
      %v709 = vsel %vm704, %v696, %v708
      %714 = vst [vmem:[#allocation2 + $0x16c] sm:$0xff] %v705
      %715 = vst [vmem:[#allocation2 + $0x174] sm:$0xff] %v707
      %716 = vst [vmem:[#allocation2 + $0x17c] sm:$0xff] %v709
      %717 = vst.msk [vmem:[#allocation2 + $0x184] sm:$0xf] %vm260, %v698
      %v718 = vld [vmem:[%s246] sm:$0xff]
      %v719 = vld [vmem:[%s246 + $0x8] sm:$0xff]
      %v720 = vld [vmem:[%s246 + $0x10] sm:$0xff]
      %v721 = vld [vmem:[%s246 + $0x18] sm:$0xf]
      %726 = vrot.lane.b32.xlu0 %v718, 16
      %v727 = vpop.permute.xlu0 %726
      %728 = vrot.lane.b32.xlu0 %v719, 16
      %v729 = vpop.permute.xlu0 %728
      %730 = vrot.lane.b32.xlu0 %v720, 16
      %v731 = vpop.permute.xlu0 %730
      %732 = vrot.lane.b32.xlu0 %v721, 16
      %v733 = vpop.permute.xlu0 %732
      %v734 = vrot.slane %v727, 4
      %v735 = vrot.slane %v729, 4
      %v736 = vrot.slane %v731, 4
      %v737 = vrot.slane %v733, 4
      %v738 = vsel %vm282, %v734, %v735
      %vm739 = vcmask 130048
      %v740 = vsel %vm739, %v727, %v738
      %v741 = vsel %vm282, %v735, %v736
      %v742 = vsel %vm739, %v729, %v741
      %v743 = vsel %vm282, %v736, %v737
      %v744 = vsel %vm739, %v731, %v743
      %749 = vst [vmem:[#allocation2 + $0x188] sm:$0xff] %v740
      %750 = vst [vmem:[#allocation2 + $0x190] sm:$0xff] %v742
      %751 = vst [vmem:[#allocation2 + $0x198] sm:$0xff] %v744
      %752 = vst.msk [vmem:[#allocation2 + $0x1a0] sm:$0xf] %vm260, %v733
      %v753 = vld [vmem:[%s246] sm:$0xff]
      %v754 = vld [vmem:[%s246 + $0x8] sm:$0xff]
      %v755 = vld [vmem:[%s246 + $0x10] sm:$0xff]
      %v756 = vld [vmem:[%s246 + $0x18] sm:$0xff]
      %761 = vrot.lane.b32.xlu0 %v753, 8
      %v762 = vpop.permute.xlu0 %761
      %763 = vrot.lane.b32.xlu0 %v754, 8
      %v764 = vpop.permute.xlu0 %763
      %765 = vrot.lane.b32.xlu0 %v755, 8
      %v766 = vpop.permute.xlu0 %765
      %767 = vrot.lane.b32.xlu0 %v756, 8
      %v768 = vpop.permute.xlu0 %767
      %v769 = vrot.slane %v762, 4
      %v770 = vrot.slane %v764, 4
      %v771 = vrot.slane %v766, 4
      %v772 = vrot.slane %v768, 4
      %v773 = vsel %vm282, %v769, %v770
      %vm774 = vcmask 64512
      %v775 = vsel %vm774, %v762, %v773
      %v776 = vsel %vm282, %v770, %v771
      %v777 = vsel %vm774, %v764, %v776
      %v778 = vsel %vm282, %v771, %v772
      %v779 = vsel %vm774, %v766, %v778
      %v780 = vsel %vm774, %v768, %v772
      %785 = vst [vmem:[#allocation2 + $0x1a4] sm:$0xff] %v775
      %786 = vst [vmem:[#allocation2 + $0x1ac] sm:$0xff] %v777
      %787 = vst [vmem:[#allocation2 + $0x1b4] sm:$0xff] %v779
      %788 = vst.msk [vmem:[#allocation2 + $0x1bc] sm:$0xf] %vm260, %v780
      %v789 = vld [vmem:[%s246] sm:$0xff]
      %v790 = vld [vmem:[%s246 + $0x8] sm:$0xff]
      %v791 = vld [vmem:[%s246 + $0x10] sm:$0xff]
      %v792 = vld [vmem:[%s246 + $0x18] sm:$0xff]
      %797 = vrot.lane.b32.xlu0 %v789, 7
      %v798 = vpop.permute.xlu0 %797
      %799 = vrot.lane.b32.xlu0 %v790, 7
      %v800 = vpop.permute.xlu0 %799
      %801 = vrot.lane.b32.xlu0 %v791, 7
      %v802 = vpop.permute.xlu0 %801
      %803 = vrot.lane.b32.xlu0 %v792, 7
      %v804 = vpop.permute.xlu0 %803
      %v805 = vrot.slane %v798, 4
      %v806 = vrot.slane %v800, 4
      %v807 = vrot.slane %v802, 4
      %v808 = vrot.slane %v804, 4
      %v809 = vsel %vm282, %v805, %v806
      %vm810 = vcmask 56320
      %v811 = vsel %vm810, %v798, %v809
      %v812 = vsel %vm282, %v806, %v807
      %v813 = vsel %vm810, %v800, %v812
      %v814 = vsel %vm282, %v807, %v808
      %v815 = vsel %vm810, %v802, %v814
      %v816 = vsel %vm810, %v804, %v808
      %821 = vst [vmem:[#allocation2 + $0x1c0] sm:$0xff] %v811
      %822 = vst [vmem:[#allocation2 + $0x1c8] sm:$0xff] %v813
      %823 = vst [vmem:[#allocation2 + $0x1d0] sm:$0xff] %v815
      %824 = vst.msk [vmem:[#allocation2 + $0x1d8] sm:$0xf] %vm260, %v816
      %v825 = vld [vmem:[%s246] sm:$0xff]
      %v826 = vld [vmem:[%s246 + $0x8] sm:$0xff]
      %v827 = vld [vmem:[%s246 + $0x10] sm:$0xff]
      %v828 = vld [vmem:[%s246 + $0x18] sm:$0xff]
      %833 = vrot.lane.b32.xlu0 %v825, 6
      %v834 = vpop.permute.xlu0 %833
      %835 = vrot.lane.b32.xlu0 %v826, 6
      %v836 = vpop.permute.xlu0 %835
      %837 = vrot.lane.b32.xlu0 %v827, 6
      %v838 = vpop.permute.xlu0 %837
      %839 = vrot.lane.b32.xlu0 %v828, 6
      %v840 = vpop.permute.xlu0 %839
      %v841 = vrot.slane %v834, 4
      %v842 = vrot.slane %v836, 4
      %v843 = vrot.slane %v838, 4
      %v844 = vrot.slane %v840, 4
      %v845 = vsel %vm282, %v841, %v842
      %vm846 = vcmask 48128
      %v847 = vsel %vm846, %v834, %v845
      %v848 = vsel %vm282, %v842, %v843
      %v849 = vsel %vm846, %v836, %v848
      %v850 = vsel %vm282, %v843, %v844
      %v851 = vsel %vm846, %v838, %v850
      %v852 = vsel %vm846, %v840, %v844
      %857 = vst [vmem:[#allocation2 + $0x1dc] sm:$0xff] %v847
      %858 = vst [vmem:[#allocation2 + $0x1e4] sm:$0xff] %v849
      %859 = vst [vmem:[#allocation2 + $0x1ec] sm:$0xff] %v851
      %860 = vst.msk [vmem:[#allocation2 + $0x1f4] sm:$0xf] %vm260, %v852
      %v861 = vld [vmem:[%s246 + $0x4] sm:$0xff]
      %v862 = vld [vmem:[%s246 + $0xc] sm:$0xff]
      %v863 = vld [vmem:[%s246 + $0x14] sm:$0xff]
      %v864 = vld [vmem:[%s246 + $0x1c] sm:$0xf]
      %869 = vrot.lane.b32.xlu0 %v861, 56
      %v870 = vpop.permute.xlu0 %869
      %871 = vrot.lane.b32.xlu0 %v862, 56
      %v872 = vpop.permute.xlu0 %871
      %873 = vrot.lane.b32.xlu0 %v863, 56
      %v874 = vpop.permute.xlu0 %873
      %875 = vrot.lane.b32.xlu0 %v864, 56
      %v876 = vpop.permute.xlu0 %875
      %v877 = vrot.slane %v870, 4
      %v878 = vrot.slane %v872, 4
      %v879 = vrot.slane %v874, 4
      %v880 = vrot.slane %v876, 4
      %v881 = vsel %vm282, %v877, %v878
      %vm882 = vcmask 457728
      %v883 = vsel %vm882, %v870, %v881
      %v884 = vsel %vm282, %v878, %v879
      %v885 = vsel %vm882, %v872, %v884
      %v886 = vsel %vm282, %v879, %v880
      %v887 = vsel %vm882, %v874, %v886
      %892 = vst [vmem:[#allocation2 + $0x1f8] sm:$0xff] %v883
      %893 = vst [vmem:[#allocation2 + $0x200] sm:$0xff] %v885
      %894 = vst [vmem:[#allocation2 + $0x208] sm:$0xff] %v887
      %895 = vst.msk [vmem:[#allocation2 + $0x210] sm:$0xf] %vm260, %v876
      %v896 = vld [vmem:[%s246 + $0x4] sm:$0xff]
      %v897 = vld [vmem:[%s246 + $0xc] sm:$0xff]
      %v898 = vld [vmem:[%s246 + $0x14] sm:$0xff]
      %v899 = vld [vmem:[%s246 + $0x1c] sm:$0xf]
      %904 = vrot.lane.b32.xlu0 %v896, 55
      %v905 = vpop.permute.xlu0 %904
      %906 = vrot.lane.b32.xlu0 %v897, 55
      %v907 = vpop.permute.xlu0 %906
      %908 = vrot.lane.b32.xlu0 %v898, 55
      %v909 = vpop.permute.xlu0 %908
      %910 = vrot.lane.b32.xlu0 %v899, 55
      %v911 = vpop.permute.xlu0 %910
      %v912 = vrot.slane %v905, 4
      %v913 = vrot.slane %v907, 4
      %v914 = vrot.slane %v909, 4
      %v915 = vrot.slane %v911, 4
      %v916 = vsel %vm282, %v912, %v913
      %vm917 = vcmask 449536
      %v918 = vsel %vm917, %v905, %v916
      %v919 = vsel %vm282, %v913, %v914
      %v920 = vsel %vm917, %v907, %v919
      %v921 = vsel %vm282, %v914, %v915
      %v922 = vsel %vm917, %v909, %v921
      %927 = vst [vmem:[#allocation2 + $0x214] sm:$0xff] %v918
      %928 = vst [vmem:[#allocation2 + $0x21c] sm:$0xff] %v920
      %929 = vst [vmem:[#allocation2 + $0x224] sm:$0xff] %v922
      %930 = vst.msk [vmem:[#allocation2 + $0x22c] sm:$0xf] %vm260, %v911
      %v931 = vld [vmem:[%s246 + $0x4] sm:$0xff]
      %v932 = vld [vmem:[%s246 + $0xc] sm:$0xff]
      %v933 = vld [vmem:[%s246 + $0x14] sm:$0xff]
      %v934 = vld [vmem:[%s246 + $0x1c] sm:$0xf]
      %939 = vrot.lane.b32.xlu0 %v931, 54
      %v940 = vpop.permute.xlu0 %939
      %941 = vrot.lane.b32.xlu0 %v932, 54
      %v942 = vpop.permute.xlu0 %941
      %943 = vrot.lane.b32.xlu0 %v933, 54
      %v944 = vpop.permute.xlu0 %943
      %945 = vrot.lane.b32.xlu0 %v934, 54
      %v946 = vpop.permute.xlu0 %945
      %v947 = vrot.slane %v940, 4
      %v948 = vrot.slane %v942, 4
      %v949 = vrot.slane %v944, 4
      %v950 = vrot.slane %v946, 4
      %v951 = vsel %vm282, %v947, %v948
      %vm952 = vcmask 441344
      %v953 = vsel %vm952, %v940, %v951
      %v954 = vsel %vm282, %v948, %v949
      %v955 = vsel %vm952, %v942, %v954
      %v956 = vsel %vm282, %v949, %v950
      %v957 = vsel %vm952, %v944, %v956
      %962 = vst [vmem:[#allocation2 + $0x230] sm:$0xff] %v953
      %963 = vst [vmem:[#allocation2 + $0x238] sm:$0xff] %v955
      %964 = vst [vmem:[#allocation2 + $0x240] sm:$0xff] %v957
      %965 = vst.msk [vmem:[#allocation2 + $0x248] sm:$0xf] %vm260, %v946
      %v966 = vld [vmem:[%s246 + $0x4] sm:$0xff]
      %v967 = vld [vmem:[%s246 + $0xc] sm:$0xff]
      %v968 = vld [vmem:[%s246 + $0x14] sm:$0xff]
      %v969 = vld [vmem:[%s246 + $0x1c] sm:$0xf]
      %974 = vrot.lane.b32.xlu0 %v966, 46
      %v975 = vpop.permute.xlu0 %974
      %976 = vrot.lane.b32.xlu0 %v967, 46
      %v977 = vpop.permute.xlu0 %976
      %978 = vrot.lane.b32.xlu0 %v968, 46
      %v979 = vpop.permute.xlu0 %978
      %980 = vrot.lane.b32.xlu0 %v969, 46
      %v981 = vpop.permute.xlu0 %980
      %v982 = vrot.slane %v975, 4
      %v983 = vrot.slane %v977, 4
      %v984 = vrot.slane %v979, 4
      %v985 = vrot.slane %v981, 4
      %v986 = vsel %vm282, %v982, %v983
      %vm987 = vcmask 375808
      %v988 = vsel %vm987, %v975, %v986
      %v989 = vsel %vm282, %v983, %v984
      %v990 = vsel %vm987, %v977, %v989
      %v991 = vsel %vm282, %v984, %v985
      %v992 = vsel %vm987, %v979, %v991
      %997 = vst [vmem:[#allocation2 + $0x24c] sm:$0xff] %v988
      %998 = vst [vmem:[#allocation2 + $0x254] sm:$0xff] %v990
      %999 = vst [vmem:[#allocation2 + $0x25c] sm:$0xff] %v992
      %1000 = vst.msk [vmem:[#allocation2 + $0x264] sm:$0xf] %vm260, %v981
      %v1001 = vld [vmem:[%s246 + $0x4] sm:$0xff]
      %v1002 = vld [vmem:[%s246 + $0xc] sm:$0xff]
      %v1003 = vld [vmem:[%s246 + $0x14] sm:$0xff]
      %v1004 = vld [vmem:[%s246 + $0x1c] sm:$0xf]
      %1009 = vrot.lane.b32.xlu0 %v1001, 45
      %v1010 = vpop.permute.xlu0 %1009
      %1011 = vrot.lane.b32.xlu0 %v1002, 45
      %v1012 = vpop.permute.xlu0 %1011
      %1013 = vrot.lane.b32.xlu0 %v1003, 45
      %v1014 = vpop.permute.xlu0 %1013
      %1015 = vrot.lane.b32.xlu0 %v1004, 45
      %v1016 = vpop.permute.xlu0 %1015
      %v1017 = vrot.slane %v1010, 4
      %v1018 = vrot.slane %v1012, 4
      %v1019 = vrot.slane %v1014, 4
      %v1020 = vrot.slane %v1016, 4
      %v1021 = vsel %vm282, %v1017, %v1018
      %vm1022 = vcmask 367616
      %v1023 = vsel %vm1022, %v1010, %v1021
      %v1024 = vsel %vm282, %v1018, %v1019
      %v1025 = vsel %vm1022, %v1012, %v1024
      %v1026 = vsel %vm282, %v1019, %v1020
      %v1027 = vsel %vm1022, %v1014, %v1026
      %1032 = vst [vmem:[#allocation2 + $0x268] sm:$0xff] %v1023
      %1033 = vst [vmem:[#allocation2 + $0x270] sm:$0xff] %v1025
      %1034 = vst [vmem:[#allocation2 + $0x278] sm:$0xff] %v1027
      %1035 = vst.msk [vmem:[#allocation2 + $0x280] sm:$0xf] %vm260, %v1016
      %v1036 = vld [vmem:[%s246 + $0x4] sm:$0xff]
      %v1037 = vld [vmem:[%s246 + $0xc] sm:$0xff]
      %v1038 = vld [vmem:[%s246 + $0x14] sm:$0xff]
      %v1039 = vld [vmem:[%s246 + $0x1c] sm:$0xf]
      %1044 = vrot.lane.b32.xlu0 %v1036, 44
      %v1045 = vpop.permute.xlu0 %1044
      %1046 = vrot.lane.b32.xlu0 %v1037, 44
      %v1047 = vpop.permute.xlu0 %1046
      %1048 = vrot.lane.b32.xlu0 %v1038, 44
      %v1049 = vpop.permute.xlu0 %1048
      %1050 = vrot.lane.b32.xlu0 %v1039, 44
      %v1051 = vpop.permute.xlu0 %1050
      %v1052 = vrot.slane %v1045, 4
      %v1053 = vrot.slane %v1047, 4
      %v1054 = vrot.slane %v1049, 4
      %v1055 = vrot.slane %v1051, 4
      %v1056 = vsel %vm282, %v1052, %v1053
      %vm1057 = vcmask 359424
      %v1058 = vsel %vm1057, %v1045, %v1056
      %v1059 = vsel %vm282, %v1053, %v1054
      %v1060 = vsel %vm1057, %v1047, %v1059
      %v1061 = vsel %vm282, %v1054, %v1055
      %v1062 = vsel %vm1057, %v1049, %v1061
      %1067 = vst [vmem:[#allocation2 + $0x284] sm:$0xff] %v1058
      %1068 = vst [vmem:[#allocation2 + $0x28c] sm:$0xff] %v1060
      %1069 = vst [vmem:[#allocation2 + $0x294] sm:$0xff] %v1062
      %1070 = vst.msk [vmem:[#allocation2 + $0x29c] sm:$0xf] %vm260, %v1051
      %v1071 = vld [vmem:[%s246 + $0x4] sm:$0xff]
      %v1072 = vld [vmem:[%s246 + $0xc] sm:$0xff]
      %v1073 = vld [vmem:[%s246 + $0x14] sm:$0xff]
      %v1074 = vld [vmem:[%s246 + $0x1c] sm:$0xf]
      %1079 = vrot.lane.b32.xlu0 %v1071, 36
      %v1080 = vpop.permute.xlu0 %1079
      %1081 = vrot.lane.b32.xlu0 %v1072, 36
      %v1082 = vpop.permute.xlu0 %1081
      %1083 = vrot.lane.b32.xlu0 %v1073, 36
      %v1084 = vpop.permute.xlu0 %1083
      %1085 = vrot.lane.b32.xlu0 %v1074, 36
      %v1086 = vpop.permute.xlu0 %1085
      %v1087 = vrot.slane %v1080, 4
      %v1088 = vrot.slane %v1082, 4
      %v1089 = vrot.slane %v1084, 4
      %v1090 = vrot.slane %v1086, 4
      %v1091 = vsel %vm282, %v1087, %v1088
      %vm1092 = vcmask 293888
      %v1093 = vsel %vm1092, %v1080, %v1091
      %v1094 = vsel %vm282, %v1088, %v1089
      %v1095 = vsel %vm1092, %v1082, %v1094
      %v1096 = vsel %vm282, %v1089, %v1090
      %v1097 = vsel %vm1092, %v1084, %v1096
      %1102 = vst [vmem:[#allocation2 + $0x2a0] sm:$0xff] %v1093
      %1103 = vst [vmem:[#allocation2 + $0x2a8] sm:$0xff] %v1095
      %1104 = vst [vmem:[#allocation2 + $0x2b0] sm:$0xff] %v1097
      %1105 = vst.msk [vmem:[#allocation2 + $0x2b8] sm:$0xf] %vm260, %v1086
      %v1106 = vld [vmem:[%s246 + $0x4] sm:$0xff]
      %v1107 = vld [vmem:[%s246 + $0xc] sm:$0xff]
      %v1108 = vld [vmem:[%s246 + $0x14] sm:$0xff]
      %v1109 = vld [vmem:[%s246 + $0x1c] sm:$0xf]
      %1114 = vrot.lane.b32.xlu0 %v1106, 35
      %v1115 = vpop.permute.xlu0 %1114
      %1116 = vrot.lane.b32.xlu0 %v1107, 35
      %v1117 = vpop.permute.xlu0 %1116
      %1118 = vrot.lane.b32.xlu0 %v1108, 35
      %v1119 = vpop.permute.xlu0 %1118
      %1120 = vrot.lane.b32.xlu0 %v1109, 35
      %v1121 = vpop.permute.xlu0 %1120
      %v1122 = vrot.slane %v1115, 4
      %v1123 = vrot.slane %v1117, 4
      %v1124 = vrot.slane %v1119, 4
      %v1125 = vrot.slane %v1121, 4
      %v1126 = vsel %vm282, %v1122, %v1123
      %vm1127 = vcmask 285696
      %v1128 = vsel %vm1127, %v1115, %v1126
      %v1129 = vsel %vm282, %v1123, %v1124
      %v1130 = vsel %vm1127, %v1117, %v1129
      %v1131 = vsel %vm282, %v1124, %v1125
      %v1132 = vsel %vm1127, %v1119, %v1131
      %1137 = vst [vmem:[#allocation2 + $0x2bc] sm:$0xff] %v1128
      %1138 = vst [vmem:[#allocation2 + $0x2c4] sm:$0xff] %v1130
      %1139 = vst [vmem:[#allocation2 + $0x2cc] sm:$0xff] %v1132
      %1140 = vst.msk [vmem:[#allocation2 + $0x2d4] sm:$0xf] %vm260, %v1121
      %v1141 = vld [vmem:[%s246 + $0x4] sm:$0xff]
      %v1142 = vld [vmem:[%s246 + $0xc] sm:$0xff]
      %v1143 = vld [vmem:[%s246 + $0x14] sm:$0xff]
      %v1144 = vld [vmem:[%s246 + $0x1c] sm:$0xf]
      %1149 = vrot.lane.b32.xlu0 %v1141, 34
      %v1150 = vpop.permute.xlu0 %1149
      %1151 = vrot.lane.b32.xlu0 %v1142, 34
      %v1152 = vpop.permute.xlu0 %1151
      %1153 = vrot.lane.b32.xlu0 %v1143, 34
      %v1154 = vpop.permute.xlu0 %1153
      %1155 = vrot.lane.b32.xlu0 %v1144, 34
      %v1156 = vpop.permute.xlu0 %1155
      %v1157 = vrot.slane %v1150, 4
      %v1158 = vrot.slane %v1152, 4
      %v1159 = vrot.slane %v1154, 4
      %v1160 = vrot.slane %v1156, 4
      %v1161 = vsel %vm282, %v1157, %v1158
      %vm1162 = vcmask 277504
      %v1163 = vsel %vm1162, %v1150, %v1161
      %v1164 = vsel %vm282, %v1158, %v1159
      %v1165 = vsel %vm1162, %v1152, %v1164
      %v1166 = vsel %vm282, %v1159, %v1160
      %v1167 = vsel %vm1162, %v1154, %v1166
      %1172 = vst [vmem:[#allocation2 + $0x2d8] sm:$0xff] %v1163
      %1173 = vst [vmem:[#allocation2 + $0x2e0] sm:$0xff] %v1165
      %1174 = vst [vmem:[#allocation2 + $0x2e8] sm:$0xff] %v1167
      %1175 = vst.msk [vmem:[#allocation2 + $0x2f0] sm:$0xf] %vm260, %v1156
      %v1176 = vld [vmem:[%s1] sm:$0xff]
      %v1177 = vld [vmem:[#allocation2] sm:$0xff]
      %v1178 = vld [vmem:[#allocation2 + $0x8] sm:$0xff]
      %v1179 = vld [vmem:[#allocation2 + $0x10] sm:$0xff]
      %v1180 = vld [vmem:[#allocation2 + $0x18] sm:$0xf]
      %v1181 = vld [vmem:[#allocation2 + $0x1c] sm:$0xff]
      %v1182 = vld [vmem:[#allocation2 + $0x24] sm:$0xff]
      %v1183 = vld [vmem:[#allocation2 + $0x2c] sm:$0xff]
      %v1184 = vld [vmem:[#allocation2 + $0x34] sm:$0xf]
      %v1185 = vld [vmem:[#allocation2 + $0x38] sm:$0xff]
      %v1186 = vld [vmem:[#allocation2 + $0x40] sm:$0xff]
      %v1187 = vld [vmem:[#allocation2 + $0x48] sm:$0xff]
      %v1188 = vld [vmem:[#allocation2 + $0x50] sm:$0xf]
      %v1189 = vld [vmem:[#allocation2 + $0x54] sm:$0xff]
      %v1190 = vld [vmem:[#allocation2 + $0x5c] sm:$0xff]
      %v1191 = vld [vmem:[#allocation2 + $0x64] sm:$0xff]
      %v1192 = vld [vmem:[#allocation2 + $0x6c] sm:$0xf]
      %v1193 = vld [vmem:[#allocation2 + $0x70] sm:$0xff]
      %v1194 = vld [vmem:[#allocation2 + $0x78] sm:$0xff]
      %v1195 = vld [vmem:[#allocation2 + $0x80] sm:$0xff]
      %v1196 = vld [vmem:[#allocation2 + $0x88] sm:$0xf]
      %v1197 = vld [vmem:[#allocation2 + $0x8c] sm:$0xff]
      %v1198 = vld [vmem:[#allocation2 + $0x94] sm:$0xff]
      %v1199 = vld [vmem:[#allocation2 + $0x9c] sm:$0xff]
      %v1200 = vld [vmem:[#allocation2 + $0xa4] sm:$0xf]
      %v1201 = vld [vmem:[#allocation2 + $0xa8] sm:$0xff]
      %v1202 = vld [vmem:[#allocation2 + $0xb0] sm:$0xff]
      %v1203 = vld [vmem:[#allocation2 + $0xb8] sm:$0xff]
      %v1204 = vld [vmem:[#allocation2 + $0xc0] sm:$0xf]
      %v1205 = vld [vmem:[#allocation2 + $0xc4] sm:$0xff]
      %v1206 = vld [vmem:[#allocation2 + $0xcc] sm:$0xff]
      %v1207 = vld [vmem:[#allocation2 + $0xd4] sm:$0xff]
      %v1208 = vld [vmem:[#allocation2 + $0xdc] sm:$0xf]
      %v1209 = vld [vmem:[#allocation2 + $0xe0] sm:$0xff]
      %v1210 = vld [vmem:[#allocation2 + $0xe8] sm:$0xff]
      %v1211 = vld [vmem:[#allocation2 + $0xf0] sm:$0xff]
      %v1212 = vld [vmem:[#allocation2 + $0xf8] sm:$0xf]
      %v1213 = vld [vmem:[#allocation2 + $0xfc] sm:$0xff]
      %v1214 = vld [vmem:[#allocation2 + $0x104] sm:$0xff]
      %v1215 = vld [vmem:[#allocation2 + $0x10c] sm:$0xff]
      %v1216 = vld [vmem:[#allocation2 + $0x114] sm:$0xf]
      %v1217 = vld [vmem:[#allocation2 + $0x118] sm:$0xff]
      %v1218 = vld [vmem:[#allocation2 + $0x120] sm:$0xff]
      %v1219 = vld [vmem:[#allocation2 + $0x128] sm:$0xff]
      %v1220 = vld [vmem:[#allocation2 + $0x130] sm:$0xf]
      %v1221 = vld [vmem:[#allocation2 + $0x134] sm:$0xff]
      %v1222 = vld [vmem:[#allocation2 + $0x13c] sm:$0xff]
      %v1223 = vld [vmem:[#allocation2 + $0x144] sm:$0xff]
      %v1224 = vld [vmem:[#allocation2 + $0x14c] sm:$0xf]
      %v1225 = vld [vmem:[#allocation2 + $0x150] sm:$0xff]
      %v1226 = vld [vmem:[#allocation2 + $0x158] sm:$0xff]
      %v1227 = vld [vmem:[#allocation2 + $0x160] sm:$0xff]
      %v1228 = vld [vmem:[#allocation2 + $0x168] sm:$0xf]
      %v1229 = vld [vmem:[#allocation2 + $0x16c] sm:$0xff]
      %v1230 = vld [vmem:[#allocation2 + $0x174] sm:$0xff]
      %v1231 = vld [vmem:[#allocation2 + $0x17c] sm:$0xff]
      %v1232 = vld [vmem:[#allocation2 + $0x184] sm:$0xf]
      %v1233 = vld [vmem:[#allocation2 + $0x188] sm:$0xff]
      %v1234 = vld [vmem:[#allocation2 + $0x190] sm:$0xff]
      %v1235 = vld [vmem:[#allocation2 + $0x198] sm:$0xff]
      %v1236 = vld [vmem:[#allocation2 + $0x1a0] sm:$0xf]
      %v1237 = vld [vmem:[#allocation2 + $0x1a4] sm:$0xff]
      %v1238 = vld [vmem:[#allocation2 + $0x1ac] sm:$0xff]
      %v1239 = vld [vmem:[#allocation2 + $0x1b4] sm:$0xff]
      %v1240 = vld [vmem:[#allocation2 + $0x1bc] sm:$0xf]
      %v1241 = vld [vmem:[#allocation2 + $0x1c0] sm:$0xff]
      %v1242 = vld [vmem:[#allocation2 + $0x1c8] sm:$0xff]
      %v1243 = vld [vmem:[#allocation2 + $0x1d0] sm:$0xff]
      %v1244 = vld [vmem:[#allocation2 + $0x1d8] sm:$0xf]
      %v1245 = vld [vmem:[#allocation2 + $0x1dc] sm:$0xff]
      %v1246 = vld [vmem:[#allocation2 + $0x1e4] sm:$0xff]
      %v1247 = vld [vmem:[#allocation2 + $0x1ec] sm:$0xff]
      %v1248 = vld [vmem:[#allocation2 + $0x1f4] sm:$0xf]
      %v1249 = vld [vmem:[#allocation2 + $0x1f8] sm:$0xff]
      %v1250 = vld [vmem:[#allocation2 + $0x200] sm:$0xff]
      %v1251 = vld [vmem:[#allocation2 + $0x208] sm:$0xff]
      %v1252 = vld [vmem:[#allocation2 + $0x210] sm:$0xf]
      %v1253 = vld [vmem:[#allocation2 + $0x214] sm:$0xff]
      %v1254 = vld [vmem:[#allocation2 + $0x21c] sm:$0xff]
      %v1255 = vld [vmem:[#allocation2 + $0x224] sm:$0xff]
      %v1256 = vld [vmem:[#allocation2 + $0x22c] sm:$0xf]
      %v1257 = vld [vmem:[#allocation2 + $0x230] sm:$0xff]
      %v1258 = vld [vmem:[#allocation2 + $0x238] sm:$0xff]
      %v1259 = vld [vmem:[#allocation2 + $0x240] sm:$0xff]
      %v1260 = vld [vmem:[#allocation2 + $0x248] sm:$0xf]
      %v1261 = vld [vmem:[#allocation2 + $0x24c] sm:$0xff]
      %v1262 = vld [vmem:[#allocation2 + $0x254] sm:$0xff]
      %v1263 = vld [vmem:[#allocation2 + $0x25c] sm:$0xff]
      %v1264 = vld [vmem:[#allocation2 + $0x264] sm:$0xf]
      %v1265 = vld [vmem:[#allocation2 + $0x268] sm:$0xff]
      %v1266 = vld [vmem:[#allocation2 + $0x270] sm:$0xff]
      %v1267 = vld [vmem:[#allocation2 + $0x278] sm:$0xff]
      %v1268 = vld [vmem:[#allocation2 + $0x280] sm:$0xf]
      %v1269 = vld [vmem:[#allocation2 + $0x284] sm:$0xff]
      %v1270 = vld [vmem:[#allocation2 + $0x28c] sm:$0xff]
      %v1271 = vld [vmem:[#allocation2 + $0x294] sm:$0xff]
      %v1272 = vld [vmem:[#allocation2 + $0x29c] sm:$0xf]
      %v1273 = vld [vmem:[#allocation2 + $0x2a0] sm:$0xff]
      %v1274 = vld [vmem:[#allocation2 + $0x2a8] sm:$0xff]
      %v1275 = vld [vmem:[#allocation2 + $0x2b0] sm:$0xff]
      %v1276 = vld [vmem:[#allocation2 + $0x2b8] sm:$0xf]
      %v1277 = vld [vmem:[#allocation2 + $0x2bc] sm:$0xff]
      %v1278 = vld [vmem:[#allocation2 + $0x2c4] sm:$0xff]
      %v1279 = vld [vmem:[#allocation2 + $0x2cc] sm:$0xff]
      %v1280 = vld [vmem:[#allocation2 + $0x2d4] sm:$0xf]
      %v1281 = vld [vmem:[#allocation2 + $0x2d8] sm:$0xff]
      %v1282 = vld [vmem:[#allocation2 + $0x2e0] sm:$0xff]
      %v1283 = vld [vmem:[#allocation2 + $0x2e8] sm:$0xff]
      %v1284 = vld [vmem:[#allocation2 + $0x2f0] sm:$0xf]
      %v1285 = vld [vmem:[%s2] sm:$0xff]
      %1287 = vset.pattern.permute.xlu0 0
      %1288 = vperm.xlu0 %1287, %v1285
      %v1289 = vpop.permute.xlu0 %1288
      %v1292 = vunpack.c.l.b16 %v1176
      %v1293 = vunpack.c.h.b16 %v1176
      %v1294 = vpack.c.b16 %v1292, %v1292
      %v1295 = vpack.c.b16 %v1293, %v1293
      %v1405 = vunpack.c.l.b16 %v1177
      %v1406 = vunpack.c.h.b16 %v1177
      %v1407 = vunpack.c.l.b16 %v1178
      %v1408 = vunpack.c.h.b16 %v1178
      %v1409 = vunpack.c.l.b16 %v1179
      %v1410 = vunpack.c.h.b16 %v1179
      %v1411 = vunpack.c.l.b16 %v1180
      %v1412 = vunpack.c.l.b16 %v1181
      %v1413 = vunpack.c.h.b16 %v1181
      %v1414 = vunpack.c.l.b16 %v1182
      %v1415 = vunpack.c.h.b16 %v1182
      %v1416 = vunpack.c.l.b16 %v1183
      %v1417 = vunpack.c.h.b16 %v1183
      %v1418 = vunpack.c.l.b16 %v1184
      %v1419 = vunpack.c.l.b16 %v1185
      %v1420 = vunpack.c.h.b16 %v1185
      %v1421 = vunpack.c.l.b16 %v1186
      %v1422 = vunpack.c.h.b16 %v1186
      %v1423 = vunpack.c.l.b16 %v1187
      %v1424 = vunpack.c.h.b16 %v1187
      %v1425 = vunpack.c.l.b16 %v1188
      %v1426 = vunpack.c.l.b16 %v1189
      %v1427 = vunpack.c.h.b16 %v1189
      %v1428 = vunpack.c.l.b16 %v1190
      %v1429 = vunpack.c.h.b16 %v1190
      %v1430 = vunpack.c.l.b16 %v1191
      %v1431 = vunpack.c.h.b16 %v1191
      %v1432 = vunpack.c.l.b16 %v1192
      %v1433 = vunpack.c.l.b16 %v1193
      %v1434 = vunpack.c.h.b16 %v1193
      %v1435 = vunpack.c.l.b16 %v1194
      %v1436 = vunpack.c.h.b16 %v1194
      %v1437 = vunpack.c.l.b16 %v1195
      %v1438 = vunpack.c.h.b16 %v1195
      %v1439 = vunpack.c.l.b16 %v1196
      %v1440 = vunpack.c.l.b16 %v1197
      %v1441 = vunpack.c.h.b16 %v1197
      %v1442 = vunpack.c.l.b16 %v1198
      %v1443 = vunpack.c.h.b16 %v1198
      %v1444 = vunpack.c.l.b16 %v1199
      %v1445 = vunpack.c.h.b16 %v1199
      %v1446 = vunpack.c.l.b16 %v1200
      %v1447 = vunpack.c.l.b16 %v1201
      %v1448 = vunpack.c.h.b16 %v1201
      %v1449 = vunpack.c.l.b16 %v1202
      %v1450 = vunpack.c.h.b16 %v1202
      %v1451 = vunpack.c.l.b16 %v1203
      %v1452 = vunpack.c.h.b16 %v1203
      %v1453 = vunpack.c.l.b16 %v1204
      %v1454 = vunpack.c.l.b16 %v1205
      %v1455 = vunpack.c.h.b16 %v1205
      %v1456 = vunpack.c.l.b16 %v1206
      %v1457 = vunpack.c.h.b16 %v1206
      %v1458 = vunpack.c.l.b16 %v1207
      %v1459 = vunpack.c.h.b16 %v1207
      %v1460 = vunpack.c.l.b16 %v1208
      %v1461 = vunpack.c.l.b16 %v1209
      %v1462 = vunpack.c.h.b16 %v1209
      %v1463 = vunpack.c.l.b16 %v1210
      %v1464 = vunpack.c.h.b16 %v1210
      %v1465 = vunpack.c.l.b16 %v1211
      %v1466 = vunpack.c.h.b16 %v1211
      %v1467 = vunpack.c.l.b16 %v1212
      %v1468 = vunpack.c.l.b16 %v1213
      %v1469 = vunpack.c.h.b16 %v1213
      %v1470 = vunpack.c.l.b16 %v1214
      %v1471 = vunpack.c.h.b16 %v1214
      %v1472 = vunpack.c.l.b16 %v1215
      %v1473 = vunpack.c.h.b16 %v1215
      %v1474 = vunpack.c.l.b16 %v1216
      %v1475 = vunpack.c.l.b16 %v1217
      %v1476 = vunpack.c.h.b16 %v1217
      %v1477 = vunpack.c.l.b16 %v1218
      %v1478 = vunpack.c.h.b16 %v1218
      %v1479 = vunpack.c.l.b16 %v1219
      %v1480 = vunpack.c.h.b16 %v1219
      %v1481 = vunpack.c.l.b16 %v1220
      %v1482 = vunpack.c.l.b16 %v1221
      %v1483 = vunpack.c.h.b16 %v1221
      %v1484 = vunpack.c.l.b16 %v1222
      %v1485 = vunpack.c.h.b16 %v1222
      %v1486 = vunpack.c.l.b16 %v1223
      %v1487 = vunpack.c.h.b16 %v1223
      %v1488 = vunpack.c.l.b16 %v1224
      %v1489 = vunpack.c.l.b16 %v1225
      %v1490 = vunpack.c.h.b16 %v1225
      %v1491 = vunpack.c.l.b16 %v1226
      %v1492 = vunpack.c.h.b16 %v1226
      %v1493 = vunpack.c.l.b16 %v1227
      %v1494 = vunpack.c.h.b16 %v1227
      %v1495 = vunpack.c.l.b16 %v1228
      %v1496 = vunpack.c.l.b16 %v1229
      %v1497 = vunpack.c.h.b16 %v1229
      %v1498 = vunpack.c.l.b16 %v1230
      %v1499 = vunpack.c.h.b16 %v1230
      %v1500 = vunpack.c.l.b16 %v1231
      %v1501 = vunpack.c.h.b16 %v1231
      %v1502 = vunpack.c.l.b16 %v1232
      %v1503 = vunpack.c.l.b16 %v1233
      %v1504 = vunpack.c.h.b16 %v1233
      %v1505 = vunpack.c.l.b16 %v1234
      %v1506 = vunpack.c.h.b16 %v1234
      %v1507 = vunpack.c.l.b16 %v1235
      %v1508 = vunpack.c.h.b16 %v1235
      %v1509 = vunpack.c.l.b16 %v1236
      %v1510 = vunpack.c.l.b16 %v1237
      %v1511 = vunpack.c.h.b16 %v1237
      %v1512 = vunpack.c.l.b16 %v1238
      %v1513 = vunpack.c.h.b16 %v1238
      %v1514 = vunpack.c.l.b16 %v1239
      %v1515 = vunpack.c.h.b16 %v1239
      %v1516 = vunpack.c.l.b16 %v1240
      %v1517 = vunpack.c.l.b16 %v1241
      %v1518 = vunpack.c.h.b16 %v1241
      %v1519 = vunpack.c.l.b16 %v1242
      %v1520 = vunpack.c.h.b16 %v1242
      %v1521 = vunpack.c.l.b16 %v1243
      %v1522 = vunpack.c.h.b16 %v1243
      %v1523 = vunpack.c.l.b16 %v1244
      %v1524 = vunpack.c.l.b16 %v1245
      %v1525 = vunpack.c.h.b16 %v1245
      %v1526 = vunpack.c.l.b16 %v1246
      %v1527 = vunpack.c.h.b16 %v1246
      %v1528 = vunpack.c.l.b16 %v1247
      %v1529 = vunpack.c.h.b16 %v1247
      %v1530 = vunpack.c.l.b16 %v1248
      %v1531 = vunpack.c.l.b16 %v1249
      %v1532 = vunpack.c.h.b16 %v1249
      %v1533 = vunpack.c.l.b16 %v1250
      %v1534 = vunpack.c.h.b16 %v1250
      %v1535 = vunpack.c.l.b16 %v1251
      %v1536 = vunpack.c.h.b16 %v1251
      %v1537 = vunpack.c.l.b16 %v1252
      %v1538 = vunpack.c.l.b16 %v1253
      %v1539 = vunpack.c.h.b16 %v1253
      %v1540 = vunpack.c.l.b16 %v1254
      %v1541 = vunpack.c.h.b16 %v1254
      %v1542 = vunpack.c.l.b16 %v1255
      %v1543 = vunpack.c.h.b16 %v1255
      %v1544 = vunpack.c.l.b16 %v1256
      %v1545 = vunpack.c.l.b16 %v1257
      %v1546 = vunpack.c.h.b16 %v1257
      %v1547 = vunpack.c.l.b16 %v1258
      %v1548 = vunpack.c.h.b16 %v1258
      %v1549 = vunpack.c.l.b16 %v1259
      %v1550 = vunpack.c.h.b16 %v1259
      %v1551 = vunpack.c.l.b16 %v1260
      %v1552 = vunpack.c.l.b16 %v1261
      %v1553 = vunpack.c.h.b16 %v1261
      %v1554 = vunpack.c.l.b16 %v1262
      %v1555 = vunpack.c.h.b16 %v1262
      %v1556 = vunpack.c.l.b16 %v1263
      %v1557 = vunpack.c.h.b16 %v1263
      %v1558 = vunpack.c.l.b16 %v1264
      %v1559 = vunpack.c.l.b16 %v1265
      %v1560 = vunpack.c.h.b16 %v1265
      %v1561 = vunpack.c.l.b16 %v1266
      %v1562 = vunpack.c.h.b16 %v1266
      %v1563 = vunpack.c.l.b16 %v1267
      %v1564 = vunpack.c.h.b16 %v1267
      %v1565 = vunpack.c.l.b16 %v1268
      %v1566 = vunpack.c.l.b16 %v1269
      %v1567 = vunpack.c.h.b16 %v1269
      %v1568 = vunpack.c.l.b16 %v1270
      %v1569 = vunpack.c.h.b16 %v1270
      %v1570 = vunpack.c.l.b16 %v1271
      %v1571 = vunpack.c.h.b16 %v1271
      %v1572 = vunpack.c.l.b16 %v1272
      %v1573 = vunpack.c.l.b16 %v1273
      %v1574 = vunpack.c.h.b16 %v1273
      %v1575 = vunpack.c.l.b16 %v1274
      %v1576 = vunpack.c.h.b16 %v1274
      %v1577 = vunpack.c.l.b16 %v1275
      %v1578 = vunpack.c.h.b16 %v1275
      %v1579 = vunpack.c.l.b16 %v1276
      %v1580 = vunpack.c.l.b16 %v1277
      %v1581 = vunpack.c.h.b16 %v1277
      %v1582 = vunpack.c.l.b16 %v1278
      %v1583 = vunpack.c.h.b16 %v1278
      %v1584 = vunpack.c.l.b16 %v1279
      %v1585 = vunpack.c.h.b16 %v1279
      %v1586 = vunpack.c.l.b16 %v1280
      %v1587 = vunpack.c.l.b16 %v1281
      %v1588 = vunpack.c.h.b16 %v1281
      %v1589 = vunpack.c.l.b16 %v1282
      %v1590 = vunpack.c.h.b16 %v1282
      %v1591 = vunpack.c.l.b16 %v1283
      %v1592 = vunpack.c.h.b16 %v1283
      %v1593 = vunpack.c.l.b16 %v1284
      %v1594 = vpack.c.b16 %v1412, %v1405
      %v1595 = vpack.c.b16 %v1413, %v1406
      %v1596 = vpack.c.b16 %v1414, %v1407
      %v1597 = vpack.c.b16 %v1415, %v1408
      %v1598 = vpack.c.b16 %v1416, %v1409
      %v1599 = vpack.c.b16 %v1417, %v1410
      %v1600 = vpack.c.b16 %v1418, %v1411
      %v1601 = vpack.c.b16 %v1426, %v1419
      %v1602 = vpack.c.b16 %v1427, %v1420
      %v1603 = vpack.c.b16 %v1428, %v1421
      %v1604 = vpack.c.b16 %v1429, %v1422
      %v1605 = vpack.c.b16 %v1430, %v1423
      %v1606 = vpack.c.b16 %v1431, %v1424
      %v1607 = vpack.c.b16 %v1432, %v1425
      %v1608 = vpack.c.b16 %v1440, %v1433
      %v1609 = vpack.c.b16 %v1441, %v1434
      %v1610 = vpack.c.b16 %v1442, %v1435
      %v1611 = vpack.c.b16 %v1443, %v1436
      %v1612 = vpack.c.b16 %v1444, %v1437
      %v1613 = vpack.c.b16 %v1445, %v1438
      %v1614 = vpack.c.b16 %v1446, %v1439
      %v1615 = vpack.c.b16 %v1454, %v1447
      %v1616 = vpack.c.b16 %v1455, %v1448
      %v1617 = vpack.c.b16 %v1456, %v1449
      %v1618 = vpack.c.b16 %v1457, %v1450
      %v1619 = vpack.c.b16 %v1458, %v1451
      %v1620 = vpack.c.b16 %v1459, %v1452
      %v1621 = vpack.c.b16 %v1460, %v1453
      %v1622 = vpack.c.b16 %v1468, %v1461
      %v1623 = vpack.c.b16 %v1469, %v1462
      %v1624 = vpack.c.b16 %v1470, %v1463
      %v1625 = vpack.c.b16 %v1471, %v1464
      %v1626 = vpack.c.b16 %v1472, %v1465
      %v1627 = vpack.c.b16 %v1473, %v1466
      %v1628 = vpack.c.b16 %v1474, %v1467
      %v1629 = vpack.c.b16 %v1482, %v1475
      %v1630 = vpack.c.b16 %v1483, %v1476
      %v1631 = vpack.c.b16 %v1484, %v1477
      %v1632 = vpack.c.b16 %v1485, %v1478
      %v1633 = vpack.c.b16 %v1486, %v1479
      %v1634 = vpack.c.b16 %v1487, %v1480
      %v1635 = vpack.c.b16 %v1488, %v1481
      %v1636 = vpack.c.b16 %v1496, %v1489
      %v1637 = vpack.c.b16 %v1497, %v1490
      %v1638 = vpack.c.b16 %v1498, %v1491
      %v1639 = vpack.c.b16 %v1499, %v1492
      %v1640 = vpack.c.b16 %v1500, %v1493
      %v1641 = vpack.c.b16 %v1501, %v1494
      %v1642 = vpack.c.b16 %v1502, %v1495
      %v1643 = vpack.c.b16 %v1510, %v1503
      %v1644 = vpack.c.b16 %v1511, %v1504
      %v1645 = vpack.c.b16 %v1512, %v1505
      %v1646 = vpack.c.b16 %v1513, %v1506
      %v1647 = vpack.c.b16 %v1514, %v1507
      %v1648 = vpack.c.b16 %v1515, %v1508
      %v1649 = vpack.c.b16 %v1516, %v1509
      %v1650 = vpack.c.b16 %v1524, %v1517
      %v1651 = vpack.c.b16 %v1525, %v1518
      %v1652 = vpack.c.b16 %v1526, %v1519
      %v1653 = vpack.c.b16 %v1527, %v1520
      %v1654 = vpack.c.b16 %v1528, %v1521
      %v1655 = vpack.c.b16 %v1529, %v1522
      %v1656 = vpack.c.b16 %v1530, %v1523
      %v1657 = vpack.c.b16 %v1538, %v1531
      %v1658 = vpack.c.b16 %v1539, %v1532
      %v1659 = vpack.c.b16 %v1540, %v1533
      %v1660 = vpack.c.b16 %v1541, %v1534
      %v1661 = vpack.c.b16 %v1542, %v1535
      %v1662 = vpack.c.b16 %v1543, %v1536
      %v1663 = vpack.c.b16 %v1544, %v1537
      %v1664 = vpack.c.b16 %v1552, %v1545
      %v1665 = vpack.c.b16 %v1553, %v1546
      %v1666 = vpack.c.b16 %v1554, %v1547
      %v1667 = vpack.c.b16 %v1555, %v1548
      %v1668 = vpack.c.b16 %v1556, %v1549
      %v1669 = vpack.c.b16 %v1557, %v1550
      %v1670 = vpack.c.b16 %v1558, %v1551
      %v1671 = vpack.c.b16 %v1566, %v1559
      %v1672 = vpack.c.b16 %v1567, %v1560
      %v1673 = vpack.c.b16 %v1568, %v1561
      %v1674 = vpack.c.b16 %v1569, %v1562
      %v1675 = vpack.c.b16 %v1570, %v1563
      %v1676 = vpack.c.b16 %v1571, %v1564
      %v1677 = vpack.c.b16 %v1572, %v1565
      %v1678 = vpack.c.b16 %v1580, %v1573
      %v1679 = vpack.c.b16 %v1581, %v1574
      %v1680 = vpack.c.b16 %v1582, %v1575
      %v1681 = vpack.c.b16 %v1583, %v1576
      %v1682 = vpack.c.b16 %v1584, %v1577
      %v1683 = vpack.c.b16 %v1585, %v1578
      %v1684 = vpack.c.b16 %v1586, %v1579
      %v1685 = vpack.c.b16 %v1587, %v1587
      %v1686 = vpack.c.b16 %v1588, %v1588
      %v1687 = vpack.c.b16 %v1589, %v1589
      %v1688 = vpack.c.b16 %v1590, %v1590
      %v1689 = vpack.c.b16 %v1591, %v1591
      %v1690 = vpack.c.b16 %v1592, %v1592
      %v1691 = vpack.c.b16 %v1593, %v1593
      %vm1783 = vcmask 719872
      %v1785 = vsel %vm1783, %v1295, 0
      %vm1787 = vcmask 1043456
      %v1789 = vsel %vm1787, %v1685, 0
      %v1792 = vsel %vm1787, %v1686, 0
      %v1795 = vsel %vm1787, %v1687, 0
      %v1798 = vsel %vm1787, %v1688, 0
      %v1801 = vsel %vm1787, %v1689, 0
      %v1804 = vsel %vm1787, %v1690, 0
      %v1807 = vsel %vm1787, %v1691, 0
      %1809 = vmatprep.subr.bf16.mxu0 %v1644
      %1810 = vmatpush1.bf16.msra.mxu0 %v1643
      %1811 = vmatprep.subr.bf16.mxu0 %v1637
      %1812 = vmatpush1.bf16.msra.mxu0 %v1636
      %1813 = vmatprep.subr.bf16.mxu0 %v1630
      %1814 = vmatpush1.bf16.msra.mxu0 %v1629
      %1815 = vmatprep.subr.bf16.mxu0 %v1623
      %1816 = vmatpush1.bf16.msra.mxu0 %v1622
      %1817 = vmatprep.subr.bf16.mxu0 %v1616
      %1818 = vmatpush1.bf16.msra.mxu0 %v1615
      %1819 = vmatprep.subr.bf16.mxu0 %v1609
      %1820 = vmatpush1.bf16.msra.mxu0 %v1608
      %1821 = vmatprep.subr.bf16.mxu0 %v1602
      %1822 = vmatpush1.bf16.msra.mxu0 %v1601
      %1823 = vmatprep.subr.bf16.mxu0 %v1595
      %1824 = vmatpush1.bf16.msra.mxu0 %v1594
      %1825 = vmatprep.subr.bf16.mxu0 0
      %1826 = vmatpush2.bf16.msra.mxu0 0
      %1827 = vmatprep.subr.bf16.mxu0 0
      %1828 = vmatpush2.bf16.msra.mxu0 0
      %1829 = vmatprep.subr.bf16.mxu0 %v1792
      %1830 = vmatpush2.bf16.msra.mxu0 %v1789
      %1831 = vmatprep.subr.bf16.mxu0 %v1679
      %1832 = vmatpush2.bf16.msra.mxu0 %v1678
      %1833 = vmatprep.subr.bf16.mxu0 %v1672
      %1834 = vmatpush2.bf16.msra.mxu0 %v1671
      %1835 = vmatprep.subr.bf16.mxu0 %v1665
      %1836 = vmatpush2.bf16.msra.mxu0 %v1664
      %1837 = vmatprep.subr.bf16.mxu0 %v1658
      %1838 = vmatpush2.bf16.msra.mxu0 %v1657
      %1839 = vmatprep.subr.bf16.mxu0 %v1651
      %1840 = vmatpush2.bf16.msra.mxu0 %v1650
      %1841 = vmatprep.mubr.bf16.mxu0 %v1785
      %1842 = vmatmul.mubr.bf16.gmra.mxu0 %v1294
      %v1843 = vpop.f32.mrf.mxu0
      %v1844 = vadd.f32 %v1289, %v1843
      %v1845 = vpop.f32.mrf.mxu0
      %v1846 = vadd.f32 %v1289, %v1845
      %v1847 = vpop.f32.mrf.mxu0
      %v1848 = vpop.f32.mrf.mxu0
      %1849 = vdwg.mxu0
      %1850 = vmatprep.subr.bf16.mxu0 %v1646
      %1851 = vmatpush1.bf16.msra.mxu0 %v1645
      %1852 = vmatprep.subr.bf16.mxu0 %v1639
      %1853 = vmatpush1.bf16.msra.mxu0 %v1638
      %1854 = vmatprep.subr.bf16.mxu0 %v1632
      %1855 = vmatpush1.bf16.msra.mxu0 %v1631
      %1856 = vmatprep.subr.bf16.mxu0 %v1625
      %1857 = vmatpush1.bf16.msra.mxu0 %v1624
      %1858 = vmatprep.subr.bf16.mxu0 %v1618
      %1859 = vmatpush1.bf16.msra.mxu0 %v1617
      %1860 = vmatprep.subr.bf16.mxu0 %v1611
      %1861 = vmatpush1.bf16.msra.mxu0 %v1610
      %1862 = vmatprep.subr.bf16.mxu0 %v1604
      %1863 = vmatpush1.bf16.msra.mxu0 %v1603
      %1864 = vmatprep.subr.bf16.mxu0 %v1597
      %1865 = vmatpush1.bf16.msra.mxu0 %v1596
      %1866 = vmatprep.subr.bf16.mxu0 0
      %1867 = vmatpush2.bf16.msra.mxu0 0
      %1868 = vmatprep.subr.bf16.mxu0 0
      %1869 = vmatpush2.bf16.msra.mxu0 0
      %1870 = vmatprep.subr.bf16.mxu0 %v1798
      %1871 = vmatpush2.bf16.msra.mxu0 %v1795
      %1872 = vmatprep.subr.bf16.mxu0 %v1681
      %1873 = vmatpush2.bf16.msra.mxu0 %v1680
      %1874 = vmatprep.subr.bf16.mxu0 %v1674
      %1875 = vmatpush2.bf16.msra.mxu0 %v1673
      %1876 = vmatprep.subr.bf16.mxu0 %v1667
      %1877 = vmatpush2.bf16.msra.mxu0 %v1666
      %1878 = vmatprep.subr.bf16.mxu0 %v1660
      %1879 = vmatpush2.bf16.msra.mxu0 %v1659
      %1880 = vmatprep.subr.bf16.mxu0 %v1653
      %1881 = vmatpush2.bf16.msra.mxu0 %v1652
      %1882 = vmatprep.mubr.bf16.mxu0 %v1785
      %1883 = vmatmul.mubr.bf16.gmra.mxu0 %v1294
      %v1884 = vpop.f32.mrf.mxu0
      %v1885 = vadd.f32 %v1289, %v1884
      %v1886 = vpop.f32.mrf.mxu0
      %v1887 = vadd.f32 %v1289, %v1886
      %v1888 = vpop.f32.mrf.mxu0
      %v1889 = vpop.f32.mrf.mxu0
      %1890 = vdwg.mxu0
      %1891 = vmatprep.subr.bf16.mxu0 %v1648
      %1892 = vmatpush1.bf16.msra.mxu0 %v1647
      %1893 = vmatprep.subr.bf16.mxu0 %v1641
      %1894 = vmatpush1.bf16.msra.mxu0 %v1640
      %1895 = vmatprep.subr.bf16.mxu0 %v1634
      %1896 = vmatpush1.bf16.msra.mxu0 %v1633
      %1897 = vmatprep.subr.bf16.mxu0 %v1627
      %1898 = vmatpush1.bf16.msra.mxu0 %v1626
      %1899 = vmatprep.subr.bf16.mxu0 %v1620
      %1900 = vmatpush1.bf16.msra.mxu0 %v1619
      %1901 = vmatprep.subr.bf16.mxu0 %v1613
      %1902 = vmatpush1.bf16.msra.mxu0 %v1612
      %1903 = vmatprep.subr.bf16.mxu0 %v1606
      %1904 = vmatpush1.bf16.msra.mxu0 %v1605
      %1905 = vmatprep.subr.bf16.mxu0 %v1599
      %1906 = vmatpush1.bf16.msra.mxu0 %v1598
      %1907 = vmatprep.subr.bf16.mxu0 0
      %1908 = vmatpush2.bf16.msra.mxu0 0
      %1909 = vmatprep.subr.bf16.mxu0 0
      %1910 = vmatpush2.bf16.msra.mxu0 0
      %1911 = vmatprep.subr.bf16.mxu0 %v1804
      %1912 = vmatpush2.bf16.msra.mxu0 %v1801
      %1913 = vmatprep.subr.bf16.mxu0 %v1683
      %1914 = vmatpush2.bf16.msra.mxu0 %v1682
      %1915 = vmatprep.subr.bf16.mxu0 %v1676
      %1916 = vmatpush2.bf16.msra.mxu0 %v1675
      %1917 = vmatprep.subr.bf16.mxu0 %v1669
      %1918 = vmatpush2.bf16.msra.mxu0 %v1668
      %1919 = vmatprep.subr.bf16.mxu0 %v1662
      %1920 = vmatpush2.bf16.msra.mxu0 %v1661
      %1921 = vmatprep.subr.bf16.mxu0 %v1655
      %1922 = vmatpush2.bf16.msra.mxu0 %v1654
      %1923 = vmatprep.mubr.bf16.mxu0 %v1785
      %1924 = vmatmul.mubr.bf16.gmra.mxu0 %v1294
      %v1925 = vpop.f32.mrf.mxu0
      %v1926 = vadd.f32 %v1289, %v1925
      %v1927 = vpop.f32.mrf.mxu0
      %v1928 = vadd.f32 %v1289, %v1927
      %v1929 = vpop.f32.mrf.mxu0
      %v1930 = vpop.f32.mrf.mxu0
      %1931 = vdwg.mxu0
      %1932 = vmatprep.subr.bf16.mxu0 0
      %1933 = vmatpush1.bf16.msra.mxu0 %v1649
      %1934 = vmatprep.subr.bf16.mxu0 0
      %1935 = vmatpush1.bf16.msra.mxu0 %v1642
      %1936 = vmatprep.subr.bf16.mxu0 0
      %1937 = vmatpush1.bf16.msra.mxu0 %v1635
      %1938 = vmatprep.subr.bf16.mxu0 0
      %1939 = vmatpush1.bf16.msra.mxu0 %v1628
      %1940 = vmatprep.subr.bf16.mxu0 0
      %1941 = vmatpush1.bf16.msra.mxu0 %v1621
      %1942 = vmatprep.subr.bf16.mxu0 0
      %1943 = vmatpush1.bf16.msra.mxu0 %v1614
      %1944 = vmatprep.subr.bf16.mxu0 0
      %1945 = vmatpush1.bf16.msra.mxu0 %v1607
      %1946 = vmatprep.subr.bf16.mxu0 0
      %1947 = vmatpush1.bf16.msra.mxu0 %v1600
      %1948 = vmatprep.subr.bf16.mxu0 0
      %1949 = vmatpush2.bf16.msra.mxu0 0
      %1950 = vmatprep.subr.bf16.mxu0 0
      %1951 = vmatpush2.bf16.msra.mxu0 0
      %1952 = vmatprep.subr.bf16.mxu0 0
      %1953 = vmatpush2.bf16.msra.mxu0 %v1807
      %1954 = vmatprep.subr.bf16.mxu0 0
      %1955 = vmatpush2.bf16.msra.mxu0 %v1684
      %1956 = vmatprep.subr.bf16.mxu0 0
      %1957 = vmatpush2.bf16.msra.mxu0 %v1677
      %1958 = vmatprep.subr.bf16.mxu0 0
      %1959 = vmatpush2.bf16.msra.mxu0 %v1670
      %1960 = vmatprep.subr.bf16.mxu0 0
      %1961 = vmatpush2.bf16.msra.mxu0 %v1663
      %1962 = vmatprep.subr.bf16.mxu0 0
      %1963 = vmatpush2.bf16.msra.mxu0 %v1656
      %1964 = vmatprep.mubr.bf16.mxu0 %v1785
      %1965 = vmatmul.mubr.bf16.gmra.mxu0 %v1294
      %v1966 = vpop.f32.mrf.mxu0
      %v1967 = vadd.f32 %v1289, %v1966
      %v1968 = vpop.f32.mrf.mxu0
      %v1969 = vpop.f32.mrf.mxu0
      %v1970 = vpop.f32.mrf.mxu0
      %1971 = vdwg.mxu0
      %v1972 = vld [vmem:[%s5] sm:$0x7f]
      %v1974 = vlaneseq
      %v1975 = vshrl.u32 %v1974, 7
      %v1976 = vsub.s32 0, %v1975
      %v1977 = vrot.slane %v1972, %v1976
      %v1978 = vlaneseq
      %v1979 = vshrl.u32 %v1978, 7
      %v1980 = vsub.s32 1, %v1979
      %v1981 = vrot.slane %v1972, %v1980
      %v1982 = vlaneseq
      %v1983 = vshrl.u32 %v1982, 7
      %v1984 = vsub.s32 2, %v1983
      %v1985 = vrot.slane %v1972, %v1984
      %v1986 = vlaneseq
      %v1987 = vshrl.u32 %v1986, 7
      %v1988 = vsub.s32 3, %v1987
      %v1989 = vrot.slane %v1972, %v1988
      %v1990 = vlaneseq
      %v1991 = vshrl.u32 %v1990, 7
      %v1992 = vsub.s32 4, %v1991
      %v1993 = vrot.slane %v1972, %v1992
      %v1994 = vlaneseq
      %v1995 = vshrl.u32 %v1994, 7
      %v1996 = vsub.s32 5, %v1995
      %v1997 = vrot.slane %v1972, %v1996
      %v1998 = vlaneseq
      %v1999 = vshrl.u32 %v1998, 7
      %v2000 = vsub.s32 6, %v1999
      %v2001 = vrot.slane %v1972, %v2000
      %v2009 = vmul.f32 %v1844, %v1977
      %v2010 = vmul.f32 %v1846, %v1981
      %v2011 = vmul.f32 %v1885, %v1985
      %v2012 = vmul.f32 %v1887, %v1989
      %v2013 = vmul.f32 %v1926, %v1993
      %v2014 = vmul.f32 %v1928, %v1997
      %v2015 = vmul.f32 %v1967, %v2001
      %v2016 = vadd.f32 %v2009, %v2010
      %v2017 = vadd.f32 %v2016, %v2011
      %v2018 = vadd.f32 %v2017, %v2012
      %v2019 = vadd.f32 %v2018, %v2013
      %v2020 = vadd.f32 %v2019, %v2014
      %vm2021 = vcmask 80896
      %v2022 = vsel %vm2021, %v2015, 0.0
      %v2023 = vadd.f32 %v2020, %v2022
      %2024 = vadd.xlane.f32.xlu0 %v2023
      %v2025 = vpop.xlane.xlu0 %2024
      %v2026 = vmul.f32 %v2025, 0.001953125
      %v2027 = vsub.f32 %v1844, %v2026
      %v2028 = vsub.f32 %v1846, %v2026
      %v2029 = vsub.f32 %v1885, %v2026
      %v2030 = vsub.f32 %v1887, %v2026
      %v2031 = vsub.f32 %v1926, %v2026
      %v2032 = vsub.f32 %v1928, %v2026
      %v2033 = vsub.f32 %v1967, %v2026
      %v2034 = vmul.f32 %v2027, %v2027
      %v2035 = vmul.f32 %v2028, %v2028
      %v2036 = vmul.f32 %v2029, %v2029
      %v2037 = vmul.f32 %v2030, %v2030
      %v2038 = vmul.f32 %v2031, %v2031
      %v2039 = vmul.f32 %v2032, %v2032
      %v2040 = vmul.f32 %v2033, %v2033
      %v2041 = vmul.f32 %v2034, %v1977
      %v2042 = vmul.f32 %v2035, %v1981
      %v2043 = vmul.f32 %v2036, %v1985
      %v2044 = vmul.f32 %v2037, %v1989
      %v2045 = vmul.f32 %v2038, %v1993
      %v2046 = vmul.f32 %v2039, %v1997
      %v2047 = vmul.f32 %v2040, %v2001
      %v2048 = vadd.f32 %v2041, %v2042
      %v2049 = vadd.f32 %v2048, %v2043
      %v2050 = vadd.f32 %v2049, %v2044
      %v2051 = vadd.f32 %v2050, %v2045
      %v2052 = vadd.f32 %v2051, %v2046
      %v2053 = vsel %vm2021, %v2047, 0.0
      %v2054 = vadd.f32 %v2052, %v2053
      %2055 = vadd.xlane.f32.xlu0 %v2054
      %v2056 = vpop.xlane.xlu0 %2055
      %v2057 = vmul.f32 %v2056, 0.001953125
      %v2058 = vadd.f32 %v2057, 1e-05
      %v2059 = vrsqrt.pop %v2058
      %v2060 = vmul.f32 %v2027, %v2059
      %v2061 = vmul.f32 %v2028, %v2059
      %v2062 = vmul.f32 %v2029, %v2059
      %v2063 = vmul.f32 %v2030, %v2059
      %v2064 = vmul.f32 %v2031, %v2059
      %v2065 = vmul.f32 %v2032, %v2059
      %v2066 = vmul.f32 %v2033, %v2059
      %v2067 = vld [vmem:[%s3] sm:$0xff]
      %2069 = vset.pattern.permute.xlu0 0
      %2070 = vperm.xlu0 %2069, %v2067
      %v2071 = vpop.permute.xlu0 %2070
      %v2073 = vmul.f32 %v2060, %v2071
      %v2074 = vmul.f32 %v2061, %v2071
      %v2075 = vmul.f32 %v2062, %v2071
      %v2076 = vmul.f32 %v2063, %v2071
      %v2077 = vmul.f32 %v2064, %v2071
      %v2078 = vmul.f32 %v2065, %v2071
      %v2079 = vmul.f32 %v2066, %v2071
      %v2080 = vld [vmem:[%s4] sm:$0xff]
      %2082 = vset.pattern.permute.xlu0 0
      %2083 = vperm.xlu0 %2082, %v2080
      %v2084 = vpop.permute.xlu0 %2083
      %v2086 = vadd.f32 %v2073, %v2084
      %v2087 = vadd.f32 %v2074, %v2084
      %v2088 = vadd.f32 %v2075, %v2084
      %v2089 = vadd.f32 %v2076, %v2084
      %v2090 = vadd.f32 %v2077, %v2084
      %v2091 = vadd.f32 %v2078, %v2084
      %v2092 = vadd.f32 %v2079, %v2084
      %v2093 = vmax.f32 %v2086, 0.0
      %v2094 = vmax.f32 %v2087, 0.0
      %v2095 = vmax.f32 %v2088, 0.0
      %v2096 = vmax.f32 %v2089, 0.0
      %v2097 = vmax.f32 %v2090, 0.0
      %v2098 = vmax.f32 %v2091, 0.0
      %v2099 = vmax.f32 %v2092, 0.0
      %v2100 = vmul.f32 %v2093, %v1977
      %v2101 = vmul.f32 %v2094, %v1981
      %v2102 = vmul.f32 %v2095, %v1985
      %v2103 = vmul.f32 %v2096, %v1989
      %v2104 = vmul.f32 %v2097, %v1993
      %v2105 = vmul.f32 %v2098, %v1997
      %v2106 = vmul.f32 %v2099, %v2001
      %vm2107 = vcmask 908288
      %2108 = vst.msk [vmem:[%s251] sm:$0xff] %vm2107, 0.0
      %2116 = vrot.lane.b32.xlu0 %v2100, 111
      %v2117 = vpop.permute.xlu0 %2116
      %2118 = vrot.lane.b32.xlu0 %v2101, 111
      %v2119 = vpop.permute.xlu0 %2118
      %2120 = vrot.lane.b32.xlu0 %v2102, 111
      %v2121 = vpop.permute.xlu0 %2120
      %2122 = vrot.lane.b32.xlu0 %v2103, 111
      %v2123 = vpop.permute.xlu0 %2122
      %2124 = vrot.lane.b32.xlu0 %v2104, 111
      %v2125 = vpop.permute.xlu0 %2124
      %2126 = vrot.lane.b32.xlu0 %v2105, 111
      %v2127 = vpop.permute.xlu0 %2126
      %2128 = vrot.lane.b32.xlu0 %v2106, 111
      %v2129 = vpop.permute.xlu0 %2128
      %v2130 = vsel %vm2107, %v2117, %v2119
      %v2131 = vsel %vm2107, %v2119, %v2121
      %v2132 = vsel %vm2107, %v2121, %v2123
      %v2133 = vsel %vm2107, %v2123, %v2125
      %v2134 = vsel %vm2107, %v2125, %v2127
      %v2135 = vsel %vm2107, %v2127, %v2129
      %vm2143 = vcmask 1048440
      %2144 = vst.msk [vmem:[%s251] sm:$0xff] %vm2143, %v2117
      %2145 = vst [vmem:[%s251 + $0x8] sm:$0xff] %v2130
      %2146 = vst [vmem:[%s251 + $0x10] sm:$0xff] %v2131
      %2147 = vst [vmem:[%s251 + $0x18] sm:$0xff] %v2132
      %2148 = vst [vmem:[%s251 + $0x20] sm:$0xff] %v2133
      %2149 = vst [vmem:[%s251 + $0x28] sm:$0xff] %v2134
      %vm2150 = vcmask 990208
      %2151 = vst.msk [vmem:[%s251 + $0x30] sm:$0xff] %vm2150, %v2135
      %vm2152 = vcmask 1048520
      %2153 = vst.msk [vmem:[%s251 + $0x30] sm:$0xff] %vm2152, 0.0
      %vm2154 = vcmask 850944
      %2155 = vst.msk [vmem:[%s251 + $0x38] sm:$0xff] %vm2154, 0.0
      %p2156 = scmp.lt.s32.totalorder %s17, 1
      %s2157 = scalar_select %p2156, %s17, 1
      %s2158 = smul.addr %s2157, 8
      %s2159 = smul.addr %s2158, 8
      %s2160 = scalar_lea.vmem %s6, %s2159
      // Predicated region
      $region45: #{up_forward.3} parent=43 // pred_check
        %p2161 = pneg %p166
      $region46: #{up_forward.3} parent=43 // pred_check_branch
        %2163 = sbr.rel (%p2161) target = $region48
      $region47: #{up_forward.3} parent=43 // pred_region
        _
      $region48: #{up_forward.3} parent=43 // pred_fallthru
        _
    $region44: #{up_forward.3} parent=5 // pred_fallthru
      _
    %p2164 = scmp.le.s32.totalorder 2, %s12
    // Predicated region
    $region49: #{up_forward.3} parent=5 // pred_check
      %p2165 = pneg %p2164
    $region50: #{up_forward.3} parent=5 // pred_check_branch
      %2167 = sbr.rel (%p2165) target = $region52
    $region51: #{up_forward.3} parent=5 // pred_region
      %s2168 = ssub.s32 %s12, 2
      // Predicated region
      $region53: #{up_forward.3} parent=51 // pred_check
        %p2169 = pneg %p172
      $region54: #{up_forward.3} parent=51 // pred_check_branch
        %2171 = sbr.rel (%p2169) target = $region56
      $region55: #{up_forward.3} parent=51 // pred_region
        %p2172 = scmp.lt.s32.totalorder %s18, 1
        %s2173 = scalar_select %p2172, %s18, 1
        %s2174 = smul.addr %s2173, 8
        %s2175 = smul.addr %s2174, 8
        %s2176 = scalar_lea.vmem %s6, %s2175
      $region56: #{up_forward.3} parent=51 // pred_fallthru
        _
    $region52: #{up_forward.3} parent=5 // pred_fallthru
      _
  $region6: #{up_forward.3} parent=0 // loop_footer
    %s16 = sadd.s32 1, %s12
  $region7: #{up_forward.3} parent=0 // loop_footer_branch
    %11 = sbr.rel target = $region3
  $region8: #{up_forward.3} parent=0 // loop_exit
    _

// kernel: up_forward.2
$region0: #{up_forward.2}
  #allocation0 [shape = 'u32[]', space=smem, size = 0x4, offset = 0x4, fixed_abs, tag = 'smem constant byte address 0x4 - core index']
  #allocation1 [shape = 'u32[144,128]{1,0:T(1,128)}', space=vmem, size = 0x12000, scoped, tag = 'internal scratch']
  #allocation2 [shape = 'bf16[432,778]{1,0:T(8,128)(2,1)}', space=vmem, size = 0xbd000, scoped, tag = 'scratch operand']
  %s0 = inlined_call_operand.vmem [shape: bf16[2,8,1000], index: 0, kind: input, shape index: {}]
  %s1 = inlined_call_operand.vmem [shape: bf16[2,8,1000], index: 1, kind: input, shape index: {}]
  %s2 = inlined_call_operand.vmem [shape: bf16[8,432], index: 2, kind: input, shape index: {}]
  %s3 = inlined_call_operand.vmem [shape: f32[8,1], index: 3, kind: input, shape index: {}]
  %s4 = inlined_call_operand.vmem [shape: f32[8,1], index: 4, kind: input, shape index: {}]
  %s5 = inlined_call_operand.vmem [shape: f32[8,1], index: 5, kind: input, shape index: {}]
  %s6 = inlined_call_operand.vmem [shape: f32[1,778], index: 6, kind: input, shape index: {}]
  %s7 = inlined_call_operand.vmem [shape: bf16[2,8,1000], index: 7, kind: output, shape index: {}]
  %s8 = sld [smem:[#allocation0]]
  $region61: #{up_forward.2} parent=0
    _
  %s10 = ssub.s32 1, %s8
  %s11 = scalar_select 0, %s10, %s8
  loop: start=0, step=1, limit=4
  $region2: #{up_forward.2} parent=0 // loop_pre_header
    _
  $region3: #{up_forward.2} parent=0 // loop_header
    %s13 = sphi 0, %s17
    %p14 = scmp.ge.s32.totalorder %s13, 4
    %s23 = sphi 0, %s25
    %s26 = sphi 0, %s23
    %s27 = sphi 0, %s26
    %s43 = sphi 0, %s27
    %s49 = sphi 0, %s51
    %s52 = sphi 0, %s49
    %s53 = sphi 0, %s52
    %s69 = sphi 0, %s53
    %s73 = sphi 0, %s73
    %s75 = sphi 0, %s73
    %s76 = sphi 0, %s75
    %s90 = sphi 0, %s76
    %s94 = sphi 0, %s94
    %s96 = sphi 0, %s94
    %s97 = sphi 0, %s96
    %s111 = sphi 0, %s97
    %s115 = sphi 0, %s115
    %s117 = sphi 0, %s115
    %s118 = sphi 0, %s117
    %s132 = sphi 0, %s118
    %s136 = sphi 0, %s136
    %s138 = sphi 0, %s136
    %s139 = sphi 0, %s138
    %s153 = sphi 0, %s139
    %s157 = sphi 0, %s157
    %s159 = sphi 0, %s157
    %s160 = sphi 0, %s159
    %s174 = sphi 0, %s160
    %s180 = sphi 0, %s182
    %s183 = sphi 0, %s180
    %s184 = sphi 0, %s183
    %s200 = sphi 0, %s184
  $region4: #{up_forward.2} parent=0 // loop_header_branch
    %16 = sbr.rel (%p14) target = $region8
  $region5: #{up_forward.2} parent=0 // loop_body
    %s18 = ssub.s32 %s13, 1
    %s19 = ssub.s32 %s13, 2
    %s20 = sadd.s32 %s13, 1
    %s21 = ssub.s32 %s13, %s20
    %p22 = scmp.eq.s32.totalorder %s21, 0
    %s24 = sadd.s32 %s23, 1
    %s25 = scalar_select %p22, %s23, %s24
    %p28 = pneg %p22
    %p29 = scmp.eq.s32.totalorder %s13, 1
    %p30 = por %p28, %p29
    %p31 = scmp.ne.s32.totalorder %s23, %s26
    %p32 = scmp.eq.s32.totalorder %s13, 0
    %p33 = por %p31, %p32
    %p34 = scmp.ne.s32.totalorder %s23, %s26
    %p35 = scmp.eq.s32.totalorder %s18, 1
    %p36 = por %p34, %p35
    %p37 = scmp.ne.s32.totalorder %s26, %s27
    %p38 = scmp.eq.s32.totalorder %s18, 0
    %p39 = por %p37, %p38
    %p40 = scmp.ne.s32.totalorder %s26, %s27
    %p41 = scmp.eq.s32.totalorder %s19, 1
    %p42 = por %p40, %p41
    %p44 = scmp.ne.s32.totalorder %s27, %s43
    %p45 = scmp.eq.s32.totalorder %s19, 0
    %p46 = por %p44, %p45
    %s47 = ssub.s32 %s13, %s20
    %p48 = scmp.eq.s32.totalorder %s47, 0
    %s50 = sadd.s32 %s49, 1
    %s51 = scalar_select %p48, %s49, %s50
    %p54 = pneg %p48
    %p55 = scmp.eq.s32.totalorder %s13, 1
    %p56 = por %p54, %p55
    %p57 = scmp.ne.s32.totalorder %s49, %s52
    %p58 = scmp.eq.s32.totalorder %s13, 0
    %p59 = por %p57, %p58
    %p60 = scmp.ne.s32.totalorder %s49, %s52
    %p61 = scmp.eq.s32.totalorder %s18, 1
    %p62 = por %p60, %p61
    %p63 = scmp.ne.s32.totalorder %s52, %s53
    %p64 = scmp.eq.s32.totalorder %s18, 0
    %p65 = por %p63, %p64
    %p66 = scmp.ne.s32.totalorder %s52, %s53
    %p67 = scmp.eq.s32.totalorder %s19, 1
    %p68 = por %p66, %p67
    %p70 = scmp.ne.s32.totalorder %s53, %s69
    %p71 = scmp.eq.s32.totalorder %s19, 0
    %p72 = por %p70, %p71
    %s74 = sadd.s32 %s73, 1
    %p77 = scmp.eq.s32.totalorder %s13, 1
    %p78 = scmp.ne.s32.totalorder %s73, %s75
    %p79 = scmp.eq.s32.totalorder %s13, 0
    %p80 = por %p78, %p79
    %p81 = scmp.ne.s32.totalorder %s73, %s75
    %p82 = scmp.eq.s32.totalorder %s18, 1
    %p83 = por %p81, %p82
    %p84 = scmp.ne.s32.totalorder %s75, %s76
    %p85 = scmp.eq.s32.totalorder %s18, 0
    %p86 = por %p84, %p85
    %p87 = scmp.ne.s32.totalorder %s75, %s76
    %p88 = scmp.eq.s32.totalorder %s19, 1
    %p89 = por %p87, %p88
    %p91 = scmp.ne.s32.totalorder %s76, %s90
    %p92 = scmp.eq.s32.totalorder %s19, 0
    %p93 = por %p91, %p92
    %s95 = sadd.s32 %s94, 1
    %p98 = scmp.eq.s32.totalorder %s13, 1
    %p99 = scmp.ne.s32.totalorder %s94, %s96
    %p100 = scmp.eq.s32.totalorder %s13, 0
    %p101 = por %p99, %p100
    %p102 = scmp.ne.s32.totalorder %s94, %s96
    %p103 = scmp.eq.s32.totalorder %s18, 1
    %p104 = por %p102, %p103
    %p105 = scmp.ne.s32.totalorder %s96, %s97
    %p106 = scmp.eq.s32.totalorder %s18, 0
    %p107 = por %p105, %p106
    %p108 = scmp.ne.s32.totalorder %s96, %s97
    %p109 = scmp.eq.s32.totalorder %s19, 1
    %p110 = por %p108, %p109
    %p112 = scmp.ne.s32.totalorder %s97, %s111
    %p113 = scmp.eq.s32.totalorder %s19, 0
    %p114 = por %p112, %p113
    %s116 = sadd.s32 %s115, 1
    %p119 = scmp.eq.s32.totalorder %s13, 1
    %p120 = scmp.ne.s32.totalorder %s115, %s117
    %p121 = scmp.eq.s32.totalorder %s13, 0
    %p122 = por %p120, %p121
    %p123 = scmp.ne.s32.totalorder %s115, %s117
    %p124 = scmp.eq.s32.totalorder %s18, 1
    %p125 = por %p123, %p124
    %p126 = scmp.ne.s32.totalorder %s117, %s118
    %p127 = scmp.eq.s32.totalorder %s18, 0
    %p128 = por %p126, %p127
    %p129 = scmp.ne.s32.totalorder %s117, %s118
    %p130 = scmp.eq.s32.totalorder %s19, 1
    %p131 = por %p129, %p130
    %p133 = scmp.ne.s32.totalorder %s118, %s132
    %p134 = scmp.eq.s32.totalorder %s19, 0
    %p135 = por %p133, %p134
    %s137 = sadd.s32 %s136, 1
    %p140 = scmp.eq.s32.totalorder %s13, 1
    %p141 = scmp.ne.s32.totalorder %s136, %s138
    %p142 = scmp.eq.s32.totalorder %s13, 0
    %p143 = por %p141, %p142
    %p144 = scmp.ne.s32.totalorder %s136, %s138
    %p145 = scmp.eq.s32.totalorder %s18, 1
    %p146 = por %p144, %p145
    %p147 = scmp.ne.s32.totalorder %s138, %s139
    %p148 = scmp.eq.s32.totalorder %s18, 0
    %p149 = por %p147, %p148
    %p150 = scmp.ne.s32.totalorder %s138, %s139
    %p151 = scmp.eq.s32.totalorder %s19, 1
    %p152 = por %p150, %p151
    %p154 = scmp.ne.s32.totalorder %s139, %s153
    %p155 = scmp.eq.s32.totalorder %s19, 0
    %p156 = por %p154, %p155
    %s158 = sadd.s32 %s157, 1
    %p161 = scmp.eq.s32.totalorder %s13, 1
    %p162 = scmp.ne.s32.totalorder %s157, %s159
    %p163 = scmp.eq.s32.totalorder %s13, 0
    %p164 = por %p162, %p163
    %p165 = scmp.ne.s32.totalorder %s157, %s159
    %p166 = scmp.eq.s32.totalorder %s18, 1
    %p167 = por %p165, %p166
    %p168 = scmp.ne.s32.totalorder %s159, %s160
    %p169 = scmp.eq.s32.totalorder %s18, 0
    %p170 = por %p168, %p169
    %p171 = scmp.ne.s32.totalorder %s159, %s160
    %p172 = scmp.eq.s32.totalorder %s19, 1
    %p173 = por %p171, %p172
    %p175 = scmp.ne.s32.totalorder %s160, %s174
    %p176 = scmp.eq.s32.totalorder %s19, 0
    %p177 = por %p175, %p176
    %s178 = ssub.s32 %s13, %s20
    %p179 = scmp.eq.s32.totalorder %s178, 0
    %s181 = sadd.s32 %s180, 1
    %s182 = scalar_select %p179, %s180, %s181
    %p185 = pneg %p179
    %p186 = scmp.eq.s32.totalorder %s13, 1
    %p187 = por %p185, %p186
    %p188 = scmp.ne.s32.totalorder %s180, %s183
    %p189 = scmp.eq.s32.totalorder %s13, 0
    %p190 = por %p188, %p189
    %p191 = scmp.ne.s32.totalorder %s180, %s183
    %p192 = scmp.eq.s32.totalorder %s18, 1
    %p193 = por %p191, %p192
    %p194 = scmp.ne.s32.totalorder %s183, %s184
    %p195 = scmp.eq.s32.totalorder %s18, 0
    %p196 = por %p194, %p195
    %p197 = scmp.ne.s32.totalorder %s183, %s184
    %p198 = scmp.eq.s32.totalorder %s19, 1
    %p199 = por %p197, %p198
    %p201 = scmp.ne.s32.totalorder %s184, %s200
    %p202 = scmp.eq.s32.totalorder %s19, 0
    %p203 = por %p201, %p202
    %p204 = scmp.le.s32.totalorder 1, %s13
    %p205 = scmp.lt.s32.totalorder %s13, 3
    %p206 = pnand %p204, %p205
    %p207 = pneg %p206
    // Predicated region
    $region9: #{up_forward.2} parent=5 // pred_check
      _
    $region10: #{up_forward.2} parent=5 // pred_check_branch
      %209 = sbr.rel (%p206) target = $region12
    $region11: #{up_forward.2} parent=5 // pred_region
      %s210 = ssub.s32 %s13, 1
      // Predicated region
      $region13: #{up_forward.2} parent=11 // pred_check
        %p211 = pneg %p86
      $region14: #{up_forward.2} parent=11 // pred_check_branch
        %213 = sbr.rel (%p211) target = $region16
      $region15: #{up_forward.2} parent=11 // pred_region
        _
      $region16: #{up_forward.2} parent=11 // pred_fallthru
        _
      // Predicated region
      $region17: #{up_forward.2} parent=11 // pred_check
        %p214 = pneg %p107
      $region18: #{up_forward.2} parent=11 // pred_check_branch
        %216 = sbr.rel (%p214) target = $region20
      $region19: #{up_forward.2} parent=11 // pred_region
        _
      $region20: #{up_forward.2} parent=11 // pred_fallthru
        _
      // Predicated region
      $region21: #{up_forward.2} parent=11 // pred_check
        %p217 = pneg %p128
      $region22: #{up_forward.2} parent=11 // pred_check_branch
        %219 = sbr.rel (%p217) target = $region24
      $region23: #{up_forward.2} parent=11 // pred_region
        _
      $region24: #{up_forward.2} parent=11 // pred_fallthru
        _
      // Predicated region
      $region25: #{up_forward.2} parent=11 // pred_check
        %p220 = pneg %p149
      $region26: #{up_forward.2} parent=11 // pred_check_branch
        %222 = sbr.rel (%p220) target = $region28
      $region27: #{up_forward.2} parent=11 // pred_region
        _
      $region28: #{up_forward.2} parent=11 // pred_fallthru
        _
      // Predicated region
      $region29: #{up_forward.2} parent=11 // pred_check
        %p223 = pneg %p170
      $region30: #{up_forward.2} parent=11 // pred_check_branch
        %225 = sbr.rel (%p223) target = $region32
      $region31: #{up_forward.2} parent=11 // pred_region
        _
      $region32: #{up_forward.2} parent=11 // pred_fallthru
        _
    $region12: #{up_forward.2} parent=5 // pred_fallthru
      _
    %p226 = scmp.lt.s32.totalorder %s13, 2
    // Predicated region
    $region33: #{up_forward.2} parent=5 // pred_check
      %p227 = pneg %p226
    $region34: #{up_forward.2} parent=5 // pred_check_branch
      %229 = sbr.rel (%p227) target = $region36
    $region35: #{up_forward.2} parent=5 // pred_region
      // Predicated region
      $region37: #{up_forward.2} parent=35 // pred_check
        %p230 = pneg %p33
      $region38: #{up_forward.2} parent=35 // pred_check_branch
        %232 = sbr.rel (%p230) target = $region40
      $region39: #{up_forward.2} parent=35 // pred_region
        %p233 = scmp.lt.s32.totalorder %s13, 1
        %s234 = scalar_select %p233, %s13, 1
        %s235 = smul.addr %s234, 8
        %s236 = smul.addr %s235, 4
        %s237 = scalar_lea.vmem %s0, %s236
      $region40: #{up_forward.2} parent=35 // pred_fallthru
        _
      // Predicated region
      $region41: #{up_forward.2} parent=35 // pred_check
        %p238 = pneg %p59
      $region42: #{up_forward.2} parent=35 // pred_check_branch
        %240 = sbr.rel (%p238) target = $region44
      $region43: #{up_forward.2} parent=35 // pred_region
        %p241 = scmp.lt.s32.totalorder %s13, 1
        %s242 = scalar_select %p241, %s13, 1
        %s243 = smul.addr %s242, 8
        %s244 = smul.addr %s243, 4
        %s245 = scalar_lea.vmem %s1, %s244
      $region44: #{up_forward.2} parent=35 // pred_fallthru
        _
    $region36: #{up_forward.2} parent=5 // pred_fallthru
      _
    %p246 = scmp.le.s32.totalorder 1, %s13
    %p247 = scmp.lt.s32.totalorder %s13, 3
    %p248 = pnand %p246, %p247
    %p249 = pneg %p248
    // Predicated region
    $region45: #{up_forward.2} parent=5 // pred_check
      _
    $region46: #{up_forward.2} parent=5 // pred_check_branch
      %251 = sbr.rel (%p248) target = $region48
    $region47: #{up_forward.2} parent=5 // pred_region
      %s252 = ssub.s32 %s13, 1
      %p253 = scmp.lt.s32.totalorder %s18, 1
      %s254 = scalar_select %p253, %s18, 1
      %s255 = smul.addr %s254, 8
      %s256 = smul.addr %s255, 4
      %s257 = scalar_lea.vmem %s0, %s256
      %p258 = pneg %p39
      %p259 = pneg %p36
      %p260 = scmp.lt.s32.totalorder %s18, 1
      %s261 = scalar_select %p260, %s18, 1
      %s262 = smul.addr %s261, 8
      %s263 = smul.addr %s262, 4
      %s264 = scalar_lea.vmem %s1, %s263
      %p265 = pneg %p65
      %p266 = pneg %p62
      %p267 = pneg %p86
      %p268 = pneg %p83
      %p269 = pneg %p107
      %p270 = pneg %p104
      %p271 = pneg %p128
      %p272 = pneg %p125
      %p273 = pneg %p149
      %p274 = pneg %p146
      %p275 = pneg %p170
      %p276 = pneg %p167
      %p277 = pneg %p196
      %p278 = pneg %p193
      %p279 = scmp.lt.s32.totalorder %s18, 1
      %s280 = scalar_select %p279, %s18, 1
      %s281 = smul.addr %s280, 8
      %s282 = smul.addr %s281, 4
      %s283 = scalar_lea.vmem %s7, %s282
      %p284 = scmp.lt.s32.totalorder %s18, 1
      %s285 = scalar_select %p284, %s18, 1
      %s286 = smul.addr %s285, 8
      %s287 = smul.addr %s286, 4
      %s288 = scalar_lea.vmem %s0, %s287
      %p289 = scmp.lt.s32.totalorder %s18, 1
      %s290 = scalar_select %p289, %s18, 1
      %s291 = smul.addr %s290, 8
      %s292 = smul.addr %s291, 4
      %s293 = scalar_lea.vmem %s1, %s292
      %p294 = scmp.lt.s32.totalorder %s18, 1
      %s295 = scalar_select %p294, %s18, 1
      %s296 = smul.addr %s295, 8
      %s297 = smul.addr %s296, 4
      %s298 = scalar_lea.vmem %s7, %s297
      %v300 = vld [vmem:[%s288] sm:$0xff]
      %v301 = vld [vmem:[%s288 + $0x8] sm:$0xff]
      %v302 = vld [vmem:[%s288 + $0x10] sm:$0xff]
      %v303 = vld [vmem:[%s288 + $0x18] sm:$0xf]
      %304 = vst [vmem:[#allocation2] sm:$0xff] %v300
      %305 = vst [vmem:[#allocation2 + $0x8] sm:$0xff] %v301
      %306 = vst [vmem:[#allocation2 + $0x10] sm:$0xff] %v302
      %vm307 = vcmask 76800
      %308 = vst.msk [vmem:[#allocation2 + $0x18] sm:$0xf] %vm307, %v303
      %v309 = vld [vmem:[%s293] sm:$0xff]
      %v310 = vld [vmem:[%s293 + $0x8] sm:$0xff]
      %v311 = vld [vmem:[%s293 + $0x10] sm:$0xff]
      %v312 = vld [vmem:[%s293 + $0x18] sm:$0xf]
      %313 = vst [vmem:[#allocation2 + $0x1c] sm:$0xff] %v309
      %314 = vst [vmem:[#allocation2 + $0x24] sm:$0xff] %v310
      %315 = vst [vmem:[#allocation2 + $0x2c] sm:$0xff] %v311
      %316 = vst.msk [vmem:[#allocation2 + $0x34] sm:$0xf] %vm307, %v312
      %v317 = vld [vmem:[%s288] sm:$0xff]
      %v318 = vld [vmem:[%s288 + $0x8] sm:$0xff]
      %v319 = vld [vmem:[%s288 + $0x10] sm:$0xff]
      %v320 = vld [vmem:[%s288 + $0x18] sm:$0xf]
      %325 = vrot.lane.b32.xlu0 %v317, 127
      %v326 = vpop.permute.xlu0 %325
      %327 = vrot.lane.b32.xlu0 %v318, 127
      %v328 = vpop.permute.xlu0 %327
      %329 = vrot.lane.b32.xlu0 %v319, 127
      %v330 = vpop.permute.xlu0 %329
      %331 = vrot.lane.b32.xlu0 %v320, 127
      %v332 = vpop.permute.xlu0 %331
      %v333 = vrot.slane %v326, 4
      %v334 = vrot.slane %v328, 4
      %v335 = vrot.slane %v330, 4
      %v336 = vrot.slane %v332, 4
      %vm337 = vcmask 1043456
      %v338 = vsel %vm337, %v333, %v334
      %vm339 = vcmask 1039360
      %v340 = vsel %vm339, %v326, %v338
      %v341 = vsel %vm337, %v334, %v335
      %v342 = vsel %vm339, %v328, %v341
      %v343 = vsel %vm337, %v335, %v336
      %v344 = vsel %vm339, %v330, %v343
      %349 = vst [vmem:[#allocation2 + $0x38] sm:$0xff] %v340
      %350 = vst [vmem:[#allocation2 + $0x40] sm:$0xff] %v342
      %351 = vst [vmem:[#allocation2 + $0x48] sm:$0xff] %v344
      %352 = vst.msk [vmem:[#allocation2 + $0x50] sm:$0xf] %vm307, %v332
      %v353 = vld [vmem:[%s293] sm:$0xff]
      %v354 = vld [vmem:[%s293 + $0x8] sm:$0xff]
      %v355 = vld [vmem:[%s293 + $0x10] sm:$0xff]
      %v356 = vld [vmem:[%s293 + $0x18] sm:$0xf]
      %361 = vrot.lane.b32.xlu0 %v353, 127
      %v362 = vpop.permute.xlu0 %361
      %363 = vrot.lane.b32.xlu0 %v354, 127
      %v364 = vpop.permute.xlu0 %363
      %365 = vrot.lane.b32.xlu0 %v355, 127
      %v366 = vpop.permute.xlu0 %365
      %367 = vrot.lane.b32.xlu0 %v356, 127
      %v368 = vpop.permute.xlu0 %367
      %v369 = vrot.slane %v362, 4
      %v370 = vrot.slane %v364, 4
      %v371 = vrot.slane %v366, 4
      %v372 = vrot.slane %v368, 4
      %v373 = vsel %vm337, %v369, %v370
      %v374 = vsel %vm339, %v362, %v373
      %v375 = vsel %vm337, %v370, %v371
      %v376 = vsel %vm339, %v364, %v375
      %v377 = vsel %vm337, %v371, %v372
      %v378 = vsel %vm339, %v366, %v377
      %383 = vst [vmem:[#allocation2 + $0x54] sm:$0xff] %v374
      %384 = vst [vmem:[#allocation2 + $0x5c] sm:$0xff] %v376
      %385 = vst [vmem:[#allocation2 + $0x64] sm:$0xff] %v378
      %386 = vst.msk [vmem:[#allocation2 + $0x6c] sm:$0xf] %vm307, %v368
      %v387 = vld [vmem:[%s288] sm:$0xff]
      %v388 = vld [vmem:[%s288 + $0x8] sm:$0xff]
      %v389 = vld [vmem:[%s288 + $0x10] sm:$0xff]
      %v390 = vld [vmem:[%s288 + $0x18] sm:$0xf]
      %395 = vrot.lane.b32.xlu0 %v387, 126
      %v396 = vpop.permute.xlu0 %395
      %397 = vrot.lane.b32.xlu0 %v388, 126
      %v398 = vpop.permute.xlu0 %397
      %399 = vrot.lane.b32.xlu0 %v389, 126
      %v400 = vpop.permute.xlu0 %399
      %401 = vrot.lane.b32.xlu0 %v390, 126
      %v402 = vpop.permute.xlu0 %401
      %v403 = vrot.slane %v396, 4
      %v404 = vrot.slane %v398, 4
      %v405 = vrot.slane %v400, 4
      %v406 = vrot.slane %v402, 4
      %v407 = vsel %vm337, %v403, %v404
      %vm408 = vcmask 1031168
      %v409 = vsel %vm408, %v396, %v407
      %v410 = vsel %vm337, %v404, %v405
      %v411 = vsel %vm408, %v398, %v410
      %v412 = vsel %vm337, %v405, %v406
      %v413 = vsel %vm408, %v400, %v412
      %418 = vst [vmem:[#allocation2 + $0x70] sm:$0xff] %v409
      %419 = vst [vmem:[#allocation2 + $0x78] sm:$0xff] %v411
      %420 = vst [vmem:[#allocation2 + $0x80] sm:$0xff] %v413
      %421 = vst.msk [vmem:[#allocation2 + $0x88] sm:$0xf] %vm307, %v402
      %v422 = vld [vmem:[%s293] sm:$0xff]
      %v423 = vld [vmem:[%s293 + $0x8] sm:$0xff]
      %v424 = vld [vmem:[%s293 + $0x10] sm:$0xff]
      %v425 = vld [vmem:[%s293 + $0x18] sm:$0xf]
      %430 = vrot.lane.b32.xlu0 %v422, 126
      %v431 = vpop.permute.xlu0 %430
      %432 = vrot.lane.b32.xlu0 %v423, 126
      %v433 = vpop.permute.xlu0 %432
      %434 = vrot.lane.b32.xlu0 %v424, 126
      %v435 = vpop.permute.xlu0 %434
      %436 = vrot.lane.b32.xlu0 %v425, 126
      %v437 = vpop.permute.xlu0 %436
      %v438 = vrot.slane %v431, 4
      %v439 = vrot.slane %v433, 4
      %v440 = vrot.slane %v435, 4
      %v441 = vrot.slane %v437, 4
      %v442 = vsel %vm337, %v438, %v439
      %v443 = vsel %vm408, %v431, %v442
      %v444 = vsel %vm337, %v439, %v440
      %v445 = vsel %vm408, %v433, %v444
      %v446 = vsel %vm337, %v440, %v441
      %v447 = vsel %vm408, %v435, %v446
      %452 = vst [vmem:[#allocation2 + $0x8c] sm:$0xff] %v443
      %453 = vst [vmem:[#allocation2 + $0x94] sm:$0xff] %v445
      %454 = vst [vmem:[#allocation2 + $0x9c] sm:$0xff] %v447
      %455 = vst.msk [vmem:[#allocation2 + $0xa4] sm:$0xf] %vm307, %v437
      %v456 = vld [vmem:[%s288] sm:$0xff]
      %v457 = vld [vmem:[%s288 + $0x8] sm:$0xff]
      %v458 = vld [vmem:[%s288 + $0x10] sm:$0xff]
      %v459 = vld [vmem:[%s288 + $0x18] sm:$0xf]
      %464 = vrot.lane.b32.xlu0 %v456, 118
      %v465 = vpop.permute.xlu0 %464
      %466 = vrot.lane.b32.xlu0 %v457, 118
      %v467 = vpop.permute.xlu0 %466
      %468 = vrot.lane.b32.xlu0 %v458, 118
      %v469 = vpop.permute.xlu0 %468
      %470 = vrot.lane.b32.xlu0 %v459, 118
      %v471 = vpop.permute.xlu0 %470
      %v472 = vrot.slane %v465, 4
      %v473 = vrot.slane %v467, 4
      %v474 = vrot.slane %v469, 4
      %v475 = vrot.slane %v471, 4
      %v476 = vsel %vm337, %v472, %v473
      %vm477 = vcmask 965632
      %v478 = vsel %vm477, %v465, %v476
      %v479 = vsel %vm337, %v473, %v474
      %v480 = vsel %vm477, %v467, %v479
      %v481 = vsel %vm337, %v474, %v475
      %v482 = vsel %vm477, %v469, %v481
      %487 = vst [vmem:[#allocation2 + $0xa8] sm:$0xff] %v478
      %488 = vst [vmem:[#allocation2 + $0xb0] sm:$0xff] %v480
      %489 = vst [vmem:[#allocation2 + $0xb8] sm:$0xff] %v482
      %490 = vst.msk [vmem:[#allocation2 + $0xc0] sm:$0xf] %vm307, %v471
      %v491 = vld [vmem:[%s293] sm:$0xff]
      %v492 = vld [vmem:[%s293 + $0x8] sm:$0xff]
      %v493 = vld [vmem:[%s293 + $0x10] sm:$0xff]
      %v494 = vld [vmem:[%s293 + $0x18] sm:$0xf]
      %499 = vrot.lane.b32.xlu0 %v491, 118
      %v500 = vpop.permute.xlu0 %499
      %501 = vrot.lane.b32.xlu0 %v492, 118
      %v502 = vpop.permute.xlu0 %501
      %503 = vrot.lane.b32.xlu0 %v493, 118
      %v504 = vpop.permute.xlu0 %503
      %505 = vrot.lane.b32.xlu0 %v494, 118
      %v506 = vpop.permute.xlu0 %505
      %v507 = vrot.slane %v500, 4
      %v508 = vrot.slane %v502, 4
      %v509 = vrot.slane %v504, 4
      %v510 = vrot.slane %v506, 4
      %v511 = vsel %vm337, %v507, %v508
      %v512 = vsel %vm477, %v500, %v511
      %v513 = vsel %vm337, %v508, %v509
      %v514 = vsel %vm477, %v502, %v513
      %v515 = vsel %vm337, %v509, %v510
      %v516 = vsel %vm477, %v504, %v515
      %521 = vst [vmem:[#allocation2 + $0xc4] sm:$0xff] %v512
      %522 = vst [vmem:[#allocation2 + $0xcc] sm:$0xff] %v514
      %523 = vst [vmem:[#allocation2 + $0xd4] sm:$0xff] %v516
      %524 = vst.msk [vmem:[#allocation2 + $0xdc] sm:$0xf] %vm307, %v506
      %v525 = vld [vmem:[%s288] sm:$0xff]
      %v526 = vld [vmem:[%s288 + $0x8] sm:$0xff]
      %v527 = vld [vmem:[%s288 + $0x10] sm:$0xff]
      %v528 = vld [vmem:[%s288 + $0x18] sm:$0xf]
      %533 = vrot.lane.b32.xlu0 %v525, 117
      %v534 = vpop.permute.xlu0 %533
      %535 = vrot.lane.b32.xlu0 %v526, 117
      %v536 = vpop.permute.xlu0 %535
      %537 = vrot.lane.b32.xlu0 %v527, 117
      %v538 = vpop.permute.xlu0 %537
      %539 = vrot.lane.b32.xlu0 %v528, 117
      %v540 = vpop.permute.xlu0 %539
      %v541 = vrot.slane %v534, 4
      %v542 = vrot.slane %v536, 4
      %v543 = vrot.slane %v538, 4
      %v544 = vrot.slane %v540, 4
      %v545 = vsel %vm337, %v541, %v542
      %vm546 = vcmask 957440
      %v547 = vsel %vm546, %v534, %v545
      %v548 = vsel %vm337, %v542, %v543
      %v549 = vsel %vm546, %v536, %v548
      %v550 = vsel %vm337, %v543, %v544
      %v551 = vsel %vm546, %v538, %v550
      %556 = vst [vmem:[#allocation2 + $0xe0] sm:$0xff] %v547
      %557 = vst [vmem:[#allocation2 + $0xe8] sm:$0xff] %v549
      %558 = vst [vmem:[#allocation2 + $0xf0] sm:$0xff] %v551
      %559 = vst.msk [vmem:[#allocation2 + $0xf8] sm:$0xf] %vm307, %v540
      %v560 = vld [vmem:[%s293] sm:$0xff]
      %v561 = vld [vmem:[%s293 + $0x8] sm:$0xff]
      %v562 = vld [vmem:[%s293 + $0x10] sm:$0xff]
      %v563 = vld [vmem:[%s293 + $0x18] sm:$0xf]
      %568 = vrot.lane.b32.xlu0 %v560, 117
      %v569 = vpop.permute.xlu0 %568
      %570 = vrot.lane.b32.xlu0 %v561, 117
      %v571 = vpop.permute.xlu0 %570
      %572 = vrot.lane.b32.xlu0 %v562, 117
      %v573 = vpop.permute.xlu0 %572
      %574 = vrot.lane.b32.xlu0 %v563, 117
      %v575 = vpop.permute.xlu0 %574
      %v576 = vrot.slane %v569, 4
      %v577 = vrot.slane %v571, 4
      %v578 = vrot.slane %v573, 4
      %v579 = vrot.slane %v575, 4
      %v580 = vsel %vm337, %v576, %v577
      %v581 = vsel %vm546, %v569, %v580
      %v582 = vsel %vm337, %v577, %v578
      %v583 = vsel %vm546, %v571, %v582
      %v584 = vsel %vm337, %v578, %v579
      %v585 = vsel %vm546, %v573, %v584
      %590 = vst [vmem:[#allocation2 + $0xfc] sm:$0xff] %v581
      %591 = vst [vmem:[#allocation2 + $0x104] sm:$0xff] %v583
      %592 = vst [vmem:[#allocation2 + $0x10c] sm:$0xff] %v585
      %593 = vst.msk [vmem:[#allocation2 + $0x114] sm:$0xf] %vm307, %v575
      %v594 = vld [vmem:[%s288] sm:$0xff]
      %v595 = vld [vmem:[%s288 + $0x8] sm:$0xff]
      %v596 = vld [vmem:[%s288 + $0x10] sm:$0xff]
      %v597 = vld [vmem:[%s288 + $0x18] sm:$0xf]
      %602 = vrot.lane.b32.xlu0 %v594, 116
      %v603 = vpop.permute.xlu0 %602
      %604 = vrot.lane.b32.xlu0 %v595, 116
      %v605 = vpop.permute.xlu0 %604
      %606 = vrot.lane.b32.xlu0 %v596, 116
      %v607 = vpop.permute.xlu0 %606
      %608 = vrot.lane.b32.xlu0 %v597, 116
      %v609 = vpop.permute.xlu0 %608
      %v610 = vrot.slane %v603, 4
      %v611 = vrot.slane %v605, 4
      %v612 = vrot.slane %v607, 4
      %v613 = vrot.slane %v609, 4
      %v614 = vsel %vm337, %v610, %v611
      %vm615 = vcmask 949248
      %v616 = vsel %vm615, %v603, %v614
      %v617 = vsel %vm337, %v611, %v612
      %v618 = vsel %vm615, %v605, %v617
      %v619 = vsel %vm337, %v612, %v613
      %v620 = vsel %vm615, %v607, %v619
      %625 = vst [vmem:[#allocation2 + $0x118] sm:$0xff] %v616
      %626 = vst [vmem:[#allocation2 + $0x120] sm:$0xff] %v618
      %627 = vst [vmem:[#allocation2 + $0x128] sm:$0xff] %v620
      %628 = vst.msk [vmem:[#allocation2 + $0x130] sm:$0xf] %vm307, %v609
      %v629 = vld [vmem:[%s293] sm:$0xff]
      %v630 = vld [vmem:[%s293 + $0x8] sm:$0xff]
      %v631 = vld [vmem:[%s293 + $0x10] sm:$0xff]
      %v632 = vld [vmem:[%s293 + $0x18] sm:$0xf]
      %637 = vrot.lane.b32.xlu0 %v629, 116
      %v638 = vpop.permute.xlu0 %637
      %639 = vrot.lane.b32.xlu0 %v630, 116
      %v640 = vpop.permute.xlu0 %639
      %641 = vrot.lane.b32.xlu0 %v631, 116
      %v642 = vpop.permute.xlu0 %641
      %643 = vrot.lane.b32.xlu0 %v632, 116
      %v644 = vpop.permute.xlu0 %643
      %v645 = vrot.slane %v638, 4
      %v646 = vrot.slane %v640, 4
      %v647 = vrot.slane %v642, 4
      %v648 = vrot.slane %v644, 4
      %v649 = vsel %vm337, %v645, %v646
      %v650 = vsel %vm615, %v638, %v649
      %v651 = vsel %vm337, %v646, %v647
      %v652 = vsel %vm615, %v640, %v651
      %v653 = vsel %vm337, %v647, %v648
      %v654 = vsel %vm615, %v642, %v653
      %659 = vst [vmem:[#allocation2 + $0x134] sm:$0xff] %v650
      %660 = vst [vmem:[#allocation2 + $0x13c] sm:$0xff] %v652
      %661 = vst [vmem:[#allocation2 + $0x144] sm:$0xff] %v654
      %662 = vst.msk [vmem:[#allocation2 + $0x14c] sm:$0xf] %vm307, %v644
      %v663 = vld [vmem:[%s288] sm:$0xff]
      %v664 = vld [vmem:[%s288 + $0x8] sm:$0xff]
      %v665 = vld [vmem:[%s288 + $0x10] sm:$0xff]
      %v666 = vld [vmem:[%s288 + $0x18] sm:$0xf]
      %671 = vrot.lane.b32.xlu0 %v663, 108
      %v672 = vpop.permute.xlu0 %671
      %673 = vrot.lane.b32.xlu0 %v664, 108
      %v674 = vpop.permute.xlu0 %673
      %675 = vrot.lane.b32.xlu0 %v665, 108
      %v676 = vpop.permute.xlu0 %675
      %677 = vrot.lane.b32.xlu0 %v666, 108
      %v678 = vpop.permute.xlu0 %677
      %v679 = vrot.slane %v672, 4
      %v680 = vrot.slane %v674, 4
      %v681 = vrot.slane %v676, 4
      %v682 = vrot.slane %v678, 4
      %v683 = vsel %vm337, %v679, %v680
      %vm684 = vcmask 883712
      %v685 = vsel %vm684, %v672, %v683
      %v686 = vsel %vm337, %v680, %v681
      %v687 = vsel %vm684, %v674, %v686
      %v688 = vsel %vm337, %v681, %v682
      %v689 = vsel %vm684, %v676, %v688
      %694 = vst [vmem:[#allocation2 + $0x150] sm:$0xff] %v685
      %695 = vst [vmem:[#allocation2 + $0x158] sm:$0xff] %v687
      %696 = vst [vmem:[#allocation2 + $0x160] sm:$0xff] %v689
      %697 = vst.msk [vmem:[#allocation2 + $0x168] sm:$0xf] %vm307, %v678
      %v698 = vld [vmem:[%s293] sm:$0xff]
      %v699 = vld [vmem:[%s293 + $0x8] sm:$0xff]
      %v700 = vld [vmem:[%s293 + $0x10] sm:$0xff]
      %v701 = vld [vmem:[%s293 + $0x18] sm:$0xf]
      %706 = vrot.lane.b32.xlu0 %v698, 108
      %v707 = vpop.permute.xlu0 %706
      %708 = vrot.lane.b32.xlu0 %v699, 108
      %v709 = vpop.permute.xlu0 %708
      %710 = vrot.lane.b32.xlu0 %v700, 108
      %v711 = vpop.permute.xlu0 %710
      %712 = vrot.lane.b32.xlu0 %v701, 108
      %v713 = vpop.permute.xlu0 %712
      %v714 = vrot.slane %v707, 4
      %v715 = vrot.slane %v709, 4
      %v716 = vrot.slane %v711, 4
      %v717 = vrot.slane %v713, 4
      %v718 = vsel %vm337, %v714, %v715
      %v719 = vsel %vm684, %v707, %v718
      %v720 = vsel %vm337, %v715, %v716
      %v721 = vsel %vm684, %v709, %v720
      %v722 = vsel %vm337, %v716, %v717
      %v723 = vsel %vm684, %v711, %v722
      %728 = vst [vmem:[#allocation2 + $0x16c] sm:$0xff] %v719
      %729 = vst [vmem:[#allocation2 + $0x174] sm:$0xff] %v721
      %730 = vst [vmem:[#allocation2 + $0x17c] sm:$0xff] %v723
      %731 = vst.msk [vmem:[#allocation2 + $0x184] sm:$0xf] %vm307, %v713
      %v732 = vld [vmem:[%s288] sm:$0xff]
      %v733 = vld [vmem:[%s288 + $0x8] sm:$0xff]
      %v734 = vld [vmem:[%s288 + $0x10] sm:$0xff]
      %v735 = vld [vmem:[%s288 + $0x18] sm:$0xf]
      %740 = vrot.lane.b32.xlu0 %v732, 107
      %v741 = vpop.permute.xlu0 %740
      %742 = vrot.lane.b32.xlu0 %v733, 107
      %v743 = vpop.permute.xlu0 %742
      %744 = vrot.lane.b32.xlu0 %v734, 107
      %v745 = vpop.permute.xlu0 %744
      %746 = vrot.lane.b32.xlu0 %v735, 107
      %v747 = vpop.permute.xlu0 %746
      %v748 = vrot.slane %v741, 4
      %v749 = vrot.slane %v743, 4
      %v750 = vrot.slane %v745, 4
      %v751 = vrot.slane %v747, 4
      %v752 = vsel %vm337, %v748, %v749
      %vm753 = vcmask 875520
      %v754 = vsel %vm753, %v741, %v752
      %v755 = vsel %vm337, %v749, %v750
      %v756 = vsel %vm753, %v743, %v755
      %v757 = vsel %vm337, %v750, %v751
      %v758 = vsel %vm753, %v745, %v757
      %763 = vst [vmem:[#allocation2 + $0x188] sm:$0xff] %v754
      %764 = vst [vmem:[#allocation2 + $0x190] sm:$0xff] %v756
      %765 = vst [vmem:[#allocation2 + $0x198] sm:$0xff] %v758
      %766 = vst.msk [vmem:[#allocation2 + $0x1a0] sm:$0xf] %vm307, %v747
      %v767 = vld [vmem:[%s293] sm:$0xff]
      %v768 = vld [vmem:[%s293 + $0x8] sm:$0xff]
      %v769 = vld [vmem:[%s293 + $0x10] sm:$0xff]
      %v770 = vld [vmem:[%s293 + $0x18] sm:$0xf]
      %775 = vrot.lane.b32.xlu0 %v767, 107
      %v776 = vpop.permute.xlu0 %775
      %777 = vrot.lane.b32.xlu0 %v768, 107
      %v778 = vpop.permute.xlu0 %777
      %779 = vrot.lane.b32.xlu0 %v769, 107
      %v780 = vpop.permute.xlu0 %779
      %781 = vrot.lane.b32.xlu0 %v770, 107
      %v782 = vpop.permute.xlu0 %781
      %v783 = vrot.slane %v776, 4
      %v784 = vrot.slane %v778, 4
      %v785 = vrot.slane %v780, 4
      %v786 = vrot.slane %v782, 4
      %v787 = vsel %vm337, %v783, %v784
      %v788 = vsel %vm753, %v776, %v787
      %v789 = vsel %vm337, %v784, %v785
      %v790 = vsel %vm753, %v778, %v789
      %v791 = vsel %vm337, %v785, %v786
      %v792 = vsel %vm753, %v780, %v791
      %797 = vst [vmem:[#allocation2 + $0x1a4] sm:$0xff] %v788
      %798 = vst [vmem:[#allocation2 + $0x1ac] sm:$0xff] %v790
      %799 = vst [vmem:[#allocation2 + $0x1b4] sm:$0xff] %v792
      %800 = vst.msk [vmem:[#allocation2 + $0x1bc] sm:$0xf] %vm307, %v782
      %v801 = vld [vmem:[%s288] sm:$0xff]
      %v802 = vld [vmem:[%s288 + $0x8] sm:$0xff]
      %v803 = vld [vmem:[%s288 + $0x10] sm:$0xff]
      %v804 = vld [vmem:[%s288 + $0x18] sm:$0xf]
      %809 = vrot.lane.b32.xlu0 %v801, 106
      %v810 = vpop.permute.xlu0 %809
      %811 = vrot.lane.b32.xlu0 %v802, 106
      %v812 = vpop.permute.xlu0 %811
      %813 = vrot.lane.b32.xlu0 %v803, 106
      %v814 = vpop.permute.xlu0 %813
      %815 = vrot.lane.b32.xlu0 %v804, 106
      %v816 = vpop.permute.xlu0 %815
      %v817 = vrot.slane %v810, 4
      %v818 = vrot.slane %v812, 4
      %v819 = vrot.slane %v814, 4
      %v820 = vrot.slane %v816, 4
      %v821 = vsel %vm337, %v817, %v818
      %vm822 = vcmask 867328
      %v823 = vsel %vm822, %v810, %v821
      %v824 = vsel %vm337, %v818, %v819
      %v825 = vsel %vm822, %v812, %v824
      %v826 = vsel %vm337, %v819, %v820
      %v827 = vsel %vm822, %v814, %v826
      %832 = vst [vmem:[#allocation2 + $0x1c0] sm:$0xff] %v823
      %833 = vst [vmem:[#allocation2 + $0x1c8] sm:$0xff] %v825
      %834 = vst [vmem:[#allocation2 + $0x1d0] sm:$0xff] %v827
      %835 = vst.msk [vmem:[#allocation2 + $0x1d8] sm:$0xf] %vm307, %v816
      %v836 = vld [vmem:[%s293] sm:$0xff]
      %v837 = vld [vmem:[%s293 + $0x8] sm:$0xff]
      %v838 = vld [vmem:[%s293 + $0x10] sm:$0xff]
      %v839 = vld [vmem:[%s293 + $0x18] sm:$0xf]
      %844 = vrot.lane.b32.xlu0 %v836, 106
      %v845 = vpop.permute.xlu0 %844
      %846 = vrot.lane.b32.xlu0 %v837, 106
      %v847 = vpop.permute.xlu0 %846
      %848 = vrot.lane.b32.xlu0 %v838, 106
      %v849 = vpop.permute.xlu0 %848
      %850 = vrot.lane.b32.xlu0 %v839, 106
      %v851 = vpop.permute.xlu0 %850
      %v852 = vrot.slane %v845, 4
      %v853 = vrot.slane %v847, 4
      %v854 = vrot.slane %v849, 4
      %v855 = vrot.slane %v851, 4
      %v856 = vsel %vm337, %v852, %v853
      %v857 = vsel %vm822, %v845, %v856
      %v858 = vsel %vm337, %v853, %v854
      %v859 = vsel %vm822, %v847, %v858
      %v860 = vsel %vm337, %v854, %v855
      %v861 = vsel %vm822, %v849, %v860
      %866 = vst [vmem:[#allocation2 + $0x1dc] sm:$0xff] %v857
      %867 = vst [vmem:[#allocation2 + $0x1e4] sm:$0xff] %v859
      %868 = vst [vmem:[#allocation2 + $0x1ec] sm:$0xff] %v861
      %869 = vst.msk [vmem:[#allocation2 + $0x1f4] sm:$0xf] %vm307, %v851
      %v870 = vld [vmem:[%s288] sm:$0xff]
      %v871 = vld [vmem:[%s288 + $0x8] sm:$0xff]
      %v872 = vld [vmem:[%s288 + $0x10] sm:$0xff]
      %v873 = vld [vmem:[%s288 + $0x18] sm:$0xf]
      %878 = vrot.lane.b32.xlu0 %v870, 28
      %v879 = vpop.permute.xlu0 %878
      %880 = vrot.lane.b32.xlu0 %v871, 28
      %v881 = vpop.permute.xlu0 %880
      %882 = vrot.lane.b32.xlu0 %v872, 28
      %v883 = vpop.permute.xlu0 %882
      %884 = vrot.lane.b32.xlu0 %v873, 28
      %v885 = vpop.permute.xlu0 %884
      %v886 = vrot.slane %v879, 4
      %v887 = vrot.slane %v881, 4
      %v888 = vrot.slane %v883, 4
      %v889 = vrot.slane %v885, 4
      %v890 = vsel %vm337, %v886, %v887
      %vm891 = vcmask 228352
      %v892 = vsel %vm891, %v879, %v890
      %v893 = vsel %vm337, %v887, %v888
      %v894 = vsel %vm891, %v881, %v893
      %v895 = vsel %vm337, %v888, %v889
      %v896 = vsel %vm891, %v883, %v895
      %901 = vst [vmem:[#allocation2 + $0x1f8] sm:$0xff] %v892
      %902 = vst [vmem:[#allocation2 + $0x200] sm:$0xff] %v894
      %903 = vst [vmem:[#allocation2 + $0x208] sm:$0xff] %v896
      %904 = vst.msk [vmem:[#allocation2 + $0x210] sm:$0xf] %vm307, %v885
      %v905 = vld [vmem:[%s293] sm:$0xff]
      %v906 = vld [vmem:[%s293 + $0x8] sm:$0xff]
      %v907 = vld [vmem:[%s293 + $0x10] sm:$0xff]
      %v908 = vld [vmem:[%s293 + $0x18] sm:$0xf]
      %913 = vrot.lane.b32.xlu0 %v905, 28
      %v914 = vpop.permute.xlu0 %913
      %915 = vrot.lane.b32.xlu0 %v906, 28
      %v916 = vpop.permute.xlu0 %915
      %917 = vrot.lane.b32.xlu0 %v907, 28
      %v918 = vpop.permute.xlu0 %917
      %919 = vrot.lane.b32.xlu0 %v908, 28
      %v920 = vpop.permute.xlu0 %919
      %v921 = vrot.slane %v914, 4
      %v922 = vrot.slane %v916, 4
      %v923 = vrot.slane %v918, 4
      %v924 = vrot.slane %v920, 4
      %v925 = vsel %vm337, %v921, %v922
      %v926 = vsel %vm891, %v914, %v925
      %v927 = vsel %vm337, %v922, %v923
      %v928 = vsel %vm891, %v916, %v927
      %v929 = vsel %vm337, %v923, %v924
      %v930 = vsel %vm891, %v918, %v929
      %935 = vst [vmem:[#allocation2 + $0x214] sm:$0xff] %v926
      %936 = vst [vmem:[#allocation2 + $0x21c] sm:$0xff] %v928
      %937 = vst [vmem:[#allocation2 + $0x224] sm:$0xff] %v930
      %938 = vst.msk [vmem:[#allocation2 + $0x22c] sm:$0xf] %vm307, %v920
      %v939 = vld [vmem:[%s288] sm:$0xff]
      %v940 = vld [vmem:[%s288 + $0x8] sm:$0xff]
      %v941 = vld [vmem:[%s288 + $0x10] sm:$0xff]
      %v942 = vld [vmem:[%s288 + $0x18] sm:$0xf]
      %947 = vrot.lane.b32.xlu0 %v939, 27
      %v948 = vpop.permute.xlu0 %947
      %949 = vrot.lane.b32.xlu0 %v940, 27
      %v950 = vpop.permute.xlu0 %949
      %951 = vrot.lane.b32.xlu0 %v941, 27
      %v952 = vpop.permute.xlu0 %951
      %953 = vrot.lane.b32.xlu0 %v942, 27
      %v954 = vpop.permute.xlu0 %953
      %v955 = vrot.slane %v948, 4
      %v956 = vrot.slane %v950, 4
      %v957 = vrot.slane %v952, 4
      %v958 = vrot.slane %v954, 4
      %v959 = vsel %vm337, %v955, %v956
      %vm960 = vcmask 220160
      %v961 = vsel %vm960, %v948, %v959
      %v962 = vsel %vm337, %v956, %v957
      %v963 = vsel %vm960, %v950, %v962
      %v964 = vsel %vm337, %v957, %v958
      %v965 = vsel %vm960, %v952, %v964
      %970 = vst [vmem:[#allocation2 + $0x230] sm:$0xff] %v961
      %971 = vst [vmem:[#allocation2 + $0x238] sm:$0xff] %v963
      %972 = vst [vmem:[#allocation2 + $0x240] sm:$0xff] %v965
      %973 = vst.msk [vmem:[#allocation2 + $0x248] sm:$0xf] %vm307, %v954
      %v974 = vld [vmem:[%s293] sm:$0xff]
      %v975 = vld [vmem:[%s293 + $0x8] sm:$0xff]
      %v976 = vld [vmem:[%s293 + $0x10] sm:$0xff]
      %v977 = vld [vmem:[%s293 + $0x18] sm:$0xf]
      %982 = vrot.lane.b32.xlu0 %v974, 27
      %v983 = vpop.permute.xlu0 %982
      %984 = vrot.lane.b32.xlu0 %v975, 27
      %v985 = vpop.permute.xlu0 %984
      %986 = vrot.lane.b32.xlu0 %v976, 27
      %v987 = vpop.permute.xlu0 %986
      %988 = vrot.lane.b32.xlu0 %v977, 27
      %v989 = vpop.permute.xlu0 %988
      %v990 = vrot.slane %v983, 4
      %v991 = vrot.slane %v985, 4
      %v992 = vrot.slane %v987, 4
      %v993 = vrot.slane %v989, 4
      %v994 = vsel %vm337, %v990, %v991
      %v995 = vsel %vm960, %v983, %v994
      %v996 = vsel %vm337, %v991, %v992
      %v997 = vsel %vm960, %v985, %v996
      %v998 = vsel %vm337, %v992, %v993
      %v999 = vsel %vm960, %v987, %v998
      %1004 = vst [vmem:[#allocation2 + $0x24c] sm:$0xff] %v995
      %1005 = vst [vmem:[#allocation2 + $0x254] sm:$0xff] %v997
      %1006 = vst [vmem:[#allocation2 + $0x25c] sm:$0xff] %v999
      %1007 = vst.msk [vmem:[#allocation2 + $0x264] sm:$0xf] %vm307, %v989
      %v1008 = vld [vmem:[%s288] sm:$0xff]
      %v1009 = vld [vmem:[%s288 + $0x8] sm:$0xff]
      %v1010 = vld [vmem:[%s288 + $0x10] sm:$0xff]
      %v1011 = vld [vmem:[%s288 + $0x18] sm:$0xf]
      %1016 = vrot.lane.b32.xlu0 %v1008, 26
      %v1017 = vpop.permute.xlu0 %1016
      %1018 = vrot.lane.b32.xlu0 %v1009, 26
      %v1019 = vpop.permute.xlu0 %1018
      %1020 = vrot.lane.b32.xlu0 %v1010, 26
      %v1021 = vpop.permute.xlu0 %1020
      %1022 = vrot.lane.b32.xlu0 %v1011, 26
      %v1023 = vpop.permute.xlu0 %1022
      %v1024 = vrot.slane %v1017, 4
      %v1025 = vrot.slane %v1019, 4
      %v1026 = vrot.slane %v1021, 4
      %v1027 = vrot.slane %v1023, 4
      %v1028 = vsel %vm337, %v1024, %v1025
      %vm1029 = vcmask 211968
      %v1030 = vsel %vm1029, %v1017, %v1028
      %v1031 = vsel %vm337, %v1025, %v1026
      %v1032 = vsel %vm1029, %v1019, %v1031
      %v1033 = vsel %vm337, %v1026, %v1027
      %v1034 = vsel %vm1029, %v1021, %v1033
      %1039 = vst [vmem:[#allocation2 + $0x268] sm:$0xff] %v1030
      %1040 = vst [vmem:[#allocation2 + $0x270] sm:$0xff] %v1032
      %1041 = vst [vmem:[#allocation2 + $0x278] sm:$0xff] %v1034
      %1042 = vst.msk [vmem:[#allocation2 + $0x280] sm:$0xf] %vm307, %v1023
      %v1043 = vld [vmem:[%s293] sm:$0xff]
      %v1044 = vld [vmem:[%s293 + $0x8] sm:$0xff]
      %v1045 = vld [vmem:[%s293 + $0x10] sm:$0xff]
      %v1046 = vld [vmem:[%s293 + $0x18] sm:$0xf]
      %1051 = vrot.lane.b32.xlu0 %v1043, 26
      %v1052 = vpop.permute.xlu0 %1051
      %1053 = vrot.lane.b32.xlu0 %v1044, 26
      %v1054 = vpop.permute.xlu0 %1053
      %1055 = vrot.lane.b32.xlu0 %v1045, 26
      %v1056 = vpop.permute.xlu0 %1055
      %1057 = vrot.lane.b32.xlu0 %v1046, 26
      %v1058 = vpop.permute.xlu0 %1057
      %v1059 = vrot.slane %v1052, 4
      %v1060 = vrot.slane %v1054, 4
      %v1061 = vrot.slane %v1056, 4
      %v1062 = vrot.slane %v1058, 4
      %v1063 = vsel %vm337, %v1059, %v1060
      %v1064 = vsel %vm1029, %v1052, %v1063
      %v1065 = vsel %vm337, %v1060, %v1061
      %v1066 = vsel %vm1029, %v1054, %v1065
      %v1067 = vsel %vm337, %v1061, %v1062
      %v1068 = vsel %vm1029, %v1056, %v1067
      %1073 = vst [vmem:[#allocation2 + $0x284] sm:$0xff] %v1064
      %1074 = vst [vmem:[#allocation2 + $0x28c] sm:$0xff] %v1066
      %1075 = vst [vmem:[#allocation2 + $0x294] sm:$0xff] %v1068
      %1076 = vst.msk [vmem:[#allocation2 + $0x29c] sm:$0xf] %vm307, %v1058
      %v1077 = vld [vmem:[%s288] sm:$0xff]
      %v1078 = vld [vmem:[%s288 + $0x8] sm:$0xff]
      %v1079 = vld [vmem:[%s288 + $0x10] sm:$0xff]
      %v1080 = vld [vmem:[%s288 + $0x18] sm:$0xf]
      %1085 = vrot.lane.b32.xlu0 %v1077, 18
      %v1086 = vpop.permute.xlu0 %1085
      %1087 = vrot.lane.b32.xlu0 %v1078, 18
      %v1088 = vpop.permute.xlu0 %1087
      %1089 = vrot.lane.b32.xlu0 %v1079, 18
      %v1090 = vpop.permute.xlu0 %1089
      %1091 = vrot.lane.b32.xlu0 %v1080, 18
      %v1092 = vpop.permute.xlu0 %1091
      %v1093 = vrot.slane %v1086, 4
      %v1094 = vrot.slane %v1088, 4
      %v1095 = vrot.slane %v1090, 4
      %v1096 = vrot.slane %v1092, 4
      %v1097 = vsel %vm337, %v1093, %v1094
      %vm1098 = vcmask 146432
      %v1099 = vsel %vm1098, %v1086, %v1097
      %v1100 = vsel %vm337, %v1094, %v1095
      %v1101 = vsel %vm1098, %v1088, %v1100
      %v1102 = vsel %vm337, %v1095, %v1096
      %v1103 = vsel %vm1098, %v1090, %v1102
      %1108 = vst [vmem:[#allocation2 + $0x2a0] sm:$0xff] %v1099
      %1109 = vst [vmem:[#allocation2 + $0x2a8] sm:$0xff] %v1101
      %1110 = vst [vmem:[#allocation2 + $0x2b0] sm:$0xff] %v1103
      %1111 = vst.msk [vmem:[#allocation2 + $0x2b8] sm:$0xf] %vm307, %v1092
      %v1112 = vld [vmem:[%s293] sm:$0xff]
      %v1113 = vld [vmem:[%s293 + $0x8] sm:$0xff]
      %v1114 = vld [vmem:[%s293 + $0x10] sm:$0xff]
      %v1115 = vld [vmem:[%s293 + $0x18] sm:$0xf]
      %1120 = vrot.lane.b32.xlu0 %v1112, 18
      %v1121 = vpop.permute.xlu0 %1120
      %1122 = vrot.lane.b32.xlu0 %v1113, 18
      %v1123 = vpop.permute.xlu0 %1122
      %1124 = vrot.lane.b32.xlu0 %v1114, 18
      %v1125 = vpop.permute.xlu0 %1124
      %1126 = vrot.lane.b32.xlu0 %v1115, 18
      %v1127 = vpop.permute.xlu0 %1126
      %v1128 = vrot.slane %v1121, 4
      %v1129 = vrot.slane %v1123, 4
      %v1130 = vrot.slane %v1125, 4
      %v1131 = vrot.slane %v1127, 4
      %v1132 = vsel %vm337, %v1128, %v1129
      %v1133 = vsel %vm1098, %v1121, %v1132
      %v1134 = vsel %vm337, %v1129, %v1130
      %v1135 = vsel %vm1098, %v1123, %v1134
      %v1136 = vsel %vm337, %v1130, %v1131
      %v1137 = vsel %vm1098, %v1125, %v1136
      %1142 = vst [vmem:[#allocation2 + $0x2bc] sm:$0xff] %v1133
      %1143 = vst [vmem:[#allocation2 + $0x2c4] sm:$0xff] %v1135
      %1144 = vst [vmem:[#allocation2 + $0x2cc] sm:$0xff] %v1137
      %1145 = vst.msk [vmem:[#allocation2 + $0x2d4] sm:$0xf] %vm307, %v1127
      %v1146 = vld [vmem:[%s288] sm:$0xff]
      %v1147 = vld [vmem:[%s288 + $0x8] sm:$0xff]
      %v1148 = vld [vmem:[%s288 + $0x10] sm:$0xff]
      %v1149 = vld [vmem:[%s288 + $0x18] sm:$0xf]
      %1154 = vrot.lane.b32.xlu0 %v1146, 17
      %v1155 = vpop.permute.xlu0 %1154
      %1156 = vrot.lane.b32.xlu0 %v1147, 17
      %v1157 = vpop.permute.xlu0 %1156
      %1158 = vrot.lane.b32.xlu0 %v1148, 17
      %v1159 = vpop.permute.xlu0 %1158
      %1160 = vrot.lane.b32.xlu0 %v1149, 17
      %v1161 = vpop.permute.xlu0 %1160
      %v1162 = vrot.slane %v1155, 4
      %v1163 = vrot.slane %v1157, 4
      %v1164 = vrot.slane %v1159, 4
      %v1165 = vrot.slane %v1161, 4
      %v1166 = vsel %vm337, %v1162, %v1163
      %vm1167 = vcmask 138240
      %v1168 = vsel %vm1167, %v1155, %v1166
      %v1169 = vsel %vm337, %v1163, %v1164
      %v1170 = vsel %vm1167, %v1157, %v1169
      %v1171 = vsel %vm337, %v1164, %v1165
      %v1172 = vsel %vm1167, %v1159, %v1171
      %1177 = vst [vmem:[#allocation2 + $0x2d8] sm:$0xff] %v1168
      %1178 = vst [vmem:[#allocation2 + $0x2e0] sm:$0xff] %v1170
      %1179 = vst [vmem:[#allocation2 + $0x2e8] sm:$0xff] %v1172
      %1180 = vst.msk [vmem:[#allocation2 + $0x2f0] sm:$0xf] %vm307, %v1161
      %v1181 = vld [vmem:[%s293] sm:$0xff]
      %v1182 = vld [vmem:[%s293 + $0x8] sm:$0xff]
      %v1183 = vld [vmem:[%s293 + $0x10] sm:$0xff]
      %v1184 = vld [vmem:[%s293 + $0x18] sm:$0xf]
      %1189 = vrot.lane.b32.xlu0 %v1181, 17
      %v1190 = vpop.permute.xlu0 %1189
      %1191 = vrot.lane.b32.xlu0 %v1182, 17
      %v1192 = vpop.permute.xlu0 %1191
      %1193 = vrot.lane.b32.xlu0 %v1183, 17
      %v1194 = vpop.permute.xlu0 %1193
      %1195 = vrot.lane.b32.xlu0 %v1184, 17
      %v1196 = vpop.permute.xlu0 %1195
      %v1197 = vrot.slane %v1190, 4
      %v1198 = vrot.slane %v1192, 4
      %v1199 = vrot.slane %v1194, 4
      %v1200 = vrot.slane %v1196, 4
      %v1201 = vsel %vm337, %v1197, %v1198
      %v1202 = vsel %vm1167, %v1190, %v1201
      %v1203 = vsel %vm337, %v1198, %v1199
      %v1204 = vsel %vm1167, %v1192, %v1203
      %v1205 = vsel %vm337, %v1199, %v1200
      %v1206 = vsel %vm1167, %v1194, %v1205
      %1211 = vst [vmem:[#allocation2 + $0x2f4] sm:$0xff] %v1202
      %1212 = vst [vmem:[#allocation2 + $0x2fc] sm:$0xff] %v1204
      %1213 = vst [vmem:[#allocation2 + $0x304] sm:$0xff] %v1206
      %1214 = vst.msk [vmem:[#allocation2 + $0x30c] sm:$0xf] %vm307, %v1196
      %v1215 = vld [vmem:[%s288] sm:$0xff]
      %v1216 = vld [vmem:[%s288 + $0x8] sm:$0xff]
      %v1217 = vld [vmem:[%s288 + $0x10] sm:$0xff]
      %v1218 = vld [vmem:[%s288 + $0x18] sm:$0xf]
      %1223 = vrot.lane.b32.xlu0 %v1215, 16
      %v1224 = vpop.permute.xlu0 %1223
      %1225 = vrot.lane.b32.xlu0 %v1216, 16
      %v1226 = vpop.permute.xlu0 %1225
      %1227 = vrot.lane.b32.xlu0 %v1217, 16
      %v1228 = vpop.permute.xlu0 %1227
      %1229 = vrot.lane.b32.xlu0 %v1218, 16
      %v1230 = vpop.permute.xlu0 %1229
      %v1231 = vrot.slane %v1224, 4
      %v1232 = vrot.slane %v1226, 4
      %v1233 = vrot.slane %v1228, 4
      %v1234 = vrot.slane %v1230, 4
      %v1235 = vsel %vm337, %v1231, %v1232
      %vm1236 = vcmask 130048
      %v1237 = vsel %vm1236, %v1224, %v1235
      %v1238 = vsel %vm337, %v1232, %v1233
      %v1239 = vsel %vm1236, %v1226, %v1238
      %v1240 = vsel %vm337, %v1233, %v1234
      %v1241 = vsel %vm1236, %v1228, %v1240
      %1246 = vst [vmem:[#allocation2 + $0x310] sm:$0xff] %v1237
      %1247 = vst [vmem:[#allocation2 + $0x318] sm:$0xff] %v1239
      %1248 = vst [vmem:[#allocation2 + $0x320] sm:$0xff] %v1241
      %1249 = vst.msk [vmem:[#allocation2 + $0x328] sm:$0xf] %vm307, %v1230
      %v1250 = vld [vmem:[%s293] sm:$0xff]
      %v1251 = vld [vmem:[%s293 + $0x8] sm:$0xff]
      %v1252 = vld [vmem:[%s293 + $0x10] sm:$0xff]
      %v1253 = vld [vmem:[%s293 + $0x18] sm:$0xf]
      %1258 = vrot.lane.b32.xlu0 %v1250, 16
      %v1259 = vpop.permute.xlu0 %1258
      %1260 = vrot.lane.b32.xlu0 %v1251, 16
      %v1261 = vpop.permute.xlu0 %1260
      %1262 = vrot.lane.b32.xlu0 %v1252, 16
      %v1263 = vpop.permute.xlu0 %1262
      %1264 = vrot.lane.b32.xlu0 %v1253, 16
      %v1265 = vpop.permute.xlu0 %1264
      %v1266 = vrot.slane %v1259, 4
      %v1267 = vrot.slane %v1261, 4
      %v1268 = vrot.slane %v1263, 4
      %v1269 = vrot.slane %v1265, 4
      %v1270 = vsel %vm337, %v1266, %v1267
      %v1271 = vsel %vm1236, %v1259, %v1270
      %v1272 = vsel %vm337, %v1267, %v1268
      %v1273 = vsel %vm1236, %v1261, %v1272
      %v1274 = vsel %vm337, %v1268, %v1269
      %v1275 = vsel %vm1236, %v1263, %v1274
      %1280 = vst [vmem:[#allocation2 + $0x32c] sm:$0xff] %v1271
      %1281 = vst [vmem:[#allocation2 + $0x334] sm:$0xff] %v1273
      %1282 = vst [vmem:[#allocation2 + $0x33c] sm:$0xff] %v1275
      %1283 = vst.msk [vmem:[#allocation2 + $0x344] sm:$0xf] %vm307, %v1265
      %v1284 = vld [vmem:[%s288] sm:$0xff]
      %v1285 = vld [vmem:[%s288 + $0x8] sm:$0xff]
      %v1286 = vld [vmem:[%s288 + $0x10] sm:$0xff]
      %v1287 = vld [vmem:[%s288 + $0x18] sm:$0xff]
      %1292 = vrot.lane.b32.xlu0 %v1284, 8
      %v1293 = vpop.permute.xlu0 %1292
      %1294 = vrot.lane.b32.xlu0 %v1285, 8
      %v1295 = vpop.permute.xlu0 %1294
      %1296 = vrot.lane.b32.xlu0 %v1286, 8
      %v1297 = vpop.permute.xlu0 %1296
      %1298 = vrot.lane.b32.xlu0 %v1287, 8
      %v1299 = vpop.permute.xlu0 %1298
      %v1300 = vrot.slane %v1293, 4
      %v1301 = vrot.slane %v1295, 4
      %v1302 = vrot.slane %v1297, 4
      %v1303 = vrot.slane %v1299, 4
      %v1304 = vsel %vm337, %v1300, %v1301
      %vm1305 = vcmask 64512
      %v1306 = vsel %vm1305, %v1293, %v1304
      %v1307 = vsel %vm337, %v1301, %v1302
      %v1308 = vsel %vm1305, %v1295, %v1307
      %v1309 = vsel %vm337, %v1302, %v1303
      %v1310 = vsel %vm1305, %v1297, %v1309
      %v1311 = vsel %vm1305, %v1299, %v1303
      %1316 = vst [vmem:[#allocation2 + $0x348] sm:$0xff] %v1306
      %1317 = vst [vmem:[#allocation2 + $0x350] sm:$0xff] %v1308
      %1318 = vst [vmem:[#allocation2 + $0x358] sm:$0xff] %v1310
      %1319 = vst.msk [vmem:[#allocation2 + $0x360] sm:$0xf] %vm307, %v1311
      %v1320 = vld [vmem:[%s293] sm:$0xff]
      %v1321 = vld [vmem:[%s293 + $0x8] sm:$0xff]
      %v1322 = vld [vmem:[%s293 + $0x10] sm:$0xff]
      %v1323 = vld [vmem:[%s293 + $0x18] sm:$0xff]
      %1328 = vrot.lane.b32.xlu0 %v1320, 8
      %v1329 = vpop.permute.xlu0 %1328
      %1330 = vrot.lane.b32.xlu0 %v1321, 8
      %v1331 = vpop.permute.xlu0 %1330
      %1332 = vrot.lane.b32.xlu0 %v1322, 8
      %v1333 = vpop.permute.xlu0 %1332
      %1334 = vrot.lane.b32.xlu0 %v1323, 8
      %v1335 = vpop.permute.xlu0 %1334
      %v1336 = vrot.slane %v1329, 4
      %v1337 = vrot.slane %v1331, 4
      %v1338 = vrot.slane %v1333, 4
      %v1339 = vrot.slane %v1335, 4
      %v1340 = vsel %vm337, %v1336, %v1337
      %v1341 = vsel %vm1305, %v1329, %v1340
      %v1342 = vsel %vm337, %v1337, %v1338
      %v1343 = vsel %vm1305, %v1331, %v1342
      %v1344 = vsel %vm337, %v1338, %v1339
      %v1345 = vsel %vm1305, %v1333, %v1344
      %v1346 = vsel %vm1305, %v1335, %v1339
      %1351 = vst [vmem:[#allocation2 + $0x364] sm:$0xff] %v1341
      %1352 = vst [vmem:[#allocation2 + $0x36c] sm:$0xff] %v1343
      %1353 = vst [vmem:[#allocation2 + $0x374] sm:$0xff] %v1345
      %1354 = vst.msk [vmem:[#allocation2 + $0x37c] sm:$0xf] %vm307, %v1346
      %v1355 = vld [vmem:[%s288] sm:$0xff]
      %v1356 = vld [vmem:[%s288 + $0x8] sm:$0xff]
      %v1357 = vld [vmem:[%s288 + $0x10] sm:$0xff]
      %v1358 = vld [vmem:[%s288 + $0x18] sm:$0xff]
      %1363 = vrot.lane.b32.xlu0 %v1355, 7
      %v1364 = vpop.permute.xlu0 %1363
      %1365 = vrot.lane.b32.xlu0 %v1356, 7
      %v1366 = vpop.permute.xlu0 %1365
      %1367 = vrot.lane.b32.xlu0 %v1357, 7
      %v1368 = vpop.permute.xlu0 %1367
      %1369 = vrot.lane.b32.xlu0 %v1358, 7
      %v1370 = vpop.permute.xlu0 %1369
      %v1371 = vrot.slane %v1364, 4
      %v1372 = vrot.slane %v1366, 4
      %v1373 = vrot.slane %v1368, 4
      %v1374 = vrot.slane %v1370, 4
      %v1375 = vsel %vm337, %v1371, %v1372
      %vm1376 = vcmask 56320
      %v1377 = vsel %vm1376, %v1364, %v1375
      %v1378 = vsel %vm337, %v1372, %v1373
      %v1379 = vsel %vm1376, %v1366, %v1378
      %v1380 = vsel %vm337, %v1373, %v1374
      %v1381 = vsel %vm1376, %v1368, %v1380
      %v1382 = vsel %vm1376, %v1370, %v1374
      %1387 = vst [vmem:[#allocation2 + $0x380] sm:$0xff] %v1377
      %1388 = vst [vmem:[#allocation2 + $0x388] sm:$0xff] %v1379
      %1389 = vst [vmem:[#allocation2 + $0x390] sm:$0xff] %v1381
      %1390 = vst.msk [vmem:[#allocation2 + $0x398] sm:$0xf] %vm307, %v1382
      %v1391 = vld [vmem:[%s293] sm:$0xff]
      %v1392 = vld [vmem:[%s293 + $0x8] sm:$0xff]
      %v1393 = vld [vmem:[%s293 + $0x10] sm:$0xff]
      %v1394 = vld [vmem:[%s293 + $0x18] sm:$0xff]
      %1399 = vrot.lane.b32.xlu0 %v1391, 7
      %v1400 = vpop.permute.xlu0 %1399
      %1401 = vrot.lane.b32.xlu0 %v1392, 7
      %v1402 = vpop.permute.xlu0 %1401
      %1403 = vrot.lane.b32.xlu0 %v1393, 7
      %v1404 = vpop.permute.xlu0 %1403
      %1405 = vrot.lane.b32.xlu0 %v1394, 7
      %v1406 = vpop.permute.xlu0 %1405
      %v1407 = vrot.slane %v1400, 4
      %v1408 = vrot.slane %v1402, 4
      %v1409 = vrot.slane %v1404, 4
      %v1410 = vrot.slane %v1406, 4
      %v1411 = vsel %vm337, %v1407, %v1408
      %v1412 = vsel %vm1376, %v1400, %v1411
      %v1413 = vsel %vm337, %v1408, %v1409
      %v1414 = vsel %vm1376, %v1402, %v1413
      %v1415 = vsel %vm337, %v1409, %v1410
      %v1416 = vsel %vm1376, %v1404, %v1415
      %v1417 = vsel %vm1376, %v1406, %v1410
      %1422 = vst [vmem:[#allocation2 + $0x39c] sm:$0xff] %v1412
      %1423 = vst [vmem:[#allocation2 + $0x3a4] sm:$0xff] %v1414
      %1424 = vst [vmem:[#allocation2 + $0x3ac] sm:$0xff] %v1416
      %1425 = vst.msk [vmem:[#allocation2 + $0x3b4] sm:$0xf] %vm307, %v1417
      %v1426 = vld [vmem:[%s288] sm:$0xff]
      %v1427 = vld [vmem:[%s288 + $0x8] sm:$0xff]
      %v1428 = vld [vmem:[%s288 + $0x10] sm:$0xff]
      %v1429 = vld [vmem:[%s288 + $0x18] sm:$0xff]
      %1434 = vrot.lane.b32.xlu0 %v1426, 6
      %v1435 = vpop.permute.xlu0 %1434
      %1436 = vrot.lane.b32.xlu0 %v1427, 6
      %v1437 = vpop.permute.xlu0 %1436
      %1438 = vrot.lane.b32.xlu0 %v1428, 6
      %v1439 = vpop.permute.xlu0 %1438
      %1440 = vrot.lane.b32.xlu0 %v1429, 6
      %v1441 = vpop.permute.xlu0 %1440
      %v1442 = vrot.slane %v1435, 4
      %v1443 = vrot.slane %v1437, 4
      %v1444 = vrot.slane %v1439, 4
      %v1445 = vrot.slane %v1441, 4
      %v1446 = vsel %vm337, %v1442, %v1443
      %vm1447 = vcmask 48128
      %v1448 = vsel %vm1447, %v1435, %v1446
      %v1449 = vsel %vm337, %v1443, %v1444
      %v1450 = vsel %vm1447, %v1437, %v1449
      %v1451 = vsel %vm337, %v1444, %v1445
      %v1452 = vsel %vm1447, %v1439, %v1451
      %v1453 = vsel %vm1447, %v1441, %v1445
      %1458 = vst [vmem:[#allocation2 + $0x3b8] sm:$0xff] %v1448
      %1459 = vst [vmem:[#allocation2 + $0x3c0] sm:$0xff] %v1450
      %1460 = vst [vmem:[#allocation2 + $0x3c8] sm:$0xff] %v1452
      %1461 = vst.msk [vmem:[#allocation2 + $0x3d0] sm:$0xf] %vm307, %v1453
      %v1462 = vld [vmem:[%s293] sm:$0xff]
      %v1463 = vld [vmem:[%s293 + $0x8] sm:$0xff]
      %v1464 = vld [vmem:[%s293 + $0x10] sm:$0xff]
      %v1465 = vld [vmem:[%s293 + $0x18] sm:$0xff]
      %1470 = vrot.lane.b32.xlu0 %v1462, 6
      %v1471 = vpop.permute.xlu0 %1470
      %1472 = vrot.lane.b32.xlu0 %v1463, 6
      %v1473 = vpop.permute.xlu0 %1472
      %1474 = vrot.lane.b32.xlu0 %v1464, 6
      %v1475 = vpop.permute.xlu0 %1474
      %1476 = vrot.lane.b32.xlu0 %v1465, 6
      %v1477 = vpop.permute.xlu0 %1476
      %v1478 = vrot.slane %v1471, 4
      %v1479 = vrot.slane %v1473, 4
      %v1480 = vrot.slane %v1475, 4
      %v1481 = vrot.slane %v1477, 4
      %v1482 = vsel %vm337, %v1478, %v1479
      %v1483 = vsel %vm1447, %v1471, %v1482
      %v1484 = vsel %vm337, %v1479, %v1480
      %v1485 = vsel %vm1447, %v1473, %v1484
      %v1486 = vsel %vm337, %v1480, %v1481
      %v1487 = vsel %vm1447, %v1475, %v1486
      %v1488 = vsel %vm1447, %v1477, %v1481
      %1493 = vst [vmem:[#allocation2 + $0x3d4] sm:$0xff] %v1483
      %1494 = vst [vmem:[#allocation2 + $0x3dc] sm:$0xff] %v1485
      %1495 = vst [vmem:[#allocation2 + $0x3e4] sm:$0xff] %v1487
      %1496 = vst.msk [vmem:[#allocation2 + $0x3ec] sm:$0xf] %vm307, %v1488
      %v1497 = vld [vmem:[%s288 + $0x4] sm:$0xff]
      %v1498 = vld [vmem:[%s288 + $0xc] sm:$0xff]
      %v1499 = vld [vmem:[%s288 + $0x14] sm:$0xff]
      %v1500 = vld [vmem:[%s288 + $0x1c] sm:$0xf]
      %1505 = vrot.lane.b32.xlu0 %v1497, 56
      %v1506 = vpop.permute.xlu0 %1505
      %1507 = vrot.lane.b32.xlu0 %v1498, 56
      %v1508 = vpop.permute.xlu0 %1507
      %1509 = vrot.lane.b32.xlu0 %v1499, 56
      %v1510 = vpop.permute.xlu0 %1509
      %1511 = vrot.lane.b32.xlu0 %v1500, 56
      %v1512 = vpop.permute.xlu0 %1511
      %v1513 = vrot.slane %v1506, 4
      %v1514 = vrot.slane %v1508, 4
      %v1515 = vrot.slane %v1510, 4
      %v1516 = vrot.slane %v1512, 4
      %v1517 = vsel %vm337, %v1513, %v1514
      %vm1518 = vcmask 457728
      %v1519 = vsel %vm1518, %v1506, %v1517
      %v1520 = vsel %vm337, %v1514, %v1515
      %v1521 = vsel %vm1518, %v1508, %v1520
      %v1522 = vsel %vm337, %v1515, %v1516
      %v1523 = vsel %vm1518, %v1510, %v1522
      %1528 = vst [vmem:[#allocation2 + $0x3f0] sm:$0xff] %v1519
      %1529 = vst [vmem:[#allocation2 + $0x3f8] sm:$0xff] %v1521
      %1530 = vst [vmem:[#allocation2 + $0x400] sm:$0xff] %v1523
      %1531 = vst.msk [vmem:[#allocation2 + $0x408] sm:$0xf] %vm307, %v1512
      %v1532 = vld [vmem:[%s293 + $0x4] sm:$0xff]
      %v1533 = vld [vmem:[%s293 + $0xc] sm:$0xff]
      %v1534 = vld [vmem:[%s293 + $0x14] sm:$0xff]
      %v1535 = vld [vmem:[%s293 + $0x1c] sm:$0xf]
      %1540 = vrot.lane.b32.xlu0 %v1532, 56
      %v1541 = vpop.permute.xlu0 %1540
      %1542 = vrot.lane.b32.xlu0 %v1533, 56
      %v1543 = vpop.permute.xlu0 %1542
      %1544 = vrot.lane.b32.xlu0 %v1534, 56
      %v1545 = vpop.permute.xlu0 %1544
      %1546 = vrot.lane.b32.xlu0 %v1535, 56
      %v1547 = vpop.permute.xlu0 %1546
      %v1548 = vrot.slane %v1541, 4
      %v1549 = vrot.slane %v1543, 4
      %v1550 = vrot.slane %v1545, 4
      %v1551 = vrot.slane %v1547, 4
      %v1552 = vsel %vm337, %v1548, %v1549
      %v1553 = vsel %vm1518, %v1541, %v1552
      %v1554 = vsel %vm337, %v1549, %v1550
      %v1555 = vsel %vm1518, %v1543, %v1554
      %v1556 = vsel %vm337, %v1550, %v1551
      %v1557 = vsel %vm1518, %v1545, %v1556
      %1562 = vst [vmem:[#allocation2 + $0x40c] sm:$0xff] %v1553
      %1563 = vst [vmem:[#allocation2 + $0x414] sm:$0xff] %v1555
      %1564 = vst [vmem:[#allocation2 + $0x41c] sm:$0xff] %v1557
      %1565 = vst.msk [vmem:[#allocation2 + $0x424] sm:$0xf] %vm307, %v1547
      %v1566 = vld [vmem:[%s288 + $0x4] sm:$0xff]
      %v1567 = vld [vmem:[%s288 + $0xc] sm:$0xff]
      %v1568 = vld [vmem:[%s288 + $0x14] sm:$0xff]
      %v1569 = vld [vmem:[%s288 + $0x1c] sm:$0xf]
      %1574 = vrot.lane.b32.xlu0 %v1566, 55
      %v1575 = vpop.permute.xlu0 %1574
      %1576 = vrot.lane.b32.xlu0 %v1567, 55
      %v1577 = vpop.permute.xlu0 %1576
      %1578 = vrot.lane.b32.xlu0 %v1568, 55
      %v1579 = vpop.permute.xlu0 %1578
      %1580 = vrot.lane.b32.xlu0 %v1569, 55
      %v1581 = vpop.permute.xlu0 %1580
      %v1582 = vrot.slane %v1575, 4
      %v1583 = vrot.slane %v1577, 4
      %v1584 = vrot.slane %v1579, 4
      %v1585 = vrot.slane %v1581, 4
      %v1586 = vsel %vm337, %v1582, %v1583
      %vm1587 = vcmask 449536
      %v1588 = vsel %vm1587, %v1575, %v1586
      %v1589 = vsel %vm337, %v1583, %v1584
      %v1590 = vsel %vm1587, %v1577, %v1589
      %v1591 = vsel %vm337, %v1584, %v1585
      %v1592 = vsel %vm1587, %v1579, %v1591
      %1597 = vst [vmem:[#allocation2 + $0x428] sm:$0xff] %v1588
      %1598 = vst [vmem:[#allocation2 + $0x430] sm:$0xff] %v1590
      %1599 = vst [vmem:[#allocation2 + $0x438] sm:$0xff] %v1592
      %1600 = vst.msk [vmem:[#allocation2 + $0x440] sm:$0xf] %vm307, %v1581
      %v1601 = vld [vmem:[%s293 + $0x4] sm:$0xff]
      %v1602 = vld [vmem:[%s293 + $0xc] sm:$0xff]
      %v1603 = vld [vmem:[%s293 + $0x14] sm:$0xff]
      %v1604 = vld [vmem:[%s293 + $0x1c] sm:$0xf]
      %1609 = vrot.lane.b32.xlu0 %v1601, 55
      %v1610 = vpop.permute.xlu0 %1609
      %1611 = vrot.lane.b32.xlu0 %v1602, 55
      %v1612 = vpop.permute.xlu0 %1611
      %1613 = vrot.lane.b32.xlu0 %v1603, 55
      %v1614 = vpop.permute.xlu0 %1613
      %1615 = vrot.lane.b32.xlu0 %v1604, 55
      %v1616 = vpop.permute.xlu0 %1615
      %v1617 = vrot.slane %v1610, 4
      %v1618 = vrot.slane %v1612, 4
      %v1619 = vrot.slane %v1614, 4
      %v1620 = vrot.slane %v1616, 4
      %v1621 = vsel %vm337, %v1617, %v1618
      %v1622 = vsel %vm1587, %v1610, %v1621
      %v1623 = vsel %vm337, %v1618, %v1619
      %v1624 = vsel %vm1587, %v1612, %v1623
      %v1625 = vsel %vm337, %v1619, %v1620
      %v1626 = vsel %vm1587, %v1614, %v1625
      %1631 = vst [vmem:[#allocation2 + $0x444] sm:$0xff] %v1622
      %1632 = vst [vmem:[#allocation2 + $0x44c] sm:$0xff] %v1624
      %1633 = vst [vmem:[#allocation2 + $0x454] sm:$0xff] %v1626
      %1634 = vst.msk [vmem:[#allocation2 + $0x45c] sm:$0xf] %vm307, %v1616
      %v1635 = vld [vmem:[%s288 + $0x4] sm:$0xff]
      %v1636 = vld [vmem:[%s288 + $0xc] sm:$0xff]
      %v1637 = vld [vmem:[%s288 + $0x14] sm:$0xff]
      %v1638 = vld [vmem:[%s288 + $0x1c] sm:$0xf]
      %1643 = vrot.lane.b32.xlu0 %v1635, 54
      %v1644 = vpop.permute.xlu0 %1643
      %1645 = vrot.lane.b32.xlu0 %v1636, 54
      %v1646 = vpop.permute.xlu0 %1645
      %1647 = vrot.lane.b32.xlu0 %v1637, 54
      %v1648 = vpop.permute.xlu0 %1647
      %1649 = vrot.lane.b32.xlu0 %v1638, 54
      %v1650 = vpop.permute.xlu0 %1649
      %v1651 = vrot.slane %v1644, 4
      %v1652 = vrot.slane %v1646, 4
      %v1653 = vrot.slane %v1648, 4
      %v1654 = vrot.slane %v1650, 4
      %v1655 = vsel %vm337, %v1651, %v1652
      %vm1656 = vcmask 441344
      %v1657 = vsel %vm1656, %v1644, %v1655
      %v1658 = vsel %vm337, %v1652, %v1653
      %v1659 = vsel %vm1656, %v1646, %v1658
      %v1660 = vsel %vm337, %v1653, %v1654
      %v1661 = vsel %vm1656, %v1648, %v1660
      %1666 = vst [vmem:[#allocation2 + $0x460] sm:$0xff] %v1657
      %1667 = vst [vmem:[#allocation2 + $0x468] sm:$0xff] %v1659
      %1668 = vst [vmem:[#allocation2 + $0x470] sm:$0xff] %v1661
      %1669 = vst.msk [vmem:[#allocation2 + $0x478] sm:$0xf] %vm307, %v1650
      %v1670 = vld [vmem:[%s293 + $0x4] sm:$0xff]
      %v1671 = vld [vmem:[%s293 + $0xc] sm:$0xff]
      %v1672 = vld [vmem:[%s293 + $0x14] sm:$0xff]
      %v1673 = vld [vmem:[%s293 + $0x1c] sm:$0xf]
      %1678 = vrot.lane.b32.xlu0 %v1670, 54
      %v1679 = vpop.permute.xlu0 %1678
      %1680 = vrot.lane.b32.xlu0 %v1671, 54
      %v1681 = vpop.permute.xlu0 %1680
      %1682 = vrot.lane.b32.xlu0 %v1672, 54
      %v1683 = vpop.permute.xlu0 %1682
      %1684 = vrot.lane.b32.xlu0 %v1673, 54
      %v1685 = vpop.permute.xlu0 %1684
      %v1686 = vrot.slane %v1679, 4
      %v1687 = vrot.slane %v1681, 4
      %v1688 = vrot.slane %v1683, 4
      %v1689 = vrot.slane %v1685, 4
      %v1690 = vsel %vm337, %v1686, %v1687
      %v1691 = vsel %vm1656, %v1679, %v1690
      %v1692 = vsel %vm337, %v1687, %v1688
      %v1693 = vsel %vm1656, %v1681, %v1692
      %v1694 = vsel %vm337, %v1688, %v1689
      %v1695 = vsel %vm1656, %v1683, %v1694
      %1700 = vst [vmem:[#allocation2 + $0x47c] sm:$0xff] %v1691
      %1701 = vst [vmem:[#allocation2 + $0x484] sm:$0xff] %v1693
      %1702 = vst [vmem:[#allocation2 + $0x48c] sm:$0xff] %v1695
      %1703 = vst.msk [vmem:[#allocation2 + $0x494] sm:$0xf] %vm307, %v1685
      %v1704 = vld [vmem:[%s288 + $0x4] sm:$0xff]
      %v1705 = vld [vmem:[%s288 + $0xc] sm:$0xff]
      %v1706 = vld [vmem:[%s288 + $0x14] sm:$0xff]
      %v1707 = vld [vmem:[%s288 + $0x1c] sm:$0xf]
      %1712 = vrot.lane.b32.xlu0 %v1704, 46
      %v1713 = vpop.permute.xlu0 %1712
      %1714 = vrot.lane.b32.xlu0 %v1705, 46
      %v1715 = vpop.permute.xlu0 %1714
      %1716 = vrot.lane.b32.xlu0 %v1706, 46
      %v1717 = vpop.permute.xlu0 %1716
      %1718 = vrot.lane.b32.xlu0 %v1707, 46
      %v1719 = vpop.permute.xlu0 %1718
      %v1720 = vrot.slane %v1713, 4
      %v1721 = vrot.slane %v1715, 4
      %v1722 = vrot.slane %v1717, 4
      %v1723 = vrot.slane %v1719, 4
      %v1724 = vsel %vm337, %v1720, %v1721
      %vm1725 = vcmask 375808
      %v1726 = vsel %vm1725, %v1713, %v1724
      %v1727 = vsel %vm337, %v1721, %v1722
      %v1728 = vsel %vm1725, %v1715, %v1727
      %v1729 = vsel %vm337, %v1722, %v1723
      %v1730 = vsel %vm1725, %v1717, %v1729
      %1735 = vst [vmem:[#allocation2 + $0x498] sm:$0xff] %v1726
      %1736 = vst [vmem:[#allocation2 + $0x4a0] sm:$0xff] %v1728
      %1737 = vst [vmem:[#allocation2 + $0x4a8] sm:$0xff] %v1730
      %1738 = vst.msk [vmem:[#allocation2 + $0x4b0] sm:$0xf] %vm307, %v1719
      %v1739 = vld [vmem:[%s293 + $0x4] sm:$0xff]
      %v1740 = vld [vmem:[%s293 + $0xc] sm:$0xff]
      %v1741 = vld [vmem:[%s293 + $0x14] sm:$0xff]
      %v1742 = vld [vmem:[%s293 + $0x1c] sm:$0xf]
      %1747 = vrot.lane.b32.xlu0 %v1739, 46
      %v1748 = vpop.permute.xlu0 %1747
      %1749 = vrot.lane.b32.xlu0 %v1740, 46
      %v1750 = vpop.permute.xlu0 %1749
      %1751 = vrot.lane.b32.xlu0 %v1741, 46
      %v1752 = vpop.permute.xlu0 %1751
      %1753 = vrot.lane.b32.xlu0 %v1742, 46
      %v1754 = vpop.permute.xlu0 %1753
      %v1755 = vrot.slane %v1748, 4
      %v1756 = vrot.slane %v1750, 4
      %v1757 = vrot.slane %v1752, 4
      %v1758 = vrot.slane %v1754, 4
      %v1759 = vsel %vm337, %v1755, %v1756
      %v1760 = vsel %vm1725, %v1748, %v1759
      %v1761 = vsel %vm337, %v1756, %v1757
      %v1762 = vsel %vm1725, %v1750, %v1761
      %v1763 = vsel %vm337, %v1757, %v1758
      %v1764 = vsel %vm1725, %v1752, %v1763
      %1769 = vst [vmem:[#allocation2 + $0x4b4] sm:$0xff] %v1760
      %1770 = vst [vmem:[#allocation2 + $0x4bc] sm:$0xff] %v1762
      %1771 = vst [vmem:[#allocation2 + $0x4c4] sm:$0xff] %v1764
      %1772 = vst.msk [vmem:[#allocation2 + $0x4cc] sm:$0xf] %vm307, %v1754
      %v1773 = vld [vmem:[%s288 + $0x4] sm:$0xff]
      %v1774 = vld [vmem:[%s288 + $0xc] sm:$0xff]
      %v1775 = vld [vmem:[%s288 + $0x14] sm:$0xff]
      %v1776 = vld [vmem:[%s288 + $0x1c] sm:$0xf]
      %1781 = vrot.lane.b32.xlu0 %v1773, 45
      %v1782 = vpop.permute.xlu0 %1781
      %1783 = vrot.lane.b32.xlu0 %v1774, 45
      %v1784 = vpop.permute.xlu0 %1783
      %1785 = vrot.lane.b32.xlu0 %v1775, 45
      %v1786 = vpop.permute.xlu0 %1785
      %1787 = vrot.lane.b32.xlu0 %v1776, 45
      %v1788 = vpop.permute.xlu0 %1787
      %v1789 = vrot.slane %v1782, 4
      %v1790 = vrot.slane %v1784, 4
      %v1791 = vrot.slane %v1786, 4
      %v1792 = vrot.slane %v1788, 4
      %v1793 = vsel %vm337, %v1789, %v1790
      %vm1794 = vcmask 367616
      %v1795 = vsel %vm1794, %v1782, %v1793
      %v1796 = vsel %vm337, %v1790, %v1791
      %v1797 = vsel %vm1794, %v1784, %v1796
      %v1798 = vsel %vm337, %v1791, %v1792
      %v1799 = vsel %vm1794, %v1786, %v1798
      %1804 = vst [vmem:[#allocation2 + $0x4d0] sm:$0xff] %v1795
      %1805 = vst [vmem:[#allocation2 + $0x4d8] sm:$0xff] %v1797
      %1806 = vst [vmem:[#allocation2 + $0x4e0] sm:$0xff] %v1799
      %1807 = vst.msk [vmem:[#allocation2 + $0x4e8] sm:$0xf] %vm307, %v1788
      %v1808 = vld [vmem:[%s293 + $0x4] sm:$0xff]
      %v1809 = vld [vmem:[%s293 + $0xc] sm:$0xff]
      %v1810 = vld [vmem:[%s293 + $0x14] sm:$0xff]
      %v1811 = vld [vmem:[%s293 + $0x1c] sm:$0xf]
      %1816 = vrot.lane.b32.xlu0 %v1808, 45
      %v1817 = vpop.permute.xlu0 %1816
      %1818 = vrot.lane.b32.xlu0 %v1809, 45
      %v1819 = vpop.permute.xlu0 %1818
      %1820 = vrot.lane.b32.xlu0 %v1810, 45
      %v1821 = vpop.permute.xlu0 %1820
      %1822 = vrot.lane.b32.xlu0 %v1811, 45
      %v1823 = vpop.permute.xlu0 %1822
      %v1824 = vrot.slane %v1817, 4
      %v1825 = vrot.slane %v1819, 4
      %v1826 = vrot.slane %v1821, 4
      %v1827 = vrot.slane %v1823, 4
      %v1828 = vsel %vm337, %v1824, %v1825
      %v1829 = vsel %vm1794, %v1817, %v1828
      %v1830 = vsel %vm337, %v1825, %v1826
      %v1831 = vsel %vm1794, %v1819, %v1830
      %v1832 = vsel %vm337, %v1826, %v1827
      %v1833 = vsel %vm1794, %v1821, %v1832
      %1838 = vst [vmem:[#allocation2 + $0x4ec] sm:$0xff] %v1829
      %1839 = vst [vmem:[#allocation2 + $0x4f4] sm:$0xff] %v1831
      %1840 = vst [vmem:[#allocation2 + $0x4fc] sm:$0xff] %v1833
      %1841 = vst.msk [vmem:[#allocation2 + $0x504] sm:$0xf] %vm307, %v1823
      %v1842 = vld [vmem:[%s288 + $0x4] sm:$0xff]
      %v1843 = vld [vmem:[%s288 + $0xc] sm:$0xff]
      %v1844 = vld [vmem:[%s288 + $0x14] sm:$0xff]
      %v1845 = vld [vmem:[%s288 + $0x1c] sm:$0xf]
      %1850 = vrot.lane.b32.xlu0 %v1842, 44
      %v1851 = vpop.permute.xlu0 %1850
      %1852 = vrot.lane.b32.xlu0 %v1843, 44
      %v1853 = vpop.permute.xlu0 %1852
      %1854 = vrot.lane.b32.xlu0 %v1844, 44
      %v1855 = vpop.permute.xlu0 %1854
      %1856 = vrot.lane.b32.xlu0 %v1845, 44
      %v1857 = vpop.permute.xlu0 %1856
      %v1858 = vrot.slane %v1851, 4
      %v1859 = vrot.slane %v1853, 4
      %v1860 = vrot.slane %v1855, 4
      %v1861 = vrot.slane %v1857, 4
      %v1862 = vsel %vm337, %v1858, %v1859
      %vm1863 = vcmask 359424
      %v1864 = vsel %vm1863, %v1851, %v1862
      %v1865 = vsel %vm337, %v1859, %v1860
      %v1866 = vsel %vm1863, %v1853, %v1865
      %v1867 = vsel %vm337, %v1860, %v1861
      %v1868 = vsel %vm1863, %v1855, %v1867
      %1873 = vst [vmem:[#allocation2 + $0x508] sm:$0xff] %v1864
      %1874 = vst [vmem:[#allocation2 + $0x510] sm:$0xff] %v1866
      %1875 = vst [vmem:[#allocation2 + $0x518] sm:$0xff] %v1868
      %1876 = vst.msk [vmem:[#allocation2 + $0x520] sm:$0xf] %vm307, %v1857
      %v1877 = vld [vmem:[%s293 + $0x4] sm:$0xff]
      %v1878 = vld [vmem:[%s293 + $0xc] sm:$0xff]
      %v1879 = vld [vmem:[%s293 + $0x14] sm:$0xff]
      %v1880 = vld [vmem:[%s293 + $0x1c] sm:$0xf]
      %1885 = vrot.lane.b32.xlu0 %v1877, 44
      %v1886 = vpop.permute.xlu0 %1885
      %1887 = vrot.lane.b32.xlu0 %v1878, 44
      %v1888 = vpop.permute.xlu0 %1887
      %1889 = vrot.lane.b32.xlu0 %v1879, 44
      %v1890 = vpop.permute.xlu0 %1889
      %1891 = vrot.lane.b32.xlu0 %v1880, 44
      %v1892 = vpop.permute.xlu0 %1891
      %v1893 = vrot.slane %v1886, 4
      %v1894 = vrot.slane %v1888, 4
      %v1895 = vrot.slane %v1890, 4
      %v1896 = vrot.slane %v1892, 4
      %v1897 = vsel %vm337, %v1893, %v1894
      %v1898 = vsel %vm1863, %v1886, %v1897
      %v1899 = vsel %vm337, %v1894, %v1895
      %v1900 = vsel %vm1863, %v1888, %v1899
      %v1901 = vsel %vm337, %v1895, %v1896
      %v1902 = vsel %vm1863, %v1890, %v1901
      %1907 = vst [vmem:[#allocation2 + $0x524] sm:$0xff] %v1898
      %1908 = vst [vmem:[#allocation2 + $0x52c] sm:$0xff] %v1900
      %1909 = vst [vmem:[#allocation2 + $0x534] sm:$0xff] %v1902
      %1910 = vst.msk [vmem:[#allocation2 + $0x53c] sm:$0xf] %vm307, %v1892
      %v1911 = vld [vmem:[%s288 + $0x4] sm:$0xff]
      %v1912 = vld [vmem:[%s288 + $0xc] sm:$0xff]
      %v1913 = vld [vmem:[%s288 + $0x14] sm:$0xff]
      %v1914 = vld [vmem:[%s288 + $0x1c] sm:$0xf]
      %1919 = vrot.lane.b32.xlu0 %v1911, 36
      %v1920 = vpop.permute.xlu0 %1919
      %1921 = vrot.lane.b32.xlu0 %v1912, 36
      %v1922 = vpop.permute.xlu0 %1921
      %1923 = vrot.lane.b32.xlu0 %v1913, 36
      %v1924 = vpop.permute.xlu0 %1923
      %1925 = vrot.lane.b32.xlu0 %v1914, 36
      %v1926 = vpop.permute.xlu0 %1925
      %v1927 = vrot.slane %v1920, 4
      %v1928 = vrot.slane %v1922, 4
      %v1929 = vrot.slane %v1924, 4
      %v1930 = vrot.slane %v1926, 4
      %v1931 = vsel %vm337, %v1927, %v1928
      %vm1932 = vcmask 293888
      %v1933 = vsel %vm1932, %v1920, %v1931
      %v1934 = vsel %vm337, %v1928, %v1929
      %v1935 = vsel %vm1932, %v1922, %v1934
      %v1936 = vsel %vm337, %v1929, %v1930
      %v1937 = vsel %vm1932, %v1924, %v1936
      %1942 = vst [vmem:[#allocation2 + $0x540] sm:$0xff] %v1933
      %1943 = vst [vmem:[#allocation2 + $0x548] sm:$0xff] %v1935
      %1944 = vst [vmem:[#allocation2 + $0x550] sm:$0xff] %v1937
      %1945 = vst.msk [vmem:[#allocation2 + $0x558] sm:$0xf] %vm307, %v1926
      %v1946 = vld [vmem:[%s293 + $0x4] sm:$0xff]
      %v1947 = vld [vmem:[%s293 + $0xc] sm:$0xff]
      %v1948 = vld [vmem:[%s293 + $0x14] sm:$0xff]
      %v1949 = vld [vmem:[%s293 + $0x1c] sm:$0xf]
      %1954 = vrot.lane.b32.xlu0 %v1946, 36
      %v1955 = vpop.permute.xlu0 %1954
      %1956 = vrot.lane.b32.xlu0 %v1947, 36
      %v1957 = vpop.permute.xlu0 %1956
      %1958 = vrot.lane.b32.xlu0 %v1948, 36
      %v1959 = vpop.permute.xlu0 %1958
      %1960 = vrot.lane.b32.xlu0 %v1949, 36
      %v1961 = vpop.permute.xlu0 %1960
      %v1962 = vrot.slane %v1955, 4
      %v1963 = vrot.slane %v1957, 4
      %v1964 = vrot.slane %v1959, 4
      %v1965 = vrot.slane %v1961, 4
      %v1966 = vsel %vm337, %v1962, %v1963
      %v1967 = vsel %vm1932, %v1955, %v1966
      %v1968 = vsel %vm337, %v1963, %v1964
      %v1969 = vsel %vm1932, %v1957, %v1968
      %v1970 = vsel %vm337, %v1964, %v1965
      %v1971 = vsel %vm1932, %v1959, %v1970
      %1976 = vst [vmem:[#allocation2 + $0x55c] sm:$0xff] %v1967
      %1977 = vst [vmem:[#allocation2 + $0x564] sm:$0xff] %v1969
      %1978 = vst [vmem:[#allocation2 + $0x56c] sm:$0xff] %v1971
      %1979 = vst.msk [vmem:[#allocation2 + $0x574] sm:$0xf] %vm307, %v1961
      %v1980 = vld [vmem:[%s288 + $0x4] sm:$0xff]
      %v1981 = vld [vmem:[%s288 + $0xc] sm:$0xff]
      %v1982 = vld [vmem:[%s288 + $0x14] sm:$0xff]
      %v1983 = vld [vmem:[%s288 + $0x1c] sm:$0xf]
      %1988 = vrot.lane.b32.xlu0 %v1980, 35
      %v1989 = vpop.permute.xlu0 %1988
      %1990 = vrot.lane.b32.xlu0 %v1981, 35
      %v1991 = vpop.permute.xlu0 %1990
      %1992 = vrot.lane.b32.xlu0 %v1982, 35
      %v1993 = vpop.permute.xlu0 %1992
      %1994 = vrot.lane.b32.xlu0 %v1983, 35
      %v1995 = vpop.permute.xlu0 %1994
      %v1996 = vrot.slane %v1989, 4
      %v1997 = vrot.slane %v1991, 4
      %v1998 = vrot.slane %v1993, 4
      %v1999 = vrot.slane %v1995, 4
      %v2000 = vsel %vm337, %v1996, %v1997
      %vm2001 = vcmask 285696
      %v2002 = vsel %vm2001, %v1989, %v2000
      %v2003 = vsel %vm337, %v1997, %v1998
      %v2004 = vsel %vm2001, %v1991, %v2003
      %v2005 = vsel %vm337, %v1998, %v1999
      %v2006 = vsel %vm2001, %v1993, %v2005
      %2011 = vst [vmem:[#allocation2 + $0x578] sm:$0xff] %v2002
      %2012 = vst [vmem:[#allocation2 + $0x580] sm:$0xff] %v2004
      %2013 = vst [vmem:[#allocation2 + $0x588] sm:$0xff] %v2006
      %2014 = vst.msk [vmem:[#allocation2 + $0x590] sm:$0xf] %vm307, %v1995
      %v2015 = vld [vmem:[%s293 + $0x4] sm:$0xff]
      %v2016 = vld [vmem:[%s293 + $0xc] sm:$0xff]
      %v2017 = vld [vmem:[%s293 + $0x14] sm:$0xff]
      %v2018 = vld [vmem:[%s293 + $0x1c] sm:$0xf]
      %2023 = vrot.lane.b32.xlu0 %v2015, 35
      %v2024 = vpop.permute.xlu0 %2023
      %2025 = vrot.lane.b32.xlu0 %v2016, 35
      %v2026 = vpop.permute.xlu0 %2025
      %2027 = vrot.lane.b32.xlu0 %v2017, 35
      %v2028 = vpop.permute.xlu0 %2027
      %2029 = vrot.lane.b32.xlu0 %v2018, 35
      %v2030 = vpop.permute.xlu0 %2029
      %v2031 = vrot.slane %v2024, 4
      %v2032 = vrot.slane %v2026, 4
      %v2033 = vrot.slane %v2028, 4
      %v2034 = vrot.slane %v2030, 4
      %v2035 = vsel %vm337, %v2031, %v2032
      %v2036 = vsel %vm2001, %v2024, %v2035
      %v2037 = vsel %vm337, %v2032, %v2033
      %v2038 = vsel %vm2001, %v2026, %v2037
      %v2039 = vsel %vm337, %v2033, %v2034
      %v2040 = vsel %vm2001, %v2028, %v2039
      %2045 = vst [vmem:[#allocation2 + $0x594] sm:$0xff] %v2036
      %2046 = vst [vmem:[#allocation2 + $0x59c] sm:$0xff] %v2038
      %2047 = vst [vmem:[#allocation2 + $0x5a4] sm:$0xff] %v2040
      %2048 = vst.msk [vmem:[#allocation2 + $0x5ac] sm:$0xf] %vm307, %v2030
      %v2049 = vld [vmem:[%s288 + $0x4] sm:$0xff]
      %v2050 = vld [vmem:[%s288 + $0xc] sm:$0xff]
      %v2051 = vld [vmem:[%s288 + $0x14] sm:$0xff]
      %v2052 = vld [vmem:[%s288 + $0x1c] sm:$0xf]
      %2057 = vrot.lane.b32.xlu0 %v2049, 34
      %v2058 = vpop.permute.xlu0 %2057
      %2059 = vrot.lane.b32.xlu0 %v2050, 34
      %v2060 = vpop.permute.xlu0 %2059
      %2061 = vrot.lane.b32.xlu0 %v2051, 34
      %v2062 = vpop.permute.xlu0 %2061
      %2063 = vrot.lane.b32.xlu0 %v2052, 34
      %v2064 = vpop.permute.xlu0 %2063
      %v2065 = vrot.slane %v2058, 4
      %v2066 = vrot.slane %v2060, 4
      %v2067 = vrot.slane %v2062, 4
      %v2068 = vrot.slane %v2064, 4
      %v2069 = vsel %vm337, %v2065, %v2066
      %vm2070 = vcmask 277504
      %v2071 = vsel %vm2070, %v2058, %v2069
      %v2072 = vsel %vm337, %v2066, %v2067
      %v2073 = vsel %vm2070, %v2060, %v2072
      %v2074 = vsel %vm337, %v2067, %v2068
      %v2075 = vsel %vm2070, %v2062, %v2074
      %2080 = vst [vmem:[#allocation2 + $0x5b0] sm:$0xff] %v2071
      %2081 = vst [vmem:[#allocation2 + $0x5b8] sm:$0xff] %v2073
      %2082 = vst [vmem:[#allocation2 + $0x5c0] sm:$0xff] %v2075
      %2083 = vst.msk [vmem:[#allocation2 + $0x5c8] sm:$0xf] %vm307, %v2064
      %v2084 = vld [vmem:[%s293 + $0x4] sm:$0xff]
      %v2085 = vld [vmem:[%s293 + $0xc] sm:$0xff]
      %v2086 = vld [vmem:[%s293 + $0x14] sm:$0xff]
      %v2087 = vld [vmem:[%s293 + $0x1c] sm:$0xf]
      %2092 = vrot.lane.b32.xlu0 %v2084, 34
      %v2093 = vpop.permute.xlu0 %2092
      %2094 = vrot.lane.b32.xlu0 %v2085, 34
      %v2095 = vpop.permute.xlu0 %2094
      %2096 = vrot.lane.b32.xlu0 %v2086, 34
      %v2097 = vpop.permute.xlu0 %2096
      %2098 = vrot.lane.b32.xlu0 %v2087, 34
      %v2099 = vpop.permute.xlu0 %2098
      %v2100 = vrot.slane %v2093, 4
      %v2101 = vrot.slane %v2095, 4
      %v2102 = vrot.slane %v2097, 4
      %v2103 = vrot.slane %v2099, 4
      %v2104 = vsel %vm337, %v2100, %v2101
      %v2105 = vsel %vm2070, %v2093, %v2104
      %v2106 = vsel %vm337, %v2101, %v2102
      %v2107 = vsel %vm2070, %v2095, %v2106
      %v2108 = vsel %vm337, %v2102, %v2103
      %v2109 = vsel %vm2070, %v2097, %v2108
      %2114 = vst [vmem:[#allocation2 + $0x5cc] sm:$0xff] %v2105
      %2115 = vst [vmem:[#allocation2 + $0x5d4] sm:$0xff] %v2107
      %2116 = vst [vmem:[#allocation2 + $0x5dc] sm:$0xff] %v2109
      %2117 = vst.msk [vmem:[#allocation2 + $0x5e4] sm:$0xf] %vm307, %v2099
      %v2118 = vld [vmem:[%s2] sm:$0xff]
      %v2119 = vld [vmem:[%s2 + $0x8] sm:$0xff]
      %v2120 = vld [vmem:[#allocation2] sm:$0xff]
      %v2121 = vld [vmem:[#allocation2 + $0x8] sm:$0xff]
      %v2122 = vld [vmem:[#allocation2 + $0x10] sm:$0xff]
      %v2123 = vld [vmem:[#allocation2 + $0x18] sm:$0xf]
      %v2124 = vld [vmem:[#allocation2 + $0x1c] sm:$0xff]
      %v2125 = vld [vmem:[#allocation2 + $0x24] sm:$0xff]
      %v2126 = vld [vmem:[#allocation2 + $0x2c] sm:$0xff]
      %v2127 = vld [vmem:[#allocation2 + $0x34] sm:$0xf]
      %v2128 = vld [vmem:[#allocation2 + $0x38] sm:$0xff]
      %v2129 = vld [vmem:[#allocation2 + $0x40] sm:$0xff]
      %v2130 = vld [vmem:[#allocation2 + $0x48] sm:$0xff]
      %v2131 = vld [vmem:[#allocation2 + $0x50] sm:$0xf]
      %v2132 = vld [vmem:[#allocation2 + $0x54] sm:$0xff]
      %v2133 = vld [vmem:[#allocation2 + $0x5c] sm:$0xff]
      %v2134 = vld [vmem:[#allocation2 + $0x64] sm:$0xff]
      %v2135 = vld [vmem:[#allocation2 + $0x6c] sm:$0xf]
      %v2136 = vld [vmem:[#allocation2 + $0x70] sm:$0xff]
      %v2137 = vld [vmem:[#allocation2 + $0x78] sm:$0xff]
      %v2138 = vld [vmem:[#allocation2 + $0x80] sm:$0xff]
      %v2139 = vld [vmem:[#allocation2 + $0x88] sm:$0xf]
      %v2140 = vld [vmem:[#allocation2 + $0x8c] sm:$0xff]
      %v2141 = vld [vmem:[#allocation2 + $0x94] sm:$0xff]
      %v2142 = vld [vmem:[#allocation2 + $0x9c] sm:$0xff]
      %v2143 = vld [vmem:[#allocation2 + $0xa4] sm:$0xf]
      %v2144 = vld [vmem:[#allocation2 + $0xa8] sm:$0xff]
      %v2145 = vld [vmem:[#allocation2 + $0xb0] sm:$0xff]
      %v2146 = vld [vmem:[#allocation2 + $0xb8] sm:$0xff]
      %v2147 = vld [vmem:[#allocation2 + $0xc0] sm:$0xf]
      %v2148 = vld [vmem:[#allocation2 + $0xc4] sm:$0xff]
      %v2149 = vld [vmem:[#allocation2 + $0xcc] sm:$0xff]
      %v2150 = vld [vmem:[#allocation2 + $0xd4] sm:$0xff]
      %v2151 = vld [vmem:[#allocation2 + $0xdc] sm:$0xf]
      %v2152 = vld [vmem:[#allocation2 + $0xe0] sm:$0xff]
      %v2153 = vld [vmem:[#allocation2 + $0xe8] sm:$0xff]
      %v2154 = vld [vmem:[#allocation2 + $0xf0] sm:$0xff]
      %v2155 = vld [vmem:[#allocation2 + $0xf8] sm:$0xf]
      %v2156 = vld [vmem:[#allocation2 + $0xfc] sm:$0xff]
      %v2157 = vld [vmem:[#allocation2 + $0x104] sm:$0xff]
      %v2158 = vld [vmem:[#allocation2 + $0x10c] sm:$0xff]
      %v2159 = vld [vmem:[#allocation2 + $0x114] sm:$0xf]
      %v2160 = vld [vmem:[#allocation2 + $0x118] sm:$0xff]
      %v2161 = vld [vmem:[#allocation2 + $0x120] sm:$0xff]
      %v2162 = vld [vmem:[#allocation2 + $0x128] sm:$0xff]
      %v2163 = vld [vmem:[#allocation2 + $0x130] sm:$0xf]
      %v2164 = vld [vmem:[#allocation2 + $0x134] sm:$0xff]
      %v2165 = vld [vmem:[#allocation2 + $0x13c] sm:$0xff]
      %v2166 = vld [vmem:[#allocation2 + $0x144] sm:$0xff]
      %v2167 = vld [vmem:[#allocation2 + $0x14c] sm:$0xf]
      %v2168 = vld [vmem:[#allocation2 + $0x150] sm:$0xff]
      %v2169 = vld [vmem:[#allocation2 + $0x158] sm:$0xff]
      %v2170 = vld [vmem:[#allocation2 + $0x160] sm:$0xff]
      %v2171 = vld [vmem:[#allocation2 + $0x168] sm:$0xf]
      %v2172 = vld [vmem:[#allocation2 + $0x16c] sm:$0xff]
      %v2173 = vld [vmem:[#allocation2 + $0x174] sm:$0xff]
      %v2174 = vld [vmem:[#allocation2 + $0x17c] sm:$0xff]
      %v2175 = vld [vmem:[#allocation2 + $0x184] sm:$0xf]
      %v2176 = vld [vmem:[#allocation2 + $0x188] sm:$0xff]
      %v2177 = vld [vmem:[#allocation2 + $0x190] sm:$0xff]
      %v2178 = vld [vmem:[#allocation2 + $0x198] sm:$0xff]
      %v2179 = vld [vmem:[#allocation2 + $0x1a0] sm:$0xf]
      %v2180 = vld [vmem:[#allocation2 + $0x1a4] sm:$0xff]
      %v2181 = vld [vmem:[#allocation2 + $0x1ac] sm:$0xff]
      %v2182 = vld [vmem:[#allocation2 + $0x1b4] sm:$0xff]
      %v2183 = vld [vmem:[#allocation2 + $0x1bc] sm:$0xf]
      %v2184 = vld [vmem:[#allocation2 + $0x1c0] sm:$0xff]
      %v2185 = vld [vmem:[#allocation2 + $0x1c8] sm:$0xff]
      %v2186 = vld [vmem:[#allocation2 + $0x1d0] sm:$0xff]
      %v2187 = vld [vmem:[#allocation2 + $0x1d8] sm:$0xf]
      %v2188 = vld [vmem:[#allocation2 + $0x1dc] sm:$0xff]
      %v2189 = vld [vmem:[#allocation2 + $0x1e4] sm:$0xff]
      %v2190 = vld [vmem:[#allocation2 + $0x1ec] sm:$0xff]
      %v2191 = vld [vmem:[#allocation2 + $0x1f4] sm:$0xf]
      %v2192 = vld [vmem:[#allocation2 + $0x1f8] sm:$0xff]
      %v2193 = vld [vmem:[#allocation2 + $0x200] sm:$0xff]
      %v2194 = vld [vmem:[#allocation2 + $0x208] sm:$0xff]
      %v2195 = vld [vmem:[#allocation2 + $0x210] sm:$0xf]
      %v2196 = vld [vmem:[#allocation2 + $0x214] sm:$0xff]
      %v2197 = vld [vmem:[#allocation2 + $0x21c] sm:$0xff]
      %v2198 = vld [vmem:[#allocation2 + $0x224] sm:$0xff]
      %v2199 = vld [vmem:[#allocation2 + $0x22c] sm:$0xf]
      %v2200 = vld [vmem:[#allocation2 + $0x230] sm:$0xff]
      %v2201 = vld [vmem:[#allocation2 + $0x238] sm:$0xff]
      %v2202 = vld [vmem:[#allocation2 + $0x240] sm:$0xff]
      %v2203 = vld [vmem:[#allocation2 + $0x248] sm:$0xf]
      %v2204 = vld [vmem:[#allocation2 + $0x24c] sm:$0xff]
      %v2205 = vld [vmem:[#allocation2 + $0x254] sm:$0xff]
      %v2206 = vld [vmem:[#allocation2 + $0x25c] sm:$0xff]
      %v2207 = vld [vmem:[#allocation2 + $0x264] sm:$0xf]
      %v2208 = vld [vmem:[#allocation2 + $0x268] sm:$0xff]
      %v2209 = vld [vmem:[#allocation2 + $0x270] sm:$0xff]
      %v2210 = vld [vmem:[#allocation2 + $0x278] sm:$0xff]
      %v2211 = vld [vmem:[#allocation2 + $0x280] sm:$0xf]
      %v2212 = vld [vmem:[#allocation2 + $0x284] sm:$0xff]
      %v2213 = vld [vmem:[#allocation2 + $0x28c] sm:$0xff]
      %v2214 = vld [vmem:[#allocation2 + $0x294] sm:$0xff]
      %v2215 = vld [vmem:[#allocation2 + $0x29c] sm:$0xf]
      %v2216 = vld [vmem:[#allocation2 + $0x2a0] sm:$0xff]
      %v2217 = vld [vmem:[#allocation2 + $0x2a8] sm:$0xff]
      %v2218 = vld [vmem:[#allocation2 + $0x2b0] sm:$0xff]
      %v2219 = vld [vmem:[#allocation2 + $0x2b8] sm:$0xf]
      %v2220 = vld [vmem:[#allocation2 + $0x2bc] sm:$0xff]
      %v2221 = vld [vmem:[#allocation2 + $0x2c4] sm:$0xff]
      %v2222 = vld [vmem:[#allocation2 + $0x2cc] sm:$0xff]
      %v2223 = vld [vmem:[#allocation2 + $0x2d4] sm:$0xf]
      %v2224 = vld [vmem:[#allocation2 + $0x2d8] sm:$0xff]
      %v2225 = vld [vmem:[#allocation2 + $0x2e0] sm:$0xff]
      %v2226 = vld [vmem:[#allocation2 + $0x2e8] sm:$0xff]
      %v2227 = vld [vmem:[#allocation2 + $0x2f0] sm:$0xf]
      %v2228 = vld [vmem:[#allocation2 + $0x2f4] sm:$0xff]
      %v2229 = vld [vmem:[#allocation2 + $0x2fc] sm:$0xff]
      %v2230 = vld [vmem:[#allocation2 + $0x304] sm:$0xff]
      %v2231 = vld [vmem:[#allocation2 + $0x30c] sm:$0xf]
      %v2232 = vld [vmem:[#allocation2 + $0x310] sm:$0xff]
      %v2233 = vld [vmem:[#allocation2 + $0x318] sm:$0xff]
      %v2234 = vld [vmem:[#allocation2 + $0x320] sm:$0xff]
      %v2235 = vld [vmem:[#allocation2 + $0x328] sm:$0xf]
      %v2236 = vld [vmem:[#allocation2 + $0x32c] sm:$0xff]
      %v2237 = vld [vmem:[#allocation2 + $0x334] sm:$0xff]
      %v2238 = vld [vmem:[#allocation2 + $0x33c] sm:$0xff]
      %v2239 = vld [vmem:[#allocation2 + $0x344] sm:$0xf]
      %v2240 = vld [vmem:[#allocation2 + $0x348] sm:$0xff]
      %v2241 = vld [vmem:[#allocation2 + $0x350] sm:$0xff]
      %v2242 = vld [vmem:[#allocation2 + $0x358] sm:$0xff]
      %v2243 = vld [vmem:[#allocation2 + $0x360] sm:$0xf]
      %v2244 = vld [vmem:[#allocation2 + $0x364] sm:$0xff]
      %v2245 = vld [vmem:[#allocation2 + $0x36c] sm:$0xff]
      %v2246 = vld [vmem:[#allocation2 + $0x374] sm:$0xff]
      %v2247 = vld [vmem:[#allocation2 + $0x37c] sm:$0xf]
      %v2248 = vld [vmem:[#allocation2 + $0x380] sm:$0xff]
      %v2249 = vld [vmem:[#allocation2 + $0x388] sm:$0xff]
      %v2250 = vld [vmem:[#allocation2 + $0x390] sm:$0xff]
      %v2251 = vld [vmem:[#allocation2 + $0x398] sm:$0xf]
      %v2252 = vld [vmem:[#allocation2 + $0x39c] sm:$0xff]
      %v2253 = vld [vmem:[#allocation2 + $0x3a4] sm:$0xff]
      %v2254 = vld [vmem:[#allocation2 + $0x3ac] sm:$0xff]
      %v2255 = vld [vmem:[#allocation2 + $0x3b4] sm:$0xf]
      %v2256 = vld [vmem:[#allocation2 + $0x3b8] sm:$0xff]
      %v2257 = vld [vmem:[#allocation2 + $0x3c0] sm:$0xff]
      %v2258 = vld [vmem:[#allocation2 + $0x3c8] sm:$0xff]
      %v2259 = vld [vmem:[#allocation2 + $0x3d0] sm:$0xf]
      %v2260 = vld [vmem:[#allocation2 + $0x3d4] sm:$0xff]
      %v2261 = vld [vmem:[#allocation2 + $0x3dc] sm:$0xff]
      %v2262 = vld [vmem:[#allocation2 + $0x3e4] sm:$0xff]
      %v2263 = vld [vmem:[#allocation2 + $0x3ec] sm:$0xf]
      %v2264 = vld [vmem:[#allocation2 + $0x3f0] sm:$0xff]
      %v2265 = vld [vmem:[#allocation2 + $0x3f8] sm:$0xff]
      %v2266 = vld [vmem:[#allocation2 + $0x400] sm:$0xff]
      %v2267 = vld [vmem:[#allocation2 + $0x408] sm:$0xf]
      %v2268 = vld [vmem:[#allocation2 + $0x40c] sm:$0xff]
      %v2269 = vld [vmem:[#allocation2 + $0x414] sm:$0xff]
      %v2270 = vld [vmem:[#allocation2 + $0x41c] sm:$0xff]
      %v2271 = vld [vmem:[#allocation2 + $0x424] sm:$0xf]
      %v2272 = vld [vmem:[#allocation2 + $0x428] sm:$0xff]
      %v2273 = vld [vmem:[#allocation2 + $0x430] sm:$0xff]
      %v2274 = vld [vmem:[#allocation2 + $0x438] sm:$0xff]
      %v2275 = vld [vmem:[#allocation2 + $0x440] sm:$0xf]
      %v2276 = vld [vmem:[#allocation2 + $0x444] sm:$0xff]
      %v2277 = vld [vmem:[#allocation2 + $0x44c] sm:$0xff]
      %v2278 = vld [vmem:[#allocation2 + $0x454] sm:$0xff]
      %v2279 = vld [vmem:[#allocation2 + $0x45c] sm:$0xf]
      %v2280 = vld [vmem:[#allocation2 + $0x460] sm:$0xff]
      %v2281 = vld [vmem:[#allocation2 + $0x468] sm:$0xff]
      %v2282 = vld [vmem:[#allocation2 + $0x470] sm:$0xff]
      %v2283 = vld [vmem:[#allocation2 + $0x478] sm:$0xf]
      %v2284 = vld [vmem:[#allocation2 + $0x47c] sm:$0xff]
      %v2285 = vld [vmem:[#allocation2 + $0x484] sm:$0xff]
      %v2286 = vld [vmem:[#allocation2 + $0x48c] sm:$0xff]
      %v2287 = vld [vmem:[#allocation2 + $0x494] sm:$0xf]
      %v2288 = vld [vmem:[#allocation2 + $0x498] sm:$0xff]
      %v2289 = vld [vmem:[#allocation2 + $0x4a0] sm:$0xff]
      %v2290 = vld [vmem:[#allocation2 + $0x4a8] sm:$0xff]
      %v2291 = vld [vmem:[#allocation2 + $0x4b0] sm:$0xf]
      %v2292 = vld [vmem:[#allocation2 + $0x4b4] sm:$0xff]
      %v2293 = vld [vmem:[#allocation2 + $0x4bc] sm:$0xff]
      %v2294 = vld [vmem:[#allocation2 + $0x4c4] sm:$0xff]
      %v2295 = vld [vmem:[#allocation2 + $0x4cc] sm:$0xf]
      %v2296 = vld [vmem:[#allocation2 + $0x4d0] sm:$0xff]
      %v2297 = vld [vmem:[#allocation2 + $0x4d8] sm:$0xff]
      %v2298 = vld [vmem:[#allocation2 + $0x4e0] sm:$0xff]
      %v2299 = vld [vmem:[#allocation2 + $0x4e8] sm:$0xf]
      %v2300 = vld [vmem:[#allocation2 + $0x4ec] sm:$0xff]
      %v2301 = vld [vmem:[#allocation2 + $0x4f4] sm:$0xff]
      %v2302 = vld [vmem:[#allocation2 + $0x4fc] sm:$0xff]
      %v2303 = vld [vmem:[#allocation2 + $0x504] sm:$0xf]
      %v2304 = vld [vmem:[#allocation2 + $0x508] sm:$0xff]
      %v2305 = vld [vmem:[#allocation2 + $0x510] sm:$0xff]
      %v2306 = vld [vmem:[#allocation2 + $0x518] sm:$0xff]
      %v2307 = vld [vmem:[#allocation2 + $0x520] sm:$0xf]
      %v2308 = vld [vmem:[#allocation2 + $0x524] sm:$0xff]
      %v2309 = vld [vmem:[#allocation2 + $0x52c] sm:$0xff]
      %v2310 = vld [vmem:[#allocation2 + $0x534] sm:$0xff]
      %v2311 = vld [vmem:[#allocation2 + $0x53c] sm:$0xf]
      %v2312 = vld [vmem:[#allocation2 + $0x540] sm:$0xff]
      %v2313 = vld [vmem:[#allocation2 + $0x548] sm:$0xff]
      %v2314 = vld [vmem:[#allocation2 + $0x550] sm:$0xff]
      %v2315 = vld [vmem:[#allocation2 + $0x558] sm:$0xf]
      %v2316 = vld [vmem:[#allocation2 + $0x55c] sm:$0xff]
      %v2317 = vld [vmem:[#allocation2 + $0x564] sm:$0xff]
      %v2318 = vld [vmem:[#allocation2 + $0x56c] sm:$0xff]
      %v2319 = vld [vmem:[#allocation2 + $0x574] sm:$0xf]
      %v2320 = vld [vmem:[#allocation2 + $0x578] sm:$0xff]
      %v2321 = vld [vmem:[#allocation2 + $0x580] sm:$0xff]
      %v2322 = vld [vmem:[#allocation2 + $0x588] sm:$0xff]
      %v2323 = vld [vmem:[#allocation2 + $0x590] sm:$0xf]
      %v2324 = vld [vmem:[#allocation2 + $0x594] sm:$0xff]
      %v2325 = vld [vmem:[#allocation2 + $0x59c] sm:$0xff]
      %v2326 = vld [vmem:[#allocation2 + $0x5a4] sm:$0xff]
      %v2327 = vld [vmem:[#allocation2 + $0x5ac] sm:$0xf]
      %v2328 = vld [vmem:[#allocation2 + $0x5b0] sm:$0xff]
      %v2329 = vld [vmem:[#allocation2 + $0x5b8] sm:$0xff]
      %v2330 = vld [vmem:[#allocation2 + $0x5c0] sm:$0xff]
      %v2331 = vld [vmem:[#allocation2 + $0x5c8] sm:$0xf]
      %v2332 = vld [vmem:[#allocation2 + $0x5cc] sm:$0xff]
      %v2333 = vld [vmem:[#allocation2 + $0x5d4] sm:$0xff]
      %v2334 = vld [vmem:[#allocation2 + $0x5dc] sm:$0xff]
      %v2335 = vld [vmem:[#allocation2 + $0x5e4] sm:$0xf]
      %v2336 = vld [vmem:[%s3] sm:$0xff]
      %2338 = vset.pattern.permute.xlu0 0
      %2339 = vperm.xlu0 %2338, %v2336
      %v2340 = vpop.permute.xlu0 %2339
      %v2344 = vunpack.c.l.b16 %v2118
      %v2345 = vunpack.c.h.b16 %v2118
      %v2346 = vunpack.c.l.b16 %v2119
      %v2347 = vunpack.c.h.b16 %v2119
      %v2348 = vpack.c.b16 %v2344, %v2344
      %v2349 = vpack.c.b16 %v2345, %v2345
      %v2350 = vpack.c.b16 %v2346, %v2346
      %v2351 = vpack.c.b16 %v2347, %v2347
      %v2571 = vunpack.c.l.b16 %v2120
      %v2572 = vunpack.c.h.b16 %v2120
      %v2573 = vunpack.c.l.b16 %v2121
      %v2574 = vunpack.c.h.b16 %v2121
      %v2575 = vunpack.c.l.b16 %v2122
      %v2576 = vunpack.c.h.b16 %v2122
      %v2577 = vunpack.c.l.b16 %v2123
      %v2578 = vunpack.c.l.b16 %v2124
      %v2579 = vunpack.c.h.b16 %v2124
      %v2580 = vunpack.c.l.b16 %v2125
      %v2581 = vunpack.c.h.b16 %v2125
      %v2582 = vunpack.c.l.b16 %v2126
      %v2583 = vunpack.c.h.b16 %v2126
      %v2584 = vunpack.c.l.b16 %v2127
      %v2585 = vunpack.c.l.b16 %v2128
      %v2586 = vunpack.c.h.b16 %v2128
      %v2587 = vunpack.c.l.b16 %v2129
      %v2588 = vunpack.c.h.b16 %v2129
      %v2589 = vunpack.c.l.b16 %v2130
      %v2590 = vunpack.c.h.b16 %v2130
      %v2591 = vunpack.c.l.b16 %v2131
      %v2592 = vunpack.c.l.b16 %v2132
      %v2593 = vunpack.c.h.b16 %v2132
      %v2594 = vunpack.c.l.b16 %v2133
      %v2595 = vunpack.c.h.b16 %v2133
      %v2596 = vunpack.c.l.b16 %v2134
      %v2597 = vunpack.c.h.b16 %v2134
      %v2598 = vunpack.c.l.b16 %v2135
      %v2599 = vunpack.c.l.b16 %v2136
      %v2600 = vunpack.c.h.b16 %v2136
      %v2601 = vunpack.c.l.b16 %v2137
      %v2602 = vunpack.c.h.b16 %v2137
      %v2603 = vunpack.c.l.b16 %v2138
      %v2604 = vunpack.c.h.b16 %v2138
      %v2605 = vunpack.c.l.b16 %v2139
      %v2606 = vunpack.c.l.b16 %v2140
      %v2607 = vunpack.c.h.b16 %v2140
      %v2608 = vunpack.c.l.b16 %v2141
      %v2609 = vunpack.c.h.b16 %v2141
      %v2610 = vunpack.c.l.b16 %v2142
      %v2611 = vunpack.c.h.b16 %v2142
      %v2612 = vunpack.c.l.b16 %v2143
      %v2613 = vunpack.c.l.b16 %v2144
      %v2614 = vunpack.c.h.b16 %v2144
      %v2615 = vunpack.c.l.b16 %v2145
      %v2616 = vunpack.c.h.b16 %v2145
      %v2617 = vunpack.c.l.b16 %v2146
      %v2618 = vunpack.c.h.b16 %v2146
      %v2619 = vunpack.c.l.b16 %v2147
      %v2620 = vunpack.c.l.b16 %v2148
      %v2621 = vunpack.c.h.b16 %v2148
      %v2622 = vunpack.c.l.b16 %v2149
      %v2623 = vunpack.c.h.b16 %v2149
      %v2624 = vunpack.c.l.b16 %v2150
      %v2625 = vunpack.c.h.b16 %v2150
      %v2626 = vunpack.c.l.b16 %v2151
      %v2627 = vunpack.c.l.b16 %v2152
      %v2628 = vunpack.c.h.b16 %v2152
      %v2629 = vunpack.c.l.b16 %v2153
      %v2630 = vunpack.c.h.b16 %v2153
      %v2631 = vunpack.c.l.b16 %v2154
      %v2632 = vunpack.c.h.b16 %v2154
      %v2633 = vunpack.c.l.b16 %v2155
      %v2634 = vunpack.c.l.b16 %v2156
      %v2635 = vunpack.c.h.b16 %v2156
      %v2636 = vunpack.c.l.b16 %v2157
      %v2637 = vunpack.c.h.b16 %v2157
      %v2638 = vunpack.c.l.b16 %v2158
      %v2639 = vunpack.c.h.b16 %v2158
      %v2640 = vunpack.c.l.b16 %v2159
      %v2641 = vunpack.c.l.b16 %v2160
      %v2642 = vunpack.c.h.b16 %v2160
      %v2643 = vunpack.c.l.b16 %v2161
      %v2644 = vunpack.c.h.b16 %v2161
      %v2645 = vunpack.c.l.b16 %v2162
      %v2646 = vunpack.c.h.b16 %v2162
      %v2647 = vunpack.c.l.b16 %v2163
      %v2648 = vunpack.c.l.b16 %v2164
      %v2649 = vunpack.c.h.b16 %v2164
      %v2650 = vunpack.c.l.b16 %v2165
      %v2651 = vunpack.c.h.b16 %v2165
      %v2652 = vunpack.c.l.b16 %v2166
      %v2653 = vunpack.c.h.b16 %v2166
      %v2654 = vunpack.c.l.b16 %v2167
      %v2655 = vunpack.c.l.b16 %v2168
      %v2656 = vunpack.c.h.b16 %v2168
      %v2657 = vunpack.c.l.b16 %v2169
      %v2658 = vunpack.c.h.b16 %v2169
      %v2659 = vunpack.c.l.b16 %v2170
      %v2660 = vunpack.c.h.b16 %v2170
      %v2661 = vunpack.c.l.b16 %v2171
      %v2662 = vunpack.c.l.b16 %v2172
      %v2663 = vunpack.c.h.b16 %v2172
      %v2664 = vunpack.c.l.b16 %v2173
      %v2665 = vunpack.c.h.b16 %v2173
      %v2666 = vunpack.c.l.b16 %v2174
      %v2667 = vunpack.c.h.b16 %v2174
      %v2668 = vunpack.c.l.b16 %v2175
      %v2669 = vunpack.c.l.b16 %v2176
      %v2670 = vunpack.c.h.b16 %v2176
      %v2671 = vunpack.c.l.b16 %v2177
      %v2672 = vunpack.c.h.b16 %v2177
      %v2673 = vunpack.c.l.b16 %v2178
      %v2674 = vunpack.c.h.b16 %v2178
      %v2675 = vunpack.c.l.b16 %v2179
      %v2676 = vunpack.c.l.b16 %v2180
      %v2677 = vunpack.c.h.b16 %v2180
      %v2678 = vunpack.c.l.b16 %v2181
      %v2679 = vunpack.c.h.b16 %v2181
      %v2680 = vunpack.c.l.b16 %v2182
      %v2681 = vunpack.c.h.b16 %v2182
      %v2682 = vunpack.c.l.b16 %v2183
      %v2683 = vunpack.c.l.b16 %v2184
      %v2684 = vunpack.c.h.b16 %v2184
      %v2685 = vunpack.c.l.b16 %v2185
      %v2686 = vunpack.c.h.b16 %v2185
      %v2687 = vunpack.c.l.b16 %v2186
      %v2688 = vunpack.c.h.b16 %v2186
      %v2689 = vunpack.c.l.b16 %v2187
      %v2690 = vunpack.c.l.b16 %v2188
      %v2691 = vunpack.c.h.b16 %v2188
      %v2692 = vunpack.c.l.b16 %v2189
      %v2693 = vunpack.c.h.b16 %v2189
      %v2694 = vunpack.c.l.b16 %v2190
      %v2695 = vunpack.c.h.b16 %v2190
      %v2696 = vunpack.c.l.b16 %v2191
      %v2697 = vunpack.c.l.b16 %v2192
      %v2698 = vunpack.c.h.b16 %v2192
      %v2699 = vunpack.c.l.b16 %v2193
      %v2700 = vunpack.c.h.b16 %v2193
      %v2701 = vunpack.c.l.b16 %v2194
      %v2702 = vunpack.c.h.b16 %v2194
      %v2703 = vunpack.c.l.b16 %v2195
      %v2704 = vunpack.c.l.b16 %v2196
      %v2705 = vunpack.c.h.b16 %v2196
      %v2706 = vunpack.c.l.b16 %v2197
      %v2707 = vunpack.c.h.b16 %v2197
      %v2708 = vunpack.c.l.b16 %v2198
      %v2709 = vunpack.c.h.b16 %v2198
      %v2710 = vunpack.c.l.b16 %v2199
      %v2711 = vunpack.c.l.b16 %v2200
      %v2712 = vunpack.c.h.b16 %v2200
      %v2713 = vunpack.c.l.b16 %v2201
      %v2714 = vunpack.c.h.b16 %v2201
      %v2715 = vunpack.c.l.b16 %v2202
      %v2716 = vunpack.c.h.b16 %v2202
      %v2717 = vunpack.c.l.b16 %v2203
      %v2718 = vunpack.c.l.b16 %v2204
      %v2719 = vunpack.c.h.b16 %v2204
      %v2720 = vunpack.c.l.b16 %v2205
      %v2721 = vunpack.c.h.b16 %v2205
      %v2722 = vunpack.c.l.b16 %v2206
      %v2723 = vunpack.c.h.b16 %v2206
      %v2724 = vunpack.c.l.b16 %v2207
      %v2725 = vunpack.c.l.b16 %v2208
      %v2726 = vunpack.c.h.b16 %v2208
      %v2727 = vunpack.c.l.b16 %v2209
      %v2728 = vunpack.c.h.b16 %v2209
      %v2729 = vunpack.c.l.b16 %v2210
      %v2730 = vunpack.c.h.b16 %v2210
      %v2731 = vunpack.c.l.b16 %v2211
      %v2732 = vunpack.c.l.b16 %v2212
      %v2733 = vunpack.c.h.b16 %v2212
      %v2734 = vunpack.c.l.b16 %v2213
      %v2735 = vunpack.c.h.b16 %v2213
      %v2736 = vunpack.c.l.b16 %v2214
      %v2737 = vunpack.c.h.b16 %v2214
      %v2738 = vunpack.c.l.b16 %v2215
      %v2739 = vunpack.c.l.b16 %v2216
      %v2740 = vunpack.c.h.b16 %v2216
      %v2741 = vunpack.c.l.b16 %v2217
      %v2742 = vunpack.c.h.b16 %v2217
      %v2743 = vunpack.c.l.b16 %v2218
      %v2744 = vunpack.c.h.b16 %v2218
      %v2745 = vunpack.c.l.b16 %v2219
      %v2746 = vunpack.c.l.b16 %v2220
      %v2747 = vunpack.c.h.b16 %v2220
      %v2748 = vunpack.c.l.b16 %v2221
      %v2749 = vunpack.c.h.b16 %v2221
      %v2750 = vunpack.c.l.b16 %v2222
      %v2751 = vunpack.c.h.b16 %v2222
      %v2752 = vunpack.c.l.b16 %v2223
      %v2753 = vunpack.c.l.b16 %v2224
      %v2754 = vunpack.c.h.b16 %v2224
      %v2755 = vunpack.c.l.b16 %v2225
      %v2756 = vunpack.c.h.b16 %v2225
      %v2757 = vunpack.c.l.b16 %v2226
      %v2758 = vunpack.c.h.b16 %v2226
      %v2759 = vunpack.c.l.b16 %v2227
      %v2760 = vunpack.c.l.b16 %v2228
      %v2761 = vunpack.c.h.b16 %v2228
      %v2762 = vunpack.c.l.b16 %v2229
      %v2763 = vunpack.c.h.b16 %v2229
      %v2764 = vunpack.c.l.b16 %v2230
      %v2765 = vunpack.c.h.b16 %v2230
      %v2766 = vunpack.c.l.b16 %v2231
      %v2767 = vunpack.c.l.b16 %v2232
      %v2768 = vunpack.c.h.b16 %v2232
      %v2769 = vunpack.c.l.b16 %v2233
      %v2770 = vunpack.c.h.b16 %v2233
      %v2771 = vunpack.c.l.b16 %v2234
      %v2772 = vunpack.c.h.b16 %v2234
      %v2773 = vunpack.c.l.b16 %v2235
      %v2774 = vunpack.c.l.b16 %v2236
      %v2775 = vunpack.c.h.b16 %v2236
      %v2776 = vunpack.c.l.b16 %v2237
      %v2777 = vunpack.c.h.b16 %v2237
      %v2778 = vunpack.c.l.b16 %v2238
      %v2779 = vunpack.c.h.b16 %v2238
      %v2780 = vunpack.c.l.b16 %v2239
      %v2781 = vunpack.c.l.b16 %v2240
      %v2782 = vunpack.c.h.b16 %v2240
      %v2783 = vunpack.c.l.b16 %v2241
      %v2784 = vunpack.c.h.b16 %v2241
      %v2785 = vunpack.c.l.b16 %v2242
      %v2786 = vunpack.c.h.b16 %v2242
      %v2787 = vunpack.c.l.b16 %v2243
      %v2788 = vunpack.c.l.b16 %v2244
      %v2789 = vunpack.c.h.b16 %v2244
      %v2790 = vunpack.c.l.b16 %v2245
      %v2791 = vunpack.c.h.b16 %v2245
      %v2792 = vunpack.c.l.b16 %v2246
      %v2793 = vunpack.c.h.b16 %v2246
      %v2794 = vunpack.c.l.b16 %v2247
      %v2795 = vunpack.c.l.b16 %v2248
      %v2796 = vunpack.c.h.b16 %v2248
      %v2797 = vunpack.c.l.b16 %v2249
      %v2798 = vunpack.c.h.b16 %v2249
      %v2799 = vunpack.c.l.b16 %v2250
      %v2800 = vunpack.c.h.b16 %v2250
      %v2801 = vunpack.c.l.b16 %v2251
      %v2802 = vunpack.c.l.b16 %v2252
      %v2803 = vunpack.c.h.b16 %v2252
      %v2804 = vunpack.c.l.b16 %v2253
      %v2805 = vunpack.c.h.b16 %v2253
      %v2806 = vunpack.c.l.b16 %v2254
      %v2807 = vunpack.c.h.b16 %v2254
      %v2808 = vunpack.c.l.b16 %v2255
      %v2809 = vunpack.c.l.b16 %v2256
      %v2810 = vunpack.c.h.b16 %v2256
      %v2811 = vunpack.c.l.b16 %v2257
      %v2812 = vunpack.c.h.b16 %v2257
      %v2813 = vunpack.c.l.b16 %v2258
      %v2814 = vunpack.c.h.b16 %v2258
      %v2815 = vunpack.c.l.b16 %v2259
      %v2816 = vunpack.c.l.b16 %v2260
      %v2817 = vunpack.c.h.b16 %v2260
      %v2818 = vunpack.c.l.b16 %v2261
      %v2819 = vunpack.c.h.b16 %v2261
      %v2820 = vunpack.c.l.b16 %v2262
      %v2821 = vunpack.c.h.b16 %v2262
      %v2822 = vunpack.c.l.b16 %v2263
      %v2823 = vunpack.c.l.b16 %v2264
      %v2824 = vunpack.c.h.b16 %v2264
      %v2825 = vunpack.c.l.b16 %v2265
      %v2826 = vunpack.c.h.b16 %v2265
      %v2827 = vunpack.c.l.b16 %v2266
      %v2828 = vunpack.c.h.b16 %v2266
      %v2829 = vunpack.c.l.b16 %v2267
      %v2830 = vunpack.c.l.b16 %v2268
      %v2831 = vunpack.c.h.b16 %v2268
      %v2832 = vunpack.c.l.b16 %v2269
      %v2833 = vunpack.c.h.b16 %v2269
      %v2834 = vunpack.c.l.b16 %v2270
      %v2835 = vunpack.c.h.b16 %v2270
      %v2836 = vunpack.c.l.b16 %v2271
      %v2837 = vunpack.c.l.b16 %v2272
      %v2838 = vunpack.c.h.b16 %v2272
      %v2839 = vunpack.c.l.b16 %v2273
      %v2840 = vunpack.c.h.b16 %v2273
      %v2841 = vunpack.c.l.b16 %v2274
      %v2842 = vunpack.c.h.b16 %v2274
      %v2843 = vunpack.c.l.b16 %v2275
      %v2844 = vunpack.c.l.b16 %v2276
      %v2845 = vunpack.c.h.b16 %v2276
      %v2846 = vunpack.c.l.b16 %v2277
      %v2847 = vunpack.c.h.b16 %v2277
      %v2848 = vunpack.c.l.b16 %v2278
      %v2849 = vunpack.c.h.b16 %v2278
      %v2850 = vunpack.c.l.b16 %v2279
      %v2851 = vunpack.c.l.b16 %v2280
      %v2852 = vunpack.c.h.b16 %v2280
      %v2853 = vunpack.c.l.b16 %v2281
      %v2854 = vunpack.c.h.b16 %v2281
      %v2855 = vunpack.c.l.b16 %v2282
      %v2856 = vunpack.c.h.b16 %v2282
      %v2857 = vunpack.c.l.b16 %v2283
      %v2858 = vunpack.c.l.b16 %v2284
      %v2859 = vunpack.c.h.b16 %v2284
      %v2860 = vunpack.c.l.b16 %v2285
      %v2861 = vunpack.c.h.b16 %v2285
      %v2862 = vunpack.c.l.b16 %v2286
      %v2863 = vunpack.c.h.b16 %v2286
      %v2864 = vunpack.c.l.b16 %v2287
      %v2865 = vunpack.c.l.b16 %v2288
      %v2866 = vunpack.c.h.b16 %v2288
      %v2867 = vunpack.c.l.b16 %v2289
      %v2868 = vunpack.c.h.b16 %v2289
      %v2869 = vunpack.c.l.b16 %v2290
      %v2870 = vunpack.c.h.b16 %v2290
      %v2871 = vunpack.c.l.b16 %v2291
      %v2872 = vunpack.c.l.b16 %v2292
      %v2873 = vunpack.c.h.b16 %v2292
      %v2874 = vunpack.c.l.b16 %v2293
      %v2875 = vunpack.c.h.b16 %v2293
      %v2876 = vunpack.c.l.b16 %v2294
      %v2877 = vunpack.c.h.b16 %v2294
      %v2878 = vunpack.c.l.b16 %v2295
      %v2879 = vunpack.c.l.b16 %v2296
      %v2880 = vunpack.c.h.b16 %v2296
      %v2881 = vunpack.c.l.b16 %v2297
      %v2882 = vunpack.c.h.b16 %v2297
      %v2883 = vunpack.c.l.b16 %v2298
      %v2884 = vunpack.c.h.b16 %v2298
      %v2885 = vunpack.c.l.b16 %v2299
      %v2886 = vunpack.c.l.b16 %v2300
      %v2887 = vunpack.c.h.b16 %v2300
      %v2888 = vunpack.c.l.b16 %v2301
      %v2889 = vunpack.c.h.b16 %v2301
      %v2890 = vunpack.c.l.b16 %v2302
      %v2891 = vunpack.c.h.b16 %v2302
      %v2892 = vunpack.c.l.b16 %v2303
      %v2893 = vunpack.c.l.b16 %v2304
      %v2894 = vunpack.c.h.b16 %v2304
      %v2895 = vunpack.c.l.b16 %v2305
      %v2896 = vunpack.c.h.b16 %v2305
      %v2897 = vunpack.c.l.b16 %v2306
      %v2898 = vunpack.c.h.b16 %v2306
      %v2899 = vunpack.c.l.b16 %v2307
      %v2900 = vunpack.c.l.b16 %v2308
      %v2901 = vunpack.c.h.b16 %v2308
      %v2902 = vunpack.c.l.b16 %v2309
      %v2903 = vunpack.c.h.b16 %v2309
      %v2904 = vunpack.c.l.b16 %v2310
      %v2905 = vunpack.c.h.b16 %v2310
      %v2906 = vunpack.c.l.b16 %v2311
      %v2907 = vunpack.c.l.b16 %v2312
      %v2908 = vunpack.c.h.b16 %v2312
      %v2909 = vunpack.c.l.b16 %v2313
      %v2910 = vunpack.c.h.b16 %v2313
      %v2911 = vunpack.c.l.b16 %v2314
      %v2912 = vunpack.c.h.b16 %v2314
      %v2913 = vunpack.c.l.b16 %v2315
      %v2914 = vunpack.c.l.b16 %v2316
      %v2915 = vunpack.c.h.b16 %v2316
      %v2916 = vunpack.c.l.b16 %v2317
      %v2917 = vunpack.c.h.b16 %v2317
      %v2918 = vunpack.c.l.b16 %v2318
      %v2919 = vunpack.c.h.b16 %v2318
      %v2920 = vunpack.c.l.b16 %v2319
      %v2921 = vunpack.c.l.b16 %v2320
      %v2922 = vunpack.c.h.b16 %v2320
      %v2923 = vunpack.c.l.b16 %v2321
      %v2924 = vunpack.c.h.b16 %v2321
      %v2925 = vunpack.c.l.b16 %v2322
      %v2926 = vunpack.c.h.b16 %v2322
      %v2927 = vunpack.c.l.b16 %v2323
      %v2928 = vunpack.c.l.b16 %v2324
      %v2929 = vunpack.c.h.b16 %v2324
      %v2930 = vunpack.c.l.b16 %v2325
      %v2931 = vunpack.c.h.b16 %v2325
      %v2932 = vunpack.c.l.b16 %v2326
      %v2933 = vunpack.c.h.b16 %v2326
      %v2934 = vunpack.c.l.b16 %v2327
      %v2935 = vunpack.c.l.b16 %v2328
      %v2936 = vunpack.c.h.b16 %v2328
      %v2937 = vunpack.c.l.b16 %v2329
      %v2938 = vunpack.c.h.b16 %v2329
      %v2939 = vunpack.c.l.b16 %v2330
      %v2940 = vunpack.c.h.b16 %v2330
      %v2941 = vunpack.c.l.b16 %v2331
      %v2942 = vunpack.c.l.b16 %v2332
      %v2943 = vunpack.c.h.b16 %v2332
      %v2944 = vunpack.c.l.b16 %v2333
      %v2945 = vunpack.c.h.b16 %v2333
      %v2946 = vunpack.c.l.b16 %v2334
      %v2947 = vunpack.c.h.b16 %v2334
      %v2948 = vunpack.c.l.b16 %v2335
      %v2949 = vpack.c.b16 %v2578, %v2571
      %v2950 = vpack.c.b16 %v2579, %v2572
      %v2951 = vpack.c.b16 %v2580, %v2573
      %v2952 = vpack.c.b16 %v2581, %v2574
      %v2953 = vpack.c.b16 %v2582, %v2575
      %v2954 = vpack.c.b16 %v2583, %v2576
      %v2955 = vpack.c.b16 %v2584, %v2577
      %v2956 = vpack.c.b16 %v2592, %v2585
      %v2957 = vpack.c.b16 %v2593, %v2586
      %v2958 = vpack.c.b16 %v2594, %v2587
      %v2959 = vpack.c.b16 %v2595, %v2588
      %v2960 = vpack.c.b16 %v2596, %v2589
      %v2961 = vpack.c.b16 %v2597, %v2590
      %v2962 = vpack.c.b16 %v2598, %v2591
      %v2963 = vpack.c.b16 %v2606, %v2599
      %v2964 = vpack.c.b16 %v2607, %v2600
      %v2965 = vpack.c.b16 %v2608, %v2601
      %v2966 = vpack.c.b16 %v2609, %v2602
      %v2967 = vpack.c.b16 %v2610, %v2603
      %v2968 = vpack.c.b16 %v2611, %v2604
      %v2969 = vpack.c.b16 %v2612, %v2605
      %v2970 = vpack.c.b16 %v2620, %v2613
      %v2971 = vpack.c.b16 %v2621, %v2614
      %v2972 = vpack.c.b16 %v2622, %v2615
      %v2973 = vpack.c.b16 %v2623, %v2616
      %v2974 = vpack.c.b16 %v2624, %v2617
      %v2975 = vpack.c.b16 %v2625, %v2618
      %v2976 = vpack.c.b16 %v2626, %v2619
      %v2977 = vpack.c.b16 %v2634, %v2627
      %v2978 = vpack.c.b16 %v2635, %v2628
      %v2979 = vpack.c.b16 %v2636, %v2629
      %v2980 = vpack.c.b16 %v2637, %v2630
      %v2981 = vpack.c.b16 %v2638, %v2631
      %v2982 = vpack.c.b16 %v2639, %v2632
      %v2983 = vpack.c.b16 %v2640, %v2633
      %v2984 = vpack.c.b16 %v2648, %v2641
      %v2985 = vpack.c.b16 %v2649, %v2642
      %v2986 = vpack.c.b16 %v2650, %v2643
      %v2987 = vpack.c.b16 %v2651, %v2644
      %v2988 = vpack.c.b16 %v2652, %v2645
      %v2989 = vpack.c.b16 %v2653, %v2646
      %v2990 = vpack.c.b16 %v2654, %v2647
      %v2991 = vpack.c.b16 %v2662, %v2655
      %v2992 = vpack.c.b16 %v2663, %v2656
      %v2993 = vpack.c.b16 %v2664, %v2657
      %v2994 = vpack.c.b16 %v2665, %v2658
      %v2995 = vpack.c.b16 %v2666, %v2659
      %v2996 = vpack.c.b16 %v2667, %v2660
      %v2997 = vpack.c.b16 %v2668, %v2661
      %v2998 = vpack.c.b16 %v2676, %v2669
      %v2999 = vpack.c.b16 %v2677, %v2670
      %v3000 = vpack.c.b16 %v2678, %v2671
      %v3001 = vpack.c.b16 %v2679, %v2672
      %v3002 = vpack.c.b16 %v2680, %v2673
      %v3003 = vpack.c.b16 %v2681, %v2674
      %v3004 = vpack.c.b16 %v2682, %v2675
      %v3005 = vpack.c.b16 %v2690, %v2683
      %v3006 = vpack.c.b16 %v2691, %v2684
      %v3007 = vpack.c.b16 %v2692, %v2685
      %v3008 = vpack.c.b16 %v2693, %v2686
      %v3009 = vpack.c.b16 %v2694, %v2687
      %v3010 = vpack.c.b16 %v2695, %v2688
      %v3011 = vpack.c.b16 %v2696, %v2689
      %v3012 = vpack.c.b16 %v2704, %v2697
      %v3013 = vpack.c.b16 %v2705, %v2698
      %v3014 = vpack.c.b16 %v2706, %v2699
      %v3015 = vpack.c.b16 %v2707, %v2700
      %v3016 = vpack.c.b16 %v2708, %v2701
      %v3017 = vpack.c.b16 %v2709, %v2702
      %v3018 = vpack.c.b16 %v2710, %v2703
      %v3019 = vpack.c.b16 %v2718, %v2711
      %v3020 = vpack.c.b16 %v2719, %v2712
      %v3021 = vpack.c.b16 %v2720, %v2713
      %v3022 = vpack.c.b16 %v2721, %v2714
      %v3023 = vpack.c.b16 %v2722, %v2715
      %v3024 = vpack.c.b16 %v2723, %v2716
      %v3025 = vpack.c.b16 %v2724, %v2717
      %v3026 = vpack.c.b16 %v2732, %v2725
      %v3027 = vpack.c.b16 %v2733, %v2726
      %v3028 = vpack.c.b16 %v2734, %v2727
      %v3029 = vpack.c.b16 %v2735, %v2728
      %v3030 = vpack.c.b16 %v2736, %v2729
      %v3031 = vpack.c.b16 %v2737, %v2730
      %v3032 = vpack.c.b16 %v2738, %v2731
      %v3033 = vpack.c.b16 %v2746, %v2739
      %v3034 = vpack.c.b16 %v2747, %v2740
      %v3035 = vpack.c.b16 %v2748, %v2741
      %v3036 = vpack.c.b16 %v2749, %v2742
      %v3037 = vpack.c.b16 %v2750, %v2743
      %v3038 = vpack.c.b16 %v2751, %v2744
      %v3039 = vpack.c.b16 %v2752, %v2745
      %v3040 = vpack.c.b16 %v2760, %v2753
      %v3041 = vpack.c.b16 %v2761, %v2754
      %v3042 = vpack.c.b16 %v2762, %v2755
      %v3043 = vpack.c.b16 %v2763, %v2756
      %v3044 = vpack.c.b16 %v2764, %v2757
      %v3045 = vpack.c.b16 %v2765, %v2758
      %v3046 = vpack.c.b16 %v2766, %v2759
      %v3047 = vpack.c.b16 %v2774, %v2767
      %v3048 = vpack.c.b16 %v2775, %v2768
      %v3049 = vpack.c.b16 %v2776, %v2769
      %v3050 = vpack.c.b16 %v2777, %v2770
      %v3051 = vpack.c.b16 %v2778, %v2771
      %v3052 = vpack.c.b16 %v2779, %v2772
      %v3053 = vpack.c.b16 %v2780, %v2773
      %v3054 = vpack.c.b16 %v2788, %v2781
      %v3055 = vpack.c.b16 %v2789, %v2782
      %v3056 = vpack.c.b16 %v2790, %v2783
      %v3057 = vpack.c.b16 %v2791, %v2784
      %v3058 = vpack.c.b16 %v2792, %v2785
      %v3059 = vpack.c.b16 %v2793, %v2786
      %v3060 = vpack.c.b16 %v2794, %v2787
      %v3061 = vpack.c.b16 %v2802, %v2795
      %v3062 = vpack.c.b16 %v2803, %v2796
      %v3063 = vpack.c.b16 %v2804, %v2797
      %v3064 = vpack.c.b16 %v2805, %v2798
      %v3065 = vpack.c.b16 %v2806, %v2799
      %v3066 = vpack.c.b16 %v2807, %v2800
      %v3067 = vpack.c.b16 %v2808, %v2801
      %v3068 = vpack.c.b16 %v2816, %v2809
      %v3069 = vpack.c.b16 %v2817, %v2810
      %v3070 = vpack.c.b16 %v2818, %v2811
      %v3071 = vpack.c.b16 %v2819, %v2812
      %v3072 = vpack.c.b16 %v2820, %v2813
      %v3073 = vpack.c.b16 %v2821, %v2814
      %v3074 = vpack.c.b16 %v2822, %v2815
      %v3075 = vpack.c.b16 %v2830, %v2823
      %v3076 = vpack.c.b16 %v2831, %v2824
      %v3077 = vpack.c.b16 %v2832, %v2825
      %v3078 = vpack.c.b16 %v2833, %v2826
      %v3079 = vpack.c.b16 %v2834, %v2827
      %v3080 = vpack.c.b16 %v2835, %v2828
      %v3081 = vpack.c.b16 %v2836, %v2829
      %v3082 = vpack.c.b16 %v2844, %v2837
      %v3083 = vpack.c.b16 %v2845, %v2838
      %v3084 = vpack.c.b16 %v2846, %v2839
      %v3085 = vpack.c.b16 %v2847, %v2840
      %v3086 = vpack.c.b16 %v2848, %v2841
      %v3087 = vpack.c.b16 %v2849, %v2842
      %v3088 = vpack.c.b16 %v2850, %v2843
      %v3089 = vpack.c.b16 %v2858, %v2851
      %v3090 = vpack.c.b16 %v2859, %v2852
      %v3091 = vpack.c.b16 %v2860, %v2853
      %v3092 = vpack.c.b16 %v2861, %v2854
      %v3093 = vpack.c.b16 %v2862, %v2855
      %v3094 = vpack.c.b16 %v2863, %v2856
      %v3095 = vpack.c.b16 %v2864, %v2857
      %v3096 = vpack.c.b16 %v2872, %v2865
      %v3097 = vpack.c.b16 %v2873, %v2866
      %v3098 = vpack.c.b16 %v2874, %v2867
      %v3099 = vpack.c.b16 %v2875, %v2868
      %v3100 = vpack.c.b16 %v2876, %v2869
      %v3101 = vpack.c.b16 %v2877, %v2870
      %v3102 = vpack.c.b16 %v2878, %v2871
      %v3103 = vpack.c.b16 %v2886, %v2879
      %v3104 = vpack.c.b16 %v2887, %v2880
      %v3105 = vpack.c.b16 %v2888, %v2881
      %v3106 = vpack.c.b16 %v2889, %v2882
      %v3107 = vpack.c.b16 %v2890, %v2883
      %v3108 = vpack.c.b16 %v2891, %v2884
      %v3109 = vpack.c.b16 %v2892, %v2885
      %v3110 = vpack.c.b16 %v2900, %v2893
      %v3111 = vpack.c.b16 %v2901, %v2894
      %v3112 = vpack.c.b16 %v2902, %v2895
      %v3113 = vpack.c.b16 %v2903, %v2896
      %v3114 = vpack.c.b16 %v2904, %v2897
      %v3115 = vpack.c.b16 %v2905, %v2898
      %v3116 = vpack.c.b16 %v2906, %v2899
      %v3117 = vpack.c.b16 %v2914, %v2907
      %v3118 = vpack.c.b16 %v2915, %v2908
      %v3119 = vpack.c.b16 %v2916, %v2909
      %v3120 = vpack.c.b16 %v2917, %v2910
      %v3121 = vpack.c.b16 %v2918, %v2911
      %v3122 = vpack.c.b16 %v2919, %v2912
      %v3123 = vpack.c.b16 %v2920, %v2913
      %v3124 = vpack.c.b16 %v2928, %v2921
      %v3125 = vpack.c.b16 %v2929, %v2922
      %v3126 = vpack.c.b16 %v2930, %v2923
      %v3127 = vpack.c.b16 %v2931, %v2924
      %v3128 = vpack.c.b16 %v2932, %v2925
      %v3129 = vpack.c.b16 %v2933, %v2926
      %v3130 = vpack.c.b16 %v2934, %v2927
      %v3131 = vpack.c.b16 %v2942, %v2935
      %v3132 = vpack.c.b16 %v2943, %v2936
      %v3133 = vpack.c.b16 %v2944, %v2937
      %v3134 = vpack.c.b16 %v2945, %v2938
      %v3135 = vpack.c.b16 %v2946, %v2939
      %v3136 = vpack.c.b16 %v2947, %v2940
      %v3137 = vpack.c.b16 %v2948, %v2941
      %vm3327 = vcmask 392192
      %v3329 = vsel %vm3327, %v2351, 0
      %3331 = vmatprep.subr.bf16.mxu0 %v2999
      %3332 = vmatpush1.bf16.msra.mxu0 %v2998
      %3333 = vmatprep.subr.bf16.mxu0 %v2992
      %3334 = vmatpush1.bf16.msra.mxu0 %v2991
      %3335 = vmatprep.subr.bf16.mxu0 %v2985
      %3336 = vmatpush1.bf16.msra.mxu0 %v2984
      %3337 = vmatprep.subr.bf16.mxu0 %v2978
      %3338 = vmatpush1.bf16.msra.mxu0 %v2977
      %3339 = vmatprep.subr.bf16.mxu0 %v2971
      %3340 = vmatpush1.bf16.msra.mxu0 %v2970
      %3341 = vmatprep.subr.bf16.mxu0 %v2964
      %3342 = vmatpush1.bf16.msra.mxu0 %v2963
      %3343 = vmatprep.subr.bf16.mxu0 %v2957
      %3344 = vmatpush1.bf16.msra.mxu0 %v2956
      %3345 = vmatprep.subr.bf16.mxu0 %v2950
      %3346 = vmatpush1.bf16.msra.mxu0 %v2949
      %3347 = vmatprep.subr.bf16.mxu0 %v3055
      %3348 = vmatpush2.bf16.msra.mxu0 %v3054
      %3349 = vmatprep.subr.bf16.mxu0 %v3048
      %3350 = vmatpush2.bf16.msra.mxu0 %v3047
      %3351 = vmatprep.subr.bf16.mxu0 %v3041
      %3352 = vmatpush2.bf16.msra.mxu0 %v3040
      %3353 = vmatprep.subr.bf16.mxu0 %v3034
      %3354 = vmatpush2.bf16.msra.mxu0 %v3033
      %3355 = vmatprep.subr.bf16.mxu0 %v3027
      %3356 = vmatpush2.bf16.msra.mxu0 %v3026
      %3357 = vmatprep.subr.bf16.mxu0 %v3020
      %3358 = vmatpush2.bf16.msra.mxu0 %v3019
      %3359 = vmatprep.subr.bf16.mxu0 %v3013
      %3360 = vmatpush2.bf16.msra.mxu0 %v3012
      %3361 = vmatprep.subr.bf16.mxu0 %v3006
      %3362 = vmatpush2.bf16.msra.mxu0 %v3005
      %3363 = vmatprep.mubr.bf16.mxu0 %v2349
      %3364 = vmatmul.mubr.bf16.gmra.mxu0 %v2348
      %v3365 = vpop.f32.mrf.mxu0
      %v3366 = vadd.f32 %v2340, %v3365
      %v3367 = vpop.f32.mrf.mxu0
      %v3368 = vadd.f32 %v2340, %v3367
      %v3369 = vpop.f32.mrf.mxu0
      %v3370 = vpop.f32.mrf.mxu0
      %3371 = vdwg.mxu0
      %3372 = vmatprep.subr.bf16.mxu0 %v3111
      %3373 = vmatpush1.bf16.msra.mxu0 %v3110
      %3374 = vmatprep.subr.bf16.mxu0 %v3104
      %3375 = vmatpush1.bf16.msra.mxu0 %v3103
      %3376 = vmatprep.subr.bf16.mxu0 %v3097
      %3377 = vmatpush1.bf16.msra.mxu0 %v3096
      %3378 = vmatprep.subr.bf16.mxu0 %v3090
      %3379 = vmatpush1.bf16.msra.mxu0 %v3089
      %3380 = vmatprep.subr.bf16.mxu0 %v3083
      %3381 = vmatpush1.bf16.msra.mxu0 %v3082
      %3382 = vmatprep.subr.bf16.mxu0 %v3076
      %3383 = vmatpush1.bf16.msra.mxu0 %v3075
      %3384 = vmatprep.subr.bf16.mxu0 %v3069
      %3385 = vmatpush1.bf16.msra.mxu0 %v3068
      %3386 = vmatprep.subr.bf16.mxu0 %v3062
      %3387 = vmatpush1.bf16.msra.mxu0 %v3061
      %3388 = vmatprep.subr.bf16.mxu0 0
      %3389 = vmatpush2.bf16.msra.mxu0 0
      %3390 = vmatprep.subr.bf16.mxu0 0
      %3391 = vmatpush2.bf16.msra.mxu0 0
      %3392 = vmatprep.subr.bf16.mxu0 0
      %3393 = vmatpush2.bf16.msra.mxu0 0
      %3394 = vmatprep.subr.bf16.mxu0 0
      %3395 = vmatpush2.bf16.msra.mxu0 0
      %3396 = vmatprep.subr.bf16.mxu0 0
      %3397 = vmatpush2.bf16.msra.mxu0 0
      %3398 = vmatprep.subr.bf16.mxu0 %v3132
      %3399 = vmatpush2.bf16.msra.mxu0 %v3131
      %3400 = vmatprep.subr.bf16.mxu0 %v3125
      %3401 = vmatpush2.bf16.msra.mxu0 %v3124
      %3402 = vmatprep.subr.bf16.mxu0 %v3118
      %3403 = vmatpush2.bf16.msra.mxu0 %v3117
      %3404 = vmatprep.mubr.bf16.mxu0 %v3329
      %3405 = vmatmul.mubr.bf16.gmra.mxu0 %v2350
      %v3406 = vpop.f32.mrf.mxu0
      %v3407 = vadd.f32 %v3366, %v3406
      %v3408 = vpop.f32.mrf.mxu0
      %v3409 = vadd.f32 %v3368, %v3408
      %v3410 = vpop.f32.mrf.mxu0
      %v3411 = vpop.f32.mrf.mxu0
      %3412 = vdwg.mxu0
      %3413 = vmatprep.subr.bf16.mxu0 %v3001
      %3414 = vmatpush1.bf16.msra.mxu0 %v3000
      %3415 = vmatprep.subr.bf16.mxu0 %v2994
      %3416 = vmatpush1.bf16.msra.mxu0 %v2993
      %3417 = vmatprep.subr.bf16.mxu0 %v2987
      %3418 = vmatpush1.bf16.msra.mxu0 %v2986
      %3419 = vmatprep.subr.bf16.mxu0 %v2980
      %3420 = vmatpush1.bf16.msra.mxu0 %v2979
      %3421 = vmatprep.subr.bf16.mxu0 %v2973
      %3422 = vmatpush1.bf16.msra.mxu0 %v2972
      %3423 = vmatprep.subr.bf16.mxu0 %v2966
      %3424 = vmatpush1.bf16.msra.mxu0 %v2965
      %3425 = vmatprep.subr.bf16.mxu0 %v2959
      %3426 = vmatpush1.bf16.msra.mxu0 %v2958
      %3427 = vmatprep.subr.bf16.mxu0 %v2952
      %3428 = vmatpush1.bf16.msra.mxu0 %v2951
      %3429 = vmatprep.subr.bf16.mxu0 %v3057
      %3430 = vmatpush2.bf16.msra.mxu0 %v3056
      %3431 = vmatprep.subr.bf16.mxu0 %v3050
      %3432 = vmatpush2.bf16.msra.mxu0 %v3049
      %3433 = vmatprep.subr.bf16.mxu0 %v3043
      %3434 = vmatpush2.bf16.msra.mxu0 %v3042
      %3435 = vmatprep.subr.bf16.mxu0 %v3036
      %3436 = vmatpush2.bf16.msra.mxu0 %v3035
      %3437 = vmatprep.subr.bf16.mxu0 %v3029
      %3438 = vmatpush2.bf16.msra.mxu0 %v3028
      %3439 = vmatprep.subr.bf16.mxu0 %v3022
      %3440 = vmatpush2.bf16.msra.mxu0 %v3021
      %3441 = vmatprep.subr.bf16.mxu0 %v3015
      %3442 = vmatpush2.bf16.msra.mxu0 %v3014
      %3443 = vmatprep.subr.bf16.mxu0 %v3008
      %3444 = vmatpush2.bf16.msra.mxu0 %v3007
      %3445 = vmatprep.mubr.bf16.mxu0 %v2349
      %3446 = vmatmul.mubr.bf16.gmra.mxu0 %v2348
      %v3447 = vpop.f32.mrf.mxu0
      %v3448 = vadd.f32 %v2340, %v3447
      %v3449 = vpop.f32.mrf.mxu0
      %v3450 = vadd.f32 %v2340, %v3449
      %v3451 = vpop.f32.mrf.mxu0
      %v3452 = vpop.f32.mrf.mxu0
      %3453 = vdwg.mxu0
      %3454 = vmatprep.subr.bf16.mxu0 %v3113
      %3455 = vmatpush1.bf16.msra.mxu0 %v3112
      %3456 = vmatprep.subr.bf16.mxu0 %v3106
      %3457 = vmatpush1.bf16.msra.mxu0 %v3105
      %3458 = vmatprep.subr.bf16.mxu0 %v3099
      %3459 = vmatpush1.bf16.msra.mxu0 %v3098
      %3460 = vmatprep.subr.bf16.mxu0 %v3092
      %3461 = vmatpush1.bf16.msra.mxu0 %v3091
      %3462 = vmatprep.subr.bf16.mxu0 %v3085
      %3463 = vmatpush1.bf16.msra.mxu0 %v3084
      %3464 = vmatprep.subr.bf16.mxu0 %v3078
      %3465 = vmatpush1.bf16.msra.mxu0 %v3077
      %3466 = vmatprep.subr.bf16.mxu0 %v3071
      %3467 = vmatpush1.bf16.msra.mxu0 %v3070
      %3468 = vmatprep.subr.bf16.mxu0 %v3064
      %3469 = vmatpush1.bf16.msra.mxu0 %v3063
      %3470 = vmatprep.subr.bf16.mxu0 0
      %3471 = vmatpush2.bf16.msra.mxu0 0
      %3472 = vmatprep.subr.bf16.mxu0 0
      %3473 = vmatpush2.bf16.msra.mxu0 0
      %3474 = vmatprep.subr.bf16.mxu0 0
      %3475 = vmatpush2.bf16.msra.mxu0 0
      %3476 = vmatprep.subr.bf16.mxu0 0
      %3477 = vmatpush2.bf16.msra.mxu0 0
      %3478 = vmatprep.subr.bf16.mxu0 0
      %3479 = vmatpush2.bf16.msra.mxu0 0
      %3480 = vmatprep.subr.bf16.mxu0 %v3134
      %3481 = vmatpush2.bf16.msra.mxu0 %v3133
      %3482 = vmatprep.subr.bf16.mxu0 %v3127
      %3483 = vmatpush2.bf16.msra.mxu0 %v3126
      %3484 = vmatprep.subr.bf16.mxu0 %v3120
      %3485 = vmatpush2.bf16.msra.mxu0 %v3119
      %3486 = vmatprep.mubr.bf16.mxu0 %v3329
      %3487 = vmatmul.mubr.bf16.gmra.mxu0 %v2350
      %v3488 = vpop.f32.mrf.mxu0
      %v3489 = vadd.f32 %v3448, %v3488
      %v3490 = vpop.f32.mrf.mxu0
      %v3491 = vadd.f32 %v3450, %v3490
      %v3492 = vpop.f32.mrf.mxu0
      %v3493 = vpop.f32.mrf.mxu0
      %3494 = vdwg.mxu0
      %3495 = vmatprep.subr.bf16.mxu0 %v3003
      %3496 = vmatpush1.bf16.msra.mxu0 %v3002
      %3497 = vmatprep.subr.bf16.mxu0 %v2996
      %3498 = vmatpush1.bf16.msra.mxu0 %v2995
      %3499 = vmatprep.subr.bf16.mxu0 %v2989
      %3500 = vmatpush1.bf16.msra.mxu0 %v2988
      %3501 = vmatprep.subr.bf16.mxu0 %v2982
      %3502 = vmatpush1.bf16.msra.mxu0 %v2981
      %3503 = vmatprep.subr.bf16.mxu0 %v2975
      %3504 = vmatpush1.bf16.msra.mxu0 %v2974
      %3505 = vmatprep.subr.bf16.mxu0 %v2968
      %3506 = vmatpush1.bf16.msra.mxu0 %v2967
      %3507 = vmatprep.subr.bf16.mxu0 %v2961
      %3508 = vmatpush1.bf16.msra.mxu0 %v2960
      %3509 = vmatprep.subr.bf16.mxu0 %v2954
      %3510 = vmatpush1.bf16.msra.mxu0 %v2953
      %3511 = vmatprep.subr.bf16.mxu0 %v3059
      %3512 = vmatpush2.bf16.msra.mxu0 %v3058
      %3513 = vmatprep.subr.bf16.mxu0 %v3052
      %3514 = vmatpush2.bf16.msra.mxu0 %v3051
      %3515 = vmatprep.subr.bf16.mxu0 %v3045
      %3516 = vmatpush2.bf16.msra.mxu0 %v3044
      %3517 = vmatprep.subr.bf16.mxu0 %v3038
      %3518 = vmatpush2.bf16.msra.mxu0 %v3037
      %3519 = vmatprep.subr.bf16.mxu0 %v3031
      %3520 = vmatpush2.bf16.msra.mxu0 %v3030
      %3521 = vmatprep.subr.bf16.mxu0 %v3024
      %3522 = vmatpush2.bf16.msra.mxu0 %v3023
      %3523 = vmatprep.subr.bf16.mxu0 %v3017
      %3524 = vmatpush2.bf16.msra.mxu0 %v3016
      %3525 = vmatprep.subr.bf16.mxu0 %v3010
      %3526 = vmatpush2.bf16.msra.mxu0 %v3009
      %3527 = vmatprep.mubr.bf16.mxu0 %v2349
      %3528 = vmatmul.mubr.bf16.gmra.mxu0 %v2348
      %v3529 = vpop.f32.mrf.mxu0
      %v3530 = vadd.f32 %v2340, %v3529
      %v3531 = vpop.f32.mrf.mxu0
      %v3532 = vadd.f32 %v2340, %v3531
      %v3533 = vpop.f32.mrf.mxu0
      %v3534 = vpop.f32.mrf.mxu0
      %3535 = vdwg.mxu0
      %3536 = vmatprep.subr.bf16.mxu0 %v3115
      %3537 = vmatpush1.bf16.msra.mxu0 %v3114
      %3538 = vmatprep.subr.bf16.mxu0 %v3108
      %3539 = vmatpush1.bf16.msra.mxu0 %v3107
      %3540 = vmatprep.subr.bf16.mxu0 %v3101
      %3541 = vmatpush1.bf16.msra.mxu0 %v3100
      %3542 = vmatprep.subr.bf16.mxu0 %v3094
      %3543 = vmatpush1.bf16.msra.mxu0 %v3093
      %3544 = vmatprep.subr.bf16.mxu0 %v3087
      %3545 = vmatpush1.bf16.msra.mxu0 %v3086
      %3546 = vmatprep.subr.bf16.mxu0 %v3080
      %3547 = vmatpush1.bf16.msra.mxu0 %v3079
      %3548 = vmatprep.subr.bf16.mxu0 %v3073
      %3549 = vmatpush1.bf16.msra.mxu0 %v3072
      %3550 = vmatprep.subr.bf16.mxu0 %v3066
      %3551 = vmatpush1.bf16.msra.mxu0 %v3065
      %3552 = vmatprep.subr.bf16.mxu0 0
      %3553 = vmatpush2.bf16.msra.mxu0 0
      %3554 = vmatprep.subr.bf16.mxu0 0
      %3555 = vmatpush2.bf16.msra.mxu0 0
      %3556 = vmatprep.subr.bf16.mxu0 0
      %3557 = vmatpush2.bf16.msra.mxu0 0
      %3558 = vmatprep.subr.bf16.mxu0 0
      %3559 = vmatpush2.bf16.msra.mxu0 0
      %3560 = vmatprep.subr.bf16.mxu0 0
      %3561 = vmatpush2.bf16.msra.mxu0 0
      %3562 = vmatprep.subr.bf16.mxu0 %v3136
      %3563 = vmatpush2.bf16.msra.mxu0 %v3135
      %3564 = vmatprep.subr.bf16.mxu0 %v3129
      %3565 = vmatpush2.bf16.msra.mxu0 %v3128
      %3566 = vmatprep.subr.bf16.mxu0 %v3122
      %3567 = vmatpush2.bf16.msra.mxu0 %v3121
      %3568 = vmatprep.mubr.bf16.mxu0 %v3329
      %3569 = vmatmul.mubr.bf16.gmra.mxu0 %v2350
      %v3570 = vpop.f32.mrf.mxu0
      %v3571 = vadd.f32 %v3530, %v3570
      %v3572 = vpop.f32.mrf.mxu0
      %v3573 = vadd.f32 %v3532, %v3572
      %v3574 = vpop.f32.mrf.mxu0
      %v3575 = vpop.f32.mrf.mxu0
      %3576 = vdwg.mxu0
      %3577 = vmatprep.subr.bf16.mxu0 0
      %3578 = vmatpush1.bf16.msra.mxu0 %v3004
      %3579 = vmatprep.subr.bf16.mxu0 0
      %3580 = vmatpush1.bf16.msra.mxu0 %v2997
      %3581 = vmatprep.subr.bf16.mxu0 0
      %3582 = vmatpush1.bf16.msra.mxu0 %v2990
      %3583 = vmatprep.subr.bf16.mxu0 0
      %3584 = vmatpush1.bf16.msra.mxu0 %v2983
      %3585 = vmatprep.subr.bf16.mxu0 0
      %3586 = vmatpush1.bf16.msra.mxu0 %v2976
      %3587 = vmatprep.subr.bf16.mxu0 0
      %3588 = vmatpush1.bf16.msra.mxu0 %v2969
      %3589 = vmatprep.subr.bf16.mxu0 0
      %3590 = vmatpush1.bf16.msra.mxu0 %v2962
      %3591 = vmatprep.subr.bf16.mxu0 0
      %3592 = vmatpush1.bf16.msra.mxu0 %v2955
      %3593 = vmatprep.subr.bf16.mxu0 0
      %3594 = vmatpush2.bf16.msra.mxu0 %v3060
      %3595 = vmatprep.subr.bf16.mxu0 0
      %3596 = vmatpush2.bf16.msra.mxu0 %v3053
      %3597 = vmatprep.subr.bf16.mxu0 0
      %3598 = vmatpush2.bf16.msra.mxu0 %v3046
      %3599 = vmatprep.subr.bf16.mxu0 0
      %3600 = vmatpush2.bf16.msra.mxu0 %v3039
      %3601 = vmatprep.subr.bf16.mxu0 0
      %3602 = vmatpush2.bf16.msra.mxu0 %v3032
      %3603 = vmatprep.subr.bf16.mxu0 0
      %3604 = vmatpush2.bf16.msra.mxu0 %v3025
      %3605 = vmatprep.subr.bf16.mxu0 0
      %3606 = vmatpush2.bf16.msra.mxu0 %v3018
      %3607 = vmatprep.subr.bf16.mxu0 0
      %3608 = vmatpush2.bf16.msra.mxu0 %v3011
      %3609 = vmatprep.mubr.bf16.mxu0 %v2349
      %3610 = vmatmul.mubr.bf16.gmra.mxu0 %v2348
      %v3611 = vpop.f32.mrf.mxu0
      %v3612 = vadd.f32 %v2340, %v3611
      %v3613 = vpop.f32.mrf.mxu0
      %v3614 = vpop.f32.mrf.mxu0
      %v3615 = vpop.f32.mrf.mxu0
      %3616 = vdwg.mxu0
      %3617 = vmatprep.subr.bf16.mxu0 0
      %3618 = vmatpush1.bf16.msra.mxu0 %v3116
      %3619 = vmatprep.subr.bf16.mxu0 0
      %3620 = vmatpush1.bf16.msra.mxu0 %v3109
      %3621 = vmatprep.subr.bf16.mxu0 0
      %3622 = vmatpush1.bf16.msra.mxu0 %v3102
      %3623 = vmatprep.subr.bf16.mxu0 0
      %3624 = vmatpush1.bf16.msra.mxu0 %v3095
      %3625 = vmatprep.subr.bf16.mxu0 0
      %3626 = vmatpush1.bf16.msra.mxu0 %v3088
      %3627 = vmatprep.subr.bf16.mxu0 0
      %3628 = vmatpush1.bf16.msra.mxu0 %v3081
      %3629 = vmatprep.subr.bf16.mxu0 0
      %3630 = vmatpush1.bf16.msra.mxu0 %v3074
      %3631 = vmatprep.subr.bf16.mxu0 0
      %3632 = vmatpush1.bf16.msra.mxu0 %v3067
      %3633 = vmatprep.subr.bf16.mxu0 0
      %3634 = vmatpush2.bf16.msra.mxu0 0
      %3635 = vmatprep.subr.bf16.mxu0 0
      %3636 = vmatpush2.bf16.msra.mxu0 0
      %3637 = vmatprep.subr.bf16.mxu0 0
      %3638 = vmatpush2.bf16.msra.mxu0 0
      %3639 = vmatprep.subr.bf16.mxu0 0
      %3640 = vmatpush2.bf16.msra.mxu0 0
      %3641 = vmatprep.subr.bf16.mxu0 0
      %3642 = vmatpush2.bf16.msra.mxu0 0
      %3643 = vmatprep.subr.bf16.mxu0 0
      %3644 = vmatpush2.bf16.msra.mxu0 %v3137
      %3645 = vmatprep.subr.bf16.mxu0 0
      %3646 = vmatpush2.bf16.msra.mxu0 %v3130
      %3647 = vmatprep.subr.bf16.mxu0 0
      %3648 = vmatpush2.bf16.msra.mxu0 %v3123
      %3649 = vmatprep.mubr.bf16.mxu0 %v3329
      %3650 = vmatmul.mubr.bf16.gmra.mxu0 %v2350
      %v3651 = vpop.f32.mrf.mxu0
      %v3652 = vadd.f32 %v3612, %v3651
      %v3653 = vpop.f32.mrf.mxu0
      %v3654 = vpop.f32.mrf.mxu0
      %v3655 = vpop.f32.mrf.mxu0
      %3656 = vdwg.mxu0
      %v3657 = vld [vmem:[%s6] sm:$0x7f]
      %v3659 = vlaneseq
      %v3660 = vshrl.u32 %v3659, 7
      %v3661 = vsub.s32 0, %v3660
      %v3662 = vrot.slane %v3657, %v3661
      %v3663 = vlaneseq
      %v3664 = vshrl.u32 %v3663, 7
      %v3665 = vsub.s32 1, %v3664
      %v3666 = vrot.slane %v3657, %v3665
      %v3667 = vlaneseq
      %v3668 = vshrl.u32 %v3667, 7
      %v3669 = vsub.s32 2, %v3668
      %v3670 = vrot.slane %v3657, %v3669
      %v3671 = vlaneseq
      %v3672 = vshrl.u32 %v3671, 7
      %v3673 = vsub.s32 3, %v3672
      %v3674 = vrot.slane %v3657, %v3673
      %v3675 = vlaneseq
      %v3676 = vshrl.u32 %v3675, 7
      %v3677 = vsub.s32 4, %v3676
      %v3678 = vrot.slane %v3657, %v3677
      %v3679 = vlaneseq
      %v3680 = vshrl.u32 %v3679, 7
      %v3681 = vsub.s32 5, %v3680
      %v3682 = vrot.slane %v3657, %v3681
      %v3683 = vlaneseq
      %v3684 = vshrl.u32 %v3683, 7
      %v3685 = vsub.s32 6, %v3684
      %v3686 = vrot.slane %v3657, %v3685
      %v3694 = vmul.f32 %v3407, %v3662
      %v3695 = vmul.f32 %v3409, %v3666
      %v3696 = vmul.f32 %v3489, %v3670
      %v3697 = vmul.f32 %v3491, %v3674
      %v3698 = vmul.f32 %v3571, %v3678
      %v3699 = vmul.f32 %v3573, %v3682
      %v3700 = vmul.f32 %v3652, %v3686
      %v3701 = vadd.f32 %v3694, %v3695
      %v3702 = vadd.f32 %v3701, %v3696
      %v3703 = vadd.f32 %v3702, %v3697
      %v3704 = vadd.f32 %v3703, %v3698
      %v3705 = vadd.f32 %v3704, %v3699
      %vm3706 = vcmask 80896
      %v3707 = vsel %vm3706, %v3700, 0.0
      %v3708 = vadd.f32 %v3705, %v3707
      %3709 = vadd.xlane.f32.xlu0 %v3708
      %v3710 = vpop.xlane.xlu0 %3709
      %v3711 = vmul.f32 %v3710, 0.001953125
      %v3712 = vsub.f32 %v3407, %v3711
      %v3713 = vsub.f32 %v3409, %v3711
      %v3714 = vsub.f32 %v3489, %v3711
      %v3715 = vsub.f32 %v3491, %v3711
      %v3716 = vsub.f32 %v3571, %v3711
      %v3717 = vsub.f32 %v3573, %v3711
      %v3718 = vsub.f32 %v3652, %v3711
      %v3719 = vmul.f32 %v3712, %v3712
      %v3720 = vmul.f32 %v3713, %v3713
      %v3721 = vmul.f32 %v3714, %v3714
      %v3722 = vmul.f32 %v3715, %v3715
      %v3723 = vmul.f32 %v3716, %v3716
      %v3724 = vmul.f32 %v3717, %v3717
      %v3725 = vmul.f32 %v3718, %v3718
      %v3726 = vmul.f32 %v3719, %v3662
      %v3727 = vmul.f32 %v3720, %v3666
      %v3728 = vmul.f32 %v3721, %v3670
      %v3729 = vmul.f32 %v3722, %v3674
      %v3730 = vmul.f32 %v3723, %v3678
      %v3731 = vmul.f32 %v3724, %v3682
      %v3732 = vmul.f32 %v3725, %v3686
      %v3733 = vadd.f32 %v3726, %v3727
      %v3734 = vadd.f32 %v3733, %v3728
      %v3735 = vadd.f32 %v3734, %v3729
      %v3736 = vadd.f32 %v3735, %v3730
      %v3737 = vadd.f32 %v3736, %v3731
      %v3738 = vsel %vm3706, %v3732, 0.0
      %v3739 = vadd.f32 %v3737, %v3738
      %3740 = vadd.xlane.f32.xlu0 %v3739
      %v3741 = vpop.xlane.xlu0 %3740
      %v3742 = vmul.f32 %v3741, 0.001953125
      %v3743 = vadd.f32 %v3742, 1e-05
      %v3744 = vrsqrt.pop %v3743
      %v3745 = vmul.f32 %v3712, %v3744
      %v3746 = vmul.f32 %v3713, %v3744
      %v3747 = vmul.f32 %v3714, %v3744
      %v3748 = vmul.f32 %v3715, %v3744
      %v3749 = vmul.f32 %v3716, %v3744
      %v3750 = vmul.f32 %v3717, %v3744
      %v3751 = vmul.f32 %v3718, %v3744
      %v3752 = vld [vmem:[%s4] sm:$0xff]
      %3754 = vset.pattern.permute.xlu0 0
      %3755 = vperm.xlu0 %3754, %v3752
      %v3756 = vpop.permute.xlu0 %3755
      %v3758 = vmul.f32 %v3745, %v3756
      %v3759 = vmul.f32 %v3746, %v3756
      %v3760 = vmul.f32 %v3747, %v3756
      %v3761 = vmul.f32 %v3748, %v3756
      %v3762 = vmul.f32 %v3749, %v3756
      %v3763 = vmul.f32 %v3750, %v3756
      %v3764 = vmul.f32 %v3751, %v3756
      %v3765 = vld [vmem:[%s5] sm:$0xff]
      %3767 = vset.pattern.permute.xlu0 0
      %3768 = vperm.xlu0 %3767, %v3765
      %v3769 = vpop.permute.xlu0 %3768
      %v3771 = vadd.f32 %v3758, %v3769
      %v3772 = vadd.f32 %v3759, %v3769
      %v3773 = vadd.f32 %v3760, %v3769
      %v3774 = vadd.f32 %v3761, %v3769
      %v3775 = vadd.f32 %v3762, %v3769
      %v3776 = vadd.f32 %v3763, %v3769
      %v3777 = vadd.f32 %v3764, %v3769
      %v3778 = vmax.f32 %v3771, 0.0
      %v3779 = vmax.f32 %v3772, 0.0
      %v3780 = vmax.f32 %v3773, 0.0
      %v3781 = vmax.f32 %v3774, 0.0
      %v3782 = vmax.f32 %v3775, 0.0
      %v3783 = vmax.f32 %v3776, 0.0
      %v3784 = vmax.f32 %v3777, 0.0
      %v3785 = vmul.f32 %v3778, %v3662
      %v3786 = vmul.f32 %v3779, %v3666
      %v3787 = vmul.f32 %v3780, %v3670
      %v3788 = vmul.f32 %v3781, %v3674
      %v3789 = vmul.f32 %v3782, %v3678
      %v3790 = vmul.f32 %v3783, %v3682
      %v3791 = vmul.f32 %v3784, %v3686
      %vm3792 = vcmask 904192
      %3793 = vst.msk [vmem:[%s298] sm:$0xf] %vm3792, 0
      %v3794 = vpack.c.bf16 %v3785, %v3785
      %v3795 = vpack.c.bf16 %v3786, %v3786
      %v3796 = vpack.c.bf16 %v3787, %v3787
      %v3797 = vpack.c.bf16 %v3788, %v3788
      %v3798 = vpack.c.bf16 %v3789, %v3789
      %v3799 = vpack.c.bf16 %v3790, %v3790
      %v3800 = vpack.c.bf16 %v3791, %v3791
      %v3808 = vunpack.c.l.b16 %v3794
      %v3809 = vunpack.c.l.b16 %v3795
      %v3810 = vunpack.c.l.b16 %v3796
      %v3811 = vunpack.c.l.b16 %v3797
      %v3812 = vunpack.c.l.b16 %v3798
      %v3813 = vunpack.c.l.b16 %v3799
      %v3814 = vunpack.c.l.b16 %v3800
      %v3815 = vpack.c.b16 %v3809, %v3808
      %v3816 = vpack.c.b16 %v3811, %v3810
      %v3817 = vpack.c.b16 %v3813, %v3812
      %v3818 = vpack.c.b16 %v3814, %v3814
      %3819 = vrot.lane.b32.xlu0 %v3815, 111
      %v3820 = vpop.permute.xlu0 %3819
      %3821 = vrot.lane.b32.xlu0 %v3816, 111
      %v3822 = vpop.permute.xlu0 %3821
      %3823 = vrot.lane.b32.xlu0 %v3817, 111
      %v3824 = vpop.permute.xlu0 %3823
      %3825 = vrot.lane.b32.xlu0 %v3818, 111
      %v3826 = vpop.permute.xlu0 %3825
      %v3827 = vrot.slane %v3820, 4
      %v3828 = vrot.slane %v3822, 4
      %v3829 = vrot.slane %v3824, 4
      %vm3830 = vcmask 908288
      %v3831 = vsel %vm3830, %v3827, %v3820
      %v3832 = vsel %vm337, %v3827, %v3828
      %v3833 = vsel %vm3830, %v3832, %v3822
      %v3834 = vsel %vm337, %v3828, %v3829
      %v3835 = vsel %vm3830, %v3834, %v3824
      %v3836 = vsel %vm3830, %v3829, %v3826
      %vm3841 = vcmask 1044344
      %vm3842 = vcmask 1047556
      %vm3843 = vmor %vm3842, %vm3841
      %3844 = vst.msk [vmem:[%s298] sm:$0xff] %vm3843, %v3831
      %3845 = vst [vmem:[%s298 + $0x8] sm:$0xff] %v3833
      %3846 = vst [vmem:[%s298 + $0x10] sm:$0xff] %v3835
      %vm3847 = vcmask 986112
      %3848 = vst.msk [vmem:[%s298 + $0x18] sm:$0xf] %vm3847, %v3836
      %vm3849 = vcmask 1044424
      %vm3850 = vcmask 850948
      %vm3851 = vmor %vm3850, %vm3849
      %3852 = vst.msk [vmem:[%s298 + $0x18] sm:$0xff] %vm3851, 0
      %p3853 = scmp.lt.s32.totalorder %s18, 1
      %s3854 = scalar_select %p3853, %s18, 1
      %s3855 = smul.addr %s3854, 8
      %s3856 = smul.addr %s3855, 4
      %s3857 = scalar_lea.vmem %s7, %s3856
      // Predicated region
      $region49: #{up_forward.2} parent=47 // pred_check
        %p3858 = pneg %p193
      $region50: #{up_forward.2} parent=47 // pred_check_branch
        %3860 = sbr.rel (%p3858) target = $region52
      $region51: #{up_forward.2} parent=47 // pred_region
        _
      $region52: #{up_forward.2} parent=47 // pred_fallthru
        _
    $region48: #{up_forward.2} parent=5 // pred_fallthru
      _
    %p3861 = scmp.le.s32.totalorder 2, %s13
    // Predicated region
    $region53: #{up_forward.2} parent=5 // pred_check
      %p3862 = pneg %p3861
    $region54: #{up_forward.2} parent=5 // pred_check_branch
      %3864 = sbr.rel (%p3862) target = $region56
    $region55: #{up_forward.2} parent=5 // pred_region
      %s3865 = ssub.s32 %s13, 2
      // Predicated region
      $region57: #{up_forward.2} parent=55 // pred_check
        %p3866 = pneg %p199
      $region58: #{up_forward.2} parent=55 // pred_check_branch
        %3868 = sbr.rel (%p3866) target = $region60
      $region59: #{up_forward.2} parent=55 // pred_region
        %p3869 = scmp.lt.s32.totalorder %s19, 1
        %s3870 = scalar_select %p3869, %s19, 1
        %s3871 = smul.addr %s3870, 8
        %s3872 = smul.addr %s3871, 4
        %s3873 = scalar_lea.vmem %s7, %s3872
      $region60: #{up_forward.2} parent=55 // pred_fallthru
        _
    $region56: #{up_forward.2} parent=5 // pred_fallthru
      _
  $region6: #{up_forward.2} parent=0 // loop_footer
    %s17 = sadd.s32 1, %s13
  $region7: #{up_forward.2} parent=0 // loop_footer_branch
    %12 = sbr.rel target = $region3
  $region8: #{up_forward.2} parent=0 // loop_exit
    _

</llo_original>
